<compile_context>
chip_gen: v7x
topology: tpu7x:2x2x1
jax: 0.10.0
libtpu: 0.0.40
codegen_flags: <defaults>
</compile_context>

<pallas_src>
import functools
import numpy as np
import jax
import jax.numpy as jnp
from jax import lax
from jax.experimental import pallas as pl
from jax.experimental.pallas import tpu as pltpu

B = 2          # batch ("bs" of the module)
C = 19         # logits classes
H = W = 128
UNITS = 100    # fc1 hidden units
IGNORE = 255

HO1, WO1 = 64, 64      # after conv1 (k3, stride 2, pad 1)
HMP, WMP = 32, 32      # after max_pool2d([2, 2])
HO2, WO2 = 16, 16      # after conv2 (k3, stride 2, pad 1)
HAP, WAP = 4, 4        # after AvgPool2d(7, stride=3)
FEAT = B * HAP * WAP   # fc1 in_features (flatten over batch too, like torch .flatten())

TH = 32                # CE row-tile height
NT = H // TH           # CE tiles per sample -> grid (B, NT) = (2, 4)


# --------------------------------------------------------------------------
# Parameter / selection-matrix setup (plain numpy glue, done once).
# --------------------------------------------------------------------------
def _conv1_matrices(w1):
    """conv1 (19->1, k3, s2, p1) on the (C*H, W) layout:
         out = sum_dx A1[dx] @ x_r @ Col1[dx]
       with the (c, dy) weights folded into A1 (rows concatenated over dx)."""
    w = np.asarray(w1).reshape(C, 3, 3)
    A = np.zeros((3, HO1, C * H), np.float32)
    Col = np.zeros((3, W, WO1), np.float32)
    for dx in range(3):
        for y in range(HO1):
            for dy in range(3):
                h = 2 * y + dy - 1
                if 0 <= h < H:
                    A[dx, y, np.arange(C) * H + h] = w[:, dy, dx]
        for x in range(WO1):
            wcol = 2 * x + dx - 1
            if 0 <= wcol < W:
                Col[dx, wcol, x] = 1.0
    return (jnp.asarray(A.reshape(3 * HO1, C * H), dtype=jnp.bfloat16),
            jnp.asarray(Col, dtype=jnp.bfloat16))


def _conv2_matrices(w2):
    """conv2 (1->1, k3, s2, p1): out = sum_dx A2[dx] @ x @ Col2[dx]."""
    w = np.asarray(w2).reshape(3, 3)
    A = np.zeros((3, HO2, HMP), np.float32)
    Col = np.zeros((3, WMP, WO2), np.float32)
    for dx in range(3):
        for y in range(HO2):
            for dy in range(3):
                h = 2 * y + dy - 1
                if 0 <= h < HMP:
                    A[dx, y, h] = w[dy, dx]
        for x in range(WO2):
            wcol = 2 * x + dx - 1
            if 0 <= wcol < WMP:
                Col[dx, wcol, x] = 1.0
    return (jnp.asarray(A.reshape(3 * HO2, HMP), dtype=jnp.bfloat16),
            jnp.asarray(Col, dtype=jnp.bfloat16))


def _pool_matrices():
    # Stacked even/odd row selector (2*HMP, HO1) and column-concatenated even/odd
    # column selector (WO1, 2*WMP): maxpool 2x2 = 2 matmuls + max over quadrants.
    Rmp = np.zeros((2 * HMP, HO1), np.float32)
    for i in range(HMP):
        Rmp[i, 2 * i] = 1.0              # even rows -> block 0
        Rmp[HMP + i, 2 * i + 1] = 1.0    # odd rows  -> block 1
    Cmp = np.zeros((WO1, 2 * WMP), np.float32)
    for j in range(WMP):
        Cmp[2 * j, j] = 1.0              # even cols -> block 0
        Cmp[2 * j + 1, WMP + j] = 1.0    # odd cols  -> block 1
    # AvgPool2d(7, stride=3): separable box SUM (entries exactly 1.0), the 1/49
    # scale is applied once on the final (4,4) output inside the kernel.
    Av = np.zeros((HAP, HO2), np.float32)
    for i in range(HAP):
        Av[i, 3 * i:3 * i + 7] = 1.0
    return (jnp.asarray(Rmp, dtype=jnp.bfloat16), jnp.asarray(Cmp, dtype=jnp.bfloat16),
            jnp.asarray(Av, dtype=jnp.float32), jnp.asarray(Av.T, dtype=jnp.float32))


def init_params(key):
    ks = jax.random.split(key, 6)
    w1 = jax.random.normal(ks[0], (1, C, 3, 3), jnp.float32) * 0.1    # conv1.weight
    w2 = jax.random.normal(ks[1], (1, 1, 3, 3), jnp.float32) * 0.2    # conv2.weight
    fc1_w = jax.random.normal(ks[2], (UNITS, FEAT), jnp.float32) * 0.05
    fc1_b = jax.random.normal(ks[3], (UNITS,), jnp.float32) * 0.05
    fc2_w = jax.random.normal(ks[4], (B, UNITS), jnp.float32) * 0.05
    fc2_b = jax.random.normal(ks[5], (B,), jnp.float32) * 0.05
    A1, Col1 = _conv1_matrices(w1)
    A2, Col2 = _conv2_matrices(w2)
    Rmp, Cmp, Av, AvT = _pool_matrices()
    return dict(w1=w1, w2=w2, fc1_w=fc1_w, fc1_b=fc1_b, fc2_w=fc2_w, fc2_b=fc2_b,
                A1=A1, Col1=Col1, A2=A2, Col2=Col2,
                Rmp=Rmp, Cmp=Cmp, Av=Av, AvT=AvT,
                fc1_wt=fc1_w.T, fc1_b2=fc1_b.reshape(1, UNITS),
                fc2_wt=fc2_w.T, fc2_b2=fc2_b.reshape(1, B))


# --------------------------------------------------------------------------
# Kernel 1: conv1 -> relu -> maxpool2x2 -> conv2 -> relu -> avgpool(7,3)
# One grid step per sample; consumes the free (C*H, W) reshape of NCHW, all
# downsampling expressed as MXU matmuls, run in bf16 (f32 accumulation).
# --------------------------------------------------------------------------
def _head_kernel(x_ref, a1_ref, col1_ref, rmp_ref, cmp_ref, a2_ref, col2_ref,
                 av_ref, avt_ref, feat_ref):
    # conv1: ONE long-K bf16 matmul (weights folded) + 3 column selections + ReLU
    x = x_ref[...].astype(jnp.bfloat16)                                   # (C*H, W)
    t = jnp.dot(a1_ref[...], x, preferred_element_type=jnp.float32)       # (3*HO1, W)
    tb = t.astype(jnp.bfloat16)
    a = (jnp.dot(tb[0:HO1], col1_ref[0], preferred_element_type=jnp.float32)
         + jnp.dot(tb[HO1:2 * HO1], col1_ref[1], preferred_element_type=jnp.float32)
         + jnp.dot(tb[2 * HO1:3 * HO1], col1_ref[2], preferred_element_type=jnp.float32))
    a = jnp.maximum(a, 0.0).astype(jnp.bfloat16)                          # (HO1, WO1)

    # max_pool2d([2,2]): 2 merged selection matmuls + max over the 4 quadrants
    reo = jnp.dot(rmp_ref[...], a,
                  preferred_element_type=jnp.float32).astype(jnp.bfloat16)  # (2*HMP, WO1)
    p = jnp.dot(reo, cmp_ref[...], preferred_element_type=jnp.float32)       # (2*HMP, 2*WMP)
    m = jnp.maximum(jnp.maximum(p[:HMP, :WMP], p[:HMP, WMP:]),
                    jnp.maximum(p[HMP:, :WMP], p[HMP:, WMP:]))               # (HMP, WMP)

    # conv2 + ReLU (same concatenated-rows trick)
    mb = m.astype(jnp.bfloat16)
    t2 = jnp.dot(a2_ref[...], mb, preferred_element_type=jnp.float32)        # (3*HO2, WMP)
    t2b = t2.astype(jnp.bfloat16)
    c2 = (jnp.dot(t2b[0:HO2], col2_ref[0], preferred_element_type=jnp.float32)
          + jnp.dot(t2b[HO2:2 * HO2], col2_ref[1], preferred_element_type=jnp.float32)
          + jnp.dot(t2b[2 * HO2:3 * HO2], col2_ref[2], preferred_element_type=jnp.float32))
    c2 = jnp.maximum(c2, 0.0)                                                # (HO2, WO2) f32

    # AvgPool2d(7, stride=3): separable box sums (exact 1.0 entries), /49 once at end
    s1 = jnp.dot(av_ref[...], c2, preferred_element_type=jnp.float32)        # (HAP, WO2)
    feat_ref[...] = (jnp.dot(s1, avt_ref[...], preferred_element_type=jnp.float32)
                     * jnp.float32(1.0 / 49.0))                              # (HAP, WAP)


# --------------------------------------------------------------------------
# Kernel 2 (hot path): H-tiled temperature-scaled cross-entropy partials with
# ignore_index=255.  The tiny fc1/fc2/sigmoid stage is folded into the kernel
# prologue so no XLA op sits between the two pallas_calls.  Output is one
# lane-dense (2, W) partial per (sample, row-tile): row 0 = loss sum,
# row 1 = valid-pixel count.  Final reduction happens in XLA.
# --------------------------------------------------------------------------
def _ce_kernel(feat_ref, w1t_ref, b1_ref, w2t_ref, b2_ref, pred_ref, lbl_ref,
               out_ref):
    b = pl.program_id(0)

    # --- fc1 -> fc2 -> 1/T prologue (f32, ~7 KFLOP, recomputed per step) ----
    h1 = (jnp.dot(feat_ref[...], w1t_ref[...], preferred_element_type=jnp.float32)
          + b1_ref[...])                                                   # (1, UNITS)
    o = (jnp.dot(h1, w2t_ref[...], preferred_element_type=jnp.float32)
         + b2_ref[...])                                                    # (1, B)
    # 1/T = 1/(2*sigmoid(o)) = (1 + exp(-o)) / 2   (no divide needed)
    inv_all = 0.5 * (1.0 + jnp.exp(-o))                                    # (1, B)
    sel = lax.broadcasted_iota(jnp.int32, (1, B), 1) == b
    inv_t = jnp.sum(jnp.where(sel, inv_all, 0.0))                          # scalar 1/T[b]

    # --- temperature-scaled CE partials for this (sample, row-tile) ---------
    x = pred_ref[...]                                                      # (C, TH, W)
    z = x * inv_t
    m = jnp.max(z, axis=0)                                                 # (TH, W)
    s = jnp.sum(jnp.exp(z - m[None, :, :]), axis=0)
    lse = m + jnp.log(s)
    lbl = lbl_ref[...]                                                     # (TH, W) int32
    # class gather via masked iota reduction from the UNSCALED logits
    cls = lax.broadcasted_iota(jnp.int32, x.shape, 0)
    picked = jnp.sum(jnp.where(cls == lbl[None, :, :], x, 0.0), axis=0) * inv_t
    valid = lbl != IGNORE
    per_pix = jnp.where(valid, lse - picked, 0.0)                          # (TH, W)
    out_ref[...] = jnp.concatenate(
        [jnp.sum(per_pix, axis=0, keepdims=True),
         jnp.sum(valid.astype(jnp.float32), axis=0, keepdims=True)], axis=0)  # (2, W)


# --------------------------------------------------------------------------
# Wrapper.
# --------------------------------------------------------------------------
def calib_per_sample_t_forward(prediction, label, params):
    pred = prediction.astype(jnp.float32)

    # --- stage 1: conv/pool head (bf16 MXU) ---------------------------------
    x_r = pred.reshape(B, C * H, W)              # FREE reshape of contiguous NCHW
    head_flops = B * (2 * (3 * HO1) * (C * H) * W
                      + 3 * 2 * HO1 * W * WO1
                      + 2 * (2 * HMP) * HO1 * WO1
                      + 2 * (2 * HMP) * WO1 * (2 * WMP)
                      + 2 * (3 * HO2) * HMP * WMP
                      + 3 * 2 * HO2 * WMP * WO2
                      + 2 * HAP * HO2 * WO2 + 2 * HAP * WO2 * WAP)
    head_bytes = (B * C * H * W * 4
                  + (3 * HO1) * (C * H) * 2 + 3 * W * WO1 * 2
                  + (2 * HMP) * HO1 * 2 + WO1 * (2 * WMP) * 2
                  + (3 * HO2) * HMP * 2 + 3 * WMP * WO2 * 2
                  + HAP * HO2 * 4 + WO2 * WAP * 4
                  + B * HAP * WAP * 4)
    feat = pl.pallas_call(
        _head_kernel,
        out_shape=jax.ShapeDtypeStruct((B, HAP, WAP), jnp.float32),
        grid=(B,),
        in_specs=[
            pl.BlockSpec((None, C * H, W), lambda b: (b, 0, 0)),
            pl.BlockSpec((3 * HO1, C * H), lambda b: (0, 0)),
            pl.BlockSpec((3, W, WO1), lambda b: (0, 0, 0)),
            pl.BlockSpec((2 * HMP, HO1), lambda b: (0, 0)),
            pl.BlockSpec((WO1, 2 * WMP), lambda b: (0, 0)),
            pl.BlockSpec((3 * HO2, HMP), lambda b: (0, 0)),
            pl.BlockSpec((3, WMP, WO2), lambda b: (0, 0, 0)),
            pl.BlockSpec((HAP, HO2), lambda b: (0, 0)),
            pl.BlockSpec((WO2, WAP), lambda b: (0, 0)),
        ],
        out_specs=pl.BlockSpec((None, HAP, WAP), lambda b: (b, 0, 0)),
        compiler_params=pltpu.CompilerParams(dimension_semantics=("parallel",)),
        cost_estimate=pl.CostEstimate(flops=head_flops, transcendentals=0,
                                      bytes_accessed=head_bytes),
    )(x_r, params["A1"], params["Col1"], params["Rmp"], params["Cmp"],
      params["A2"], params["Col2"], params["Av"], params["AvT"])

    # torch .flatten() order (b, i, j); contiguous reshape -> pure bitcast, no launch.
    feat_flat = feat.reshape(1, FEAT)

    # T for the RETURN VALUE only, computed off the loss critical path (the CE
    # kernel recomputes 1/T internally from feat_flat).
    h1 = jnp.dot(feat_flat, params["fc1_wt"],
                 precision=lax.Precision.HIGHEST) + params["fc1_b2"]
    o = jnp.dot(h1, params["fc2_wt"],
                precision=lax.Precision.HIGHEST) + params["fc2_b2"]
    T = (2.0 * jax.nn.sigmoid(o)).reshape(B)

    # --- stage 2: temperature-scaled cross entropy, H-tiled (hot path) ------
    ce_flops = B * C * H * W * 8 + B * NT * 2 * (FEAT * UNITS + UNITS * B)
    ce_trans = B * C * H * W + B * H * W + B * NT * B
    ce_bytes = (B * C * H * W * 4 + B * H * W * 4 + B * NT * 2 * W * 4
                + B * NT * (FEAT + FEAT * UNITS + UNITS + UNITS * B + B) * 4)
    partials = pl.pallas_call(
        _ce_kernel,
        out_shape=jax.ShapeDtypeStruct((B, NT, 2, W), jnp.float32),
        grid=(B, NT),
        in_specs=[
            pl.BlockSpec((1, FEAT), lambda b, t: (0, 0)),
            pl.BlockSpec((FEAT, UNITS), lambda b, t: (0, 0)),
            pl.BlockSpec((1, UNITS), lambda b, t: (0, 0)),
            pl.BlockSpec((UNITS, B), lambda b, t: (0, 0)),
            pl.BlockSpec((1, B), lambda b, t: (0, 0)),
            pl.BlockSpec((None, C, TH, W), lambda b, t: (b, 0, t, 0)),
            pl.BlockSpec((None, TH, W), lambda b, t: (b, t, 0)),
        ],
        out_specs=pl.BlockSpec((None, None, 2, W), lambda b, t: (b, t, 0, 0)),
        compiler_params=pltpu.CompilerParams(
            dimension_semantics=("parallel", "parallel")),
        cost_estimate=pl.CostEstimate(flops=ce_flops, transcendentals=ce_trans,
                                      bytes_accessed=ce_bytes),
    )(feat_flat, params["fc1_wt"], params["fc1_b2"], params["fc2_wt"],
      params["fc2_b2"], pred, label.astype(jnp.int32))

    sums = jnp.sum(partials[:, :, 0, :])
    cnts = jnp.sum(partials[:, :, 1, :])
    loss = sums / jnp.maximum(cnts, 1.0)         # guard: all-ignored batch
    return loss, T


# --------------------------------------------------------------------------
# Pure-JAX references for validation.
# --------------------------------------------------------------------------
def reference_ce(prediction, label, T):
    x = prediction.astype(jnp.float32)
    scaled = x / T[:, None, None, None]
    lse = jax.nn.logsumexp(scaled, axis=1)
    lbl_c = jnp.clip(label, 0, C - 1)
    picked = jnp.take_along_axis(scaled, lbl_c[:, None, :, :], axis=1)[:, 0]
    valid = label != IGNORE
    return jnp.sum(jnp.where(valid, lse - picked, 0.0)) / jnp.maximum(
        jnp.sum(valid), 1)


def reference_forward(prediction, label, params):
    x = prediction.astype(jnp.float32)
    dn = ('NCHW', 'OIHW', 'NCHW')
    y = lax.conv_general_dilated(x, params["w1"], (2, 2), ((1, 1), (1, 1)),
                                 dimension_numbers=dn,
                                 precision=lax.Precision.HIGHEST)
    y = jnp.maximum(y, 0.0)
    y = lax.reduce_window(y, -jnp.inf, lax.max, (1, 1, 2, 2), (1, 1, 2, 2), 'VALID')
    y = lax.conv_general_dilated(y, params["w2"], (2, 2), ((1, 1), (1, 1)),
                                 dimension_numbers=dn,
                                 precision=lax.Precision.HIGHEST)
    y = jnp.maximum(y, 0.0)
    y = lax.reduce_window(y, 0.0, lax.add, (1, 1, 7, 7), (1, 1, 3, 3), 'VALID') / 49.0
    f = y.reshape(1, -1)
    h = jnp.dot(f, params["fc1_wt"], precision=lax.Precision.HIGHEST) + params["fc1_b2"]
    o = jnp.dot(h, params["fc2_wt"], precision=lax.Precision.HIGHEST) + params["fc2_b2"]
    T = (2.0 * jax.nn.sigmoid(o)).reshape(B)
    return reference_ce(prediction, label, T), T


if __name__ == "__main__":
    key = jax.random.PRNGKey(0)
    k_pred, k_lbl, k_ign, k_par = jax.random.split(key, 4)
    prediction = jax.random.normal(k_pred, (B, C, H, W), jnp.float32) * 2.0
    labels = jax.random.randint(k_lbl, (B, H, W), 0, C, dtype=jnp.int32)
    ignore = jax.random.uniform(k_ign, (B, H, W)) < 0.1
    labels = jnp.where(ignore, IGNORE, labels).astype(jnp.int32)

    params = init_params(k_par)

    fwd = jax.jit(functools.partial(calib_per_sample_t_forward, params=params))
    loss, T = fwd(prediction, labels)
    loss = jax.block_until_ready(loss)

    ref_loss, ref_T = reference_forward(prediction, labels, params)
    ref_loss_given_T = reference_ce(prediction, labels, T)

    assert bool(jnp.isfinite(loss)), "loss is not finite"
    # Hot CE path: all-f32 math and same T on both sides -> tight tolerance.
    assert jnp.allclose(loss, ref_loss_given_T, atol=1e-3, rtol=1e-3), (
        float(loss), float(ref_loss_given_T))
    # conv/pool head runs its matmuls in bf16 on the MXU -> small, bounded drift
    # of T (and hence of the full-f32-reference loss); tolerances sized for that.
    assert jnp.allclose(T, ref_T, atol=5e-3, rtol=5e-3), (T, ref_T)
    assert jnp.allclose(loss, ref_loss, atol=2e-2, rtol=1e-2), (
        float(loss), float(ref_loss))
    print("KERNEL_OK")
</pallas_src>

<mosaic_0001>
module attributes {stable_mosaic.version = 11 : i64} {
  func.func @_head_kernel(%arg0: i32, %arg1: memref<1x2432x128xf32, #tpu.memory_space<vmem>>, %arg2: memref<192x2432xbf16, #tpu.memory_space<vmem>>, %arg3: memref<3x128x64xbf16, #tpu.memory_space<vmem>>, %arg4: memref<64x64xbf16, #tpu.memory_space<vmem>>, %arg5: memref<64x64xbf16, #tpu.memory_space<vmem>>, %arg6: memref<48x32xbf16, #tpu.memory_space<vmem>>, %arg7: memref<3x32x16xbf16, #tpu.memory_space<vmem>>, %arg8: memref<4x16xf32, #tpu.memory_space<vmem>>, %arg9: memref<16x4xf32, #tpu.memory_space<vmem>>, %arg10: memref<1x4x4xf32, #tpu.memory_space<vmem>>) attributes {dimension_semantics = [#tpu.dimension_semantics<parallel>], iteration_bounds = array<i64: 2>, scalar_prefetch = 0 : i64, scratch_operands = 0 : i64, tpu.core_type = #tpu.core_type<tc>, window_params = [{transform_indices = @transform_0, window_bounds = array<i64: 1, 2432, 128>}, {pipeline_mode = #tpu.pipeline_mode<synchronous>, transform_indices = @transform_1, window_bounds = array<i64: 192, 2432>}, {pipeline_mode = #tpu.pipeline_mode<synchronous>, transform_indices = @transform_2, window_bounds = array<i64: 3, 128, 64>}, {pipeline_mode = #tpu.pipeline_mode<synchronous>, transform_indices = @transform_3, window_bounds = array<i64: 64, 64>}, {pipeline_mode = #tpu.pipeline_mode<synchronous>, transform_indices = @transform_4, window_bounds = array<i64: 64, 64>}, {pipeline_mode = #tpu.pipeline_mode<synchronous>, transform_indices = @transform_5, window_bounds = array<i64: 48, 32>}, {pipeline_mode = #tpu.pipeline_mode<synchronous>, transform_indices = @transform_6, window_bounds = array<i64: 3, 32, 16>}, {pipeline_mode = #tpu.pipeline_mode<synchronous>, transform_indices = @transform_7, window_bounds = array<i64: 4, 16>}, {pipeline_mode = #tpu.pipeline_mode<synchronous>, transform_indices = @transform_8, window_bounds = array<i64: 16, 4>}, {transform_indices = @transform_9, window_bounds = array<i64: 1, 4, 4>}]} {
    %c0 = arith.constant 0 : index
    %c0_0 = arith.constant 0 : index
    %c0_1 = arith.constant 0 : index
    %0 = vector.load %arg1[%c0, %c0_0, %c0_1] : memref<1x2432x128xf32, #tpu.memory_space<vmem>>, vector<1x2432x128xf32>
    %1 = vector.shape_cast %0 : vector<1x2432x128xf32> to vector<2432x128xf32>
    %2 = arith.truncf %1 : vector<2432x128xf32> to vector<2432x128xbf16>
    %c0_2 = arith.constant 0 : index
    %c0_3 = arith.constant 0 : index
    %3 = vector.load %arg2[%c0_2, %c0_3] : memref<192x2432xbf16, #tpu.memory_space<vmem>>, vector<192x2432xbf16>
    %cst = arith.constant dense<0.000000e+00> : vector<192x128xf32>
    %4 = tpu.matmul %3, %2, %cst {dimension_numbers = #tpu.dot_dimension_numbers<[1], [0], [0], [1], [0, 0, 1, 1], [], []>} : vector<192x2432xbf16>, vector<2432x128xbf16>, vector<192x128xf32> -> vector<192x128xf32>
    %5 = arith.truncf %4 : vector<192x128xf32> to vector<192x128xbf16>
    %6 = vector.extract_strided_slice %5 {offsets = [0, 0], sizes = [64, 128], strides = [1, 1]} : vector<192x128xbf16> to vector<64x128xbf16>
    %c0_4 = arith.constant 0 : index
    %c0_5 = arith.constant 0 : index
    %c0_6 = arith.constant 0 : index
    %7 = vector.load %arg3[%c0_4, %c0_5, %c0_6] : memref<3x128x64xbf16, #tpu.memory_space<vmem>>, vector<1x128x64xbf16>
    %8 = vector.shape_cast %7 : vector<1x128x64xbf16> to vector<128x64xbf16>
    %cst_7 = arith.constant dense<0.000000e+00> : vector<64x64xf32>
    %9 = tpu.matmul %6, %8, %cst_7 {dimension_numbers = #tpu.dot_dimension_numbers<[1], [0], [0], [1], [0, 0, 1, 1], [], []>} : vector<64x128xbf16>, vector<128x64xbf16>, vector<64x64xf32> -> vector<64x64xf32>
    %10 = vector.extract_strided_slice %5 {offsets = [64, 0], sizes = [64, 128], strides = [1, 1]} : vector<192x128xbf16> to vector<64x128xbf16>
    %c1 = arith.constant 1 : index
    %c0_8 = arith.constant 0 : index
    %c0_9 = arith.constant 0 : index
    %11 = vector.load %arg3[%c1, %c0_8, %c0_9] : memref<3x128x64xbf16, #tpu.memory_space<vmem>>, vector<1x128x64xbf16>
    %12 = vector.shape_cast %11 : vector<1x128x64xbf16> to vector<128x64xbf16>
    %cst_10 = arith.constant dense<0.000000e+00> : vector<64x64xf32>
    %13 = tpu.matmul %10, %12, %cst_10 {dimension_numbers = #tpu.dot_dimension_numbers<[1], [0], [0], [1], [0, 0, 1, 1], [], []>} : vector<64x128xbf16>, vector<128x64xbf16>, vector<64x64xf32> -> vector<64x64xf32>
    %14 = arith.addf %9, %13 : vector<64x64xf32>
    %15 = vector.extract_strided_slice %5 {offsets = [128, 0], sizes = [64, 128], strides = [1, 1]} : vector<192x128xbf16> to vector<64x128xbf16>
    %c2 = arith.constant 2 : index
    %c0_11 = arith.constant 0 : index
    %c0_12 = arith.constant 0 : index
    %16 = vector.load %arg3[%c2, %c0_11, %c0_12] : memref<3x128x64xbf16, #tpu.memory_space<vmem>>, vector<1x128x64xbf16>
    %17 = vector.shape_cast %16 : vector<1x128x64xbf16> to vector<128x64xbf16>
    %cst_13 = arith.constant dense<0.000000e+00> : vector<64x64xf32>
    %18 = tpu.matmul %15, %17, %cst_13 {dimension_numbers = #tpu.dot_dimension_numbers<[1], [0], [0], [1], [0, 0, 1, 1], [], []>} : vector<64x128xbf16>, vector<128x64xbf16>, vector<64x64xf32> -> vector<64x64xf32>
    %19 = arith.addf %14, %18 : vector<64x64xf32>
    %cst_14 = arith.constant 0.000000e+00 : f32
    %20 = vector.broadcast %cst_14 : f32 to vector<64x64xf32>
    %21 = arith.maximumf %19, %20 : vector<64x64xf32>
    %22 = arith.truncf %21 : vector<64x64xf32> to vector<64x64xbf16>
    %c0_15 = arith.constant 0 : index
    %c0_16 = arith.constant 0 : index
    %23 = vector.load %arg4[%c0_15, %c0_16] : memref<64x64xbf16, #tpu.memory_space<vmem>>, vector<64x64xbf16>
    %cst_17 = arith.constant dense<0.000000e+00> : vector<64x64xf32>
    %24 = tpu.matmul %23, %22, %cst_17 {dimension_numbers = #tpu.dot_dimension_numbers<[1], [0], [0], [1], [0, 0, 1, 1], [], []>} : vector<64x64xbf16>, vector<64x64xbf16>, vector<64x64xf32> -> vector<64x64xf32>
    %25 = arith.truncf %24 : vector<64x64xf32> to vector<64x64xbf16>
    %c0_18 = arith.constant 0 : index
    %c0_19 = arith.constant 0 : index
    %26 = vector.load %arg5[%c0_18, %c0_19] : memref<64x64xbf16, #tpu.memory_space<vmem>>, vector<64x64xbf16>
    %cst_20 = arith.constant dense<0.000000e+00> : vector<64x64xf32>
    %27 = tpu.matmul %25, %26, %cst_20 {dimension_numbers = #tpu.dot_dimension_numbers<[1], [0], [0], [1], [0, 0, 1, 1], [], []>} : vector<64x64xbf16>, vector<64x64xbf16>, vector<64x64xf32> -> vector<64x64xf32>
    %28 = vector.extract_strided_slice %27 {offsets = [0, 0], sizes = [32, 32], strides = [1, 1]} : vector<64x64xf32> to vector<32x32xf32>
    %29 = vector.extract_strided_slice %27 {offsets = [0, 32], sizes = [32, 32], strides = [1, 1]} : vector<64x64xf32> to vector<32x32xf32>
    %30 = arith.maximumf %28, %29 : vector<32x32xf32>
    %31 = vector.extract_strided_slice %27 {offsets = [32, 0], sizes = [32, 32], strides = [1, 1]} : vector<64x64xf32> to vector<32x32xf32>
    %32 = vector.extract_strided_slice %27 {offsets = [32, 32], sizes = [32, 32], strides = [1, 1]} : vector<64x64xf32> to vector<32x32xf32>
    %33 = arith.maximumf %31, %32 : vector<32x32xf32>
    %34 = arith.maximumf %30, %33 : vector<32x32xf32>
    %35 = arith.truncf %34 : vector<32x32xf32> to vector<32x32xbf16>
    %c0_21 = arith.constant 0 : index
    %c0_22 = arith.constant 0 : index
    %36 = vector.load %arg6[%c0_21, %c0_22] : memref<48x32xbf16, #tpu.memory_space<vmem>>, vector<48x32xbf16>
    %cst_23 = arith.constant dense<0.000000e+00> : vector<48x32xf32>
    %37 = tpu.matmul %36, %35, %cst_23 {dimension_numbers = #tpu.dot_dimension_numbers<[1], [0], [0], [1], [0, 0, 1, 1], [], []>} : vector<48x32xbf16>, vector<32x32xbf16>, vector<48x32xf32> -> vector<48x32xf32>
    %38 = arith.truncf %37 : vector<48x32xf32> to vector<48x32xbf16>
    %39 = vector.extract_strided_slice %38 {offsets = [0, 0], sizes = [16, 32], strides = [1, 1]} : vector<48x32xbf16> to vector<16x32xbf16>
    %c0_24 = arith.constant 0 : index
    %c0_25 = arith.constant 0 : index
    %c0_26 = arith.constant 0 : index
    %40 = vector.load %arg7[%c0_24, %c0_25, %c0_26] : memref<3x32x16xbf16, #tpu.memory_space<vmem>>, vector<1x32x16xbf16>
    %41 = vector.shape_cast %40 : vector<1x32x16xbf16> to vector<32x16xbf16>
    %cst_27 = arith.constant dense<0.000000e+00> : vector<16x16xf32>
    %42 = tpu.matmul %39, %41, %cst_27 {dimension_numbers = #tpu.dot_dimension_numbers<[1], [0], [0], [1], [0, 0, 1, 1], [], []>} : vector<16x32xbf16>, vector<32x16xbf16>, vector<16x16xf32> -> vector<16x16xf32>
    %43 = vector.extract_strided_slice %38 {offsets = [16, 0], sizes = [16, 32], strides = [1, 1]} : vector<48x32xbf16> to vector<16x32xbf16>
    %c1_28 = arith.constant 1 : index
    %c0_29 = arith.constant 0 : index
    %c0_30 = arith.constant 0 : index
    %44 = vector.load %arg7[%c1_28, %c0_29, %c0_30] : memref<3x32x16xbf16, #tpu.memory_space<vmem>>, vector<1x32x16xbf16>
    %45 = vector.shape_cast %44 : vector<1x32x16xbf16> to vector<32x16xbf16>
    %cst_31 = arith.constant dense<0.000000e+00> : vector<16x16xf32>
    %46 = tpu.matmul %43, %45, %cst_31 {dimension_numbers = #tpu.dot_dimension_numbers<[1], [0], [0], [1], [0, 0, 1, 1], [], []>} : vector<16x32xbf16>, vector<32x16xbf16>, vector<16x16xf32> -> vector<16x16xf32>
    %47 = arith.addf %42, %46 : vector<16x16xf32>
    %48 = vector.extract_strided_slice %38 {offsets = [32, 0], sizes = [16, 32], strides = [1, 1]} : vector<48x32xbf16> to vector<16x32xbf16>
    %c2_32 = arith.constant 2 : index
    %c0_33 = arith.constant 0 : index
    %c0_34 = arith.constant 0 : index
    %49 = vector.load %arg7[%c2_32, %c0_33, %c0_34] : memref<3x32x16xbf16, #tpu.memory_space<vmem>>, vector<1x32x16xbf16>
    %50 = vector.shape_cast %49 : vector<1x32x16xbf16> to vector<32x16xbf16>
    %cst_35 = arith.constant dense<0.000000e+00> : vector<16x16xf32>
    %51 = tpu.matmul %48, %50, %cst_35 {dimension_numbers = #tpu.dot_dimension_numbers<[1], [0], [0], [1], [0, 0, 1, 1], [], []>} : vector<16x32xbf16>, vector<32x16xbf16>, vector<16x16xf32> -> vector<16x16xf32>
    %52 = arith.addf %47, %51 : vector<16x16xf32>
    %cst_36 = arith.constant 0.000000e+00 : f32
    %53 = vector.broadcast %cst_36 : f32 to vector<16x16xf32>
    %54 = arith.maximumf %52, %53 : vector<16x16xf32>
    %c0_37 = arith.constant 0 : index
    %c0_38 = arith.constant 0 : index
    %55 = vector.load %arg8[%c0_37, %c0_38] : memref<4x16xf32, #tpu.memory_space<vmem>>, vector<4x16xf32>
    %cst_39 = arith.constant dense<0.000000e+00> : vector<4x16xf32>
    %56 = tpu.matmul %55, %54, %cst_39 {dimension_numbers = #tpu.dot_dimension_numbers<[1], [0], [0], [1], [0, 0, 1, 1], [], []>} : vector<4x16xf32>, vector<16x16xf32>, vector<4x16xf32> -> vector<4x16xf32>
    %c0_40 = arith.constant 0 : index
    %c0_41 = arith.constant 0 : index
    %57 = vector.load %arg9[%c0_40, %c0_41] : memref<16x4xf32, #tpu.memory_space<vmem>>, vector<16x4xf32>
    %cst_42 = arith.constant dense<0.000000e+00> : vector<4x4xf32>
    %58 = tpu.matmul %56, %57, %cst_42 {dimension_numbers = #tpu.dot_dimension_numbers<[1], [0], [0], [1], [0, 0, 1, 1], [], []>} : vector<4x16xf32>, vector<16x4xf32>, vector<4x4xf32> -> vector<4x4xf32>
    %cst_43 = arith.constant 0.0204081628 : f32
    %59 = vector.broadcast %cst_43 : f32 to vector<4x4xf32>
    %60 = arith.mulf %58, %59 : vector<4x4xf32>
    %c0_44 = arith.constant 0 : index
    %c0_45 = arith.constant 0 : index
    %c0_46 = arith.constant 0 : index
    %61 = vector.load %arg10[%c0_44, %c0_45, %c0_46] : memref<1x4x4xf32, #tpu.memory_space<vmem>>, vector<1x4x4xf32>
    %62 = vector.shape_cast %61 : vector<1x4x4xf32> to vector<4x4xf32>
    %63 = vector.shape_cast %60 : vector<4x4xf32> to vector<1x4x4xf32>
    tpu.vector_store %arg10[%c0_44, %c0_45, %c0_46], %63 {strides = array<i32>} : memref<1x4x4xf32, #tpu.memory_space<vmem>>, vector<1x4x4xf32>,
    return
  }
  func.func @transform_0(%arg0: i32) -> (i32, i32, i32) {
    %c0_i32 = arith.constant 0 : i32
    %c0_i32_0 = arith.constant 0 : i32
    %c0_i32_1 = arith.constant 0 : i32
    return %arg0, %c0_i32, %c0_i32_0 : i32, i32, i32
  }
  func.func @transform_1(%arg0: i32) -> (i32, i32) {
    %c0_i32 = arith.constant 0 : i32
    %c0_i32_0 = arith.constant 0 : i32
    %c0_i32_1 = arith.constant 0 : i32
    return %c0_i32, %c0_i32_0 : i32, i32
  }
  func.func @transform_2(%arg0: i32) -> (i32, i32, i32) {
    %c0_i32 = arith.constant 0 : i32
    %c0_i32_0 = arith.constant 0 : i32
    %c0_i32_1 = arith.constant 0 : i32
    %c0_i32_2 = arith.constant 0 : i32
    return %c0_i32, %c0_i32_0, %c0_i32_1 : i32, i32, i32
  }
  func.func @transform_3(%arg0: i32) -> (i32, i32) {
    %c0_i32 = arith.constant 0 : i32
    %c0_i32_0 = arith.constant 0 : i32
    %c0_i32_1 = arith.constant 0 : i32
    return %c0_i32, %c0_i32_0 : i32, i32
  }
  func.func @transform_4(%arg0: i32) -> (i32, i32) {
    %c0_i32 = arith.constant 0 : i32
    %c0_i32_0 = arith.constant 0 : i32
    %c0_i32_1 = arith.constant 0 : i32
    return %c0_i32, %c0_i32_0 : i32, i32
  }
  func.func @transform_5(%arg0: i32) -> (i32, i32) {
    %c0_i32 = arith.constant 0 : i32
    %c0_i32_0 = arith.constant 0 : i32
    %c0_i32_1 = arith.constant 0 : i32
    return %c0_i32, %c0_i32_0 : i32, i32
  }
  func.func @transform_6(%arg0: i32) -> (i32, i32, i32) {
    %c0_i32 = arith.constant 0 : i32
    %c0_i32_0 = arith.constant 0 : i32
    %c0_i32_1 = arith.constant 0 : i32
    %c0_i32_2 = arith.constant 0 : i32
    return %c0_i32, %c0_i32_0, %c0_i32_1 : i32, i32, i32
  }
  func.func @transform_7(%arg0: i32) -> (i32, i32) {
    %c0_i32 = arith.constant 0 : i32
    %c0_i32_0 = arith.constant 0 : i32
    %c0_i32_1 = arith.constant 0 : i32
    return %c0_i32, %c0_i32_0 : i32, i32
  }
  func.func @transform_8(%arg0: i32) -> (i32, i32) {
    %c0_i32 = arith.constant 0 : i32
    %c0_i32_0 = arith.constant 0 : i32
    %c0_i32_1 = arith.constant 0 : i32
    return %c0_i32, %c0_i32_0 : i32, i32
  }
  func.func @transform_9(%arg0: i32) -> (i32, i32, i32) {
    %c0_i32 = arith.constant 0 : i32
    %c0_i32_0 = arith.constant 0 : i32
    %c0_i32_1 = arith.constant 0 : i32
    return %arg0, %c0_i32, %c0_i32_0 : i32, i32, i32
  }
}

module attributes {stable_mosaic.version = 11 : i64} {
  func.func @_ce_kernel(%arg0: i32, %arg1: i32, %arg2: memref<1x32xf32, #tpu.memory_space<vmem>>, %arg3: memref<32x100xf32, #tpu.memory_space<vmem>>, %arg4: memref<1x100xf32, #tpu.memory_space<vmem>>, %arg5: memref<100x2xf32, #tpu.memory_space<vmem>>, %arg6: memref<1x2xf32, #tpu.memory_space<vmem>>, %arg7: memref<1x19x32x128xf32, #tpu.memory_space<vmem>>, %arg8: memref<1x32x128xi32, #tpu.memory_space<vmem>>, %arg9: memref<1x1x2x128xf32, #tpu.memory_space<vmem>>) attributes {dimension_semantics = [#tpu.dimension_semantics<parallel>, #tpu.dimension_semantics<parallel>], iteration_bounds = array<i64: 2, 4>, scalar_prefetch = 0 : i64, scratch_operands = 0 : i64, tpu.core_type = #tpu.core_type<tc>, window_params = [{pipeline_mode = #tpu.pipeline_mode<synchronous>, transform_indices = @transform_0, window_bounds = array<i64: 1, 32>}, {pipeline_mode = #tpu.pipeline_mode<synchronous>, transform_indices = @transform_1, window_bounds = array<i64: 32, 100>}, {pipeline_mode = #tpu.pipeline_mode<synchronous>, transform_indices = @transform_2, window_bounds = array<i64: 1, 100>}, {pipeline_mode = #tpu.pipeline_mode<synchronous>, transform_indices = @transform_3, window_bounds = array<i64: 100, 2>}, {pipeline_mode = #tpu.pipeline_mode<synchronous>, transform_indices = @transform_4, window_bounds = array<i64: 1, 2>}, {transform_indices = @transform_5, window_bounds = array<i64: 1, 19, 32, 128>}, {transform_indices = @transform_6, window_bounds = array<i64: 1, 32, 128>}, {transform_indices = @transform_7, window_bounds = array<i64: 1, 1, 2, 128>}]} {
    %c0 = arith.constant 0 : index
    %c0_0 = arith.constant 0 : index
    %0 = vector.load %arg2[%c0, %c0_0] : memref<1x32xf32, #tpu.memory_space<vmem>>, vector<1x32xf32>
    %c0_1 = arith.constant 0 : index
    %c0_2 = arith.constant 0 : index
    %1 = vector.load %arg3[%c0_1, %c0_2] : memref<32x100xf32, #tpu.memory_space<vmem>>, vector<32x100xf32>
    %cst = arith.constant dense<0.000000e+00> : vector<1x100xf32>
    %2 = tpu.matmul %0, %1, %cst {dimension_numbers = #tpu.dot_dimension_numbers<[1], [0], [0], [1], [0, 0, 1, 1], [], []>} : vector<1x32xf32>, vector<32x100xf32>, vector<1x100xf32> -> vector<1x100xf32>
    %c0_3 = arith.constant 0 : index
    %c0_4 = arith.constant 0 : index
    %3 = vector.load %arg4[%c0_3, %c0_4] : memref<1x100xf32, #tpu.memory_space<vmem>>, vector<1x100xf32>
    %4 = arith.addf %2, %3 : vector<1x100xf32>
    %c0_5 = arith.constant 0 : index
    %c0_6 = arith.constant 0 : index
    %5 = vector.load %arg5[%c0_5, %c0_6] : memref<100x2xf32, #tpu.memory_space<vmem>>, vector<100x2xf32>
    %cst_7 = arith.constant dense<0.000000e+00> : vector<1x2xf32>
    %6 = tpu.matmul %4, %5, %cst_7 {dimension_numbers = #tpu.dot_dimension_numbers<[1], [0], [0], [1], [0, 0, 1, 1], [], []>} : vector<1x100xf32>, vector<100x2xf32>, vector<1x2xf32> -> vector<1x2xf32>
    %c0_8 = arith.constant 0 : index
    %c0_9 = arith.constant 0 : index
    %7 = vector.load %arg6[%c0_8, %c0_9] : memref<1x2xf32, #tpu.memory_space<vmem>>, vector<1x2xf32>
    %8 = arith.addf %6, %7 : vector<1x2xf32>
    %cst_10 = arith.constant 0.000000e+00 : f32
    %9 = vector.broadcast %cst_10 : f32 to vector<1x2xf32>
    %10 = arith.subf %9, %8 : vector<1x2xf32>
    %11 = math.exp %10 : vector<1x2xf32>
    %cst_11 = arith.constant 1.000000e+00 : f32
    %12 = vector.broadcast %cst_11 : f32 to vector<1x2xf32>
    %13 = arith.addf %12, %11 : vector<1x2xf32>
    %cst_12 = arith.constant 5.000000e-01 : f32
    %14 = vector.broadcast %cst_12 : f32 to vector<1x2xf32>
    %15 = arith.mulf %14, %13 : vector<1x2xf32>
    %16 = tpu.iota {dimensions = array<i32: 1>} : vector<1x2xi32>
    %17 = vector.broadcast %arg0 : i32 to vector<1x2xi32>
    %18 = arith.cmpi eq, %16, %17 : vector<1x2xi32>
    %cst_13 = arith.constant 0.000000e+00 : f32
    %19 = vector.broadcast %cst_13 : f32 to vector<1x2xf32>
    %20 = arith.select %18, %15, %19 : vector<1x2xi1>, vector<1x2xf32>
    %21 = vector.shape_cast %20 : vector<1x2xf32> to vector<1x1x2xf32>
    %cst_14 = arith.constant dense<0.000000e+00> : vector<1xf32>
    %22 = vector.multi_reduction <add>, %21, %cst_14 [1, 2] : vector<1x1x2xf32> to vector<1xf32>
    %23 = vector.shape_cast %22 : vector<1xf32> to vector<1x1x1xf32>
    %24 = vector.extract %23[0, 0, 0] : f32 from vector<1x1x1xf32>
    %c0_15 = arith.constant 0 : index
    %c0_16 = arith.constant 0 : index
    %c0_17 = arith.constant 0 : index
    %c0_18 = arith.constant 0 : index
    %25 = vector.load %arg7[%c0_15, %c0_16, %c0_17, %c0_18] : memref<1x19x32x128xf32, #tpu.memory_space<vmem>>, vector<1x19x32x128xf32>
    %26 = vector.shape_cast %25 : vector<1x19x32x128xf32> to vector<19x32x128xf32>
    %27 = vector.broadcast %24 : f32 to vector<19x32x128xf32>
    %28 = arith.mulf %26, %27 : vector<19x32x128xf32>
    %cst_19 = arith.constant dense<0xFF800000> : vector<32x128xf32>
    %29 = vector.multi_reduction <maximumf>, %28, %cst_19 [0] : vector<19x32x128xf32> to vector<32x128xf32>
    %30 = vector.shape_cast %29 : vector<32x128xf32> to vector<1x32x128xf32>
    %31 = vector.broadcast %30 : vector<1x32x128xf32> to vector<19x32x128xf32>
    %32 = arith.subf %28, %31 : vector<19x32x128xf32>
    %33 = math.exp %32 : vector<19x32x128xf32>
    %cst_20 = arith.constant dense<0.000000e+00> : vector<32x128xf32>
    %34 = vector.multi_reduction <add>, %33, %cst_20 [0] : vector<19x32x128xf32> to vector<32x128xf32>
    %35 = math.log %34 : vector<32x128xf32>
    %36 = arith.addf %29, %35 : vector<32x128xf32>
    %c0_21 = arith.constant 0 : index
    %c0_22 = arith.constant 0 : index
    %c0_23 = arith.constant 0 : index
    %37 = vector.load %arg8[%c0_21, %c0_22, %c0_23] : memref<1x32x128xi32, #tpu.memory_space<vmem>>, vector<1x32x128xi32>
    %38 = vector.shape_cast %37 : vector<1x32x128xi32> to vector<32x128xi32>
    %39 = tpu.iota {dimensions = array<i32: 0>} : vector<19x32x128xi32>
    %40 = vector.shape_cast %38 : vector<32x128xi32> to vector<1x32x128xi32>
    %41 = vector.broadcast %40 : vector<1x32x128xi32> to vector<19x32x128xi32>
    %42 = arith.cmpi eq, %39, %41 : vector<19x32x128xi32>
    %cst_24 = arith.constant 0.000000e+00 : f32
    %43 = vector.broadcast %cst_24 : f32 to vector<19x32x128xf32>
    %44 = arith.select %42, %26, %43 : vector<19x32x128xi1>, vector<19x32x128xf32>
    %cst_25 = arith.constant dense<0.000000e+00> : vector<32x128xf32>
    %45 = vector.multi_reduction <add>, %44, %cst_25 [0] : vector<19x32x128xf32> to vector<32x128xf32>
    %46 = vector.broadcast %24 : f32 to vector<32x128xf32>
    %47 = arith.mulf %45, %46 : vector<32x128xf32>
    %c255_i32 = arith.constant 255 : i32
    %48 = vector.broadcast %c255_i32 : i32 to vector<32x128xi32>
    %49 = arith.cmpi ne, %38, %48 : vector<32x128xi32>
    %50 = arith.subf %36, %47 : vector<32x128xf32>
    %cst_26 = arith.constant 0.000000e+00 : f32
    %51 = vector.broadcast %cst_26 : f32 to vector<32x128xf32>
    %52 = arith.select %49, %50, %51 : vector<32x128xi1>, vector<32x128xf32>
    %cst_27 = arith.constant dense<0.000000e+00> : vector<128xf32>
    %53 = vector.multi_reduction <add>, %52, %cst_27 [0] : vector<32x128xf32> to vector<128xf32>
    %54 = vector.shape_cast %53 : vector<128xf32> to vector<1x128xf32>
    %55 = arith.extui %49 : vector<32x128xi1> to vector<32x128xi32>
    %56 = arith.sitofp %55 : vector<32x128xi32> to vector<32x128xf32>
    %cst_28 = arith.constant dense<0.000000e+00> : vector<128xf32>
    %57 = vector.multi_reduction <add>, %56, %cst_28 [0] : vector<32x128xf32> to vector<128xf32>
    %58 = vector.shape_cast %57 : vector<128xf32> to vector<1x128xf32>
    %59 = tpu.concatenate %54, %58 in 0 : vector<1x128xf32>, vector<1x128xf32> -> vector<2x128xf32>
    %c0_29 = arith.constant 0 : index
    %c0_30 = arith.constant 0 : index
    %c0_31 = arith.constant 0 : index
    %c0_32 = arith.constant 0 : index
    %60 = vector.load %arg9[%c0_29, %c0_30, %c0_31, %c0_32] : memref<1x1x2x128xf32, #tpu.memory_space<vmem>>, vector<1x1x2x128xf32>
    %61 = vector.shape_cast %60 : vector<1x1x2x128xf32> to vector<2x128xf32>
    %62 = vector.shape_cast %59 : vector<2x128xf32> to vector<1x1x2x128xf32>
    tpu.vector_store %arg9[%c0_29, %c0_30, %c0_31, %c0_32], %62 {strides = array<i32>} : memref<1x1x2x128xf32, #tpu.memory_space<vmem>>, vector<1x1x2x128xf32>,
    return
  }
  func.func @transform_0(%arg0: i32, %arg1: i32) -> (i32, i32) {
    %c0_i32 = arith.constant 0 : i32
    %c0_i32_0 = arith.constant 0 : i32
    %c0_i32_1 = arith.constant 0 : i32
    return %c0_i32, %c0_i32_0 : i32, i32
  }
  func.func @transform_1(%arg0: i32, %arg1: i32) -> (i32, i32) {
    %c0_i32 = arith.constant 0 : i32
    %c0_i32_0 = arith.constant 0 : i32
    %c0_i32_1 = arith.constant 0 : i32
    return %c0_i32, %c0_i32_0 : i32, i32
  }
  func.func @transform_2(%arg0: i32, %arg1: i32) -> (i32, i32) {
    %c0_i32 = arith.constant 0 : i32
    %c0_i32_0 = arith.constant 0 : i32
    %c0_i32_1 = arith.constant 0 : i32
    return %c0_i32, %c0_i32_0 : i32, i32
  }
  func.func @transform_3(%arg0: i32, %arg1: i32) -> (i32, i32) {
    %c0_i32 = arith.constant 0 : i32
    %c0_i32_0 = arith.constant 0 : i32
    %c0_i32_1 = arith.constant 0 : i32
    return %c0_i32, %c0_i32_0 : i32, i32
  }
  func.func @transform_4(%arg0: i32, %arg1: i32) -> (i32, i32) {
    %c0_i32 = arith.constant 0 : i32
    %c0_i32_0 = arith.constant 0 : i32
    %c0_i32_1 = arith.constant 0 : i32
    return %c0_i32, %c0_i32_0 : i32, i32
  }
  func.func @transform_5(%arg0: i32, %arg1: i32) -> (i32, i32, i32, i32) {
    %c0_i32 = arith.constant 0 : i32
    %c0_i32_0 = arith.constant 0 : i32
    %c0_i32_1 = arith.constant 0 : i32
    return %arg0, %c0_i32, %arg1, %c0_i32_0 : i32, i32, i32, i32
  }
  func.func @transform_6(%arg0: i32, %arg1: i32) -> (i32, i32, i32) {
    %c0_i32 = arith.constant 0 : i32
    %c0_i32_0 = arith.constant 0 : i32
    return %arg0, %arg1, %c0_i32 : i32, i32, i32
  }
  func.func @transform_7(%arg0: i32, %arg1: i32) -> (i32, i32, i32, i32) {
    %c0_i32 = arith.constant 0 : i32
    %c0_i32_0 = arith.constant 0 : i32
    %c0_i32_1 = arith.constant 0 : i32
    return %arg0, %arg1, %c0_i32, %c0_i32_0 : i32, i32, i32, i32
  }
}

</mosaic_0001>

<llo_original>
// kernel: calib_per_sample_t_forward.3
$region0: #{calib_per_sample_t_forward.3}
  #allocation0 [shape = 'u32[]', space=smem, size = 0x4, offset = 0x4, fixed_abs, tag = 'smem constant byte address 0x4 - core index']
  #allocation1 [shape = 'u32[144,128]{1,0:T(1,128)}', space=vmem, size = 0x12000, scoped, tag = 'internal scratch']
  %s0 = inlined_call_operand.vmem [shape: f32[1,32], index: 0, kind: input, shape index: {}]
  %s1 = inlined_call_operand.vmem [shape: f32[32,100], index: 1, kind: input, shape index: {}]
  %s2 = inlined_call_operand.vmem [shape: f32[1,100], index: 2, kind: input, shape index: {}]
  %s3 = inlined_call_operand.vmem [shape: f32[100,2], index: 3, kind: input, shape index: {}]
  %s4 = inlined_call_operand.vmem [shape: f32[1,2], index: 4, kind: input, shape index: {}]
  %s5 = inlined_call_operand.vmem [shape: f32[2,19,128,128], index: 5, kind: input, shape index: {}]
  %s6 = inlined_call_operand.vmem [shape: s32[2,128,128], index: 6, kind: input, shape index: {}]
  %s7 = inlined_call_operand.vmem [shape: f32[2,4,2,128], index: 7, kind: output, shape index: {}]
  %s8 = sld [smem:[#allocation0]]
  $region99: #{calib_per_sample_t_forward.3} parent=0
    _
  %s10 = ssub.s32 1, %s8
  %s11 = scalar_select 0, %s10, %s8
  $region1: #{calib_per_sample_t_forward.3} parent=0
    #allocation2 [shape = 'u8[622592]{0}', space=vmem, size = 0x98000, scoped, tag = 'input window, operand 5']
    loop: start=0, step=1, limit=10
    $region2: #{calib_per_sample_t_forward.3} parent=1 // loop_pre_header
      _
    $region3: #{calib_per_sample_t_forward.3} parent=1 // loop_header
      %s13 = sphi 0, %s17
      %p14 = scmp.ge.s32.totalorder %s13, 10
      %s20 = sphi 0, %s32
      %s21 = sphi 0, %s28
      %s22 = sphi 0, %s20
      %s23 = sphi 0, %s21
      %s24 = sphi 0, %s22
      %s25 = sphi 0, %s23
      %s33 = sphi 0, %s33
      %s35 = sphi 0, %s33
      %s36 = sphi 0, %s35
      %s50 = sphi 0, %s36
      %s54 = sphi 0, %s54
      %s56 = sphi 0, %s54
      %s57 = sphi 0, %s56
      %s71 = sphi 0, %s57
      %s75 = sphi 0, %s75
      %s77 = sphi 0, %s75
      %s78 = sphi 0, %s77
      %s92 = sphi 0, %s78
      %s96 = sphi 0, %s96
      %s98 = sphi 0, %s96
      %s99 = sphi 0, %s98
      %s113 = sphi 0, %s99
      %s117 = sphi 0, %s117
      %s119 = sphi 0, %s117
      %s120 = sphi 0, %s119
      %s134 = sphi 0, %s120
      %s142 = sphi 0, %s144
      %s145 = sphi 0, %s142
      %s146 = sphi 0, %s145
      %s162 = sphi 0, %s146
      %s170 = sphi 0, %s172
      %s173 = sphi 0, %s170
      %s174 = sphi 0, %s173
      %s190 = sphi 0, %s174
      %s198 = sphi 0, %s200
      %s201 = sphi 0, %s198
      %s202 = sphi 0, %s201
      %s218 = sphi 0, %s202
    $region4: #{calib_per_sample_t_forward.3} parent=1 // loop_header_branch
      %16 = sbr.rel (%p14) target = $region8
    $region5: #{calib_per_sample_t_forward.3} parent=1 // loop_body
      %s18 = ssub.s32 %s13, 1
      %s19 = ssub.s32 %s13, 2
      %s26 = sadd.s32 1, %s21
      %p27 = scmp.ge.s32.totalorder %s26, 4
      %s28 = scalar_select %p27, 0, %s26
      %s29 = sadd.s32 1, %s20
      %s30 = scalar_select %p27, %s29, %s20
      %p31 = scmp.ge.s32.totalorder %s30, 2
      %s32 = scalar_select %p31, 0, %s30
      %s34 = sadd.s32 %s33, 1
      %p37 = scmp.eq.s32.totalorder %s13, 7
      %p38 = scmp.ne.s32.totalorder %s33, %s35
      %p39 = scmp.eq.s32.totalorder %s13, 0
      %p40 = por %p38, %p39
      %p41 = scmp.ne.s32.totalorder %s33, %s35
      %p42 = scmp.eq.s32.totalorder %s18, 7
      %p43 = por %p41, %p42
      %p44 = scmp.ne.s32.totalorder %s35, %s36
      %p45 = scmp.eq.s32.totalorder %s18, 0
      %p46 = por %p44, %p45
      %p47 = scmp.ne.s32.totalorder %s35, %s36
      %p48 = scmp.eq.s32.totalorder %s19, 7
      %p49 = por %p47, %p48
      %p51 = scmp.ne.s32.totalorder %s36, %s50
      %p52 = scmp.eq.s32.totalorder %s19, 0
      %p53 = por %p51, %p52
      %s55 = sadd.s32 %s54, 1
      %p58 = scmp.eq.s32.totalorder %s13, 7
      %p59 = scmp.ne.s32.totalorder %s54, %s56
      %p60 = scmp.eq.s32.totalorder %s13, 0
      %p61 = por %p59, %p60
      %p62 = scmp.ne.s32.totalorder %s54, %s56
      %p63 = scmp.eq.s32.totalorder %s18, 7
      %p64 = por %p62, %p63
      %p65 = scmp.ne.s32.totalorder %s56, %s57
      %p66 = scmp.eq.s32.totalorder %s18, 0
      %p67 = por %p65, %p66
      %p68 = scmp.ne.s32.totalorder %s56, %s57
      %p69 = scmp.eq.s32.totalorder %s19, 7
      %p70 = por %p68, %p69
      %p72 = scmp.ne.s32.totalorder %s57, %s71
      %p73 = scmp.eq.s32.totalorder %s19, 0
      %p74 = por %p72, %p73
      %s76 = sadd.s32 %s75, 1
      %p79 = scmp.eq.s32.totalorder %s13, 7
      %p80 = scmp.ne.s32.totalorder %s75, %s77
      %p81 = scmp.eq.s32.totalorder %s13, 0
      %p82 = por %p80, %p81
      %p83 = scmp.ne.s32.totalorder %s75, %s77
      %p84 = scmp.eq.s32.totalorder %s18, 7
      %p85 = por %p83, %p84
      %p86 = scmp.ne.s32.totalorder %s77, %s78
      %p87 = scmp.eq.s32.totalorder %s18, 0
      %p88 = por %p86, %p87
      %p89 = scmp.ne.s32.totalorder %s77, %s78
      %p90 = scmp.eq.s32.totalorder %s19, 7
      %p91 = por %p89, %p90
      %p93 = scmp.ne.s32.totalorder %s78, %s92
      %p94 = scmp.eq.s32.totalorder %s19, 0
      %p95 = por %p93, %p94
      %s97 = sadd.s32 %s96, 1
      %p100 = scmp.eq.s32.totalorder %s13, 7
      %p101 = scmp.ne.s32.totalorder %s96, %s98
      %p102 = scmp.eq.s32.totalorder %s13, 0
      %p103 = por %p101, %p102
      %p104 = scmp.ne.s32.totalorder %s96, %s98
      %p105 = scmp.eq.s32.totalorder %s18, 7
      %p106 = por %p104, %p105
      %p107 = scmp.ne.s32.totalorder %s98, %s99
      %p108 = scmp.eq.s32.totalorder %s18, 0
      %p109 = por %p107, %p108
      %p110 = scmp.ne.s32.totalorder %s98, %s99
      %p111 = scmp.eq.s32.totalorder %s19, 7
      %p112 = por %p110, %p111
      %p114 = scmp.ne.s32.totalorder %s99, %s113
      %p115 = scmp.eq.s32.totalorder %s19, 0
      %p116 = por %p114, %p115
      %s118 = sadd.s32 %s117, 1
      %p121 = scmp.eq.s32.totalorder %s13, 7
      %p122 = scmp.ne.s32.totalorder %s117, %s119
      %p123 = scmp.eq.s32.totalorder %s13, 0
      %p124 = por %p122, %p123
      %p125 = scmp.ne.s32.totalorder %s117, %s119
      %p126 = scmp.eq.s32.totalorder %s18, 7
      %p127 = por %p125, %p126
      %p128 = scmp.ne.s32.totalorder %s119, %s120
      %p129 = scmp.eq.s32.totalorder %s18, 0
      %p130 = por %p128, %p129
      %p131 = scmp.ne.s32.totalorder %s119, %s120
      %p132 = scmp.eq.s32.totalorder %s19, 7
      %p133 = por %p131, %p132
      %p135 = scmp.ne.s32.totalorder %s120, %s134
      %p136 = scmp.eq.s32.totalorder %s19, 0
      %p137 = por %p135, %p136
      %s138 = ssub.s32 %s20, %s32
      %s139 = ssub.s32 %s21, %s28
      %s140 = sor.u32 %s138, %s139
      %p141 = scmp.eq.s32.totalorder %s140, 0
      %s143 = sadd.s32 %s142, 1
      %s144 = scalar_select %p141, %s142, %s143
      %p147 = pneg %p141
      %p148 = scmp.eq.s32.totalorder %s13, 7
      %p149 = por %p147, %p148
      %p150 = scmp.ne.s32.totalorder %s142, %s145
      %p151 = scmp.eq.s32.totalorder %s13, 0
      %p152 = por %p150, %p151
      %p153 = scmp.ne.s32.totalorder %s142, %s145
      %p154 = scmp.eq.s32.totalorder %s18, 7
      %p155 = por %p153, %p154
      %p156 = scmp.ne.s32.totalorder %s145, %s146
      %p157 = scmp.eq.s32.totalorder %s18, 0
      %p158 = por %p156, %p157
      %p159 = scmp.ne.s32.totalorder %s145, %s146
      %p160 = scmp.eq.s32.totalorder %s19, 7
      %p161 = por %p159, %p160
      %p163 = scmp.ne.s32.totalorder %s146, %s162
      %p164 = scmp.eq.s32.totalorder %s19, 0
      %p165 = por %p163, %p164
      %s166 = ssub.s32 %s20, %s32
      %s167 = ssub.s32 %s21, %s28
      %s168 = sor.u32 %s166, %s167
      %p169 = scmp.eq.s32.totalorder %s168, 0
      %s171 = sadd.s32 %s170, 1
      %s172 = scalar_select %p169, %s170, %s171
      %p175 = pneg %p169
      %p176 = scmp.eq.s32.totalorder %s13, 7
      %p177 = por %p175, %p176
      %p178 = scmp.ne.s32.totalorder %s170, %s173
      %p179 = scmp.eq.s32.totalorder %s13, 0
      %p180 = por %p178, %p179
      %p181 = scmp.ne.s32.totalorder %s170, %s173
      %p182 = scmp.eq.s32.totalorder %s18, 7
      %p183 = por %p181, %p182
      %p184 = scmp.ne.s32.totalorder %s173, %s174
      %p185 = scmp.eq.s32.totalorder %s18, 0
      %p186 = por %p184, %p185
      %p187 = scmp.ne.s32.totalorder %s173, %s174
      %p188 = scmp.eq.s32.totalorder %s19, 7
      %p189 = por %p187, %p188
      %p191 = scmp.ne.s32.totalorder %s174, %s190
      %p192 = scmp.eq.s32.totalorder %s19, 0
      %p193 = por %p191, %p192
      %s194 = ssub.s32 %s20, %s32
      %s195 = ssub.s32 %s21, %s28
      %s196 = sor.u32 %s194, %s195
      %p197 = scmp.eq.s32.totalorder %s196, 0
      %s199 = sadd.s32 %s198, 1
      %s200 = scalar_select %p197, %s198, %s199
      %p203 = pneg %p197
      %p204 = scmp.eq.s32.totalorder %s13, 7
      %p205 = por %p203, %p204
      %p206 = scmp.ne.s32.totalorder %s198, %s201
      %p207 = scmp.eq.s32.totalorder %s13, 0
      %p208 = por %p206, %p207
      %p209 = scmp.ne.s32.totalorder %s198, %s201
      %p210 = scmp.eq.s32.totalorder %s18, 7
      %p211 = por %p209, %p210
      %p212 = scmp.ne.s32.totalorder %s201, %s202
      %p213 = scmp.eq.s32.totalorder %s18, 0
      %p214 = por %p212, %p213
      %p215 = scmp.ne.s32.totalorder %s201, %s202
      %p216 = scmp.eq.s32.totalorder %s19, 7
      %p217 = por %p215, %p216
      %p219 = scmp.ne.s32.totalorder %s202, %s218
      %p220 = scmp.eq.s32.totalorder %s19, 0
      %p221 = por %p219, %p220
      %p222 = scmp.le.s32.totalorder 1, %s13
      %p223 = scmp.lt.s32.totalorder %s13, 9
      %p224 = pnand %p222, %p223
      %p225 = pneg %p224
      // Predicated region
      $region9: #{calib_per_sample_t_forward.3} parent=5 // pred_check
        _
      $region10: #{calib_per_sample_t_forward.3} parent=5 // pred_check_branch
        %227 = sbr.rel (%p224) target = $region12
      $region11: #{calib_per_sample_t_forward.3} parent=5 // pred_region
        %s228 = ssub.s32 %s13, 1
        // Predicated region
        $region13: #{calib_per_sample_t_forward.3} parent=11 // pred_check
          %p229 = pneg %p46
        $region14: #{calib_per_sample_t_forward.3} parent=11 // pred_check_branch
          %231 = sbr.rel (%p229) target = $region16
        $region15: #{calib_per_sample_t_forward.3} parent=11 // pred_region
          _
        $region16: #{calib_per_sample_t_forward.3} parent=11 // pred_fallthru
          _
        // Predicated region
        $region17: #{calib_per_sample_t_forward.3} parent=11 // pred_check
          %p232 = pneg %p67
        $region18: #{calib_per_sample_t_forward.3} parent=11 // pred_check_branch
          %234 = sbr.rel (%p232) target = $region20
        $region19: #{calib_per_sample_t_forward.3} parent=11 // pred_region
          _
        $region20: #{calib_per_sample_t_forward.3} parent=11 // pred_fallthru
          _
        // Predicated region
        $region21: #{calib_per_sample_t_forward.3} parent=11 // pred_check
          %p235 = pneg %p88
        $region22: #{calib_per_sample_t_forward.3} parent=11 // pred_check_branch
          %237 = sbr.rel (%p235) target = $region24
        $region23: #{calib_per_sample_t_forward.3} parent=11 // pred_region
          _
        $region24: #{calib_per_sample_t_forward.3} parent=11 // pred_fallthru
          _
        // Predicated region
        $region25: #{calib_per_sample_t_forward.3} parent=11 // pred_check
          %p238 = pneg %p109
        $region26: #{calib_per_sample_t_forward.3} parent=11 // pred_check_branch
          %240 = sbr.rel (%p238) target = $region28
        $region27: #{calib_per_sample_t_forward.3} parent=11 // pred_region
          _
        $region28: #{calib_per_sample_t_forward.3} parent=11 // pred_fallthru
          _
        // Predicated region
        $region29: #{calib_per_sample_t_forward.3} parent=11 // pred_check
          %p241 = pneg %p130
        $region30: #{calib_per_sample_t_forward.3} parent=11 // pred_check_branch
          %243 = sbr.rel (%p241) target = $region32
        $region31: #{calib_per_sample_t_forward.3} parent=11 // pred_region
          _
        $region32: #{calib_per_sample_t_forward.3} parent=11 // pred_fallthru
          _
      $region12: #{calib_per_sample_t_forward.3} parent=5 // pred_fallthru
        _
      %p244 = scmp.lt.s32.totalorder %s13, 8
      // Predicated region
      $region33: #{calib_per_sample_t_forward.3} parent=5 // pred_check
        %p245 = pneg %p244
      $region34: #{calib_per_sample_t_forward.3} parent=5 // pred_check_branch
        %247 = sbr.rel (%p245) target = $region36
      $region35: #{calib_per_sample_t_forward.3} parent=5 // pred_region
        // Predicated region
        $region37: #{calib_per_sample_t_forward.3} parent=35 // pred_check
          %p248 = pneg %p152
        $region38: #{calib_per_sample_t_forward.3} parent=35 // pred_check_branch
          %250 = sbr.rel (%p248) target = $region40
        $region39: #{calib_per_sample_t_forward.3} parent=35 // pred_region
          %s251 = sand.u32 %s142, 1
          %s252 = sand.u32 %s142, 1
          %s253 = smul.addr %s252, 608
          %s254 = scalar_lea.vmem [#allocation2], %s253
          %s255 = smul.u32 4, %s21
          %s256 = smul.addr %s20, 304
          %s257 = sadd.s32 %s255, %s256
          %s258 = smul.addr %s257, 8
          %s259 = scalar_lea.vmem %s5, %s258
          // Predicated region
          $region41: #{calib_per_sample_t_forward.3} parent=39 // pred_check
            _
          $region42: #{calib_per_sample_t_forward.3} parent=39 // pred_check_branch
            %261 = sbr.rel (0) target = $region44
          $region43: #{calib_per_sample_t_forward.3} parent=39 // pred_region
            // Predicated region
            $region45: #{calib_per_sample_t_forward.3} parent=43 // pred_check
              _
            $region46: #{calib_per_sample_t_forward.3} parent=43 // pred_check_branch
              %263 = sbr.rel (0) target = $region48
            $region47: #{calib_per_sample_t_forward.3} parent=43 // pred_region
              // Predicated region
              $region60: #{calib_per_sample_t_forward.3} parent=47 // pred_check
                _
              $region61: #{calib_per_sample_t_forward.3} parent=47 // pred_check_branch
                %428 = sbr.rel (0) target = $region63
              $region62: #{calib_per_sample_t_forward.3} parent=47 // pred_region
                loop: start=0, step=1, limit=1
                $region64: #{calib_per_sample_t_forward.3} parent=62 // loop_pre_header
                  _
                $region65: #{calib_per_sample_t_forward.3} parent=62 // loop_header
                  %s430 = sphi 0, %s434
                  %p431 = scmp.ge.s32.totalorder %s430, 1
                  %s435 = sphi %s259, %s259
                  %s436 = sphi %s254, %s254
                $region66: #{calib_per_sample_t_forward.3} parent=62 // loop_header_branch
                  %433 = sbr.rel (%p431) target = $region70
                $region67: #{calib_per_sample_t_forward.3} parent=62 // loop_body
                  %v437 = vld [vmem:[%s435] sm:$0xff]
                  %438 = vst [vmem:[%s436] sm:$0xff] %v437
                  %v439 = vld [vmem:[%s435 + $0x8] sm:$0xff]
                  %440 = vst [vmem:[%s436 + $0x8] sm:$0xff] %v439
                  %v441 = vld [vmem:[%s435 + $0x10] sm:$0xff]
                  %442 = vst [vmem:[%s436 + $0x10] sm:$0xff] %v441
                  %v443 = vld [vmem:[%s435 + $0x18] sm:$0xff]
                  %444 = vst [vmem:[%s436 + $0x18] sm:$0xff] %v443
                  %v445 = vld [vmem:[%s435 + $0x80] sm:$0xff]
                  %446 = vst [vmem:[%s436 + $0x20] sm:$0xff] %v445
                  %v447 = vld [vmem:[%s435 + $0x88] sm:$0xff]
                  %448 = vst [vmem:[%s436 + $0x28] sm:$0xff] %v447
                  %v449 = vld [vmem:[%s435 + $0x90] sm:$0xff]
                  %450 = vst [vmem:[%s436 + $0x30] sm:$0xff] %v449
                  %v451 = vld [vmem:[%s435 + $0x98] sm:$0xff]
                  %452 = vst [vmem:[%s436 + $0x38] sm:$0xff] %v451
                  %v453 = vld [vmem:[%s435 + $0x100] sm:$0xff]
                  %454 = vst [vmem:[%s436 + $0x40] sm:$0xff] %v453
                  %v455 = vld [vmem:[%s435 + $0x108] sm:$0xff]
                  %456 = vst [vmem:[%s436 + $0x48] sm:$0xff] %v455
                  %v457 = vld [vmem:[%s435 + $0x110] sm:$0xff]
                  %458 = vst [vmem:[%s436 + $0x50] sm:$0xff] %v457
                  %v459 = vld [vmem:[%s435 + $0x118] sm:$0xff]
                  %460 = vst [vmem:[%s436 + $0x58] sm:$0xff] %v459
                  %v461 = vld [vmem:[%s435 + $0x180] sm:$0xff]
                  %462 = vst [vmem:[%s436 + $0x60] sm:$0xff] %v461
                  %v463 = vld [vmem:[%s435 + $0x188] sm:$0xff]
                  %464 = vst [vmem:[%s436 + $0x68] sm:$0xff] %v463
                  %v465 = vld [vmem:[%s435 + $0x190] sm:$0xff]
                  %466 = vst [vmem:[%s436 + $0x70] sm:$0xff] %v465
                  %v467 = vld [vmem:[%s435 + $0x198] sm:$0xff]
                  %468 = vst [vmem:[%s436 + $0x78] sm:$0xff] %v467
                  %v469 = vld [vmem:[%s435 + $0x200] sm:$0xff]
                  %470 = vst [vmem:[%s436 + $0x80] sm:$0xff] %v469
                  %v471 = vld [vmem:[%s435 + $0x208] sm:$0xff]
                  %472 = vst [vmem:[%s436 + $0x88] sm:$0xff] %v471
                  %v473 = vld [vmem:[%s435 + $0x210] sm:$0xff]
                  %474 = vst [vmem:[%s436 + $0x90] sm:$0xff] %v473
                  %v475 = vld [vmem:[%s435 + $0x218] sm:$0xff]
                  %476 = vst [vmem:[%s436 + $0x98] sm:$0xff] %v475
                  %v477 = vld [vmem:[%s435 + $0x280] sm:$0xff]
                  %478 = vst [vmem:[%s436 + $0xa0] sm:$0xff] %v477
                  %v479 = vld [vmem:[%s435 + $0x288] sm:$0xff]
                  %480 = vst [vmem:[%s436 + $0xa8] sm:$0xff] %v479
                  %v481 = vld [vmem:[%s435 + $0x290] sm:$0xff]
                  %482 = vst [vmem:[%s436 + $0xb0] sm:$0xff] %v481
                  %v483 = vld [vmem:[%s435 + $0x298] sm:$0xff]
                  %484 = vst [vmem:[%s436 + $0xb8] sm:$0xff] %v483
                  %v485 = vld [vmem:[%s435 + $0x300] sm:$0xff]
                  %486 = vst [vmem:[%s436 + $0xc0] sm:$0xff] %v485
                  %v487 = vld [vmem:[%s435 + $0x308] sm:$0xff]
                  %488 = vst [vmem:[%s436 + $0xc8] sm:$0xff] %v487
                  %v489 = vld [vmem:[%s435 + $0x310] sm:$0xff]
                  %490 = vst [vmem:[%s436 + $0xd0] sm:$0xff] %v489
                  %v491 = vld [vmem:[%s435 + $0x318] sm:$0xff]
                  %492 = vst [vmem:[%s436 + $0xd8] sm:$0xff] %v491
                  %v493 = vld [vmem:[%s435 + $0x380] sm:$0xff]
                  %494 = vst [vmem:[%s436 + $0xe0] sm:$0xff] %v493
                  %v495 = vld [vmem:[%s435 + $0x388] sm:$0xff]
                  %496 = vst [vmem:[%s436 + $0xe8] sm:$0xff] %v495
                  %v497 = vld [vmem:[%s435 + $0x390] sm:$0xff]
                  %498 = vst [vmem:[%s436 + $0xf0] sm:$0xff] %v497
                  %v499 = vld [vmem:[%s435 + $0x398] sm:$0xff]
                  %500 = vst [vmem:[%s436 + $0xf8] sm:$0xff] %v499
                  %v501 = vld [vmem:[%s435 + $0x400] sm:$0xff]
                  %502 = vst [vmem:[%s436 + $0x100] sm:$0xff] %v501
                  %v503 = vld [vmem:[%s435 + $0x408] sm:$0xff]
                  %504 = vst [vmem:[%s436 + $0x108] sm:$0xff] %v503
                  %v505 = vld [vmem:[%s435 + $0x410] sm:$0xff]
                  %506 = vst [vmem:[%s436 + $0x110] sm:$0xff] %v505
                  %v507 = vld [vmem:[%s435 + $0x418] sm:$0xff]
                  %508 = vst [vmem:[%s436 + $0x118] sm:$0xff] %v507
                  %v509 = vld [vmem:[%s435 + $0x480] sm:$0xff]
                  %510 = vst [vmem:[%s436 + $0x120] sm:$0xff] %v509
                  %v511 = vld [vmem:[%s435 + $0x488] sm:$0xff]
                  %512 = vst [vmem:[%s436 + $0x128] sm:$0xff] %v511
                  %v513 = vld [vmem:[%s435 + $0x490] sm:$0xff]
                  %514 = vst [vmem:[%s436 + $0x130] sm:$0xff] %v513
                  %v515 = vld [vmem:[%s435 + $0x498] sm:$0xff]
                  %516 = vst [vmem:[%s436 + $0x138] sm:$0xff] %v515
                  %v517 = vld [vmem:[%s435 + $0x500] sm:$0xff]
                  %518 = vst [vmem:[%s436 + $0x140] sm:$0xff] %v517
                  %v519 = vld [vmem:[%s435 + $0x508] sm:$0xff]
                  %520 = vst [vmem:[%s436 + $0x148] sm:$0xff] %v519
                  %v521 = vld [vmem:[%s435 + $0x510] sm:$0xff]
                  %522 = vst [vmem:[%s436 + $0x150] sm:$0xff] %v521
                  %v523 = vld [vmem:[%s435 + $0x518] sm:$0xff]
                  %524 = vst [vmem:[%s436 + $0x158] sm:$0xff] %v523
                  %v525 = vld [vmem:[%s435 + $0x580] sm:$0xff]
                  %526 = vst [vmem:[%s436 + $0x160] sm:$0xff] %v525
                  %v527 = vld [vmem:[%s435 + $0x588] sm:$0xff]
                  %528 = vst [vmem:[%s436 + $0x168] sm:$0xff] %v527
                  %v529 = vld [vmem:[%s435 + $0x590] sm:$0xff]
                  %530 = vst [vmem:[%s436 + $0x170] sm:$0xff] %v529
                  %v531 = vld [vmem:[%s435 + $0x598] sm:$0xff]
                  %532 = vst [vmem:[%s436 + $0x178] sm:$0xff] %v531
                  %v533 = vld [vmem:[%s435 + $0x600] sm:$0xff]
                  %534 = vst [vmem:[%s436 + $0x180] sm:$0xff] %v533
                  %v535 = vld [vmem:[%s435 + $0x608] sm:$0xff]
                  %536 = vst [vmem:[%s436 + $0x188] sm:$0xff] %v535
                  %v537 = vld [vmem:[%s435 + $0x610] sm:$0xff]
                  %538 = vst [vmem:[%s436 + $0x190] sm:$0xff] %v537
                  %v539 = vld [vmem:[%s435 + $0x618] sm:$0xff]
                  %540 = vst [vmem:[%s436 + $0x198] sm:$0xff] %v539
                  %v541 = vld [vmem:[%s435 + $0x680] sm:$0xff]
                  %542 = vst [vmem:[%s436 + $0x1a0] sm:$0xff] %v541
                  %v543 = vld [vmem:[%s435 + $0x688] sm:$0xff]
                  %544 = vst [vmem:[%s436 + $0x1a8] sm:$0xff] %v543
                  %v545 = vld [vmem:[%s435 + $0x690] sm:$0xff]
                  %546 = vst [vmem:[%s436 + $0x1b0] sm:$0xff] %v545
                  %v547 = vld [vmem:[%s435 + $0x698] sm:$0xff]
                  %548 = vst [vmem:[%s436 + $0x1b8] sm:$0xff] %v547
                  %v549 = vld [vmem:[%s435 + $0x700] sm:$0xff]
                  %550 = vst [vmem:[%s436 + $0x1c0] sm:$0xff] %v549
                  %v551 = vld [vmem:[%s435 + $0x708] sm:$0xff]
                  %552 = vst [vmem:[%s436 + $0x1c8] sm:$0xff] %v551
                  %v553 = vld [vmem:[%s435 + $0x710] sm:$0xff]
                  %554 = vst [vmem:[%s436 + $0x1d0] sm:$0xff] %v553
                  %v555 = vld [vmem:[%s435 + $0x718] sm:$0xff]
                  %556 = vst [vmem:[%s436 + $0x1d8] sm:$0xff] %v555
                  %v557 = vld [vmem:[%s435 + $0x780] sm:$0xff]
                  %558 = vst [vmem:[%s436 + $0x1e0] sm:$0xff] %v557
                  %v559 = vld [vmem:[%s435 + $0x788] sm:$0xff]
                  %560 = vst [vmem:[%s436 + $0x1e8] sm:$0xff] %v559
                  %v561 = vld [vmem:[%s435 + $0x790] sm:$0xff]
                  %562 = vst [vmem:[%s436 + $0x1f0] sm:$0xff] %v561
                  %v563 = vld [vmem:[%s435 + $0x798] sm:$0xff]
                  %564 = vst [vmem:[%s436 + $0x1f8] sm:$0xff] %v563
                  %v565 = vld [vmem:[%s435 + $0x800] sm:$0xff]
                  %566 = vst [vmem:[%s436 + $0x200] sm:$0xff] %v565
                  %v567 = vld [vmem:[%s435 + $0x808] sm:$0xff]
                  %568 = vst [vmem:[%s436 + $0x208] sm:$0xff] %v567
                  %v569 = vld [vmem:[%s435 + $0x810] sm:$0xff]
                  %570 = vst [vmem:[%s436 + $0x210] sm:$0xff] %v569
                  %v571 = vld [vmem:[%s435 + $0x818] sm:$0xff]
                  %572 = vst [vmem:[%s436 + $0x218] sm:$0xff] %v571
                  %v573 = vld [vmem:[%s435 + $0x880] sm:$0xff]
                  %574 = vst [vmem:[%s436 + $0x220] sm:$0xff] %v573
                  %v575 = vld [vmem:[%s435 + $0x888] sm:$0xff]
                  %576 = vst [vmem:[%s436 + $0x228] sm:$0xff] %v575
                  %v577 = vld [vmem:[%s435 + $0x890] sm:$0xff]
                  %578 = vst [vmem:[%s436 + $0x230] sm:$0xff] %v577
                  %v579 = vld [vmem:[%s435 + $0x898] sm:$0xff]
                  %580 = vst [vmem:[%s436 + $0x238] sm:$0xff] %v579
                  %v581 = vld [vmem:[%s435 + $0x900] sm:$0xff]
                  %582 = vst [vmem:[%s436 + $0x240] sm:$0xff] %v581
                  %v583 = vld [vmem:[%s435 + $0x908] sm:$0xff]
                  %584 = vst [vmem:[%s436 + $0x248] sm:$0xff] %v583
                  %v585 = vld [vmem:[%s435 + $0x910] sm:$0xff]
                  %586 = vst [vmem:[%s436 + $0x250] sm:$0xff] %v585
                  %v587 = vld [vmem:[%s435 + $0x918] sm:$0xff]
                  %588 = vst [vmem:[%s436 + $0x258] sm:$0xff] %v587
                $region68: #{calib_per_sample_t_forward.3} parent=62 // loop_footer
                  %s434 = sadd.s32 1, %s430
                $region69: #{calib_per_sample_t_forward.3} parent=62 // loop_footer_branch
                  %429 = sbr.rel target = $region65
                $region70: #{calib_per_sample_t_forward.3} parent=62 // loop_exit
                  _
              $region63: #{calib_per_sample_t_forward.3} parent=47 // pred_fallthru
                _
              // Predicated region
              $region71: #{calib_per_sample_t_forward.3} parent=47 // pred_check
                _
              $region72: #{calib_per_sample_t_forward.3} parent=47 // pred_check_branch
                %590 = sbr.rel target = $region74
              $region73: #{calib_per_sample_t_forward.3} parent=47 // pred_region
                _
              $region74: #{calib_per_sample_t_forward.3} parent=47 // pred_fallthru
                _
            $region48: #{calib_per_sample_t_forward.3} parent=43 // pred_fallthru
              _
            // Predicated region
            $region49: #{calib_per_sample_t_forward.3} parent=43 // pred_check
              _
            $region50: #{calib_per_sample_t_forward.3} parent=43 // pred_check_branch
              %265 = sbr.rel target = $region52
            $region51: #{calib_per_sample_t_forward.3} parent=43 // pred_region
              loop: start=0, step=1, limit=1
              $region53: #{calib_per_sample_t_forward.3} parent=51 // loop_pre_header
                _
              $region54: #{calib_per_sample_t_forward.3} parent=51 // loop_header
                %s268 = sphi 0, %s272
                %p269 = scmp.ge.s32.totalorder %s268, 1
                %s273 = sphi %s259, %s259
                %s274 = sphi %s254, %s254
              $region55: #{calib_per_sample_t_forward.3} parent=51 // loop_header_branch
                %271 = sbr.rel (%p269) target = $region59
              $region56: #{calib_per_sample_t_forward.3} parent=51 // loop_body
                %v275 = vld [vmem:[%s273] sm:$0xff]
                %276 = vst [vmem:[%s274] sm:$0xff] %v275
                %v277 = vld [vmem:[%s273 + $0x8] sm:$0xff]
                %278 = vst [vmem:[%s274 + $0x8] sm:$0xff] %v277
                %v279 = vld [vmem:[%s273 + $0x10] sm:$0xff]
                %280 = vst [vmem:[%s274 + $0x10] sm:$0xff] %v279
                %v281 = vld [vmem:[%s273 + $0x18] sm:$0xff]
                %282 = vst [vmem:[%s274 + $0x18] sm:$0xff] %v281
                %v283 = vld [vmem:[%s273 + $0x80] sm:$0xff]
                %284 = vst [vmem:[%s274 + $0x20] sm:$0xff] %v283
                %v285 = vld [vmem:[%s273 + $0x88] sm:$0xff]
                %286 = vst [vmem:[%s274 + $0x28] sm:$0xff] %v285
                %v287 = vld [vmem:[%s273 + $0x90] sm:$0xff]
                %288 = vst [vmem:[%s274 + $0x30] sm:$0xff] %v287
                %v289 = vld [vmem:[%s273 + $0x98] sm:$0xff]
                %290 = vst [vmem:[%s274 + $0x38] sm:$0xff] %v289
                %v291 = vld [vmem:[%s273 + $0x100] sm:$0xff]
                %292 = vst [vmem:[%s274 + $0x40] sm:$0xff] %v291
                %v293 = vld [vmem:[%s273 + $0x108] sm:$0xff]
                %294 = vst [vmem:[%s274 + $0x48] sm:$0xff] %v293
                %v295 = vld [vmem:[%s273 + $0x110] sm:$0xff]
                %296 = vst [vmem:[%s274 + $0x50] sm:$0xff] %v295
                %v297 = vld [vmem:[%s273 + $0x118] sm:$0xff]
                %298 = vst [vmem:[%s274 + $0x58] sm:$0xff] %v297
                %v299 = vld [vmem:[%s273 + $0x180] sm:$0xff]
                %300 = vst [vmem:[%s274 + $0x60] sm:$0xff] %v299
                %v301 = vld [vmem:[%s273 + $0x188] sm:$0xff]
                %302 = vst [vmem:[%s274 + $0x68] sm:$0xff] %v301
                %v303 = vld [vmem:[%s273 + $0x190] sm:$0xff]
                %304 = vst [vmem:[%s274 + $0x70] sm:$0xff] %v303
                %v305 = vld [vmem:[%s273 + $0x198] sm:$0xff]
                %306 = vst [vmem:[%s274 + $0x78] sm:$0xff] %v305
                %v307 = vld [vmem:[%s273 + $0x200] sm:$0xff]
                %308 = vst [vmem:[%s274 + $0x80] sm:$0xff] %v307
                %v309 = vld [vmem:[%s273 + $0x208] sm:$0xff]
                %310 = vst [vmem:[%s274 + $0x88] sm:$0xff] %v309
                %v311 = vld [vmem:[%s273 + $0x210] sm:$0xff]
                %312 = vst [vmem:[%s274 + $0x90] sm:$0xff] %v311
                %v313 = vld [vmem:[%s273 + $0x218] sm:$0xff]
                %314 = vst [vmem:[%s274 + $0x98] sm:$0xff] %v313
                %v315 = vld [vmem:[%s273 + $0x280] sm:$0xff]
                %316 = vst [vmem:[%s274 + $0xa0] sm:$0xff] %v315
                %v317 = vld [vmem:[%s273 + $0x288] sm:$0xff]
                %318 = vst [vmem:[%s274 + $0xa8] sm:$0xff] %v317
                %v319 = vld [vmem:[%s273 + $0x290] sm:$0xff]
                %320 = vst [vmem:[%s274 + $0xb0] sm:$0xff] %v319
                %v321 = vld [vmem:[%s273 + $0x298] sm:$0xff]
                %322 = vst [vmem:[%s274 + $0xb8] sm:$0xff] %v321
                %v323 = vld [vmem:[%s273 + $0x300] sm:$0xff]
                %324 = vst [vmem:[%s274 + $0xc0] sm:$0xff] %v323
                %v325 = vld [vmem:[%s273 + $0x308] sm:$0xff]
                %326 = vst [vmem:[%s274 + $0xc8] sm:$0xff] %v325
                %v327 = vld [vmem:[%s273 + $0x310] sm:$0xff]
                %328 = vst [vmem:[%s274 + $0xd0] sm:$0xff] %v327
                %v329 = vld [vmem:[%s273 + $0x318] sm:$0xff]
                %330 = vst [vmem:[%s274 + $0xd8] sm:$0xff] %v329
                %v331 = vld [vmem:[%s273 + $0x380] sm:$0xff]
                %332 = vst [vmem:[%s274 + $0xe0] sm:$0xff] %v331
                %v333 = vld [vmem:[%s273 + $0x388] sm:$0xff]
                %334 = vst [vmem:[%s274 + $0xe8] sm:$0xff] %v333
                %v335 = vld [vmem:[%s273 + $0x390] sm:$0xff]
                %336 = vst [vmem:[%s274 + $0xf0] sm:$0xff] %v335
                %v337 = vld [vmem:[%s273 + $0x398] sm:$0xff]
                %338 = vst [vmem:[%s274 + $0xf8] sm:$0xff] %v337
                %v339 = vld [vmem:[%s273 + $0x400] sm:$0xff]
                %340 = vst [vmem:[%s274 + $0x100] sm:$0xff] %v339
                %v341 = vld [vmem:[%s273 + $0x408] sm:$0xff]
                %342 = vst [vmem:[%s274 + $0x108] sm:$0xff] %v341
                %v343 = vld [vmem:[%s273 + $0x410] sm:$0xff]
                %344 = vst [vmem:[%s274 + $0x110] sm:$0xff] %v343
                %v345 = vld [vmem:[%s273 + $0x418] sm:$0xff]
                %346 = vst [vmem:[%s274 + $0x118] sm:$0xff] %v345
                %v347 = vld [vmem:[%s273 + $0x480] sm:$0xff]
                %348 = vst [vmem:[%s274 + $0x120] sm:$0xff] %v347
                %v349 = vld [vmem:[%s273 + $0x488] sm:$0xff]
                %350 = vst [vmem:[%s274 + $0x128] sm:$0xff] %v349
                %v351 = vld [vmem:[%s273 + $0x490] sm:$0xff]
                %352 = vst [vmem:[%s274 + $0x130] sm:$0xff] %v351
                %v353 = vld [vmem:[%s273 + $0x498] sm:$0xff]
                %354 = vst [vmem:[%s274 + $0x138] sm:$0xff] %v353
                %v355 = vld [vmem:[%s273 + $0x500] sm:$0xff]
                %356 = vst [vmem:[%s274 + $0x140] sm:$0xff] %v355
                %v357 = vld [vmem:[%s273 + $0x508] sm:$0xff]
                %358 = vst [vmem:[%s274 + $0x148] sm:$0xff] %v357
                %v359 = vld [vmem:[%s273 + $0x510] sm:$0xff]
                %360 = vst [vmem:[%s274 + $0x150] sm:$0xff] %v359
                %v361 = vld [vmem:[%s273 + $0x518] sm:$0xff]
                %362 = vst [vmem:[%s274 + $0x158] sm:$0xff] %v361
                %v363 = vld [vmem:[%s273 + $0x580] sm:$0xff]
                %364 = vst [vmem:[%s274 + $0x160] sm:$0xff] %v363
                %v365 = vld [vmem:[%s273 + $0x588] sm:$0xff]
                %366 = vst [vmem:[%s274 + $0x168] sm:$0xff] %v365
                %v367 = vld [vmem:[%s273 + $0x590] sm:$0xff]
                %368 = vst [vmem:[%s274 + $0x170] sm:$0xff] %v367
                %v369 = vld [vmem:[%s273 + $0x598] sm:$0xff]
                %370 = vst [vmem:[%s274 + $0x178] sm:$0xff] %v369
                %v371 = vld [vmem:[%s273 + $0x600] sm:$0xff]
                %372 = vst [vmem:[%s274 + $0x180] sm:$0xff] %v371
                %v373 = vld [vmem:[%s273 + $0x608] sm:$0xff]
                %374 = vst [vmem:[%s274 + $0x188] sm:$0xff] %v373
                %v375 = vld [vmem:[%s273 + $0x610] sm:$0xff]
                %376 = vst [vmem:[%s274 + $0x190] sm:$0xff] %v375
                %v377 = vld [vmem:[%s273 + $0x618] sm:$0xff]
                %378 = vst [vmem:[%s274 + $0x198] sm:$0xff] %v377
                %v379 = vld [vmem:[%s273 + $0x680] sm:$0xff]
                %380 = vst [vmem:[%s274 + $0x1a0] sm:$0xff] %v379
                %v381 = vld [vmem:[%s273 + $0x688] sm:$0xff]
                %382 = vst [vmem:[%s274 + $0x1a8] sm:$0xff] %v381
                %v383 = vld [vmem:[%s273 + $0x690] sm:$0xff]
                %384 = vst [vmem:[%s274 + $0x1b0] sm:$0xff] %v383
                %v385 = vld [vmem:[%s273 + $0x698] sm:$0xff]
                %386 = vst [vmem:[%s274 + $0x1b8] sm:$0xff] %v385
                %v387 = vld [vmem:[%s273 + $0x700] sm:$0xff]
                %388 = vst [vmem:[%s274 + $0x1c0] sm:$0xff] %v387
                %v389 = vld [vmem:[%s273 + $0x708] sm:$0xff]
                %390 = vst [vmem:[%s274 + $0x1c8] sm:$0xff] %v389
                %v391 = vld [vmem:[%s273 + $0x710] sm:$0xff]
                %392 = vst [vmem:[%s274 + $0x1d0] sm:$0xff] %v391
                %v393 = vld [vmem:[%s273 + $0x718] sm:$0xff]
                %394 = vst [vmem:[%s274 + $0x1d8] sm:$0xff] %v393
                %v395 = vld [vmem:[%s273 + $0x780] sm:$0xff]
                %396 = vst [vmem:[%s274 + $0x1e0] sm:$0xff] %v395
                %v397 = vld [vmem:[%s273 + $0x788] sm:$0xff]
                %398 = vst [vmem:[%s274 + $0x1e8] sm:$0xff] %v397
                %v399 = vld [vmem:[%s273 + $0x790] sm:$0xff]
                %400 = vst [vmem:[%s274 + $0x1f0] sm:$0xff] %v399
                %v401 = vld [vmem:[%s273 + $0x798] sm:$0xff]
                %402 = vst [vmem:[%s274 + $0x1f8] sm:$0xff] %v401
                %v403 = vld [vmem:[%s273 + $0x800] sm:$0xff]
                %404 = vst [vmem:[%s274 + $0x200] sm:$0xff] %v403
                %v405 = vld [vmem:[%s273 + $0x808] sm:$0xff]
                %406 = vst [vmem:[%s274 + $0x208] sm:$0xff] %v405
                %v407 = vld [vmem:[%s273 + $0x810] sm:$0xff]
                %408 = vst [vmem:[%s274 + $0x210] sm:$0xff] %v407
                %v409 = vld [vmem:[%s273 + $0x818] sm:$0xff]
                %410 = vst [vmem:[%s274 + $0x218] sm:$0xff] %v409
                %v411 = vld [vmem:[%s273 + $0x880] sm:$0xff]
                %412 = vst [vmem:[%s274 + $0x220] sm:$0xff] %v411
                %v413 = vld [vmem:[%s273 + $0x888] sm:$0xff]
                %414 = vst [vmem:[%s274 + $0x228] sm:$0xff] %v413
                %v415 = vld [vmem:[%s273 + $0x890] sm:$0xff]
                %416 = vst [vmem:[%s274 + $0x230] sm:$0xff] %v415
                %v417 = vld [vmem:[%s273 + $0x898] sm:$0xff]
                %418 = vst [vmem:[%s274 + $0x238] sm:$0xff] %v417
                %v419 = vld [vmem:[%s273 + $0x900] sm:$0xff]
                %420 = vst [vmem:[%s274 + $0x240] sm:$0xff] %v419
                %v421 = vld [vmem:[%s273 + $0x908] sm:$0xff]
                %422 = vst [vmem:[%s274 + $0x248] sm:$0xff] %v421
                %v423 = vld [vmem:[%s273 + $0x910] sm:$0xff]
                %424 = vst [vmem:[%s274 + $0x250] sm:$0xff] %v423
                %v425 = vld [vmem:[%s273 + $0x918] sm:$0xff]
                %426 = vst [vmem:[%s274 + $0x258] sm:$0xff] %v425
              $region57: #{calib_per_sample_t_forward.3} parent=51 // loop_footer
                %s272 = sadd.s32 1, %s268
              $region58: #{calib_per_sample_t_forward.3} parent=51 // loop_footer_branch
                %267 = sbr.rel target = $region54
              $region59: #{calib_per_sample_t_forward.3} parent=51 // loop_exit
                _
            $region52: #{calib_per_sample_t_forward.3} parent=43 // pred_fallthru
              _
          $region44: #{calib_per_sample_t_forward.3} parent=39 // pred_fallthru
            _
          %591 = vnop
        $region40: #{calib_per_sample_t_forward.3} parent=35 // pred_fallthru
          _
        // Predicated region
        $region75: #{calib_per_sample_t_forward.3} parent=35 // pred_check
          %p592 = pneg %p180
        $region76: #{calib_per_sample_t_forward.3} parent=35 // pred_check_branch
          %594 = sbr.rel (%p592) target = $region78
        $region77: #{calib_per_sample_t_forward.3} parent=35 // pred_region
          %s595 = smul.u32 4, %s21
          %p596 = scmp.lt.s32.totalorder %s20, 1
          %s597 = scalar_select %p596, %s20, 1
          %p598 = scmp.lt.s32.totalorder %s595, 15
          %s599 = scalar_select %p598, %s595, 15
          %s600 = smul.addr %s597, 16
          %s601 = sadd.s32 %s599, %s600
          %s602 = smul.addr %s601, 8
          %s603 = scalar_lea.vmem %s6, %s602
          %s604 = smul.u32 4, %s21
        $region78: #{calib_per_sample_t_forward.3} parent=35 // pred_fallthru
          _
      $region36: #{calib_per_sample_t_forward.3} parent=5 // pred_fallthru
        _
      %p605 = scmp.le.s32.totalorder 1, %s13
      %p606 = scmp.lt.s32.totalorder %s13, 9
      %p607 = pnand %p605, %p606
      %p608 = pneg %p607
      // Predicated region
      $region79: #{calib_per_sample_t_forward.3} parent=5 // pred_check
        _
      $region80: #{calib_per_sample_t_forward.3} parent=5 // pred_check_branch
        %610 = sbr.rel (%p607) target = $region82
      $region81: #{calib_per_sample_t_forward.3} parent=5 // pred_region
        %s611 = ssub.s32 %s13, 1
        %s612 = sand.u32 %s145, 1
        %s613 = sand.u32 %s145, 1
        %s614 = smul.addr %s613, 608
        %s615 = scalar_lea.vmem [#allocation2], %s614
        // Predicated region
        $region83: #{calib_per_sample_t_forward.3} parent=81 // pred_check
          %p616 = pneg %p158
        $region84: #{calib_per_sample_t_forward.3} parent=81 // pred_check_branch
          %618 = sbr.rel (%p616) target = $region86
        $region85: #{calib_per_sample_t_forward.3} parent=81 // pred_region
          _
        $region86: #{calib_per_sample_t_forward.3} parent=81 // pred_fallthru
          _
        %p619 = pneg %p46
        %p620 = pneg %p43
        %p621 = pneg %p67
        %p622 = pneg %p64
        %p623 = pneg %p88
        %p624 = pneg %p85
        %p625 = pneg %p109
        %p626 = pneg %p106
        %p627 = pneg %p130
        %p628 = pneg %p127
        %s629 = sand.u32 %s145, 1
        %s630 = sand.u32 %s145, 1
        %s631 = smul.addr %s630, 608
        %s632 = scalar_lea.vmem [#allocation2], %s631
        %p633 = pneg %p158
        %p634 = pneg %p155
        %s635 = smul.u32 4, %s23
        %p636 = scmp.lt.s32.totalorder %s22, 1
        %s637 = scalar_select %p636, %s22, 1
        %p638 = scmp.lt.s32.totalorder %s635, 15
        %s639 = scalar_select %p638, %s635, 15
        %s640 = smul.addr %s637, 16
        %s641 = sadd.s32 %s639, %s640
        %s642 = smul.addr %s641, 8
        %s643 = scalar_lea.vmem %s6, %s642
        %p644 = pneg %p186
        %p645 = pneg %p183
        %p646 = pneg %p214
        %p647 = pneg %p211
        %p648 = scmp.lt.s32.totalorder %s22, 1
        %s649 = scalar_select %p648, %s22, 1
        %p650 = scmp.lt.s32.totalorder %s23, 3
        %s651 = scalar_select %p650, %s23, 3
        %s652 = smul.addr %s649, 4
        %s653 = sadd.s32 %s651, %s652
        %s654 = smul.addr %s653, 2
        %s655 = scalar_lea.vmem %s7, %s654
        %s656 = smul.u32 4, %s23
        %s657 = smul.u32 4, %s23
        %p658 = scmp.lt.s32.totalorder %s22, 1
        %s659 = scalar_select %p658, %s22, 1
        %p660 = scmp.lt.s32.totalorder %s657, 15
        %s661 = scalar_select %p660, %s657, 15
        %s662 = smul.addr %s659, 16
        %s663 = sadd.s32 %s661, %s662
        %s664 = smul.addr %s663, 8
        %s665 = scalar_lea.vmem %s6, %s664
        %s666 = smul.u32 4, %s23
        %p667 = scmp.lt.s32.totalorder %s22, 1
        %s668 = scalar_select %p667, %s22, 1
        %p669 = scmp.lt.s32.totalorder %s23, 3
        %s670 = scalar_select %p669, %s23, 3
        %s671 = smul.addr %s668, 4
        %s672 = sadd.s32 %s670, %s671
        %s673 = smul.addr %s672, 2
        %s674 = scalar_lea.vmem %s7, %s673
        %v675 = vld [vmem:[%s0] sm:$0x1]
        %v676 = vld [vmem:[%s1] sm:$0xff]
        %v677 = vld [vmem:[%s1 + $0x8] sm:$0xff]
        %v678 = vld [vmem:[%s1 + $0x10] sm:$0xff]
        %v679 = vld [vmem:[%s1 + $0x18] sm:$0xff]
        %v680 = vld [vmem:[%s2] sm:$0x1]
        %vm681 = vcmask 261120
        %v683 = vsel %vm681, %v675, 0
        %685 = vmatprep.subr.mxu0 0.0
        %686 = vmatpush1.msra.mxu0 %v676
        %687 = vmatprep.subr.mxu0 0.0
        %688 = vmatpush1.msra.mxu0 %v677
        %689 = vmatprep.subr.mxu0 0.0
        %690 = vmatpush1.msra.mxu0 %v678
        %691 = vmatprep.subr.mxu0 0.0
        %692 = vmatpush1.msra.mxu0 %v679
        %693 = vmatprep.subr.mxu0 0.0
        %694 = vmatpush1.msra.mxu0 0.0
        %695 = vmatprep.subr.mxu0 0.0
        %696 = vmatpush1.msra.mxu0 0.0
        %697 = vmatprep.subr.mxu0 0.0
        %698 = vmatpush1.msra.mxu0 0.0
        %699 = vmatprep.subr.mxu0 0.0
        %700 = vmatpush1.msra.mxu0 0.0
        %701 = vmatprep.subr.mxu0 0.0
        %702 = vmatpush1.msra.mxu0 0.0
        %703 = vmatprep.subr.mxu0 0.0
        %704 = vmatpush1.msra.mxu0 0.0
        %705 = vmatprep.subr.mxu0 0.0
        %706 = vmatpush1.msra.mxu0 0.0
        %707 = vmatprep.subr.mxu0 0.0
        %708 = vmatpush1.msra.mxu0 0.0
        %709 = vmatprep.subr.mxu0 0.0
        %710 = vmatpush1.msra.mxu0 0.0
        %711 = vmatprep.subr.mxu0 0.0
        %712 = vmatpush1.msra.mxu0 0.0
        %713 = vmatprep.subr.mxu0 0.0
        %714 = vmatpush1.msra.mxu0 0.0
        %715 = vmatprep.subr.mxu0 0.0
        %716 = vmatpush1.msra.mxu0 0.0
        %717 = vmatprep.subr.mxu0 0.0
        %718 = vmatpush1.msra.mxu0 0.0
        %719 = vmatprep.subr.mxu0 0.0
        %720 = vmatpush1.msra.mxu0 0.0
        %721 = vmatprep.subr.mxu0 0.0
        %722 = vmatpush1.msra.mxu0 0.0
        %723 = vmatprep.subr.mxu0 0.0
        %724 = vmatpush1.msra.mxu0 0.0
        %725 = vmatprep.subr.mxu0 0.0
        %726 = vmatpush1.msra.mxu0 0.0
        %727 = vmatprep.subr.mxu0 0.0
        %728 = vmatpush1.msra.mxu0 0.0
        %729 = vmatprep.subr.mxu0 0.0
        %730 = vmatpush1.msra.mxu0 0.0
        %731 = vmatprep.subr.mxu0 0.0
        %732 = vmatpush1.msra.mxu0 0.0
        %733 = vmatprep.subr.mxu0 0.0
        %734 = vmatpush1.msra.mxu0 0.0
        %735 = vmatprep.subr.mxu0 0.0
        %736 = vmatpush1.msra.mxu0 0.0
        %737 = vmatprep.subr.mxu0 0.0
        %738 = vmatpush1.msra.mxu0 0.0
        %739 = vmatprep.subr.mxu0 0.0
        %740 = vmatpush1.msra.mxu0 0.0
        %741 = vmatprep.subr.mxu0 0.0
        %742 = vmatpush1.msra.mxu0 0.0
        %743 = vmatprep.subr.mxu0 0.0
        %744 = vmatpush1.msra.mxu0 0.0
        %745 = vmatprep.subr.mxu0 0.0
        %746 = vmatpush1.msra.mxu0 0.0
        %747 = vmatprep.subr.mxu0 0.0
        %748 = vmatpush1.msra.mxu0 0.0
        %749 = vmatprep.mubr.f32.mxu0 0.0
        %750 = vmatmul.mubr.f32.gmra.mrb[0].mxu0 %v683
        %v751 = vpop.f32.mrb[0].mxu0
        %v752 = vadd.f32 %v680, %v751
        %v753 = vpop.f32.mrb[0].mxu0
        %754 = vdwg.mxu0
        %v755 = vld [vmem:[%s3] sm:$0xff]
        %v756 = vld [vmem:[%s3 + $0x8] sm:$0xff]
        %v757 = vld [vmem:[%s3 + $0x10] sm:$0xff]
        %v758 = vld [vmem:[%s3 + $0x18] sm:$0xff]
        %v759 = vld [vmem:[%s3 + $0x20] sm:$0xff]
        %v760 = vld [vmem:[%s3 + $0x28] sm:$0xff]
        %v761 = vld [vmem:[%s3 + $0x30] sm:$0xff]
        %v762 = vld [vmem:[%s3 + $0x38] sm:$0xff]
        %v763 = vld [vmem:[%s3 + $0x40] sm:$0xff]
        %v764 = vld [vmem:[%s3 + $0x48] sm:$0xff]
        %v765 = vld [vmem:[%s3 + $0x50] sm:$0xff]
        %v766 = vld [vmem:[%s3 + $0x58] sm:$0xff]
        %v767 = vld [vmem:[%s3 + $0x60] sm:$0xf]
        %v768 = vld [vmem:[%s4] sm:$0x1]
        %vm769 = vcmask 818176
        %v771 = vsel %vm769, %v752, 0
        %vm773 = vcmask 1043456
        %v775 = vsel %vm773, %v767, 0
        %777 = vmatprep.subr.mxu0 0.0
        %778 = vmatpush1.msra.mxu0 %v755
        %779 = vmatprep.subr.mxu0 0.0
        %780 = vmatpush1.msra.mxu0 %v756
        %781 = vmatprep.subr.mxu0 0.0
        %782 = vmatpush1.msra.mxu0 %v757
        %783 = vmatprep.subr.mxu0 0.0
        %784 = vmatpush1.msra.mxu0 %v758
        %785 = vmatprep.subr.mxu0 0.0
        %786 = vmatpush1.msra.mxu0 %v759
        %787 = vmatprep.subr.mxu0 0.0
        %788 = vmatpush1.msra.mxu0 %v760
        %789 = vmatprep.subr.mxu0 0.0
        %790 = vmatpush1.msra.mxu0 %v761
        %791 = vmatprep.subr.mxu0 0.0
        %792 = vmatpush1.msra.mxu0 %v762
        %793 = vmatprep.subr.mxu0 0.0
        %794 = vmatpush1.msra.mxu0 %v763
        %795 = vmatprep.subr.mxu0 0.0
        %796 = vmatpush1.msra.mxu0 %v764
        %797 = vmatprep.subr.mxu0 0.0
        %798 = vmatpush1.msra.mxu0 %v765
        %799 = vmatprep.subr.mxu0 0.0
        %800 = vmatpush1.msra.mxu0 %v766
        %801 = vmatprep.subr.mxu0 0.0
        %802 = vmatpush1.msra.mxu0 %v775
        %803 = vmatprep.subr.mxu0 0.0
        %804 = vmatpush1.msra.mxu0 0.0
        %805 = vmatprep.subr.mxu0 0.0
        %806 = vmatpush1.msra.mxu0 0.0
        %807 = vmatprep.subr.mxu0 0.0
        %808 = vmatpush1.msra.mxu0 0.0
        %809 = vmatprep.subr.mxu0 0.0
        %810 = vmatpush1.msra.mxu0 0.0
        %811 = vmatprep.subr.mxu0 0.0
        %812 = vmatpush1.msra.mxu0 0.0
        %813 = vmatprep.subr.mxu0 0.0
        %814 = vmatpush1.msra.mxu0 0.0
        %815 = vmatprep.subr.mxu0 0.0
        %816 = vmatpush1.msra.mxu0 0.0
        %817 = vmatprep.subr.mxu0 0.0
        %818 = vmatpush1.msra.mxu0 0.0
        %819 = vmatprep.subr.mxu0 0.0
        %820 = vmatpush1.msra.mxu0 0.0
        %821 = vmatprep.subr.mxu0 0.0
        %822 = vmatpush1.msra.mxu0 0.0
        %823 = vmatprep.subr.mxu0 0.0
        %824 = vmatpush1.msra.mxu0 0.0
        %825 = vmatprep.subr.mxu0 0.0
        %826 = vmatpush1.msra.mxu0 0.0
        %827 = vmatprep.subr.mxu0 0.0
        %828 = vmatpush1.msra.mxu0 0.0
        %829 = vmatprep.subr.mxu0 0.0
        %830 = vmatpush1.msra.mxu0 0.0
        %831 = vmatprep.subr.mxu0 0.0
        %832 = vmatpush1.msra.mxu0 0.0
        %833 = vmatprep.subr.mxu0 0.0
        %834 = vmatpush1.msra.mxu0 0.0
        %835 = vmatprep.subr.mxu0 0.0
        %836 = vmatpush1.msra.mxu0 0.0
        %837 = vmatprep.subr.mxu0 0.0
        %838 = vmatpush1.msra.mxu0 0.0
        %839 = vmatprep.subr.mxu0 0.0
        %840 = vmatpush1.msra.mxu0 0.0
        %841 = vmatprep.mubr.f32.mxu0 0.0
        %842 = vmatmul.mubr.f32.gmra.mrb[0].mxu0 %v771
        %v843 = vpop.f32.mrb[0].mxu0
        %v844 = vadd.f32 %v768, %v843
        %v845 = vpop.f32.mrb[0].mxu0
        %846 = vdwg.mxu0
        %v847 = vsub.f32 0.0, %v844
        %v848 = vmul.f32 %v847, 1.442695
        %v849 = vpow.pop %v848
        %v850 = vadd.f32 %v849, 1.0
        %v851 = vmul.f32 %v850, 0.5
        %v852 = vlaneseq
        %v853 = vand.u32 %v852, 127
        %v854 = vstv %s22
        %vm855 = vcmp.eq.s32.totalorder %v853, %v854
        %v856 = vsel %vm855, %v851, 0.0
        %vm857 = vcmask 8192
        %v858 = vsel %vm857, %v856, 0.0
        %859 = vadd.xlane.f32.xlu0 %v858
        %v860 = vpop.xlane.xlu0 %859
        %v861 = vrot.slane %v860, 4
        %v862 = vadd.f32 %v860, %v861
        %v863 = vrot.slane %v862, 2
        %v864 = vadd.f32 %v862, %v863
        %v865 = vrot.slane %v864, 1
        %v866 = vadd.f32 %v864, %v865
        %s867 = vtos %v866
        %v868 = vld [vmem:[%s615] sm:$0xff]
        %v869 = vld [vmem:[%s615 + $0x8] sm:$0xff]
        %v870 = vld [vmem:[%s615 + $0x10] sm:$0xff]
        %v871 = vld [vmem:[%s615 + $0x18] sm:$0xff]
        %v872 = vld [vmem:[%s615 + $0x20] sm:$0xff]
        %v873 = vld [vmem:[%s615 + $0x28] sm:$0xff]
        %v874 = vld [vmem:[%s615 + $0x30] sm:$0xff]
        %v875 = vld [vmem:[%s615 + $0x38] sm:$0xff]
        %v876 = vld [vmem:[%s615 + $0x40] sm:$0xff]
        %v877 = vld [vmem:[%s615 + $0x48] sm:$0xff]
        %v878 = vld [vmem:[%s615 + $0x50] sm:$0xff]
        %v879 = vld [vmem:[%s615 + $0x58] sm:$0xff]
        %v880 = vld [vmem:[%s615 + $0x60] sm:$0xff]
        %v881 = vld [vmem:[%s615 + $0x68] sm:$0xff]
        %v882 = vld [vmem:[%s615 + $0x70] sm:$0xff]
        %v883 = vld [vmem:[%s615 + $0x78] sm:$0xff]
        %v884 = vld [vmem:[%s615 + $0x80] sm:$0xff]
        %v885 = vld [vmem:[%s615 + $0x88] sm:$0xff]
        %v886 = vld [vmem:[%s615 + $0x90] sm:$0xff]
        %v887 = vld [vmem:[%s615 + $0x98] sm:$0xff]
        %v888 = vld [vmem:[%s615 + $0xa0] sm:$0xff]
        %v889 = vld [vmem:[%s615 + $0xa8] sm:$0xff]
        %v890 = vld [vmem:[%s615 + $0xb0] sm:$0xff]
        %v891 = vld [vmem:[%s615 + $0xb8] sm:$0xff]
        %v892 = vld [vmem:[%s615 + $0xc0] sm:$0xff]
        %v893 = vld [vmem:[%s615 + $0xc8] sm:$0xff]
        %v894 = vld [vmem:[%s615 + $0xd0] sm:$0xff]
        %v895 = vld [vmem:[%s615 + $0xd8] sm:$0xff]
        %v896 = vld [vmem:[%s615 + $0xe0] sm:$0xff]
        %v897 = vld [vmem:[%s615 + $0xe8] sm:$0xff]
        %v898 = vld [vmem:[%s615 + $0xf0] sm:$0xff]
        %v899 = vld [vmem:[%s615 + $0xf8] sm:$0xff]
        %v900 = vld [vmem:[%s615 + $0x100] sm:$0xff]
        %v901 = vld [vmem:[%s615 + $0x108] sm:$0xff]
        %v902 = vld [vmem:[%s615 + $0x110] sm:$0xff]
        %v903 = vld [vmem:[%s615 + $0x118] sm:$0xff]
        %v904 = vld [vmem:[%s615 + $0x120] sm:$0xff]
        %v905 = vld [vmem:[%s615 + $0x128] sm:$0xff]
        %v906 = vld [vmem:[%s615 + $0x130] sm:$0xff]
        %v907 = vld [vmem:[%s615 + $0x138] sm:$0xff]
        %v908 = vld [vmem:[%s615 + $0x140] sm:$0xff]
        %v909 = vld [vmem:[%s615 + $0x148] sm:$0xff]
        %v910 = vld [vmem:[%s615 + $0x150] sm:$0xff]
        %v911 = vld [vmem:[%s615 + $0x158] sm:$0xff]
        %v912 = vld [vmem:[%s615 + $0x160] sm:$0xff]
        %v913 = vld [vmem:[%s615 + $0x168] sm:$0xff]
        %v914 = vld [vmem:[%s615 + $0x170] sm:$0xff]
        %v915 = vld [vmem:[%s615 + $0x178] sm:$0xff]
        %v916 = vld [vmem:[%s615 + $0x180] sm:$0xff]
        %v917 = vld [vmem:[%s615 + $0x188] sm:$0xff]
        %v918 = vld [vmem:[%s615 + $0x190] sm:$0xff]
        %v919 = vld [vmem:[%s615 + $0x198] sm:$0xff]
        %v920 = vld [vmem:[%s615 + $0x1a0] sm:$0xff]
        %v921 = vld [vmem:[%s615 + $0x1a8] sm:$0xff]
        %v922 = vld [vmem:[%s615 + $0x1b0] sm:$0xff]
        %v923 = vld [vmem:[%s615 + $0x1b8] sm:$0xff]
        %v924 = vld [vmem:[%s615 + $0x1c0] sm:$0xff]
        %v925 = vld [vmem:[%s615 + $0x1c8] sm:$0xff]
        %v926 = vld [vmem:[%s615 + $0x1d0] sm:$0xff]
        %v927 = vld [vmem:[%s615 + $0x1d8] sm:$0xff]
        %v928 = vld [vmem:[%s615 + $0x1e0] sm:$0xff]
        %v929 = vld [vmem:[%s615 + $0x1e8] sm:$0xff]
        %v930 = vld [vmem:[%s615 + $0x1f0] sm:$0xff]
        %v931 = vld [vmem:[%s615 + $0x1f8] sm:$0xff]
        %v932 = vld [vmem:[%s615 + $0x200] sm:$0xff]
        %v933 = vld [vmem:[%s615 + $0x208] sm:$0xff]
        %v934 = vld [vmem:[%s615 + $0x210] sm:$0xff]
        %v935 = vld [vmem:[%s615 + $0x218] sm:$0xff]
        %v936 = vld [vmem:[%s615 + $0x220] sm:$0xff]
        %v937 = vld [vmem:[%s615 + $0x228] sm:$0xff]
        %v938 = vld [vmem:[%s615 + $0x230] sm:$0xff]
        %v939 = vld [vmem:[%s615 + $0x238] sm:$0xff]
        %v940 = vld [vmem:[%s615 + $0x240] sm:$0xff]
        %v941 = vld [vmem:[%s615 + $0x248] sm:$0xff]
        %v942 = vld [vmem:[%s615 + $0x250] sm:$0xff]
        %v943 = vld [vmem:[%s615 + $0x258] sm:$0xff]
        %v944 = vstv %s867
        %v945 = vmul.f32 %v868, %v944
        %v946 = vmul.f32 %v869, %v944
        %v947 = vmul.f32 %v870, %v944
        %v948 = vmul.f32 %v871, %v944
        %v949 = vmul.f32 %v872, %v944
        %v950 = vmul.f32 %v873, %v944
        %v951 = vmul.f32 %v874, %v944
        %v952 = vmul.f32 %v875, %v944
        %v953 = vmul.f32 %v876, %v944
        %v954 = vmul.f32 %v877, %v944
        %v955 = vmul.f32 %v878, %v944
        %v956 = vmul.f32 %v879, %v944
        %v957 = vmul.f32 %v880, %v944
        %v958 = vmul.f32 %v881, %v944
        %v959 = vmul.f32 %v882, %v944
        %v960 = vmul.f32 %v883, %v944
        %v961 = vmul.f32 %v884, %v944
        %v962 = vmul.f32 %v885, %v944
        %v963 = vmul.f32 %v886, %v944
        %v964 = vmul.f32 %v887, %v944
        %v965 = vmul.f32 %v888, %v944
        %v966 = vmul.f32 %v889, %v944
        %v967 = vmul.f32 %v890, %v944
        %v968 = vmul.f32 %v891, %v944
        %v969 = vmul.f32 %v892, %v944
        %v970 = vmul.f32 %v893, %v944
        %v971 = vmul.f32 %v894, %v944
        %v972 = vmul.f32 %v895, %v944
        %v973 = vmul.f32 %v896, %v944
        %v974 = vmul.f32 %v897, %v944
        %v975 = vmul.f32 %v898, %v944
        %v976 = vmul.f32 %v899, %v944
        %v977 = vmul.f32 %v900, %v944
        %v978 = vmul.f32 %v901, %v944
        %v979 = vmul.f32 %v902, %v944
        %v980 = vmul.f32 %v903, %v944
        %v981 = vmul.f32 %v904, %v944
        %v982 = vmul.f32 %v905, %v944
        %v983 = vmul.f32 %v906, %v944
        %v984 = vmul.f32 %v907, %v944
        %v985 = vmul.f32 %v908, %v944
        %v986 = vmul.f32 %v909, %v944
        %v987 = vmul.f32 %v910, %v944
        %v988 = vmul.f32 %v911, %v944
        %v989 = vmul.f32 %v912, %v944
        %v990 = vmul.f32 %v913, %v944
        %v991 = vmul.f32 %v914, %v944
        %v992 = vmul.f32 %v915, %v944
        %v993 = vmul.f32 %v916, %v944
        %v994 = vmul.f32 %v917, %v944
        %v995 = vmul.f32 %v918, %v944
        %v996 = vmul.f32 %v919, %v944
        %v997 = vmul.f32 %v920, %v944
        %v998 = vmul.f32 %v921, %v944
        %v999 = vmul.f32 %v922, %v944
        %v1000 = vmul.f32 %v923, %v944
        %v1001 = vmul.f32 %v924, %v944
        %v1002 = vmul.f32 %v925, %v944
        %v1003 = vmul.f32 %v926, %v944
        %v1004 = vmul.f32 %v927, %v944
        %v1005 = vmul.f32 %v928, %v944
        %v1006 = vmul.f32 %v929, %v944
        %v1007 = vmul.f32 %v930, %v944
        %v1008 = vmul.f32 %v931, %v944
        %v1009 = vmul.f32 %v932, %v944
        %v1010 = vmul.f32 %v933, %v944
        %v1011 = vmul.f32 %v934, %v944
        %v1012 = vmul.f32 %v935, %v944
        %v1013 = vmul.f32 %v936, %v944
        %v1014 = vmul.f32 %v937, %v944
        %v1015 = vmul.f32 %v938, %v944
        %v1016 = vmul.f32 %v939, %v944
        %v1017 = vmul.f32 %v940, %v944
        %v1018 = vmul.f32 %v941, %v944
        %v1019 = vmul.f32 %v942, %v944
        %v1020 = vmul.f32 %v943, %v944
        %v1021 = vmax.f32 %v945, %v949
        %v1022 = vmax.f32 %v1021, %v953
        %v1023 = vmax.f32 %v1022, %v957
        %v1024 = vmax.f32 %v1023, %v961
        %v1025 = vmax.f32 %v1024, %v965
        %v1026 = vmax.f32 %v1025, %v969
        %v1027 = vmax.f32 %v1026, %v973
        %v1028 = vmax.f32 %v1027, %v977
        %v1029 = vmax.f32 %v1028, %v981
        %v1030 = vmax.f32 %v1029, %v985
        %v1031 = vmax.f32 %v1030, %v989
        %v1032 = vmax.f32 %v1031, %v993
        %v1033 = vmax.f32 %v1032, %v997
        %v1034 = vmax.f32 %v1033, %v1001
        %v1035 = vmax.f32 %v1034, %v1005
        %v1036 = vmax.f32 %v1035, %v1009
        %v1037 = vmax.f32 %v1036, %v1013
        %v1038 = vmax.f32 %v1037, %v1017
        %v1039 = vmax.f32 %v946, %v950
        %v1040 = vmax.f32 %v1039, %v954
        %v1041 = vmax.f32 %v1040, %v958
        %v1042 = vmax.f32 %v1041, %v962
        %v1043 = vmax.f32 %v1042, %v966
        %v1044 = vmax.f32 %v1043, %v970
        %v1045 = vmax.f32 %v1044, %v974
        %v1046 = vmax.f32 %v1045, %v978
        %v1047 = vmax.f32 %v1046, %v982
        %v1048 = vmax.f32 %v1047, %v986
        %v1049 = vmax.f32 %v1048, %v990
        %v1050 = vmax.f32 %v1049, %v994
        %v1051 = vmax.f32 %v1050, %v998
        %v1052 = vmax.f32 %v1051, %v1002
        %v1053 = vmax.f32 %v1052, %v1006
        %v1054 = vmax.f32 %v1053, %v1010
        %v1055 = vmax.f32 %v1054, %v1014
        %v1056 = vmax.f32 %v1055, %v1018
        %v1057 = vmax.f32 %v947, %v951
        %v1058 = vmax.f32 %v1057, %v955
        %v1059 = vmax.f32 %v1058, %v959
        %v1060 = vmax.f32 %v1059, %v963
        %v1061 = vmax.f32 %v1060, %v967
        %v1062 = vmax.f32 %v1061, %v971
        %v1063 = vmax.f32 %v1062, %v975
        %v1064 = vmax.f32 %v1063, %v979
        %v1065 = vmax.f32 %v1064, %v983
        %v1066 = vmax.f32 %v1065, %v987
        %v1067 = vmax.f32 %v1066, %v991
        %v1068 = vmax.f32 %v1067, %v995
        %v1069 = vmax.f32 %v1068, %v999
        %v1070 = vmax.f32 %v1069, %v1003
        %v1071 = vmax.f32 %v1070, %v1007
        %v1072 = vmax.f32 %v1071, %v1011
        %v1073 = vmax.f32 %v1072, %v1015
        %v1074 = vmax.f32 %v1073, %v1019
        %v1075 = vmax.f32 %v948, %v952
        %v1076 = vmax.f32 %v1075, %v956
        %v1077 = vmax.f32 %v1076, %v960
        %v1078 = vmax.f32 %v1077, %v964
        %v1079 = vmax.f32 %v1078, %v968
        %v1080 = vmax.f32 %v1079, %v972
        %v1081 = vmax.f32 %v1080, %v976
        %v1082 = vmax.f32 %v1081, %v980
        %v1083 = vmax.f32 %v1082, %v984
        %v1084 = vmax.f32 %v1083, %v988
        %v1085 = vmax.f32 %v1084, %v992
        %v1086 = vmax.f32 %v1085, %v996
        %v1087 = vmax.f32 %v1086, %v1000
        %v1088 = vmax.f32 %v1087, %v1004
        %v1089 = vmax.f32 %v1088, %v1008
        %v1090 = vmax.f32 %v1089, %v1012
        %v1091 = vmax.f32 %v1090, %v1016
        %v1092 = vmax.f32 %v1091, %v1020
        %v1093 = vsub.f32 %v945, %v1038
        %v1094 = vsub.f32 %v946, %v1056
        %v1095 = vsub.f32 %v947, %v1074
        %v1096 = vsub.f32 %v948, %v1092
        %v1097 = vsub.f32 %v949, %v1038
        %v1098 = vsub.f32 %v950, %v1056
        %v1099 = vsub.f32 %v951, %v1074
        %v1100 = vsub.f32 %v952, %v1092
        %v1101 = vsub.f32 %v953, %v1038
        %v1102 = vsub.f32 %v954, %v1056
        %v1103 = vsub.f32 %v955, %v1074
        %v1104 = vsub.f32 %v956, %v1092
        %v1105 = vsub.f32 %v957, %v1038
        %v1106 = vsub.f32 %v958, %v1056
        %v1107 = vsub.f32 %v959, %v1074
        %v1108 = vsub.f32 %v960, %v1092
        %v1109 = vsub.f32 %v961, %v1038
        %v1110 = vsub.f32 %v962, %v1056
        %v1111 = vsub.f32 %v963, %v1074
        %v1112 = vsub.f32 %v964, %v1092
        %v1113 = vsub.f32 %v965, %v1038
        %v1114 = vsub.f32 %v966, %v1056
        %v1115 = vsub.f32 %v967, %v1074
        %v1116 = vsub.f32 %v968, %v1092
        %v1117 = vsub.f32 %v969, %v1038
        %v1118 = vsub.f32 %v970, %v1056
        %v1119 = vsub.f32 %v971, %v1074
        %v1120 = vsub.f32 %v972, %v1092
        %v1121 = vsub.f32 %v973, %v1038
        %v1122 = vsub.f32 %v974, %v1056
        %v1123 = vsub.f32 %v975, %v1074
        %v1124 = vsub.f32 %v976, %v1092
        %v1125 = vsub.f32 %v977, %v1038
        %v1126 = vsub.f32 %v978, %v1056
        %v1127 = vsub.f32 %v979, %v1074
        %v1128 = vsub.f32 %v980, %v1092
        %v1129 = vsub.f32 %v981, %v1038
        %v1130 = vsub.f32 %v982, %v1056
        %v1131 = vsub.f32 %v983, %v1074
        %v1132 = vsub.f32 %v984, %v1092
        %v1133 = vsub.f32 %v985, %v1038
        %v1134 = vsub.f32 %v986, %v1056
        %v1135 = vsub.f32 %v987, %v1074
        %v1136 = vsub.f32 %v988, %v1092
        %v1137 = vsub.f32 %v989, %v1038
        %v1138 = vsub.f32 %v990, %v1056
        %v1139 = vsub.f32 %v991, %v1074
        %v1140 = vsub.f32 %v992, %v1092
        %v1141 = vsub.f32 %v993, %v1038
        %v1142 = vsub.f32 %v994, %v1056
        %v1143 = vsub.f32 %v995, %v1074
        %v1144 = vsub.f32 %v996, %v1092
        %v1145 = vsub.f32 %v997, %v1038
        %v1146 = vsub.f32 %v998, %v1056
        %v1147 = vsub.f32 %v999, %v1074
        %v1148 = vsub.f32 %v1000, %v1092
        %v1149 = vsub.f32 %v1001, %v1038
        %v1150 = vsub.f32 %v1002, %v1056
        %v1151 = vsub.f32 %v1003, %v1074
        %v1152 = vsub.f32 %v1004, %v1092
        %v1153 = vsub.f32 %v1005, %v1038
        %v1154 = vsub.f32 %v1006, %v1056
        %v1155 = vsub.f32 %v1007, %v1074
        %v1156 = vsub.f32 %v1008, %v1092
        %v1157 = vsub.f32 %v1009, %v1038
        %v1158 = vsub.f32 %v1010, %v1056
        %v1159 = vsub.f32 %v1011, %v1074
        %v1160 = vsub.f32 %v1012, %v1092
        %v1161 = vsub.f32 %v1013, %v1038
        %v1162 = vsub.f32 %v1014, %v1056
        %v1163 = vsub.f32 %v1015, %v1074
        %v1164 = vsub.f32 %v1016, %v1092
        %v1165 = vsub.f32 %v1017, %v1038
        %v1166 = vsub.f32 %v1018, %v1056
        %v1167 = vsub.f32 %v1019, %v1074
        %v1168 = vsub.f32 %v1020, %v1092
        %v1169 = vmul.f32 %v1093, 1.442695
        %v1170 = vpow.pop %v1169
        %v1171 = vmul.f32 %v1094, 1.442695
        %v1172 = vpow.pop %v1171
        %v1173 = vmul.f32 %v1095, 1.442695
        %v1174 = vpow.pop %v1173
        %v1175 = vmul.f32 %v1096, 1.442695
        %v1176 = vpow.pop %v1175
        %v1177 = vmul.f32 %v1097, 1.442695
        %v1178 = vpow.pop %v1177
        %v1179 = vmul.f32 %v1098, 1.442695
        %v1180 = vpow.pop %v1179
        %v1181 = vmul.f32 %v1099, 1.442695
        %v1182 = vpow.pop %v1181
        %v1183 = vmul.f32 %v1100, 1.442695
        %v1184 = vpow.pop %v1183
        %v1185 = vmul.f32 %v1101, 1.442695
        %v1186 = vpow.pop %v1185
        %v1187 = vmul.f32 %v1102, 1.442695
        %v1188 = vpow.pop %v1187
        %v1189 = vmul.f32 %v1103, 1.442695
        %v1190 = vpow.pop %v1189
        %v1191 = vmul.f32 %v1104, 1.442695
        %v1192 = vpow.pop %v1191
        %v1193 = vmul.f32 %v1105, 1.442695
        %v1194 = vpow.pop %v1193
        %v1195 = vmul.f32 %v1106, 1.442695
        %v1196 = vpow.pop %v1195
        %v1197 = vmul.f32 %v1107, 1.442695
        %v1198 = vpow.pop %v1197
        %v1199 = vmul.f32 %v1108, 1.442695
        %v1200 = vpow.pop %v1199
        %v1201 = vmul.f32 %v1109, 1.442695
        %v1202 = vpow.pop %v1201
        %v1203 = vmul.f32 %v1110, 1.442695
        %v1204 = vpow.pop %v1203
        %v1205 = vmul.f32 %v1111, 1.442695
        %v1206 = vpow.pop %v1205
        %v1207 = vmul.f32 %v1112, 1.442695
        %v1208 = vpow.pop %v1207
        %v1209 = vmul.f32 %v1113, 1.442695
        %v1210 = vpow.pop %v1209
        %v1211 = vmul.f32 %v1114, 1.442695
        %v1212 = vpow.pop %v1211
        %v1213 = vmul.f32 %v1115, 1.442695
        %v1214 = vpow.pop %v1213
        %v1215 = vmul.f32 %v1116, 1.442695
        %v1216 = vpow.pop %v1215
        %v1217 = vmul.f32 %v1117, 1.442695
        %v1218 = vpow.pop %v1217
        %v1219 = vmul.f32 %v1118, 1.442695
        %v1220 = vpow.pop %v1219
        %v1221 = vmul.f32 %v1119, 1.442695
        %v1222 = vpow.pop %v1221
        %v1223 = vmul.f32 %v1120, 1.442695
        %v1224 = vpow.pop %v1223
        %v1225 = vmul.f32 %v1121, 1.442695
        %v1226 = vpow.pop %v1225
        %v1227 = vmul.f32 %v1122, 1.442695
        %v1228 = vpow.pop %v1227
        %v1229 = vmul.f32 %v1123, 1.442695
        %v1230 = vpow.pop %v1229
        %v1231 = vmul.f32 %v1124, 1.442695
        %v1232 = vpow.pop %v1231
        %v1233 = vmul.f32 %v1125, 1.442695
        %v1234 = vpow.pop %v1233
        %v1235 = vmul.f32 %v1126, 1.442695
        %v1236 = vpow.pop %v1235
        %v1237 = vmul.f32 %v1127, 1.442695
        %v1238 = vpow.pop %v1237
        %v1239 = vmul.f32 %v1128, 1.442695
        %v1240 = vpow.pop %v1239
        %v1241 = vmul.f32 %v1129, 1.442695
        %v1242 = vpow.pop %v1241
        %v1243 = vmul.f32 %v1130, 1.442695
        %v1244 = vpow.pop %v1243
        %v1245 = vmul.f32 %v1131, 1.442695
        %v1246 = vpow.pop %v1245
        %v1247 = vmul.f32 %v1132, 1.442695
        %v1248 = vpow.pop %v1247
        %v1249 = vmul.f32 %v1133, 1.442695
        %v1250 = vpow.pop %v1249
        %v1251 = vmul.f32 %v1134, 1.442695
        %v1252 = vpow.pop %v1251
        %v1253 = vmul.f32 %v1135, 1.442695
        %v1254 = vpow.pop %v1253
        %v1255 = vmul.f32 %v1136, 1.442695
        %v1256 = vpow.pop %v1255
        %v1257 = vmul.f32 %v1137, 1.442695
        %v1258 = vpow.pop %v1257
        %v1259 = vmul.f32 %v1138, 1.442695
        %v1260 = vpow.pop %v1259
        %v1261 = vmul.f32 %v1139, 1.442695
        %v1262 = vpow.pop %v1261
        %v1263 = vmul.f32 %v1140, 1.442695
        %v1264 = vpow.pop %v1263
        %v1265 = vmul.f32 %v1141, 1.442695
        %v1266 = vpow.pop %v1265
        %v1267 = vmul.f32 %v1142, 1.442695
        %v1268 = vpow.pop %v1267
        %v1269 = vmul.f32 %v1143, 1.442695
        %v1270 = vpow.pop %v1269
        %v1271 = vmul.f32 %v1144, 1.442695
        %v1272 = vpow.pop %v1271
        %v1273 = vmul.f32 %v1145, 1.442695
        %v1274 = vpow.pop %v1273
        %v1275 = vmul.f32 %v1146, 1.442695
        %v1276 = vpow.pop %v1275
        %v1277 = vmul.f32 %v1147, 1.442695
        %v1278 = vpow.pop %v1277
        %v1279 = vmul.f32 %v1148, 1.442695
        %v1280 = vpow.pop %v1279
        %v1281 = vmul.f32 %v1149, 1.442695
        %v1282 = vpow.pop %v1281
        %v1283 = vmul.f32 %v1150, 1.442695
        %v1284 = vpow.pop %v1283
        %v1285 = vmul.f32 %v1151, 1.442695
        %v1286 = vpow.pop %v1285
        %v1287 = vmul.f32 %v1152, 1.442695
        %v1288 = vpow.pop %v1287
        %v1289 = vmul.f32 %v1153, 1.442695
        %v1290 = vpow.pop %v1289
        %v1291 = vmul.f32 %v1154, 1.442695
        %v1292 = vpow.pop %v1291
        %v1293 = vmul.f32 %v1155, 1.442695
        %v1294 = vpow.pop %v1293
        %v1295 = vmul.f32 %v1156, 1.442695
        %v1296 = vpow.pop %v1295
        %v1297 = vmul.f32 %v1157, 1.442695
        %v1298 = vpow.pop %v1297
        %v1299 = vmul.f32 %v1158, 1.442695
        %v1300 = vpow.pop %v1299
        %v1301 = vmul.f32 %v1159, 1.442695
        %v1302 = vpow.pop %v1301
        %v1303 = vmul.f32 %v1160, 1.442695
        %v1304 = vpow.pop %v1303
        %v1305 = vmul.f32 %v1161, 1.442695
        %v1306 = vpow.pop %v1305
        %v1307 = vmul.f32 %v1162, 1.442695
        %v1308 = vpow.pop %v1307
        %v1309 = vmul.f32 %v1163, 1.442695
        %v1310 = vpow.pop %v1309
        %v1311 = vmul.f32 %v1164, 1.442695
        %v1312 = vpow.pop %v1311
        %v1313 = vmul.f32 %v1165, 1.442695
        %v1314 = vpow.pop %v1313
        %v1315 = vmul.f32 %v1166, 1.442695
        %v1316 = vpow.pop %v1315
        %v1317 = vmul.f32 %v1167, 1.442695
        %v1318 = vpow.pop %v1317
        %v1319 = vmul.f32 %v1168, 1.442695
        %v1320 = vpow.pop %v1319
        %v1321 = vadd.f32 %v1170, %v1178
        %v1322 = vadd.f32 %v1321, %v1186
        %v1323 = vadd.f32 %v1322, %v1194
        %v1324 = vadd.f32 %v1323, %v1202
        %v1325 = vadd.f32 %v1324, %v1210
        %v1326 = vadd.f32 %v1325, %v1218
        %v1327 = vadd.f32 %v1326, %v1226
        %v1328 = vadd.f32 %v1327, %v1234
        %v1329 = vadd.f32 %v1328, %v1242
        %v1330 = vadd.f32 %v1329, %v1250
        %v1331 = vadd.f32 %v1330, %v1258
        %v1332 = vadd.f32 %v1331, %v1266
        %v1333 = vadd.f32 %v1332, %v1274
        %v1334 = vadd.f32 %v1333, %v1282
        %v1335 = vadd.f32 %v1334, %v1290
        %v1336 = vadd.f32 %v1335, %v1298
        %v1337 = vadd.f32 %v1336, %v1306
        %v1338 = vadd.f32 %v1337, %v1314
        %v1339 = vadd.f32 %v1172, %v1180
        %v1340 = vadd.f32 %v1339, %v1188
        %v1341 = vadd.f32 %v1340, %v1196
        %v1342 = vadd.f32 %v1341, %v1204
        %v1343 = vadd.f32 %v1342, %v1212
        %v1344 = vadd.f32 %v1343, %v1220
        %v1345 = vadd.f32 %v1344, %v1228
        %v1346 = vadd.f32 %v1345, %v1236
        %v1347 = vadd.f32 %v1346, %v1244
        %v1348 = vadd.f32 %v1347, %v1252
        %v1349 = vadd.f32 %v1348, %v1260
        %v1350 = vadd.f32 %v1349, %v1268
        %v1351 = vadd.f32 %v1350, %v1276
        %v1352 = vadd.f32 %v1351, %v1284
        %v1353 = vadd.f32 %v1352, %v1292
        %v1354 = vadd.f32 %v1353, %v1300
        %v1355 = vadd.f32 %v1354, %v1308
        %v1356 = vadd.f32 %v1355, %v1316
        %v1357 = vadd.f32 %v1174, %v1182
        %v1358 = vadd.f32 %v1357, %v1190
        %v1359 = vadd.f32 %v1358, %v1198
        %v1360 = vadd.f32 %v1359, %v1206
        %v1361 = vadd.f32 %v1360, %v1214
        %v1362 = vadd.f32 %v1361, %v1222
        %v1363 = vadd.f32 %v1362, %v1230
        %v1364 = vadd.f32 %v1363, %v1238
        %v1365 = vadd.f32 %v1364, %v1246
        %v1366 = vadd.f32 %v1365, %v1254
        %v1367 = vadd.f32 %v1366, %v1262
        %v1368 = vadd.f32 %v1367, %v1270
        %v1369 = vadd.f32 %v1368, %v1278
        %v1370 = vadd.f32 %v1369, %v1286
        %v1371 = vadd.f32 %v1370, %v1294
        %v1372 = vadd.f32 %v1371, %v1302
        %v1373 = vadd.f32 %v1372, %v1310
        %v1374 = vadd.f32 %v1373, %v1318
        %v1375 = vadd.f32 %v1176, %v1184
        %v1376 = vadd.f32 %v1375, %v1192
        %v1377 = vadd.f32 %v1376, %v1200
        %v1378 = vadd.f32 %v1377, %v1208
        %v1379 = vadd.f32 %v1378, %v1216
        %v1380 = vadd.f32 %v1379, %v1224
        %v1381 = vadd.f32 %v1380, %v1232
        %v1382 = vadd.f32 %v1381, %v1240
        %v1383 = vadd.f32 %v1382, %v1248
        %v1384 = vadd.f32 %v1383, %v1256
        %v1385 = vadd.f32 %v1384, %v1264
        %v1386 = vadd.f32 %v1385, %v1272
        %v1387 = vadd.f32 %v1386, %v1280
        %v1388 = vadd.f32 %v1387, %v1288
        %v1389 = vadd.f32 %v1388, %v1296
        %v1390 = vadd.f32 %v1389, %v1304
        %v1391 = vadd.f32 %v1390, %v1312
        %v1392 = vadd.f32 %v1391, %v1320
        %v1393 = vlog2.pop %v1338
        %v1394 = vmul.f32 %v1393, 0.6931472
        %v1395 = vlog2.pop %v1356
        %v1396 = vmul.f32 %v1395, 0.6931472
        %v1397 = vlog2.pop %v1374
        %v1398 = vmul.f32 %v1397, 0.6931472
        %v1399 = vlog2.pop %v1392
        %v1400 = vmul.f32 %v1399, 0.6931472
        %v1401 = vadd.f32 %v1038, %v1394
        %v1402 = vadd.f32 %v1056, %v1396
        %v1403 = vadd.f32 %v1074, %v1398
        %v1404 = vadd.f32 %v1092, %v1400
        %v1405 = vld [vmem:[%s665] sm:$0xff]
        %v1406 = vld [vmem:[%s665 + $0x8] sm:$0xff]
        %v1407 = vld [vmem:[%s665 + $0x10] sm:$0xff]
        %v1408 = vld [vmem:[%s665 + $0x18] sm:$0xff]
        %vm1409 = vcmp.eq.s32.totalorder %v1405, 0
        %vm1410 = vcmp.eq.s32.totalorder %v1406, 0
        %vm1411 = vcmp.eq.s32.totalorder %v1407, 0
        %vm1412 = vcmp.eq.s32.totalorder %v1408, 0
        %vm1413 = vcmp.eq.s32.totalorder %v1405, 1
        %vm1414 = vcmp.eq.s32.totalorder %v1406, 1
        %vm1415 = vcmp.eq.s32.totalorder %v1407, 1
        %vm1416 = vcmp.eq.s32.totalorder %v1408, 1
        %vm1417 = vcmp.eq.s32.totalorder %v1405, 2
        %vm1418 = vcmp.eq.s32.totalorder %v1406, 2
        %vm1419 = vcmp.eq.s32.totalorder %v1407, 2
        %vm1420 = vcmp.eq.s32.totalorder %v1408, 2
        %vm1421 = vcmp.eq.s32.totalorder %v1405, 3
        %vm1422 = vcmp.eq.s32.totalorder %v1406, 3
        %vm1423 = vcmp.eq.s32.totalorder %v1407, 3
        %vm1424 = vcmp.eq.s32.totalorder %v1408, 3
        %vm1425 = vcmp.eq.s32.totalorder %v1405, 4
        %vm1426 = vcmp.eq.s32.totalorder %v1406, 4
        %vm1427 = vcmp.eq.s32.totalorder %v1407, 4
        %vm1428 = vcmp.eq.s32.totalorder %v1408, 4
        %vm1429 = vcmp.eq.s32.totalorder %v1405, 5
        %vm1430 = vcmp.eq.s32.totalorder %v1406, 5
        %vm1431 = vcmp.eq.s32.totalorder %v1407, 5
        %vm1432 = vcmp.eq.s32.totalorder %v1408, 5
        %vm1433 = vcmp.eq.s32.totalorder %v1405, 6
        %vm1434 = vcmp.eq.s32.totalorder %v1406, 6
        %vm1435 = vcmp.eq.s32.totalorder %v1407, 6
        %vm1436 = vcmp.eq.s32.totalorder %v1408, 6
        %vm1437 = vcmp.eq.s32.totalorder %v1405, 7
        %vm1438 = vcmp.eq.s32.totalorder %v1406, 7
        %vm1439 = vcmp.eq.s32.totalorder %v1407, 7
        %vm1440 = vcmp.eq.s32.totalorder %v1408, 7
        %vm1441 = vcmp.eq.s32.totalorder %v1405, 8
        %vm1442 = vcmp.eq.s32.totalorder %v1406, 8
        %vm1443 = vcmp.eq.s32.totalorder %v1407, 8
        %vm1444 = vcmp.eq.s32.totalorder %v1408, 8
        %vm1445 = vcmp.eq.s32.totalorder %v1405, 9
        %vm1446 = vcmp.eq.s32.totalorder %v1406, 9
        %vm1447 = vcmp.eq.s32.totalorder %v1407, 9
        %vm1448 = vcmp.eq.s32.totalorder %v1408, 9
        %vm1449 = vcmp.eq.s32.totalorder %v1405, 10
        %vm1450 = vcmp.eq.s32.totalorder %v1406, 10
        %vm1451 = vcmp.eq.s32.totalorder %v1407, 10
        %vm1452 = vcmp.eq.s32.totalorder %v1408, 10
        %vm1453 = vcmp.eq.s32.totalorder %v1405, 11
        %vm1454 = vcmp.eq.s32.totalorder %v1406, 11
        %vm1455 = vcmp.eq.s32.totalorder %v1407, 11
        %vm1456 = vcmp.eq.s32.totalorder %v1408, 11
        %vm1457 = vcmp.eq.s32.totalorder %v1405, 12
        %vm1458 = vcmp.eq.s32.totalorder %v1406, 12
        %vm1459 = vcmp.eq.s32.totalorder %v1407, 12
        %vm1460 = vcmp.eq.s32.totalorder %v1408, 12
        %vm1461 = vcmp.eq.s32.totalorder %v1405, 13
        %vm1462 = vcmp.eq.s32.totalorder %v1406, 13
        %vm1463 = vcmp.eq.s32.totalorder %v1407, 13
        %vm1464 = vcmp.eq.s32.totalorder %v1408, 13
        %vm1465 = vcmp.eq.s32.totalorder %v1405, 14
        %vm1466 = vcmp.eq.s32.totalorder %v1406, 14
        %vm1467 = vcmp.eq.s32.totalorder %v1407, 14
        %vm1468 = vcmp.eq.s32.totalorder %v1408, 14
        %vm1469 = vcmp.eq.s32.totalorder %v1405, 15
        %vm1470 = vcmp.eq.s32.totalorder %v1406, 15
        %vm1471 = vcmp.eq.s32.totalorder %v1407, 15
        %vm1472 = vcmp.eq.s32.totalorder %v1408, 15
        %vm1473 = vcmp.eq.s32.totalorder %v1405, 16
        %vm1474 = vcmp.eq.s32.totalorder %v1406, 16
        %vm1475 = vcmp.eq.s32.totalorder %v1407, 16
        %vm1476 = vcmp.eq.s32.totalorder %v1408, 16
        %vm1477 = vcmp.eq.s32.totalorder %v1405, 17
        %vm1478 = vcmp.eq.s32.totalorder %v1406, 17
        %vm1479 = vcmp.eq.s32.totalorder %v1407, 17
        %vm1480 = vcmp.eq.s32.totalorder %v1408, 17
        %vm1481 = vcmp.eq.s32.totalorder %v1405, 18
        %vm1482 = vcmp.eq.s32.totalorder %v1406, 18
        %vm1483 = vcmp.eq.s32.totalorder %v1407, 18
        %vm1484 = vcmp.eq.s32.totalorder %v1408, 18
        %v1485 = vsel %vm1409, %v868, 0.0
        %v1486 = vsel %vm1410, %v869, 0.0
        %v1487 = vsel %vm1411, %v870, 0.0
        %v1488 = vsel %vm1412, %v871, 0.0
        %v1489 = vsel %vm1413, %v872, 0.0
        %v1490 = vsel %vm1414, %v873, 0.0
        %v1491 = vsel %vm1415, %v874, 0.0
        %v1492 = vsel %vm1416, %v875, 0.0
        %v1493 = vsel %vm1417, %v876, 0.0
        %v1494 = vsel %vm1418, %v877, 0.0
        %v1495 = vsel %vm1419, %v878, 0.0
        %v1496 = vsel %vm1420, %v879, 0.0
        %v1497 = vsel %vm1421, %v880, 0.0
        %v1498 = vsel %vm1422, %v881, 0.0
        %v1499 = vsel %vm1423, %v882, 0.0
        %v1500 = vsel %vm1424, %v883, 0.0
        %v1501 = vsel %vm1425, %v884, 0.0
        %v1502 = vsel %vm1426, %v885, 0.0
        %v1503 = vsel %vm1427, %v886, 0.0
        %v1504 = vsel %vm1428, %v887, 0.0
        %v1505 = vsel %vm1429, %v888, 0.0
        %v1506 = vsel %vm1430, %v889, 0.0
        %v1507 = vsel %vm1431, %v890, 0.0
        %v1508 = vsel %vm1432, %v891, 0.0
        %v1509 = vsel %vm1433, %v892, 0.0
        %v1510 = vsel %vm1434, %v893, 0.0
        %v1511 = vsel %vm1435, %v894, 0.0
        %v1512 = vsel %vm1436, %v895, 0.0
        %v1513 = vsel %vm1437, %v896, 0.0
        %v1514 = vsel %vm1438, %v897, 0.0
        %v1515 = vsel %vm1439, %v898, 0.0
        %v1516 = vsel %vm1440, %v899, 0.0
        %v1517 = vsel %vm1441, %v900, 0.0
        %v1518 = vsel %vm1442, %v901, 0.0
        %v1519 = vsel %vm1443, %v902, 0.0
        %v1520 = vsel %vm1444, %v903, 0.0
        %v1521 = vsel %vm1445, %v904, 0.0
        %v1522 = vsel %vm1446, %v905, 0.0
        %v1523 = vsel %vm1447, %v906, 0.0
        %v1524 = vsel %vm1448, %v907, 0.0
        %v1525 = vsel %vm1449, %v908, 0.0
        %v1526 = vsel %vm1450, %v909, 0.0
        %v1527 = vsel %vm1451, %v910, 0.0
        %v1528 = vsel %vm1452, %v911, 0.0
        %v1529 = vsel %vm1453, %v912, 0.0
        %v1530 = vsel %vm1454, %v913, 0.0
        %v1531 = vsel %vm1455, %v914, 0.0
        %v1532 = vsel %vm1456, %v915, 0.0
        %v1533 = vsel %vm1457, %v916, 0.0
        %v1534 = vsel %vm1458, %v917, 0.0
        %v1535 = vsel %vm1459, %v918, 0.0
        %v1536 = vsel %vm1460, %v919, 0.0
        %v1537 = vsel %vm1461, %v920, 0.0
        %v1538 = vsel %vm1462, %v921, 0.0
        %v1539 = vsel %vm1463, %v922, 0.0
        %v1540 = vsel %vm1464, %v923, 0.0
        %v1541 = vsel %vm1465, %v924, 0.0
        %v1542 = vsel %vm1466, %v925, 0.0
        %v1543 = vsel %vm1467, %v926, 0.0
        %v1544 = vsel %vm1468, %v927, 0.0
        %v1545 = vsel %vm1469, %v928, 0.0
        %v1546 = vsel %vm1470, %v929, 0.0
        %v1547 = vsel %vm1471, %v930, 0.0
        %v1548 = vsel %vm1472, %v931, 0.0
        %v1549 = vsel %vm1473, %v932, 0.0
        %v1550 = vsel %vm1474, %v933, 0.0
        %v1551 = vsel %vm1475, %v934, 0.0
        %v1552 = vsel %vm1476, %v935, 0.0
        %v1553 = vsel %vm1477, %v936, 0.0
        %v1554 = vsel %vm1478, %v937, 0.0
        %v1555 = vsel %vm1479, %v938, 0.0
        %v1556 = vsel %vm1480, %v939, 0.0
        %v1557 = vsel %vm1481, %v940, 0.0
        %v1558 = vsel %vm1482, %v941, 0.0
        %v1559 = vsel %vm1483, %v942, 0.0
        %v1560 = vsel %vm1484, %v943, 0.0
        %v1561 = vadd.f32 %v1485, %v1489
        %v1562 = vadd.f32 %v1561, %v1493
        %v1563 = vadd.f32 %v1562, %v1497
        %v1564 = vadd.f32 %v1563, %v1501
        %v1565 = vadd.f32 %v1564, %v1505
        %v1566 = vadd.f32 %v1565, %v1509
        %v1567 = vadd.f32 %v1566, %v1513
        %v1568 = vadd.f32 %v1567, %v1517
        %v1569 = vadd.f32 %v1568, %v1521
        %v1570 = vadd.f32 %v1569, %v1525
        %v1571 = vadd.f32 %v1570, %v1529
        %v1572 = vadd.f32 %v1571, %v1533
        %v1573 = vadd.f32 %v1572, %v1537
        %v1574 = vadd.f32 %v1573, %v1541
        %v1575 = vadd.f32 %v1574, %v1545
        %v1576 = vadd.f32 %v1575, %v1549
        %v1577 = vadd.f32 %v1576, %v1553
        %v1578 = vadd.f32 %v1577, %v1557
        %v1579 = vadd.f32 %v1486, %v1490
        %v1580 = vadd.f32 %v1579, %v1494
        %v1581 = vadd.f32 %v1580, %v1498
        %v1582 = vadd.f32 %v1581, %v1502
        %v1583 = vadd.f32 %v1582, %v1506
        %v1584 = vadd.f32 %v1583, %v1510
        %v1585 = vadd.f32 %v1584, %v1514
        %v1586 = vadd.f32 %v1585, %v1518
        %v1587 = vadd.f32 %v1586, %v1522
        %v1588 = vadd.f32 %v1587, %v1526
        %v1589 = vadd.f32 %v1588, %v1530
        %v1590 = vadd.f32 %v1589, %v1534
        %v1591 = vadd.f32 %v1590, %v1538
        %v1592 = vadd.f32 %v1591, %v1542
        %v1593 = vadd.f32 %v1592, %v1546
        %v1594 = vadd.f32 %v1593, %v1550
        %v1595 = vadd.f32 %v1594, %v1554
        %v1596 = vadd.f32 %v1595, %v1558
        %v1597 = vadd.f32 %v1487, %v1491
        %v1598 = vadd.f32 %v1597, %v1495
        %v1599 = vadd.f32 %v1598, %v1499
        %v1600 = vadd.f32 %v1599, %v1503
        %v1601 = vadd.f32 %v1600, %v1507
        %v1602 = vadd.f32 %v1601, %v1511
        %v1603 = vadd.f32 %v1602, %v1515
        %v1604 = vadd.f32 %v1603, %v1519
        %v1605 = vadd.f32 %v1604, %v1523
        %v1606 = vadd.f32 %v1605, %v1527
        %v1607 = vadd.f32 %v1606, %v1531
        %v1608 = vadd.f32 %v1607, %v1535
        %v1609 = vadd.f32 %v1608, %v1539
        %v1610 = vadd.f32 %v1609, %v1543
        %v1611 = vadd.f32 %v1610, %v1547
        %v1612 = vadd.f32 %v1611, %v1551
        %v1613 = vadd.f32 %v1612, %v1555
        %v1614 = vadd.f32 %v1613, %v1559
        %v1615 = vadd.f32 %v1488, %v1492
        %v1616 = vadd.f32 %v1615, %v1496
        %v1617 = vadd.f32 %v1616, %v1500
        %v1618 = vadd.f32 %v1617, %v1504
        %v1619 = vadd.f32 %v1618, %v1508
        %v1620 = vadd.f32 %v1619, %v1512
        %v1621 = vadd.f32 %v1620, %v1516
        %v1622 = vadd.f32 %v1621, %v1520
        %v1623 = vadd.f32 %v1622, %v1524
        %v1624 = vadd.f32 %v1623, %v1528
        %v1625 = vadd.f32 %v1624, %v1532
        %v1626 = vadd.f32 %v1625, %v1536
        %v1627 = vadd.f32 %v1626, %v1540
        %v1628 = vadd.f32 %v1627, %v1544
        %v1629 = vadd.f32 %v1628, %v1548
        %v1630 = vadd.f32 %v1629, %v1552
        %v1631 = vadd.f32 %v1630, %v1556
        %v1632 = vadd.f32 %v1631, %v1560
        %v1633 = vmul.f32 %v1578, %v944
        %v1634 = vmul.f32 %v1596, %v944
        %v1635 = vmul.f32 %v1614, %v944
        %v1636 = vmul.f32 %v1632, %v944
        %vm1637 = vcmp.ne.s32.totalorder %v1405, 255
        %vm1638 = vcmp.ne.s32.totalorder %v1406, 255
        %vm1639 = vcmp.ne.s32.totalorder %v1407, 255
        %vm1640 = vcmp.ne.s32.totalorder %v1408, 255
        %v1641 = vsub.f32 %v1401, %v1633
        %v1642 = vsub.f32 %v1402, %v1634
        %v1643 = vsub.f32 %v1403, %v1635
        %v1644 = vsub.f32 %v1404, %v1636
        %v1645 = vsel %vm1637, %v1641, 0.0
        %v1646 = vsel %vm1638, %v1642, 0.0
        %v1647 = vsel %vm1639, %v1643, 0.0
        %v1648 = vsel %vm1640, %v1644, 0.0
        %v1649 = vadd.f32 %v1645, %v1646
        %v1650 = vadd.f32 %v1649, %v1647
        %v1651 = vadd.f32 %v1650, %v1648
        %v1652 = vrot.slane %v1651, 4
        %v1653 = vadd.f32 %v1651, %v1652
        %v1654 = vrot.slane %v1653, 2
        %v1655 = vadd.f32 %v1653, %v1654
        %v1656 = vrot.slane %v1655, 1
        %v1657 = vadd.f32 %v1655, %v1656
        %v1658 = vsel %vm1637, 1, 0
        %v1659 = vsel %vm1638, 1, 0
        %v1660 = vsel %vm1639, 1, 0
        %v1661 = vsel %vm1640, 1, 0
        %v1662 = vcvt.s32.f32 %v1658
        %v1663 = vcvt.s32.f32 %v1659
        %v1664 = vcvt.s32.f32 %v1660
        %v1665 = vcvt.s32.f32 %v1661
        %v1666 = vadd.f32 %v1662, %v1663
        %v1667 = vadd.f32 %v1666, %v1664
        %v1668 = vadd.f32 %v1667, %v1665
        %v1669 = vrot.slane %v1668, 4
        %v1670 = vadd.f32 %v1668, %v1669
        %v1671 = vrot.slane %v1670, 2
        %v1672 = vadd.f32 %v1670, %v1671
        %v1673 = vrot.slane %v1672, 1
        %v1674 = vadd.f32 %v1672, %v1673
        %vm1675 = vcmask 1040384
        %v1676 = vsel %vm1675, %v1657, %v1674
        %1677 = vst [vmem:[%s674] sm:$0x3] %v1676
        %p1678 = scmp.lt.s32.totalorder %s22, 1
        %s1679 = scalar_select %p1678, %s22, 1
        %p1680 = scmp.lt.s32.totalorder %s23, 3
        %s1681 = scalar_select %p1680, %s23, 3
        %s1682 = smul.addr %s1679, 4
        %s1683 = sadd.s32 %s1681, %s1682
        %s1684 = smul.addr %s1683, 2
        %s1685 = scalar_lea.vmem %s7, %s1684
        // Predicated region
        $region87: #{calib_per_sample_t_forward.3} parent=81 // pred_check
          %p1686 = pneg %p211
        $region88: #{calib_per_sample_t_forward.3} parent=81 // pred_check_branch
          %1688 = sbr.rel (%p1686) target = $region90
        $region89: #{calib_per_sample_t_forward.3} parent=81 // pred_region
          _
        $region90: #{calib_per_sample_t_forward.3} parent=81 // pred_fallthru
          _
      $region82: #{calib_per_sample_t_forward.3} parent=5 // pred_fallthru
        _
      %p1689 = scmp.le.s32.totalorder 2, %s13
      // Predicated region
      $region91: #{calib_per_sample_t_forward.3} parent=5 // pred_check
        %p1690 = pneg %p1689
      $region92: #{calib_per_sample_t_forward.3} parent=5 // pred_check_branch
        %1692 = sbr.rel (%p1690) target = $region94
      $region93: #{calib_per_sample_t_forward.3} parent=5 // pred_region
        %s1693 = ssub.s32 %s13, 2
        // Predicated region
        $region95: #{calib_per_sample_t_forward.3} parent=93 // pred_check
          %p1694 = pneg %p217
        $region96: #{calib_per_sample_t_forward.3} parent=93 // pred_check_branch
          %1696 = sbr.rel (%p1694) target = $region98
        $region97: #{calib_per_sample_t_forward.3} parent=93 // pred_region
          %p1697 = scmp.lt.s32.totalorder %s24, 1
          %s1698 = scalar_select %p1697, %s24, 1
          %p1699 = scmp.lt.s32.totalorder %s25, 3
          %s1700 = scalar_select %p1699, %s25, 3
          %s1701 = smul.addr %s1698, 4
          %s1702 = sadd.s32 %s1700, %s1701
          %s1703 = smul.addr %s1702, 2
          %s1704 = scalar_lea.vmem %s7, %s1703
        $region98: #{calib_per_sample_t_forward.3} parent=93 // pred_fallthru
          _
      $region94: #{calib_per_sample_t_forward.3} parent=5 // pred_fallthru
        _
    $region6: #{calib_per_sample_t_forward.3} parent=1 // loop_footer
      %s17 = sadd.s32 1, %s13
    $region7: #{calib_per_sample_t_forward.3} parent=1 // loop_footer_branch
      %12 = sbr.rel target = $region3
    $region8: #{calib_per_sample_t_forward.3} parent=1 // loop_exit
      _

// kernel: calib_per_sample_t_forward.2
$region0: #{calib_per_sample_t_forward.2}
  #allocation0 [shape = 'u32[]', space=smem, size = 0x4, offset = 0x4, fixed_abs, tag = 'smem constant byte address 0x4 - core index']
  #allocation1 [shape = 'u32[144,128]{1,0:T(1,128)}', space=vmem, size = 0x12000, scoped, tag = 'internal scratch']
  %s0 = inlined_call_operand.hbm [shape: f32[2,2432,128], index: 0, kind: input, shape index: {}]
  %s1 = inlined_call_operand.vmem [shape: bf16[192,2432], index: 1, kind: input, shape index: {}]
  %s2 = inlined_call_operand.hbm [shape: bf16[3,128,64], index: 2, kind: input, shape index: {}]
  %s3 = inlined_call_operand.hbm [shape: bf16[64,64], index: 3, kind: input, shape index: {}]
  %s4 = inlined_call_operand.hbm [shape: bf16[64,64], index: 4, kind: input, shape index: {}]
  %s5 = inlined_call_operand.hbm [shape: bf16[48,32], index: 5, kind: input, shape index: {}]
  %s6 = inlined_call_operand.hbm [shape: bf16[3,32,16], index: 6, kind: input, shape index: {}]
  %s7 = inlined_call_operand.hbm [shape: f32[4,16], index: 7, kind: input, shape index: {}]
  %s8 = inlined_call_operand.hbm [shape: f32[16,4], index: 8, kind: input, shape index: {}]
  %s9 = inlined_call_operand.vmem [shape: f32[2,4,4], index: 9, kind: output, shape index: {}]
  %s10 = sld [smem:[#allocation0]]
  $region101: #{calib_per_sample_t_forward.2} parent=0
    _
  %s12 = ssub.s32 1, %s10
  %s13 = scalar_select 0, %s12, %s10
  $region1: #{calib_per_sample_t_forward.2} parent=0
    #allocation2 [shape = 'u8[2490368]{0}', space=vmem, size = 0x260000, scoped, tag = 'input window, operand 0']
    #allocation3 [shape = 's32[2]{0}', space=sflag, size = 0x8, scoped, tag = 'scoped memory for calib_per_sample_t_forward.2']
    #allocation4 [shape = 'u8[98304]{0}', space=vmem, size = 0x18000, scoped, tag = 'input window, operand 2, single buffered']
    #allocation5 [shape = 's32[1]{0}', space=sflag, size = 0x4, scoped, tag = 'scoped memory for calib_per_sample_t_forward.2']
    #allocation6 [shape = 'u8[16384]{0}', space=vmem, size = 0x4000, scoped, tag = 'input window, operand 3, single buffered']
    #allocation7 [shape = 'u8[16384]{0}', space=vmem, size = 0x4000, scoped, tag = 'input window, operand 4, single buffered']
    #allocation8 [shape = 's32[1]{0}', space=sflag, size = 0x4, scoped, tag = 'scoped memory for calib_per_sample_t_forward.2']
    #allocation9 [shape = 'u8[12288]{0}', space=vmem, size = 0x3000, scoped, tag = 'input window, operand 5, single buffered']
    #allocation10 [shape = 'u8[24576]{0}', space=vmem, size = 0x6000, scoped, tag = 'input window, operand 6, single buffered']
    #allocation11 [shape = 's32[1]{0}', space=sflag, size = 0x4, scoped, tag = 'scoped memory for calib_per_sample_t_forward.2']
    #allocation12 [shape = 'u8[2048]{0}', space=vmem, size = 0x800, scoped, tag = 'input window, operand 7, single buffered']
    #allocation13 [shape = 'u8[8192]{0}', space=vmem, size = 0x2000, scoped, tag = 'input window, operand 8, single buffered']
    #allocation14 [shape = 's32[1]{0}', space=sflag, size = 0x4, scoped, tag = 'scoped memory for calib_per_sample_t_forward.2']
    %14 = vsyncpa [#allocation3], 0
    %s15 = scalar_lea.sflag [#allocation3], 1
    %16 = vsyncpa %s15, 0
    %17 = vsyncpa [#allocation5], 0
    %18 = vsyncpa [#allocation8], 0
    %19 = vsyncpa [#allocation11], 0
    %20 = vsyncpa [#allocation14], 0
    loop: start=0, step=1, limit=4
    $region2: #{calib_per_sample_t_forward.2} parent=1 // loop_pre_header
      _
    $region3: #{calib_per_sample_t_forward.2} parent=1 // loop_header
      %s22 = sphi 0, %s26
      %p23 = scmp.ge.s32.totalorder %s22, 4
      %s32 = sphi 0, %s34
      %s35 = sphi 0, %s32
      %s36 = sphi 0, %s35
      %s52 = sphi 0, %s36
      %s56 = sphi 0, %s56
      %s58 = sphi 0, %s56
      %s59 = sphi 0, %s58
      %s73 = sphi 0, %s59
      %s77 = sphi 0, %s77
      %s79 = sphi 0, %s77
      %s80 = sphi 0, %s79
      %s94 = sphi 0, %s80
      %s98 = sphi 0, %s98
      %s100 = sphi 0, %s98
      %s101 = sphi 0, %s100
      %s115 = sphi 0, %s101
      %s119 = sphi 0, %s119
      %s121 = sphi 0, %s119
      %s122 = sphi 0, %s121
      %s136 = sphi 0, %s122
      %s140 = sphi 0, %s140
      %s142 = sphi 0, %s140
      %s143 = sphi 0, %s142
      %s157 = sphi 0, %s143
      %s161 = sphi 0, %s161
      %s163 = sphi 0, %s161
      %s164 = sphi 0, %s163
      %s178 = sphi 0, %s164
      %s182 = sphi 0, %s182
      %s184 = sphi 0, %s182
      %s185 = sphi 0, %s184
      %s199 = sphi 0, %s185
      %s203 = sphi 0, %s203
      %s205 = sphi 0, %s203
      %s206 = sphi 0, %s205
      %s220 = sphi 0, %s206
      %s226 = sphi 0, %s228
      %s229 = sphi 0, %s226
      %s230 = sphi 0, %s229
      %s246 = sphi 0, %s230
    $region4: #{calib_per_sample_t_forward.2} parent=1 // loop_header_branch
      %25 = sbr.rel (%p23) target = $region8
    $region5: #{calib_per_sample_t_forward.2} parent=1 // loop_body
      %s27 = ssub.s32 %s22, 1
      %s28 = ssub.s32 %s22, 2
      %s29 = sadd.s32 %s22, 1
      %s30 = ssub.s32 %s22, %s29
      %p31 = scmp.eq.s32.totalorder %s30, 0
      %s33 = sadd.s32 %s32, 1
      %s34 = scalar_select %p31, %s32, %s33
      %p37 = pneg %p31
      %p38 = scmp.eq.s32.totalorder %s22, 1
      %p39 = por %p37, %p38
      %p40 = scmp.ne.s32.totalorder %s32, %s35
      %p41 = scmp.eq.s32.totalorder %s22, 0
      %p42 = por %p40, %p41
      %p43 = scmp.ne.s32.totalorder %s32, %s35
      %p44 = scmp.eq.s32.totalorder %s27, 1
      %p45 = por %p43, %p44
      %p46 = scmp.ne.s32.totalorder %s35, %s36
      %p47 = scmp.eq.s32.totalorder %s27, 0
      %p48 = por %p46, %p47
      %p49 = scmp.ne.s32.totalorder %s35, %s36
      %p50 = scmp.eq.s32.totalorder %s28, 1
      %p51 = por %p49, %p50
      %p53 = scmp.ne.s32.totalorder %s36, %s52
      %p54 = scmp.eq.s32.totalorder %s28, 0
      %p55 = por %p53, %p54
      %s57 = sadd.s32 %s56, 1
      %p60 = scmp.eq.s32.totalorder %s22, 1
      %p61 = scmp.ne.s32.totalorder %s56, %s58
      %p62 = scmp.eq.s32.totalorder %s22, 0
      %p63 = por %p61, %p62
      %p64 = scmp.ne.s32.totalorder %s56, %s58
      %p65 = scmp.eq.s32.totalorder %s27, 1
      %p66 = por %p64, %p65
      %p67 = scmp.ne.s32.totalorder %s58, %s59
      %p68 = scmp.eq.s32.totalorder %s27, 0
      %p69 = por %p67, %p68
      %p70 = scmp.ne.s32.totalorder %s58, %s59
      %p71 = scmp.eq.s32.totalorder %s28, 1
      %p72 = por %p70, %p71
      %p74 = scmp.ne.s32.totalorder %s59, %s73
      %p75 = scmp.eq.s32.totalorder %s28, 0
      %p76 = por %p74, %p75
      %s78 = sadd.s32 %s77, 1
      %p81 = scmp.eq.s32.totalorder %s22, 1
      %p82 = scmp.ne.s32.totalorder %s77, %s79
      %p83 = scmp.eq.s32.totalorder %s22, 0
      %p84 = por %p82, %p83
      %p85 = scmp.ne.s32.totalorder %s77, %s79
      %p86 = scmp.eq.s32.totalorder %s27, 1
      %p87 = por %p85, %p86
      %p88 = scmp.ne.s32.totalorder %s79, %s80
      %p89 = scmp.eq.s32.totalorder %s27, 0
      %p90 = por %p88, %p89
      %p91 = scmp.ne.s32.totalorder %s79, %s80
      %p92 = scmp.eq.s32.totalorder %s28, 1
      %p93 = por %p91, %p92
      %p95 = scmp.ne.s32.totalorder %s80, %s94
      %p96 = scmp.eq.s32.totalorder %s28, 0
      %p97 = por %p95, %p96
      %s99 = sadd.s32 %s98, 1
      %p102 = scmp.eq.s32.totalorder %s22, 1
      %p103 = scmp.ne.s32.totalorder %s98, %s100
      %p104 = scmp.eq.s32.totalorder %s22, 0
      %p105 = por %p103, %p104
      %p106 = scmp.ne.s32.totalorder %s98, %s100
      %p107 = scmp.eq.s32.totalorder %s27, 1
      %p108 = por %p106, %p107
      %p109 = scmp.ne.s32.totalorder %s100, %s101
      %p110 = scmp.eq.s32.totalorder %s27, 0
      %p111 = por %p109, %p110
      %p112 = scmp.ne.s32.totalorder %s100, %s101
      %p113 = scmp.eq.s32.totalorder %s28, 1
      %p114 = por %p112, %p113
      %p116 = scmp.ne.s32.totalorder %s101, %s115
      %p117 = scmp.eq.s32.totalorder %s28, 0
      %p118 = por %p116, %p117
      %s120 = sadd.s32 %s119, 1
      %p123 = scmp.eq.s32.totalorder %s22, 1
      %p124 = scmp.ne.s32.totalorder %s119, %s121
      %p125 = scmp.eq.s32.totalorder %s22, 0
      %p126 = por %p124, %p125
      %p127 = scmp.ne.s32.totalorder %s119, %s121
      %p128 = scmp.eq.s32.totalorder %s27, 1
      %p129 = por %p127, %p128
      %p130 = scmp.ne.s32.totalorder %s121, %s122
      %p131 = scmp.eq.s32.totalorder %s27, 0
      %p132 = por %p130, %p131
      %p133 = scmp.ne.s32.totalorder %s121, %s122
      %p134 = scmp.eq.s32.totalorder %s28, 1
      %p135 = por %p133, %p134
      %p137 = scmp.ne.s32.totalorder %s122, %s136
      %p138 = scmp.eq.s32.totalorder %s28, 0
      %p139 = por %p137, %p138
      %s141 = sadd.s32 %s140, 1
      %p144 = scmp.eq.s32.totalorder %s22, 1
      %p145 = scmp.ne.s32.totalorder %s140, %s142
      %p146 = scmp.eq.s32.totalorder %s22, 0
      %p147 = por %p145, %p146
      %p148 = scmp.ne.s32.totalorder %s140, %s142
      %p149 = scmp.eq.s32.totalorder %s27, 1
      %p150 = por %p148, %p149
      %p151 = scmp.ne.s32.totalorder %s142, %s143
      %p152 = scmp.eq.s32.totalorder %s27, 0
      %p153 = por %p151, %p152
      %p154 = scmp.ne.s32.totalorder %s142, %s143
      %p155 = scmp.eq.s32.totalorder %s28, 1
      %p156 = por %p154, %p155
      %p158 = scmp.ne.s32.totalorder %s143, %s157
      %p159 = scmp.eq.s32.totalorder %s28, 0
      %p160 = por %p158, %p159
      %s162 = sadd.s32 %s161, 1
      %p165 = scmp.eq.s32.totalorder %s22, 1
      %p166 = scmp.ne.s32.totalorder %s161, %s163
      %p167 = scmp.eq.s32.totalorder %s22, 0
      %p168 = por %p166, %p167
      %p169 = scmp.ne.s32.totalorder %s161, %s163
      %p170 = scmp.eq.s32.totalorder %s27, 1
      %p171 = por %p169, %p170
      %p172 = scmp.ne.s32.totalorder %s163, %s164
      %p173 = scmp.eq.s32.totalorder %s27, 0
      %p174 = por %p172, %p173
      %p175 = scmp.ne.s32.totalorder %s163, %s164
      %p176 = scmp.eq.s32.totalorder %s28, 1
      %p177 = por %p175, %p176
      %p179 = scmp.ne.s32.totalorder %s164, %s178
      %p180 = scmp.eq.s32.totalorder %s28, 0
      %p181 = por %p179, %p180
      %s183 = sadd.s32 %s182, 1
      %p186 = scmp.eq.s32.totalorder %s22, 1
      %p187 = scmp.ne.s32.totalorder %s182, %s184
      %p188 = scmp.eq.s32.totalorder %s22, 0
      %p189 = por %p187, %p188
      %p190 = scmp.ne.s32.totalorder %s182, %s184
      %p191 = scmp.eq.s32.totalorder %s27, 1
      %p192 = por %p190, %p191
      %p193 = scmp.ne.s32.totalorder %s184, %s185
      %p194 = scmp.eq.s32.totalorder %s27, 0
      %p195 = por %p193, %p194
      %p196 = scmp.ne.s32.totalorder %s184, %s185
      %p197 = scmp.eq.s32.totalorder %s28, 1
      %p198 = por %p196, %p197
      %p200 = scmp.ne.s32.totalorder %s185, %s199
      %p201 = scmp.eq.s32.totalorder %s28, 0
      %p202 = por %p200, %p201
      %s204 = sadd.s32 %s203, 1
      %p207 = scmp.eq.s32.totalorder %s22, 1
      %p208 = scmp.ne.s32.totalorder %s203, %s205
      %p209 = scmp.eq.s32.totalorder %s22, 0
      %p210 = por %p208, %p209
      %p211 = scmp.ne.s32.totalorder %s203, %s205
      %p212 = scmp.eq.s32.totalorder %s27, 1
      %p213 = por %p211, %p212
      %p214 = scmp.ne.s32.totalorder %s205, %s206
      %p215 = scmp.eq.s32.totalorder %s27, 0
      %p216 = por %p214, %p215
      %p217 = scmp.ne.s32.totalorder %s205, %s206
      %p218 = scmp.eq.s32.totalorder %s28, 1
      %p219 = por %p217, %p218
      %p221 = scmp.ne.s32.totalorder %s206, %s220
      %p222 = scmp.eq.s32.totalorder %s28, 0
      %p223 = por %p221, %p222
      %s224 = ssub.s32 %s22, %s29
      %p225 = scmp.eq.s32.totalorder %s224, 0
      %s227 = sadd.s32 %s226, 1
      %s228 = scalar_select %p225, %s226, %s227
      %p231 = pneg %p225
      %p232 = scmp.eq.s32.totalorder %s22, 1
      %p233 = por %p231, %p232
      %p234 = scmp.ne.s32.totalorder %s226, %s229
      %p235 = scmp.eq.s32.totalorder %s22, 0
      %p236 = por %p234, %p235
      %p237 = scmp.ne.s32.totalorder %s226, %s229
      %p238 = scmp.eq.s32.totalorder %s27, 1
      %p239 = por %p237, %p238
      %p240 = scmp.ne.s32.totalorder %s229, %s230
      %p241 = scmp.eq.s32.totalorder %s27, 0
      %p242 = por %p240, %p241
      %p243 = scmp.ne.s32.totalorder %s229, %s230
      %p244 = scmp.eq.s32.totalorder %s28, 1
      %p245 = por %p243, %p244
      %p247 = scmp.ne.s32.totalorder %s230, %s246
      %p248 = scmp.eq.s32.totalorder %s28, 0
      %p249 = por %p247, %p248
      %p250 = scmp.le.s32.totalorder 1, %s22
      %p251 = scmp.lt.s32.totalorder %s22, 3
      %p252 = pnand %p250, %p251
      %p253 = pneg %p252
      // Predicated region
      $region9: #{calib_per_sample_t_forward.2} parent=5 // pred_check
        _
      $region10: #{calib_per_sample_t_forward.2} parent=5 // pred_check_branch
        %255 = sbr.rel (%p252) target = $region12
      $region11: #{calib_per_sample_t_forward.2} parent=5 // pred_region
        %s256 = ssub.s32 %s22, 1
        // Predicated region
        $region13: #{calib_per_sample_t_forward.2} parent=11 // pred_check
          %p257 = pneg %p69
        $region14: #{calib_per_sample_t_forward.2} parent=11 // pred_check_branch
          %259 = sbr.rel (%p257) target = $region16
        $region15: #{calib_per_sample_t_forward.2} parent=11 // pred_region
          _
        $region16: #{calib_per_sample_t_forward.2} parent=11 // pred_fallthru
          _
        // Predicated region
        $region17: #{calib_per_sample_t_forward.2} parent=11 // pred_check
          %p260 = pneg %p90
        $region18: #{calib_per_sample_t_forward.2} parent=11 // pred_check_branch
          %262 = sbr.rel (%p260) target = $region20
        $region19: #{calib_per_sample_t_forward.2} parent=11 // pred_region
          %s264 = ssub.s32 3072, 3072
          %265 = vsyncadd [#allocation5], %s264
          %s266 = sshll.u32 [#allocation4], 4
          %s267 = int_to_ptr.vmem [resolvable:$true] %s266
          %272 = dma.hbm_to_vmem [thread:$0]  %s2, 3072, %s267, [#allocation5], 64, 64, 4
        $region20: #{calib_per_sample_t_forward.2} parent=11 // pred_fallthru
          _
        // Predicated region
        $region21: #{calib_per_sample_t_forward.2} parent=11 // pred_check
          %p273 = pneg %p111
        $region22: #{calib_per_sample_t_forward.2} parent=11 // pred_check_branch
          %275 = sbr.rel (%p273) target = $region24
        $region23: #{calib_per_sample_t_forward.2} parent=11 // pred_region
          %s277 = ssub.s32 512, 512
          %278 = vsyncadd [#allocation5], %s277
          %s279 = sshll.u32 [#allocation6], 4
          %s280 = int_to_ptr.vmem [resolvable:$true] %s279
          %285 = dma.hbm_to_vmem [thread:$0]  %s3, 512, %s280, [#allocation5], 64, 64, 4
        $region24: #{calib_per_sample_t_forward.2} parent=11 // pred_fallthru
          _
        // Predicated region
        $region25: #{calib_per_sample_t_forward.2} parent=11 // pred_check
          %p286 = pneg %p132
        $region26: #{calib_per_sample_t_forward.2} parent=11 // pred_check_branch
          %288 = sbr.rel (%p286) target = $region28
        $region27: #{calib_per_sample_t_forward.2} parent=11 // pred_region
          %s290 = ssub.s32 512, 512
          %291 = vsyncadd [#allocation8], %s290
          %s292 = sshll.u32 [#allocation7], 4
          %s293 = int_to_ptr.vmem [resolvable:$true] %s292
          %298 = dma.hbm_to_vmem [thread:$0]  %s4, 512, %s293, [#allocation8], 64, 64, 4
        $region28: #{calib_per_sample_t_forward.2} parent=11 // pred_fallthru
          _
        // Predicated region
        $region29: #{calib_per_sample_t_forward.2} parent=11 // pred_check
          %p299 = pneg %p153
        $region30: #{calib_per_sample_t_forward.2} parent=11 // pred_check_branch
          %301 = sbr.rel (%p299) target = $region32
        $region31: #{calib_per_sample_t_forward.2} parent=11 // pred_region
          %s303 = ssub.s32 384, 384
          %304 = vsyncadd [#allocation8], %s303
          %s305 = sshll.u32 [#allocation9], 4
          %s306 = int_to_ptr.vmem [resolvable:$true] %s305
          %311 = dma.hbm_to_vmem [thread:$0]  %s5, 384, %s306, [#allocation8], 64, 64, 4
        $region32: #{calib_per_sample_t_forward.2} parent=11 // pred_fallthru
          _
        // Predicated region
        $region33: #{calib_per_sample_t_forward.2} parent=11 // pred_check
          %p312 = pneg %p174
        $region34: #{calib_per_sample_t_forward.2} parent=11 // pred_check_branch
          %314 = sbr.rel (%p312) target = $region36
        $region35: #{calib_per_sample_t_forward.2} parent=11 // pred_region
          %s316 = ssub.s32 768, 768
          %317 = vsyncadd [#allocation11], %s316
          %s318 = sshll.u32 [#allocation10], 4
          %s319 = int_to_ptr.vmem [resolvable:$true] %s318
          %324 = dma.hbm_to_vmem [thread:$0]  %s6, 768, %s319, [#allocation11], 64, 64, 4
        $region36: #{calib_per_sample_t_forward.2} parent=11 // pred_fallthru
          _
        // Predicated region
        $region37: #{calib_per_sample_t_forward.2} parent=11 // pred_check
          %p325 = pneg %p195
        $region38: #{calib_per_sample_t_forward.2} parent=11 // pred_check_branch
          %327 = sbr.rel (%p325) target = $region40
        $region39: #{calib_per_sample_t_forward.2} parent=11 // pred_region
          %s329 = ssub.s32 64, 64
          %330 = vsyncadd [#allocation11], %s329
          %s332 = sshll.u32 [#allocation12], 4
          %s333 = int_to_ptr.vmem [resolvable:$true] %s332
          %335 = dma.hbm_to_vmem [thread:$0]  %s7, 64, %s333, [#allocation11]
        $region40: #{calib_per_sample_t_forward.2} parent=11 // pred_fallthru
          _
        // Predicated region
        $region41: #{calib_per_sample_t_forward.2} parent=11 // pred_check
          %p336 = pneg %p216
        $region42: #{calib_per_sample_t_forward.2} parent=11 // pred_check_branch
          %338 = sbr.rel (%p336) target = $region44
        $region43: #{calib_per_sample_t_forward.2} parent=11 // pred_region
          %s340 = ssub.s32 256, 256
          %341 = vsyncadd [#allocation14], %s340
          %s342 = sshll.u32 [#allocation13], 4
          %s343 = int_to_ptr.vmem [resolvable:$true] %s342
          %348 = dma.hbm_to_vmem [thread:$0]  %s8, 256, %s343, [#allocation14], 128, 128, 8
        $region44: #{calib_per_sample_t_forward.2} parent=11 // pred_fallthru
          _
      $region12: #{calib_per_sample_t_forward.2} parent=5 // pred_fallthru
        _
      %p349 = scmp.lt.s32.totalorder %s22, 2
      // Predicated region
      $region45: #{calib_per_sample_t_forward.2} parent=5 // pred_check
        %p350 = pneg %p349
      $region46: #{calib_per_sample_t_forward.2} parent=5 // pred_check_branch
        %352 = sbr.rel (%p350) target = $region48
      $region47: #{calib_per_sample_t_forward.2} parent=5 // pred_region
        // Predicated region
        $region49: #{calib_per_sample_t_forward.2} parent=47 // pred_check
          %p353 = pneg %p42
        $region50: #{calib_per_sample_t_forward.2} parent=47 // pred_check_branch
          %355 = sbr.rel (%p353) target = $region52
        $region51: #{calib_per_sample_t_forward.2} parent=47 // pred_region
          %s356 = sand.u32 %s32, 1
          %s357 = scalar_lea.sflag [#allocation3], %s356
          %s358 = sand.u32 %s32, 1
          %s359 = smul.addr %s358, 2432
          %s360 = scalar_lea.vmem [#allocation2], %s359
          %s362 = ssub.s32 38912, 38912
          %363 = vsyncadd %s357, %s362
          %s364 = smul.addr %s22, 304
          %s365 = smul.addr %s364, 128
          %s366 = scalar_lea.hbm %s0, %s365
          %s367 = sshll.u32 %s360, 4
          %s368 = int_to_ptr.vmem [resolvable:$true] %s367
          %373 = dma.hbm_to_vmem [thread:$0]  %s366, 38912, %s368, %s357, 128, 128, 8
        $region52: #{calib_per_sample_t_forward.2} parent=47 // pred_fallthru
          _
      $region48: #{calib_per_sample_t_forward.2} parent=5 // pred_fallthru
        _
      %p374 = scmp.le.s32.totalorder 1, %s22
      %p375 = scmp.lt.s32.totalorder %s22, 3
      %p376 = pnand %p374, %p375
      %p377 = pneg %p376
      // Predicated region
      $region53: #{calib_per_sample_t_forward.2} parent=5 // pred_check
        _
      $region54: #{calib_per_sample_t_forward.2} parent=5 // pred_check_branch
        %379 = sbr.rel (%p376) target = $region56
      $region55: #{calib_per_sample_t_forward.2} parent=5 // pred_region
        %s380 = ssub.s32 %s22, 1
        %s381 = sand.u32 %s35, 1
        %s382 = scalar_lea.sflag [#allocation3], %s381
        %s383 = sand.u32 %s35, 1
        %s384 = smul.addr %s383, 2432
        %s385 = scalar_lea.vmem [#allocation2], %s384
        // Predicated region
        $region57: #{calib_per_sample_t_forward.2} parent=55 // pred_check
          %p386 = pneg %p48
        $region58: #{calib_per_sample_t_forward.2} parent=55 // pred_check_branch
          %388 = sbr.rel (%p386) target = $region60
        $region59: #{calib_per_sample_t_forward.2} parent=55 // pred_region
          %389 = dma.done %s382, 38912
        $region60: #{calib_per_sample_t_forward.2} parent=55 // pred_fallthru
          _
        // Predicated region
        $region61: #{calib_per_sample_t_forward.2} parent=55 // pred_check
          %p390 = pneg %p90
        $region62: #{calib_per_sample_t_forward.2} parent=55 // pred_check_branch
          %392 = sbr.rel (%p390) target = $region64
        $region63: #{calib_per_sample_t_forward.2} parent=55 // pred_region
          %393 = dma.done [#allocation5], 3072
        $region64: #{calib_per_sample_t_forward.2} parent=55 // pred_fallthru
          _
        // Predicated region
        $region65: #{calib_per_sample_t_forward.2} parent=55 // pred_check
          %p394 = pneg %p111
        $region66: #{calib_per_sample_t_forward.2} parent=55 // pred_check_branch
          %396 = sbr.rel (%p394) target = $region68
        $region67: #{calib_per_sample_t_forward.2} parent=55 // pred_region
          %397 = dma.done [#allocation5], 512
        $region68: #{calib_per_sample_t_forward.2} parent=55 // pred_fallthru
          _
        // Predicated region
        $region69: #{calib_per_sample_t_forward.2} parent=55 // pred_check
          %p398 = pneg %p132
        $region70: #{calib_per_sample_t_forward.2} parent=55 // pred_check_branch
          %400 = sbr.rel (%p398) target = $region72
        $region71: #{calib_per_sample_t_forward.2} parent=55 // pred_region
          %401 = dma.done [#allocation8], 512
        $region72: #{calib_per_sample_t_forward.2} parent=55 // pred_fallthru
          _
        // Predicated region
        $region73: #{calib_per_sample_t_forward.2} parent=55 // pred_check
          %p402 = pneg %p153
        $region74: #{calib_per_sample_t_forward.2} parent=55 // pred_check_branch
          %404 = sbr.rel (%p402) target = $region76
        $region75: #{calib_per_sample_t_forward.2} parent=55 // pred_region
          %405 = dma.done [#allocation8], 384
        $region76: #{calib_per_sample_t_forward.2} parent=55 // pred_fallthru
          _
        // Predicated region
        $region77: #{calib_per_sample_t_forward.2} parent=55 // pred_check
          %p406 = pneg %p174
        $region78: #{calib_per_sample_t_forward.2} parent=55 // pred_check_branch
          %408 = sbr.rel (%p406) target = $region80
        $region79: #{calib_per_sample_t_forward.2} parent=55 // pred_region
          %409 = dma.done [#allocation11], 768
        $region80: #{calib_per_sample_t_forward.2} parent=55 // pred_fallthru
          _
        // Predicated region
        $region81: #{calib_per_sample_t_forward.2} parent=55 // pred_check
          %p410 = pneg %p195
        $region82: #{calib_per_sample_t_forward.2} parent=55 // pred_check_branch
          %412 = sbr.rel (%p410) target = $region84
        $region83: #{calib_per_sample_t_forward.2} parent=55 // pred_region
          %413 = dma.done [#allocation11], 64
        $region84: #{calib_per_sample_t_forward.2} parent=55 // pred_fallthru
          _
        // Predicated region
        $region85: #{calib_per_sample_t_forward.2} parent=55 // pred_check
          %p414 = pneg %p216
        $region86: #{calib_per_sample_t_forward.2} parent=55 // pred_check_branch
          %416 = sbr.rel (%p414) target = $region88
        $region87: #{calib_per_sample_t_forward.2} parent=55 // pred_region
          %417 = dma.done [#allocation14], 256
        $region88: #{calib_per_sample_t_forward.2} parent=55 // pred_fallthru
          _
        %s418 = sand.u32 %s35, 1
        %s419 = scalar_lea.sflag [#allocation3], %s418
        %s420 = sand.u32 %s35, 1
        %s421 = smul.addr %s420, 2432
        %s422 = scalar_lea.vmem [#allocation2], %s421
        %p423 = pneg %p48
        %p424 = pneg %p45
        %p425 = pneg %p69
        %p426 = pneg %p66
        %p427 = pneg %p90
        %p428 = pneg %p87
        %p429 = pneg %p111
        %p430 = pneg %p108
        %p431 = pneg %p132
        %p432 = pneg %p129
        %p433 = pneg %p153
        %p434 = pneg %p150
        %p435 = pneg %p174
        %p436 = pneg %p171
        %p437 = pneg %p195
        %p438 = pneg %p192
        %p439 = pneg %p216
        %p440 = pneg %p213
        %p441 = pneg %p242
        %p442 = pneg %p239
        %p443 = scmp.lt.s32.totalorder %s27, 1
        %s444 = scalar_select %p443, %s27, 1
        %s445 = smul.addr %s444, 4
        %s446 = scalar_lea.vmem %s9, %s445
        %p447 = scmp.lt.s32.totalorder %s27, 1
        %s448 = scalar_select %p447, %s27, 1
        %s449 = smul.addr %s448, 4
        %s450 = scalar_lea.vmem %s9, %s449
        %v452 = vld [vmem:[%s385] sm:$0xff]
        %v453 = vld [vmem:[%s385 + $0x8] sm:$0xff]
        %v454 = vld [vmem:[%s385 + $0x10] sm:$0xff]
        %v455 = vld [vmem:[%s385 + $0x18] sm:$0xff]
        %v456 = vld [vmem:[%s385 + $0x20] sm:$0xff]
        %v457 = vld [vmem:[%s385 + $0x28] sm:$0xff]
        %v458 = vld [vmem:[%s385 + $0x30] sm:$0xff]
        %v459 = vld [vmem:[%s385 + $0x38] sm:$0xff]
        %v460 = vld [vmem:[%s385 + $0x40] sm:$0xff]
        %v461 = vld [vmem:[%s385 + $0x48] sm:$0xff]
        %v462 = vld [vmem:[%s385 + $0x50] sm:$0xff]
        %v463 = vld [vmem:[%s385 + $0x58] sm:$0xff]
        %v464 = vld [vmem:[%s385 + $0x60] sm:$0xff]
        %v465 = vld [vmem:[%s385 + $0x68] sm:$0xff]
        %v466 = vld [vmem:[%s385 + $0x70] sm:$0xff]
        %v467 = vld [vmem:[%s385 + $0x78] sm:$0xff]
        %v468 = vld [vmem:[%s385 + $0x80] sm:$0xff]
        %v469 = vld [vmem:[%s385 + $0x88] sm:$0xff]
        %v470 = vld [vmem:[%s385 + $0x90] sm:$0xff]
        %v471 = vld [vmem:[%s385 + $0x98] sm:$0xff]
        %v472 = vld [vmem:[%s385 + $0xa0] sm:$0xff]
        %v473 = vld [vmem:[%s385 + $0xa8] sm:$0xff]
        %v474 = vld [vmem:[%s385 + $0xb0] sm:$0xff]
        %v475 = vld [vmem:[%s385 + $0xb8] sm:$0xff]
        %v476 = vld [vmem:[%s385 + $0xc0] sm:$0xff]
        %v477 = vld [vmem:[%s385 + $0xc8] sm:$0xff]
        %v478 = vld [vmem:[%s385 + $0xd0] sm:$0xff]
        %v479 = vld [vmem:[%s385 + $0xd8] sm:$0xff]
        %v480 = vld [vmem:[%s385 + $0xe0] sm:$0xff]
        %v481 = vld [vmem:[%s385 + $0xe8] sm:$0xff]
        %v482 = vld [vmem:[%s385 + $0xf0] sm:$0xff]
        %v483 = vld [vmem:[%s385 + $0xf8] sm:$0xff]
        %v484 = vld [vmem:[%s385 + $0x100] sm:$0xff]
        %v485 = vld [vmem:[%s385 + $0x108] sm:$0xff]
        %v486 = vld [vmem:[%s385 + $0x110] sm:$0xff]
        %v487 = vld [vmem:[%s385 + $0x118] sm:$0xff]
        %v488 = vld [vmem:[%s385 + $0x120] sm:$0xff]
        %v489 = vld [vmem:[%s385 + $0x128] sm:$0xff]
        %v490 = vld [vmem:[%s385 + $0x130] sm:$0xff]
        %v491 = vld [vmem:[%s385 + $0x138] sm:$0xff]
        %v492 = vld [vmem:[%s385 + $0x140] sm:$0xff]
        %v493 = vld [vmem:[%s385 + $0x148] sm:$0xff]
        %v494 = vld [vmem:[%s385 + $0x150] sm:$0xff]
        %v495 = vld [vmem:[%s385 + $0x158] sm:$0xff]
        %v496 = vld [vmem:[%s385 + $0x160] sm:$0xff]
        %v497 = vld [vmem:[%s385 + $0x168] sm:$0xff]
        %v498 = vld [vmem:[%s385 + $0x170] sm:$0xff]
        %v499 = vld [vmem:[%s385 + $0x178] sm:$0xff]
        %v500 = vld [vmem:[%s385 + $0x180] sm:$0xff]
        %v501 = vld [vmem:[%s385 + $0x188] sm:$0xff]
        %v502 = vld [vmem:[%s385 + $0x190] sm:$0xff]
        %v503 = vld [vmem:[%s385 + $0x198] sm:$0xff]
        %v504 = vld [vmem:[%s385 + $0x1a0] sm:$0xff]
        %v505 = vld [vmem:[%s385 + $0x1a8] sm:$0xff]
        %v506 = vld [vmem:[%s385 + $0x1b0] sm:$0xff]
        %v507 = vld [vmem:[%s385 + $0x1b8] sm:$0xff]
        %v508 = vld [vmem:[%s385 + $0x1c0] sm:$0xff]
        %v509 = vld [vmem:[%s385 + $0x1c8] sm:$0xff]
        %v510 = vld [vmem:[%s385 + $0x1d0] sm:$0xff]
        %v511 = vld [vmem:[%s385 + $0x1d8] sm:$0xff]
        %v512 = vld [vmem:[%s385 + $0x1e0] sm:$0xff]
        %v513 = vld [vmem:[%s385 + $0x1e8] sm:$0xff]
        %v514 = vld [vmem:[%s385 + $0x1f0] sm:$0xff]
        %v515 = vld [vmem:[%s385 + $0x1f8] sm:$0xff]
        %v516 = vld [vmem:[%s385 + $0x200] sm:$0xff]
        %v517 = vld [vmem:[%s385 + $0x208] sm:$0xff]
        %v518 = vld [vmem:[%s385 + $0x210] sm:$0xff]
        %v519 = vld [vmem:[%s385 + $0x218] sm:$0xff]
        %v520 = vld [vmem:[%s385 + $0x220] sm:$0xff]
        %v521 = vld [vmem:[%s385 + $0x228] sm:$0xff]
        %v522 = vld [vmem:[%s385 + $0x230] sm:$0xff]
        %v523 = vld [vmem:[%s385 + $0x238] sm:$0xff]
        %v524 = vld [vmem:[%s385 + $0x240] sm:$0xff]
        %v525 = vld [vmem:[%s385 + $0x248] sm:$0xff]
        %v526 = vld [vmem:[%s385 + $0x250] sm:$0xff]
        %v527 = vld [vmem:[%s385 + $0x258] sm:$0xff]
        %v528 = vld [vmem:[%s385 + $0x260] sm:$0xff]
        %v529 = vld [vmem:[%s385 + $0x268] sm:$0xff]
        %v530 = vld [vmem:[%s385 + $0x270] sm:$0xff]
        %v531 = vld [vmem:[%s385 + $0x278] sm:$0xff]
        %v532 = vld [vmem:[%s385 + $0x280] sm:$0xff]
        %v533 = vld [vmem:[%s385 + $0x288] sm:$0xff]
        %v534 = vld [vmem:[%s385 + $0x290] sm:$0xff]
        %v535 = vld [vmem:[%s385 + $0x298] sm:$0xff]
        %v536 = vld [vmem:[%s385 + $0x2a0] sm:$0xff]
        %v537 = vld [vmem:[%s385 + $0x2a8] sm:$0xff]
        %v538 = vld [vmem:[%s385 + $0x2b0] sm:$0xff]
        %v539 = vld [vmem:[%s385 + $0x2b8] sm:$0xff]
        %v540 = vld [vmem:[%s385 + $0x2c0] sm:$0xff]
        %v541 = vld [vmem:[%s385 + $0x2c8] sm:$0xff]
        %v542 = vld [vmem:[%s385 + $0x2d0] sm:$0xff]
        %v543 = vld [vmem:[%s385 + $0x2d8] sm:$0xff]
        %v544 = vld [vmem:[%s385 + $0x2e0] sm:$0xff]
        %v545 = vld [vmem:[%s385 + $0x2e8] sm:$0xff]
        %v546 = vld [vmem:[%s385 + $0x2f0] sm:$0xff]
        %v547 = vld [vmem:[%s385 + $0x2f8] sm:$0xff]
        %v548 = vld [vmem:[%s385 + $0x300] sm:$0xff]
        %v549 = vld [vmem:[%s385 + $0x308] sm:$0xff]
        %v550 = vld [vmem:[%s385 + $0x310] sm:$0xff]
        %v551 = vld [vmem:[%s385 + $0x318] sm:$0xff]
        %v552 = vld [vmem:[%s385 + $0x320] sm:$0xff]
        %v553 = vld [vmem:[%s385 + $0x328] sm:$0xff]
        %v554 = vld [vmem:[%s385 + $0x330] sm:$0xff]
        %v555 = vld [vmem:[%s385 + $0x338] sm:$0xff]
        %v556 = vld [vmem:[%s385 + $0x340] sm:$0xff]
        %v557 = vld [vmem:[%s385 + $0x348] sm:$0xff]
        %v558 = vld [vmem:[%s385 + $0x350] sm:$0xff]
        %v559 = vld [vmem:[%s385 + $0x358] sm:$0xff]
        %v560 = vld [vmem:[%s385 + $0x360] sm:$0xff]
        %v561 = vld [vmem:[%s385 + $0x368] sm:$0xff]
        %v562 = vld [vmem:[%s385 + $0x370] sm:$0xff]
        %v563 = vld [vmem:[%s385 + $0x378] sm:$0xff]
        %v564 = vld [vmem:[%s385 + $0x380] sm:$0xff]
        %v565 = vld [vmem:[%s385 + $0x388] sm:$0xff]
        %v566 = vld [vmem:[%s385 + $0x390] sm:$0xff]
        %v567 = vld [vmem:[%s385 + $0x398] sm:$0xff]
        %v568 = vld [vmem:[%s385 + $0x3a0] sm:$0xff]
        %v569 = vld [vmem:[%s385 + $0x3a8] sm:$0xff]
        %v570 = vld [vmem:[%s385 + $0x3b0] sm:$0xff]
        %v571 = vld [vmem:[%s385 + $0x3b8] sm:$0xff]
        %v572 = vld [vmem:[%s385 + $0x3c0] sm:$0xff]
        %v573 = vld [vmem:[%s385 + $0x3c8] sm:$0xff]
        %v574 = vld [vmem:[%s385 + $0x3d0] sm:$0xff]
        %v575 = vld [vmem:[%s385 + $0x3d8] sm:$0xff]
        %v576 = vld [vmem:[%s385 + $0x3e0] sm:$0xff]
        %v577 = vld [vmem:[%s385 + $0x3e8] sm:$0xff]
        %v578 = vld [vmem:[%s385 + $0x3f0] sm:$0xff]
        %v579 = vld [vmem:[%s385 + $0x3f8] sm:$0xff]
        %v580 = vld [vmem:[%s385 + $0x400] sm:$0xff]
        %v581 = vld [vmem:[%s385 + $0x408] sm:$0xff]
        %v582 = vld [vmem:[%s385 + $0x410] sm:$0xff]
        %v583 = vld [vmem:[%s385 + $0x418] sm:$0xff]
        %v584 = vld [vmem:[%s385 + $0x420] sm:$0xff]
        %v585 = vld [vmem:[%s385 + $0x428] sm:$0xff]
        %v586 = vld [vmem:[%s385 + $0x430] sm:$0xff]
        %v587 = vld [vmem:[%s385 + $0x438] sm:$0xff]
        %v588 = vld [vmem:[%s385 + $0x440] sm:$0xff]
        %v589 = vld [vmem:[%s385 + $0x448] sm:$0xff]
        %v590 = vld [vmem:[%s385 + $0x450] sm:$0xff]
        %v591 = vld [vmem:[%s385 + $0x458] sm:$0xff]
        %v592 = vld [vmem:[%s385 + $0x460] sm:$0xff]
        %v593 = vld [vmem:[%s385 + $0x468] sm:$0xff]
        %v594 = vld [vmem:[%s385 + $0x470] sm:$0xff]
        %v595 = vld [vmem:[%s385 + $0x478] sm:$0xff]
        %v596 = vld [vmem:[%s385 + $0x480] sm:$0xff]
        %v597 = vld [vmem:[%s385 + $0x488] sm:$0xff]
        %v598 = vld [vmem:[%s385 + $0x490] sm:$0xff]
        %v599 = vld [vmem:[%s385 + $0x498] sm:$0xff]
        %v600 = vld [vmem:[%s385 + $0x4a0] sm:$0xff]
        %v601 = vld [vmem:[%s385 + $0x4a8] sm:$0xff]
        %v602 = vld [vmem:[%s385 + $0x4b0] sm:$0xff]
        %v603 = vld [vmem:[%s385 + $0x4b8] sm:$0xff]
        %v604 = vld [vmem:[%s385 + $0x4c0] sm:$0xff]
        %v605 = vld [vmem:[%s385 + $0x4c8] sm:$0xff]
        %v606 = vld [vmem:[%s385 + $0x4d0] sm:$0xff]
        %v607 = vld [vmem:[%s385 + $0x4d8] sm:$0xff]
        %v608 = vld [vmem:[%s385 + $0x4e0] sm:$0xff]
        %v609 = vld [vmem:[%s385 + $0x4e8] sm:$0xff]
        %v610 = vld [vmem:[%s385 + $0x4f0] sm:$0xff]
        %v611 = vld [vmem:[%s385 + $0x4f8] sm:$0xff]
        %v612 = vld [vmem:[%s385 + $0x500] sm:$0xff]
        %v613 = vld [vmem:[%s385 + $0x508] sm:$0xff]
        %v614 = vld [vmem:[%s385 + $0x510] sm:$0xff]
        %v615 = vld [vmem:[%s385 + $0x518] sm:$0xff]
        %v616 = vld [vmem:[%s385 + $0x520] sm:$0xff]
        %v617 = vld [vmem:[%s385 + $0x528] sm:$0xff]
        %v618 = vld [vmem:[%s385 + $0x530] sm:$0xff]
        %v619 = vld [vmem:[%s385 + $0x538] sm:$0xff]
        %v620 = vld [vmem:[%s385 + $0x540] sm:$0xff]
        %v621 = vld [vmem:[%s385 + $0x548] sm:$0xff]
        %v622 = vld [vmem:[%s385 + $0x550] sm:$0xff]
        %v623 = vld [vmem:[%s385 + $0x558] sm:$0xff]
        %v624 = vld [vmem:[%s385 + $0x560] sm:$0xff]
        %v625 = vld [vmem:[%s385 + $0x568] sm:$0xff]
        %v626 = vld [vmem:[%s385 + $0x570] sm:$0xff]
        %v627 = vld [vmem:[%s385 + $0x578] sm:$0xff]
        %v628 = vld [vmem:[%s385 + $0x580] sm:$0xff]
        %v629 = vld [vmem:[%s385 + $0x588] sm:$0xff]
        %v630 = vld [vmem:[%s385 + $0x590] sm:$0xff]
        %v631 = vld [vmem:[%s385 + $0x598] sm:$0xff]
        %v632 = vld [vmem:[%s385 + $0x5a0] sm:$0xff]
        %v633 = vld [vmem:[%s385 + $0x5a8] sm:$0xff]
        %v634 = vld [vmem:[%s385 + $0x5b0] sm:$0xff]
        %v635 = vld [vmem:[%s385 + $0x5b8] sm:$0xff]
        %v636 = vld [vmem:[%s385 + $0x5c0] sm:$0xff]
        %v637 = vld [vmem:[%s385 + $0x5c8] sm:$0xff]
        %v638 = vld [vmem:[%s385 + $0x5d0] sm:$0xff]
        %v639 = vld [vmem:[%s385 + $0x5d8] sm:$0xff]
        %v640 = vld [vmem:[%s385 + $0x5e0] sm:$0xff]
        %v641 = vld [vmem:[%s385 + $0x5e8] sm:$0xff]
        %v642 = vld [vmem:[%s385 + $0x5f0] sm:$0xff]
        %v643 = vld [vmem:[%s385 + $0x5f8] sm:$0xff]
        %v644 = vld [vmem:[%s385 + $0x600] sm:$0xff]
        %v645 = vld [vmem:[%s385 + $0x608] sm:$0xff]
        %v646 = vld [vmem:[%s385 + $0x610] sm:$0xff]
        %v647 = vld [vmem:[%s385 + $0x618] sm:$0xff]
        %v648 = vld [vmem:[%s385 + $0x620] sm:$0xff]
        %v649 = vld [vmem:[%s385 + $0x628] sm:$0xff]
        %v650 = vld [vmem:[%s385 + $0x630] sm:$0xff]
        %v651 = vld [vmem:[%s385 + $0x638] sm:$0xff]
        %v652 = vld [vmem:[%s385 + $0x640] sm:$0xff]
        %v653 = vld [vmem:[%s385 + $0x648] sm:$0xff]
        %v654 = vld [vmem:[%s385 + $0x650] sm:$0xff]
        %v655 = vld [vmem:[%s385 + $0x658] sm:$0xff]
        %v656 = vld [vmem:[%s385 + $0x660] sm:$0xff]
        %v657 = vld [vmem:[%s385 + $0x668] sm:$0xff]
        %v658 = vld [vmem:[%s385 + $0x670] sm:$0xff]
        %v659 = vld [vmem:[%s385 + $0x678] sm:$0xff]
        %v660 = vld [vmem:[%s385 + $0x680] sm:$0xff]
        %v661 = vld [vmem:[%s385 + $0x688] sm:$0xff]
        %v662 = vld [vmem:[%s385 + $0x690] sm:$0xff]
        %v663 = vld [vmem:[%s385 + $0x698] sm:$0xff]
        %v664 = vld [vmem:[%s385 + $0x6a0] sm:$0xff]
        %v665 = vld [vmem:[%s385 + $0x6a8] sm:$0xff]
        %v666 = vld [vmem:[%s385 + $0x6b0] sm:$0xff]
        %v667 = vld [vmem:[%s385 + $0x6b8] sm:$0xff]
        %v668 = vld [vmem:[%s385 + $0x6c0] sm:$0xff]
        %v669 = vld [vmem:[%s385 + $0x6c8] sm:$0xff]
        %v670 = vld [vmem:[%s385 + $0x6d0] sm:$0xff]
        %v671 = vld [vmem:[%s385 + $0x6d8] sm:$0xff]
        %v672 = vld [vmem:[%s385 + $0x6e0] sm:$0xff]
        %v673 = vld [vmem:[%s385 + $0x6e8] sm:$0xff]
        %v674 = vld [vmem:[%s385 + $0x6f0] sm:$0xff]
        %v675 = vld [vmem:[%s385 + $0x6f8] sm:$0xff]
        %v676 = vld [vmem:[%s385 + $0x700] sm:$0xff]
        %v677 = vld [vmem:[%s385 + $0x708] sm:$0xff]
        %v678 = vld [vmem:[%s385 + $0x710] sm:$0xff]
        %v679 = vld [vmem:[%s385 + $0x718] sm:$0xff]
        %v680 = vld [vmem:[%s385 + $0x720] sm:$0xff]
        %v681 = vld [vmem:[%s385 + $0x728] sm:$0xff]
        %v682 = vld [vmem:[%s385 + $0x730] sm:$0xff]
        %v683 = vld [vmem:[%s385 + $0x738] sm:$0xff]
        %v684 = vld [vmem:[%s385 + $0x740] sm:$0xff]
        %v685 = vld [vmem:[%s385 + $0x748] sm:$0xff]
        %v686 = vld [vmem:[%s385 + $0x750] sm:$0xff]
        %v687 = vld [vmem:[%s385 + $0x758] sm:$0xff]
        %v688 = vld [vmem:[%s385 + $0x760] sm:$0xff]
        %v689 = vld [vmem:[%s385 + $0x768] sm:$0xff]
        %v690 = vld [vmem:[%s385 + $0x770] sm:$0xff]
        %v691 = vld [vmem:[%s385 + $0x778] sm:$0xff]
        %v692 = vld [vmem:[%s385 + $0x780] sm:$0xff]
        %v693 = vld [vmem:[%s385 + $0x788] sm:$0xff]
        %v694 = vld [vmem:[%s385 + $0x790] sm:$0xff]
        %v695 = vld [vmem:[%s385 + $0x798] sm:$0xff]
        %v696 = vld [vmem:[%s385 + $0x7a0] sm:$0xff]
        %v697 = vld [vmem:[%s385 + $0x7a8] sm:$0xff]
        %v698 = vld [vmem:[%s385 + $0x7b0] sm:$0xff]
        %v699 = vld [vmem:[%s385 + $0x7b8] sm:$0xff]
        %v700 = vld [vmem:[%s385 + $0x7c0] sm:$0xff]
        %v701 = vld [vmem:[%s385 + $0x7c8] sm:$0xff]
        %v702 = vld [vmem:[%s385 + $0x7d0] sm:$0xff]
        %v703 = vld [vmem:[%s385 + $0x7d8] sm:$0xff]
        %v704 = vld [vmem:[%s385 + $0x7e0] sm:$0xff]
        %v705 = vld [vmem:[%s385 + $0x7e8] sm:$0xff]
        %v706 = vld [vmem:[%s385 + $0x7f0] sm:$0xff]
        %v707 = vld [vmem:[%s385 + $0x7f8] sm:$0xff]
        %v708 = vld [vmem:[%s385 + $0x800] sm:$0xff]
        %v709 = vld [vmem:[%s385 + $0x808] sm:$0xff]
        %v710 = vld [vmem:[%s385 + $0x810] sm:$0xff]
        %v711 = vld [vmem:[%s385 + $0x818] sm:$0xff]
        %v712 = vld [vmem:[%s385 + $0x820] sm:$0xff]
        %v713 = vld [vmem:[%s385 + $0x828] sm:$0xff]
        %v714 = vld [vmem:[%s385 + $0x830] sm:$0xff]
        %v715 = vld [vmem:[%s385 + $0x838] sm:$0xff]
        %v716 = vld [vmem:[%s385 + $0x840] sm:$0xff]
        %v717 = vld [vmem:[%s385 + $0x848] sm:$0xff]
        %v718 = vld [vmem:[%s385 + $0x850] sm:$0xff]
        %v719 = vld [vmem:[%s385 + $0x858] sm:$0xff]
        %v720 = vld [vmem:[%s385 + $0x860] sm:$0xff]
        %v721 = vld [vmem:[%s385 + $0x868] sm:$0xff]
        %v722 = vld [vmem:[%s385 + $0x870] sm:$0xff]
        %v723 = vld [vmem:[%s385 + $0x878] sm:$0xff]
        %v724 = vld [vmem:[%s385 + $0x880] sm:$0xff]
        %v725 = vld [vmem:[%s385 + $0x888] sm:$0xff]
        %v726 = vld [vmem:[%s385 + $0x890] sm:$0xff]
        %v727 = vld [vmem:[%s385 + $0x898] sm:$0xff]
        %v728 = vld [vmem:[%s385 + $0x8a0] sm:$0xff]
        %v729 = vld [vmem:[%s385 + $0x8a8] sm:$0xff]
        %v730 = vld [vmem:[%s385 + $0x8b0] sm:$0xff]
        %v731 = vld [vmem:[%s385 + $0x8b8] sm:$0xff]
        %v732 = vld [vmem:[%s385 + $0x8c0] sm:$0xff]
        %v733 = vld [vmem:[%s385 + $0x8c8] sm:$0xff]
        %v734 = vld [vmem:[%s385 + $0x8d0] sm:$0xff]
        %v735 = vld [vmem:[%s385 + $0x8d8] sm:$0xff]
        %v736 = vld [vmem:[%s385 + $0x8e0] sm:$0xff]
        %v737 = vld [vmem:[%s385 + $0x8e8] sm:$0xff]
        %v738 = vld [vmem:[%s385 + $0x8f0] sm:$0xff]
        %v739 = vld [vmem:[%s385 + $0x8f8] sm:$0xff]
        %v740 = vld [vmem:[%s385 + $0x900] sm:$0xff]
        %v741 = vld [vmem:[%s385 + $0x908] sm:$0xff]
        %v742 = vld [vmem:[%s385 + $0x910] sm:$0xff]
        %v743 = vld [vmem:[%s385 + $0x918] sm:$0xff]
        %v744 = vld [vmem:[%s385 + $0x920] sm:$0xff]
        %v745 = vld [vmem:[%s385 + $0x928] sm:$0xff]
        %v746 = vld [vmem:[%s385 + $0x930] sm:$0xff]
        %v747 = vld [vmem:[%s385 + $0x938] sm:$0xff]
        %v748 = vld [vmem:[%s385 + $0x940] sm:$0xff]
        %v749 = vld [vmem:[%s385 + $0x948] sm:$0xff]
        %v750 = vld [vmem:[%s385 + $0x950] sm:$0xff]
        %v751 = vld [vmem:[%s385 + $0x958] sm:$0xff]
        %v752 = vld [vmem:[%s385 + $0x960] sm:$0xff]
        %v753 = vld [vmem:[%s385 + $0x968] sm:$0xff]
        %v754 = vld [vmem:[%s385 + $0x970] sm:$0xff]
        %v755 = vld [vmem:[%s385 + $0x978] sm:$0xff]
        %v756 = vpack.c.bf16 %v453, %v452
        %v757 = vpack.c.bf16 %v455, %v454
        %v758 = vpack.c.bf16 %v457, %v456
        %v759 = vpack.c.bf16 %v459, %v458
        %v760 = vpack.c.bf16 %v461, %v460
        %v761 = vpack.c.bf16 %v463, %v462
        %v762 = vpack.c.bf16 %v465, %v464
        %v763 = vpack.c.bf16 %v467, %v466
        %v764 = vpack.c.bf16 %v469, %v468
        %v765 = vpack.c.bf16 %v471, %v470
        %v766 = vpack.c.bf16 %v473, %v472
        %v767 = vpack.c.bf16 %v475, %v474
        %v768 = vpack.c.bf16 %v477, %v476
        %v769 = vpack.c.bf16 %v479, %v478
        %v770 = vpack.c.bf16 %v481, %v480
        %v771 = vpack.c.bf16 %v483, %v482
        %v772 = vpack.c.bf16 %v485, %v484
        %v773 = vpack.c.bf16 %v487, %v486
        %v774 = vpack.c.bf16 %v489, %v488
        %v775 = vpack.c.bf16 %v491, %v490
        %v776 = vpack.c.bf16 %v493, %v492
        %v777 = vpack.c.bf16 %v495, %v494
        %v778 = vpack.c.bf16 %v497, %v496
        %v779 = vpack.c.bf16 %v499, %v498
        %v780 = vpack.c.bf16 %v501, %v500
        %v781 = vpack.c.bf16 %v503, %v502
        %v782 = vpack.c.bf16 %v505, %v504
        %v783 = vpack.c.bf16 %v507, %v506
        %v784 = vpack.c.bf16 %v509, %v508
        %v785 = vpack.c.bf16 %v511, %v510
        %v786 = vpack.c.bf16 %v513, %v512
        %v787 = vpack.c.bf16 %v515, %v514
        %v788 = vpack.c.bf16 %v517, %v516
        %v789 = vpack.c.bf16 %v519, %v518
        %v790 = vpack.c.bf16 %v521, %v520
        %v791 = vpack.c.bf16 %v523, %v522
        %v792 = vpack.c.bf16 %v525, %v524
        %v793 = vpack.c.bf16 %v527, %v526
        %v794 = vpack.c.bf16 %v529, %v528
        %v795 = vpack.c.bf16 %v531, %v530
        %v796 = vpack.c.bf16 %v533, %v532
        %v797 = vpack.c.bf16 %v535, %v534
        %v798 = vpack.c.bf16 %v537, %v536
        %v799 = vpack.c.bf16 %v539, %v538
        %v800 = vpack.c.bf16 %v541, %v540
        %v801 = vpack.c.bf16 %v543, %v542
        %v802 = vpack.c.bf16 %v545, %v544
        %v803 = vpack.c.bf16 %v547, %v546
        %v804 = vpack.c.bf16 %v549, %v548
        %v805 = vpack.c.bf16 %v551, %v550
        %v806 = vpack.c.bf16 %v553, %v552
        %v807 = vpack.c.bf16 %v555, %v554
        %v808 = vpack.c.bf16 %v557, %v556
        %v809 = vpack.c.bf16 %v559, %v558
        %v810 = vpack.c.bf16 %v561, %v560
        %v811 = vpack.c.bf16 %v563, %v562
        %v812 = vpack.c.bf16 %v565, %v564
        %v813 = vpack.c.bf16 %v567, %v566
        %v814 = vpack.c.bf16 %v569, %v568
        %v815 = vpack.c.bf16 %v571, %v570
        %v816 = vpack.c.bf16 %v573, %v572
        %v817 = vpack.c.bf16 %v575, %v574
        %v818 = vpack.c.bf16 %v577, %v576
        %v819 = vpack.c.bf16 %v579, %v578
        %v820 = vpack.c.bf16 %v581, %v580
        %v821 = vpack.c.bf16 %v583, %v582
        %v822 = vpack.c.bf16 %v585, %v584
        %v823 = vpack.c.bf16 %v587, %v586
        %v824 = vpack.c.bf16 %v589, %v588
        %v825 = vpack.c.bf16 %v591, %v590
        %v826 = vpack.c.bf16 %v593, %v592
        %v827 = vpack.c.bf16 %v595, %v594
        %v828 = vpack.c.bf16 %v597, %v596
        %v829 = vpack.c.bf16 %v599, %v598
        %v830 = vpack.c.bf16 %v601, %v600
        %v831 = vpack.c.bf16 %v603, %v602
        %v832 = vpack.c.bf16 %v605, %v604
        %v833 = vpack.c.bf16 %v607, %v606
        %v834 = vpack.c.bf16 %v609, %v608
        %v835 = vpack.c.bf16 %v611, %v610
        %v836 = vpack.c.bf16 %v613, %v612
        %v837 = vpack.c.bf16 %v615, %v614
        %v838 = vpack.c.bf16 %v617, %v616
        %v839 = vpack.c.bf16 %v619, %v618
        %v840 = vpack.c.bf16 %v621, %v620
        %v841 = vpack.c.bf16 %v623, %v622
        %v842 = vpack.c.bf16 %v625, %v624
        %v843 = vpack.c.bf16 %v627, %v626
        %v844 = vpack.c.bf16 %v629, %v628
        %v845 = vpack.c.bf16 %v631, %v630
        %v846 = vpack.c.bf16 %v633, %v632
        %v847 = vpack.c.bf16 %v635, %v634
        %v848 = vpack.c.bf16 %v637, %v636
        %v849 = vpack.c.bf16 %v639, %v638
        %v850 = vpack.c.bf16 %v641, %v640
        %v851 = vpack.c.bf16 %v643, %v642
        %v852 = vpack.c.bf16 %v645, %v644
        %v853 = vpack.c.bf16 %v647, %v646
        %v854 = vpack.c.bf16 %v649, %v648
        %v855 = vpack.c.bf16 %v651, %v650
        %v856 = vpack.c.bf16 %v653, %v652
        %v857 = vpack.c.bf16 %v655, %v654
        %v858 = vpack.c.bf16 %v657, %v656
        %v859 = vpack.c.bf16 %v659, %v658
        %v860 = vpack.c.bf16 %v661, %v660
        %v861 = vpack.c.bf16 %v663, %v662
        %v862 = vpack.c.bf16 %v665, %v664
        %v863 = vpack.c.bf16 %v667, %v666
        %v864 = vpack.c.bf16 %v669, %v668
        %v865 = vpack.c.bf16 %v671, %v670
        %v866 = vpack.c.bf16 %v673, %v672
        %v867 = vpack.c.bf16 %v675, %v674
        %v868 = vpack.c.bf16 %v677, %v676
        %v869 = vpack.c.bf16 %v679, %v678
        %v870 = vpack.c.bf16 %v681, %v680
        %v871 = vpack.c.bf16 %v683, %v682
        %v872 = vpack.c.bf16 %v685, %v684
        %v873 = vpack.c.bf16 %v687, %v686
        %v874 = vpack.c.bf16 %v689, %v688
        %v875 = vpack.c.bf16 %v691, %v690
        %v876 = vpack.c.bf16 %v693, %v692
        %v877 = vpack.c.bf16 %v695, %v694
        %v878 = vpack.c.bf16 %v697, %v696
        %v879 = vpack.c.bf16 %v699, %v698
        %v880 = vpack.c.bf16 %v701, %v700
        %v881 = vpack.c.bf16 %v703, %v702
        %v882 = vpack.c.bf16 %v705, %v704
        %v883 = vpack.c.bf16 %v707, %v706
        %v884 = vpack.c.bf16 %v709, %v708
        %v885 = vpack.c.bf16 %v711, %v710
        %v886 = vpack.c.bf16 %v713, %v712
        %v887 = vpack.c.bf16 %v715, %v714
        %v888 = vpack.c.bf16 %v717, %v716
        %v889 = vpack.c.bf16 %v719, %v718
        %v890 = vpack.c.bf16 %v721, %v720
        %v891 = vpack.c.bf16 %v723, %v722
        %v892 = vpack.c.bf16 %v725, %v724
        %v893 = vpack.c.bf16 %v727, %v726
        %v894 = vpack.c.bf16 %v729, %v728
        %v895 = vpack.c.bf16 %v731, %v730
        %v896 = vpack.c.bf16 %v733, %v732
        %v897 = vpack.c.bf16 %v735, %v734
        %v898 = vpack.c.bf16 %v737, %v736
        %v899 = vpack.c.bf16 %v739, %v738
        %v900 = vpack.c.bf16 %v741, %v740
        %v901 = vpack.c.bf16 %v743, %v742
        %v902 = vpack.c.bf16 %v745, %v744
        %v903 = vpack.c.bf16 %v747, %v746
        %v904 = vpack.c.bf16 %v749, %v748
        %v905 = vpack.c.bf16 %v751, %v750
        %v906 = vpack.c.bf16 %v753, %v752
        %v907 = vpack.c.bf16 %v755, %v754
        %v908 = vld [vmem:[%s1] sm:$0xff]
        %v909 = vld [vmem:[%s1 + $0x8] sm:$0xff]
        %v910 = vld [vmem:[%s1 + $0x10] sm:$0xff]
        %v911 = vld [vmem:[%s1 + $0x18] sm:$0xff]
        %v912 = vld [vmem:[%s1 + $0x20] sm:$0xff]
        %v913 = vld [vmem:[%s1 + $0x28] sm:$0xff]
        %v914 = vld [vmem:[%s1 + $0x30] sm:$0xff]
        %v915 = vld [vmem:[%s1 + $0x38] sm:$0xff]
        %v916 = vld [vmem:[%s1 + $0x40] sm:$0xff]
        %v917 = vld [vmem:[%s1 + $0x48] sm:$0xf]
        %v918 = vld [vmem:[%s1 + $0x4c] sm:$0xff]
        %v919 = vld [vmem:[%s1 + $0x54] sm:$0xff]
        %v920 = vld [vmem:[%s1 + $0x5c] sm:$0xff]
        %v921 = vld [vmem:[%s1 + $0x64] sm:$0xff]
        %v922 = vld [vmem:[%s1 + $0x6c] sm:$0xff]
        %v923 = vld [vmem:[%s1 + $0x74] sm:$0xff]
        %v924 = vld [vmem:[%s1 + $0x7c] sm:$0xff]
        %v925 = vld [vmem:[%s1 + $0x84] sm:$0xff]
        %v926 = vld [vmem:[%s1 + $0x8c] sm:$0xff]
        %v927 = vld [vmem:[%s1 + $0x94] sm:$0xf]
        %v928 = vld [vmem:[%s1 + $0x98] sm:$0xff]
        %v929 = vld [vmem:[%s1 + $0xa0] sm:$0xff]
        %v930 = vld [vmem:[%s1 + $0xa8] sm:$0xff]
        %v931 = vld [vmem:[%s1 + $0xb0] sm:$0xff]
        %v932 = vld [vmem:[%s1 + $0xb8] sm:$0xff]
        %v933 = vld [vmem:[%s1 + $0xc0] sm:$0xff]
        %v934 = vld [vmem:[%s1 + $0xc8] sm:$0xff]
        %v935 = vld [vmem:[%s1 + $0xd0] sm:$0xff]
        %v936 = vld [vmem:[%s1 + $0xd8] sm:$0xff]
        %v937 = vld [vmem:[%s1 + $0xe0] sm:$0xf]
        %v938 = vld [vmem:[%s1 + $0xe4] sm:$0xff]
        %v939 = vld [vmem:[%s1 + $0xec] sm:$0xff]
        %v940 = vld [vmem:[%s1 + $0xf4] sm:$0xff]
        %v941 = vld [vmem:[%s1 + $0xfc] sm:$0xff]
        %v942 = vld [vmem:[%s1 + $0x104] sm:$0xff]
        %v943 = vld [vmem:[%s1 + $0x10c] sm:$0xff]
        %v944 = vld [vmem:[%s1 + $0x114] sm:$0xff]
        %v945 = vld [vmem:[%s1 + $0x11c] sm:$0xff]
        %v946 = vld [vmem:[%s1 + $0x124] sm:$0xff]
        %v947 = vld [vmem:[%s1 + $0x12c] sm:$0xf]
        %v948 = vld [vmem:[%s1 + $0x130] sm:$0xff]
        %v949 = vld [vmem:[%s1 + $0x138] sm:$0xff]
        %v950 = vld [vmem:[%s1 + $0x140] sm:$0xff]
        %v951 = vld [vmem:[%s1 + $0x148] sm:$0xff]
        %v952 = vld [vmem:[%s1 + $0x150] sm:$0xff]
        %v953 = vld [vmem:[%s1 + $0x158] sm:$0xff]
        %v954 = vld [vmem:[%s1 + $0x160] sm:$0xff]
        %v955 = vld [vmem:[%s1 + $0x168] sm:$0xff]
        %v956 = vld [vmem:[%s1 + $0x170] sm:$0xff]
        %v957 = vld [vmem:[%s1 + $0x178] sm:$0xf]
        %v958 = vld [vmem:[%s1 + $0x17c] sm:$0xff]
        %v959 = vld [vmem:[%s1 + $0x184] sm:$0xff]
        %v960 = vld [vmem:[%s1 + $0x18c] sm:$0xff]
        %v961 = vld [vmem:[%s1 + $0x194] sm:$0xff]
        %v962 = vld [vmem:[%s1 + $0x19c] sm:$0xff]
        %v963 = vld [vmem:[%s1 + $0x1a4] sm:$0xff]
        %v964 = vld [vmem:[%s1 + $0x1ac] sm:$0xff]
        %v965 = vld [vmem:[%s1 + $0x1b4] sm:$0xff]
        %v966 = vld [vmem:[%s1 + $0x1bc] sm:$0xff]
        %v967 = vld [vmem:[%s1 + $0x1c4] sm:$0xf]
        %v968 = vld [vmem:[%s1 + $0x1c8] sm:$0xff]
        %v969 = vld [vmem:[%s1 + $0x1d0] sm:$0xff]
        %v970 = vld [vmem:[%s1 + $0x1d8] sm:$0xff]
        %v971 = vld [vmem:[%s1 + $0x1e0] sm:$0xff]
        %v972 = vld [vmem:[%s1 + $0x1e8] sm:$0xff]
        %v973 = vld [vmem:[%s1 + $0x1f0] sm:$0xff]
        %v974 = vld [vmem:[%s1 + $0x1f8] sm:$0xff]
        %v975 = vld [vmem:[%s1 + $0x200] sm:$0xff]
        %v976 = vld [vmem:[%s1 + $0x208] sm:$0xff]
        %v977 = vld [vmem:[%s1 + $0x210] sm:$0xf]
        %v978 = vld [vmem:[%s1 + $0x214] sm:$0xff]
        %v979 = vld [vmem:[%s1 + $0x21c] sm:$0xff]
        %v980 = vld [vmem:[%s1 + $0x224] sm:$0xff]
        %v981 = vld [vmem:[%s1 + $0x22c] sm:$0xff]
        %v982 = vld [vmem:[%s1 + $0x234] sm:$0xff]
        %v983 = vld [vmem:[%s1 + $0x23c] sm:$0xff]
        %v984 = vld [vmem:[%s1 + $0x244] sm:$0xff]
        %v985 = vld [vmem:[%s1 + $0x24c] sm:$0xff]
        %v986 = vld [vmem:[%s1 + $0x254] sm:$0xff]
        %v987 = vld [vmem:[%s1 + $0x25c] sm:$0xf]
        %v988 = vld [vmem:[%s1 + $0x260] sm:$0xff]
        %v989 = vld [vmem:[%s1 + $0x268] sm:$0xff]
        %v990 = vld [vmem:[%s1 + $0x270] sm:$0xff]
        %v991 = vld [vmem:[%s1 + $0x278] sm:$0xff]
        %v992 = vld [vmem:[%s1 + $0x280] sm:$0xff]
        %v993 = vld [vmem:[%s1 + $0x288] sm:$0xff]
        %v994 = vld [vmem:[%s1 + $0x290] sm:$0xff]
        %v995 = vld [vmem:[%s1 + $0x298] sm:$0xff]
        %v996 = vld [vmem:[%s1 + $0x2a0] sm:$0xff]
        %v997 = vld [vmem:[%s1 + $0x2a8] sm:$0xf]
        %v998 = vld [vmem:[%s1 + $0x2ac] sm:$0xff]
        %v999 = vld [vmem:[%s1 + $0x2b4] sm:$0xff]
        %v1000 = vld [vmem:[%s1 + $0x2bc] sm:$0xff]
        %v1001 = vld [vmem:[%s1 + $0x2c4] sm:$0xff]
        %v1002 = vld [vmem:[%s1 + $0x2cc] sm:$0xff]
        %v1003 = vld [vmem:[%s1 + $0x2d4] sm:$0xff]
        %v1004 = vld [vmem:[%s1 + $0x2dc] sm:$0xff]
        %v1005 = vld [vmem:[%s1 + $0x2e4] sm:$0xff]
        %v1006 = vld [vmem:[%s1 + $0x2ec] sm:$0xff]
        %v1007 = vld [vmem:[%s1 + $0x2f4] sm:$0xf]
        %v1008 = vld [vmem:[%s1 + $0x2f8] sm:$0xff]
        %v1009 = vld [vmem:[%s1 + $0x300] sm:$0xff]
        %v1010 = vld [vmem:[%s1 + $0x308] sm:$0xff]
        %v1011 = vld [vmem:[%s1 + $0x310] sm:$0xff]
        %v1012 = vld [vmem:[%s1 + $0x318] sm:$0xff]
        %v1013 = vld [vmem:[%s1 + $0x320] sm:$0xff]
        %v1014 = vld [vmem:[%s1 + $0x328] sm:$0xff]
        %v1015 = vld [vmem:[%s1 + $0x330] sm:$0xff]
        %v1016 = vld [vmem:[%s1 + $0x338] sm:$0xff]
        %v1017 = vld [vmem:[%s1 + $0x340] sm:$0xf]
        %v1018 = vld [vmem:[%s1 + $0x344] sm:$0xff]
        %v1019 = vld [vmem:[%s1 + $0x34c] sm:$0xff]
        %v1020 = vld [vmem:[%s1 + $0x354] sm:$0xff]
        %v1021 = vld [vmem:[%s1 + $0x35c] sm:$0xff]
        %v1022 = vld [vmem:[%s1 + $0x364] sm:$0xff]
        %v1023 = vld [vmem:[%s1 + $0x36c] sm:$0xff]
        %v1024 = vld [vmem:[%s1 + $0x374] sm:$0xff]
        %v1025 = vld [vmem:[%s1 + $0x37c] sm:$0xff]
        %v1026 = vld [vmem:[%s1 + $0x384] sm:$0xff]
        %v1027 = vld [vmem:[%s1 + $0x38c] sm:$0xf]
        %v1028 = vld [vmem:[%s1 + $0x390] sm:$0xff]
        %v1029 = vld [vmem:[%s1 + $0x398] sm:$0xff]
        %v1030 = vld [vmem:[%s1 + $0x3a0] sm:$0xff]
        %v1031 = vld [vmem:[%s1 + $0x3a8] sm:$0xff]
        %v1032 = vld [vmem:[%s1 + $0x3b0] sm:$0xff]
        %v1033 = vld [vmem:[%s1 + $0x3b8] sm:$0xff]
        %v1034 = vld [vmem:[%s1 + $0x3c0] sm:$0xff]
        %v1035 = vld [vmem:[%s1 + $0x3c8] sm:$0xff]
        %v1036 = vld [vmem:[%s1 + $0x3d0] sm:$0xff]
        %v1037 = vld [vmem:[%s1 + $0x3d8] sm:$0xf]
        %v1038 = vld [vmem:[%s1 + $0x3dc] sm:$0xff]
        %v1039 = vld [vmem:[%s1 + $0x3e4] sm:$0xff]
        %v1040 = vld [vmem:[%s1 + $0x3ec] sm:$0xff]
        %v1041 = vld [vmem:[%s1 + $0x3f4] sm:$0xff]
        %v1042 = vld [vmem:[%s1 + $0x3fc] sm:$0xff]
        %v1043 = vld [vmem:[%s1 + $0x404] sm:$0xff]
        %v1044 = vld [vmem:[%s1 + $0x40c] sm:$0xff]
        %v1045 = vld [vmem:[%s1 + $0x414] sm:$0xff]
        %v1046 = vld [vmem:[%s1 + $0x41c] sm:$0xff]
        %v1047 = vld [vmem:[%s1 + $0x424] sm:$0xf]
        %v1048 = vld [vmem:[%s1 + $0x428] sm:$0xff]
        %v1049 = vld [vmem:[%s1 + $0x430] sm:$0xff]
        %v1050 = vld [vmem:[%s1 + $0x438] sm:$0xff]
        %v1051 = vld [vmem:[%s1 + $0x440] sm:$0xff]
        %v1052 = vld [vmem:[%s1 + $0x448] sm:$0xff]
        %v1053 = vld [vmem:[%s1 + $0x450] sm:$0xff]
        %v1054 = vld [vmem:[%s1 + $0x458] sm:$0xff]
        %v1055 = vld [vmem:[%s1 + $0x460] sm:$0xff]
        %v1056 = vld [vmem:[%s1 + $0x468] sm:$0xff]
        %v1057 = vld [vmem:[%s1 + $0x470] sm:$0xf]
        %v1058 = vld [vmem:[%s1 + $0x474] sm:$0xff]
        %v1059 = vld [vmem:[%s1 + $0x47c] sm:$0xff]
        %v1060 = vld [vmem:[%s1 + $0x484] sm:$0xff]
        %v1061 = vld [vmem:[%s1 + $0x48c] sm:$0xff]
        %v1062 = vld [vmem:[%s1 + $0x494] sm:$0xff]
        %v1063 = vld [vmem:[%s1 + $0x49c] sm:$0xff]
        %v1064 = vld [vmem:[%s1 + $0x4a4] sm:$0xff]
        %v1065 = vld [vmem:[%s1 + $0x4ac] sm:$0xff]
        %v1066 = vld [vmem:[%s1 + $0x4b4] sm:$0xff]
        %v1067 = vld [vmem:[%s1 + $0x4bc] sm:$0xf]
        %v1068 = vld [vmem:[%s1 + $0x4c0] sm:$0xff]
        %v1069 = vld [vmem:[%s1 + $0x4c8] sm:$0xff]
        %v1070 = vld [vmem:[%s1 + $0x4d0] sm:$0xff]
        %v1071 = vld [vmem:[%s1 + $0x4d8] sm:$0xff]
        %v1072 = vld [vmem:[%s1 + $0x4e0] sm:$0xff]
        %v1073 = vld [vmem:[%s1 + $0x4e8] sm:$0xff]
        %v1074 = vld [vmem:[%s1 + $0x4f0] sm:$0xff]
        %v1075 = vld [vmem:[%s1 + $0x4f8] sm:$0xff]
        %v1076 = vld [vmem:[%s1 + $0x500] sm:$0xff]
        %v1077 = vld [vmem:[%s1 + $0x508] sm:$0xf]
        %v1078 = vld [vmem:[%s1 + $0x50c] sm:$0xff]
        %v1079 = vld [vmem:[%s1 + $0x514] sm:$0xff]
        %v1080 = vld [vmem:[%s1 + $0x51c] sm:$0xff]
        %v1081 = vld [vmem:[%s1 + $0x524] sm:$0xff]
        %v1082 = vld [vmem:[%s1 + $0x52c] sm:$0xff]
        %v1083 = vld [vmem:[%s1 + $0x534] sm:$0xff]
        %v1084 = vld [vmem:[%s1 + $0x53c] sm:$0xff]
        %v1085 = vld [vmem:[%s1 + $0x544] sm:$0xff]
        %v1086 = vld [vmem:[%s1 + $0x54c] sm:$0xff]
        %v1087 = vld [vmem:[%s1 + $0x554] sm:$0xf]
        %v1088 = vld [vmem:[%s1 + $0x558] sm:$0xff]
        %v1089 = vld [vmem:[%s1 + $0x560] sm:$0xff]
        %v1090 = vld [vmem:[%s1 + $0x568] sm:$0xff]
        %v1091 = vld [vmem:[%s1 + $0x570] sm:$0xff]
        %v1092 = vld [vmem:[%s1 + $0x578] sm:$0xff]
        %v1093 = vld [vmem:[%s1 + $0x580] sm:$0xff]
        %v1094 = vld [vmem:[%s1 + $0x588] sm:$0xff]
        %v1095 = vld [vmem:[%s1 + $0x590] sm:$0xff]
        %v1096 = vld [vmem:[%s1 + $0x598] sm:$0xff]
        %v1097 = vld [vmem:[%s1 + $0x5a0] sm:$0xf]
        %v1098 = vld [vmem:[%s1 + $0x5a4] sm:$0xff]
        %v1099 = vld [vmem:[%s1 + $0x5ac] sm:$0xff]
        %v1100 = vld [vmem:[%s1 + $0x5b4] sm:$0xff]
        %v1101 = vld [vmem:[%s1 + $0x5bc] sm:$0xff]
        %v1102 = vld [vmem:[%s1 + $0x5c4] sm:$0xff]
        %v1103 = vld [vmem:[%s1 + $0x5cc] sm:$0xff]
        %v1104 = vld [vmem:[%s1 + $0x5d4] sm:$0xff]
        %v1105 = vld [vmem:[%s1 + $0x5dc] sm:$0xff]
        %v1106 = vld [vmem:[%s1 + $0x5e4] sm:$0xff]
        %v1107 = vld [vmem:[%s1 + $0x5ec] sm:$0xf]
        %v1108 = vld [vmem:[%s1 + $0x5f0] sm:$0xff]
        %v1109 = vld [vmem:[%s1 + $0x5f8] sm:$0xff]
        %v1110 = vld [vmem:[%s1 + $0x600] sm:$0xff]
        %v1111 = vld [vmem:[%s1 + $0x608] sm:$0xff]
        %v1112 = vld [vmem:[%s1 + $0x610] sm:$0xff]
        %v1113 = vld [vmem:[%s1 + $0x618] sm:$0xff]
        %v1114 = vld [vmem:[%s1 + $0x620] sm:$0xff]
        %v1115 = vld [vmem:[%s1 + $0x628] sm:$0xff]
        %v1116 = vld [vmem:[%s1 + $0x630] sm:$0xff]
        %v1117 = vld [vmem:[%s1 + $0x638] sm:$0xf]
        %v1118 = vld [vmem:[%s1 + $0x63c] sm:$0xff]
        %v1119 = vld [vmem:[%s1 + $0x644] sm:$0xff]
        %v1120 = vld [vmem:[%s1 + $0x64c] sm:$0xff]
        %v1121 = vld [vmem:[%s1 + $0x654] sm:$0xff]
        %v1122 = vld [vmem:[%s1 + $0x65c] sm:$0xff]
        %v1123 = vld [vmem:[%s1 + $0x664] sm:$0xff]
        %v1124 = vld [vmem:[%s1 + $0x66c] sm:$0xff]
        %v1125 = vld [vmem:[%s1 + $0x674] sm:$0xff]
        %v1126 = vld [vmem:[%s1 + $0x67c] sm:$0xff]
        %v1127 = vld [vmem:[%s1 + $0x684] sm:$0xf]
        %v1128 = vld [vmem:[%s1 + $0x688] sm:$0xff]
        %v1129 = vld [vmem:[%s1 + $0x690] sm:$0xff]
        %v1130 = vld [vmem:[%s1 + $0x698] sm:$0xff]
        %v1131 = vld [vmem:[%s1 + $0x6a0] sm:$0xff]
        %v1132 = vld [vmem:[%s1 + $0x6a8] sm:$0xff]
        %v1133 = vld [vmem:[%s1 + $0x6b0] sm:$0xff]
        %v1134 = vld [vmem:[%s1 + $0x6b8] sm:$0xff]
        %v1135 = vld [vmem:[%s1 + $0x6c0] sm:$0xff]
        %v1136 = vld [vmem:[%s1 + $0x6c8] sm:$0xff]
        %v1137 = vld [vmem:[%s1 + $0x6d0] sm:$0xf]
        %v1138 = vld [vmem:[%s1 + $0x6d4] sm:$0xff]
        %v1139 = vld [vmem:[%s1 + $0x6dc] sm:$0xff]
        %v1140 = vld [vmem:[%s1 + $0x6e4] sm:$0xff]
        %v1141 = vld [vmem:[%s1 + $0x6ec] sm:$0xff]
        %v1142 = vld [vmem:[%s1 + $0x6f4] sm:$0xff]
        %v1143 = vld [vmem:[%s1 + $0x6fc] sm:$0xff]
        %v1144 = vld [vmem:[%s1 + $0x704] sm:$0xff]
        %v1145 = vld [vmem:[%s1 + $0x70c] sm:$0xff]
        %v1146 = vld [vmem:[%s1 + $0x714] sm:$0xff]
        %v1147 = vld [vmem:[%s1 + $0x71c] sm:$0xf]
        %v1388 = vunpack.c.l.b16 %v908
        %v1389 = vunpack.c.h.b16 %v908
        %v1390 = vunpack.c.l.b16 %v909
        %v1391 = vunpack.c.h.b16 %v909
        %v1392 = vunpack.c.l.b16 %v910
        %v1393 = vunpack.c.h.b16 %v910
        %v1394 = vunpack.c.l.b16 %v911
        %v1395 = vunpack.c.h.b16 %v911
        %v1396 = vunpack.c.l.b16 %v912
        %v1397 = vunpack.c.h.b16 %v912
        %v1398 = vunpack.c.l.b16 %v913
        %v1399 = vunpack.c.h.b16 %v913
        %v1400 = vunpack.c.l.b16 %v914
        %v1401 = vunpack.c.h.b16 %v914
        %v1402 = vunpack.c.l.b16 %v915
        %v1403 = vunpack.c.h.b16 %v915
        %v1404 = vunpack.c.l.b16 %v916
        %v1405 = vunpack.c.h.b16 %v916
        %v1406 = vunpack.c.l.b16 %v917
        %v1407 = vunpack.c.l.b16 %v918
        %v1408 = vunpack.c.h.b16 %v918
        %v1409 = vunpack.c.l.b16 %v919
        %v1410 = vunpack.c.h.b16 %v919
        %v1411 = vunpack.c.l.b16 %v920
        %v1412 = vunpack.c.h.b16 %v920
        %v1413 = vunpack.c.l.b16 %v921
        %v1414 = vunpack.c.h.b16 %v921
        %v1415 = vunpack.c.l.b16 %v922
        %v1416 = vunpack.c.h.b16 %v922
        %v1417 = vunpack.c.l.b16 %v923
        %v1418 = vunpack.c.h.b16 %v923
        %v1419 = vunpack.c.l.b16 %v924
        %v1420 = vunpack.c.h.b16 %v924
        %v1421 = vunpack.c.l.b16 %v925
        %v1422 = vunpack.c.h.b16 %v925
        %v1423 = vunpack.c.l.b16 %v926
        %v1424 = vunpack.c.h.b16 %v926
        %v1425 = vunpack.c.l.b16 %v927
        %v1426 = vunpack.c.l.b16 %v928
        %v1427 = vunpack.c.h.b16 %v928
        %v1428 = vunpack.c.l.b16 %v929
        %v1429 = vunpack.c.h.b16 %v929
        %v1430 = vunpack.c.l.b16 %v930
        %v1431 = vunpack.c.h.b16 %v930
        %v1432 = vunpack.c.l.b16 %v931
        %v1433 = vunpack.c.h.b16 %v931
        %v1434 = vunpack.c.l.b16 %v932
        %v1435 = vunpack.c.h.b16 %v932
        %v1436 = vunpack.c.l.b16 %v933
        %v1437 = vunpack.c.h.b16 %v933
        %v1438 = vunpack.c.l.b16 %v934
        %v1439 = vunpack.c.h.b16 %v934
        %v1440 = vunpack.c.l.b16 %v935
        %v1441 = vunpack.c.h.b16 %v935
        %v1442 = vunpack.c.l.b16 %v936
        %v1443 = vunpack.c.h.b16 %v936
        %v1444 = vunpack.c.l.b16 %v937
        %v1445 = vunpack.c.l.b16 %v938
        %v1446 = vunpack.c.h.b16 %v938
        %v1447 = vunpack.c.l.b16 %v939
        %v1448 = vunpack.c.h.b16 %v939
        %v1449 = vunpack.c.l.b16 %v940
        %v1450 = vunpack.c.h.b16 %v940
        %v1451 = vunpack.c.l.b16 %v941
        %v1452 = vunpack.c.h.b16 %v941
        %v1453 = vunpack.c.l.b16 %v942
        %v1454 = vunpack.c.h.b16 %v942
        %v1455 = vunpack.c.l.b16 %v943
        %v1456 = vunpack.c.h.b16 %v943
        %v1457 = vunpack.c.l.b16 %v944
        %v1458 = vunpack.c.h.b16 %v944
        %v1459 = vunpack.c.l.b16 %v945
        %v1460 = vunpack.c.h.b16 %v945
        %v1461 = vunpack.c.l.b16 %v946
        %v1462 = vunpack.c.h.b16 %v946
        %v1463 = vunpack.c.l.b16 %v947
        %v1464 = vunpack.c.l.b16 %v948
        %v1465 = vunpack.c.h.b16 %v948
        %v1466 = vunpack.c.l.b16 %v949
        %v1467 = vunpack.c.h.b16 %v949
        %v1468 = vunpack.c.l.b16 %v950
        %v1469 = vunpack.c.h.b16 %v950
        %v1470 = vunpack.c.l.b16 %v951
        %v1471 = vunpack.c.h.b16 %v951
        %v1472 = vunpack.c.l.b16 %v952
        %v1473 = vunpack.c.h.b16 %v952
        %v1474 = vunpack.c.l.b16 %v953
        %v1475 = vunpack.c.h.b16 %v953
        %v1476 = vunpack.c.l.b16 %v954
        %v1477 = vunpack.c.h.b16 %v954
        %v1478 = vunpack.c.l.b16 %v955
        %v1479 = vunpack.c.h.b16 %v955
        %v1480 = vunpack.c.l.b16 %v956
        %v1481 = vunpack.c.h.b16 %v956
        %v1482 = vunpack.c.l.b16 %v957
        %v1483 = vunpack.c.l.b16 %v958
        %v1484 = vunpack.c.h.b16 %v958
        %v1485 = vunpack.c.l.b16 %v959
        %v1486 = vunpack.c.h.b16 %v959
        %v1487 = vunpack.c.l.b16 %v960
        %v1488 = vunpack.c.h.b16 %v960
        %v1489 = vunpack.c.l.b16 %v961
        %v1490 = vunpack.c.h.b16 %v961
        %v1491 = vunpack.c.l.b16 %v962
        %v1492 = vunpack.c.h.b16 %v962
        %v1493 = vunpack.c.l.b16 %v963
        %v1494 = vunpack.c.h.b16 %v963
        %v1495 = vunpack.c.l.b16 %v964
        %v1496 = vunpack.c.h.b16 %v964
        %v1497 = vunpack.c.l.b16 %v965
        %v1498 = vunpack.c.h.b16 %v965
        %v1499 = vunpack.c.l.b16 %v966
        %v1500 = vunpack.c.h.b16 %v966
        %v1501 = vunpack.c.l.b16 %v967
        %v1502 = vunpack.c.l.b16 %v968
        %v1503 = vunpack.c.h.b16 %v968
        %v1504 = vunpack.c.l.b16 %v969
        %v1505 = vunpack.c.h.b16 %v969
        %v1506 = vunpack.c.l.b16 %v970
        %v1507 = vunpack.c.h.b16 %v970
        %v1508 = vunpack.c.l.b16 %v971
        %v1509 = vunpack.c.h.b16 %v971
        %v1510 = vunpack.c.l.b16 %v972
        %v1511 = vunpack.c.h.b16 %v972
        %v1512 = vunpack.c.l.b16 %v973
        %v1513 = vunpack.c.h.b16 %v973
        %v1514 = vunpack.c.l.b16 %v974
        %v1515 = vunpack.c.h.b16 %v974
        %v1516 = vunpack.c.l.b16 %v975
        %v1517 = vunpack.c.h.b16 %v975
        %v1518 = vunpack.c.l.b16 %v976
        %v1519 = vunpack.c.h.b16 %v976
        %v1520 = vunpack.c.l.b16 %v977
        %v1521 = vunpack.c.l.b16 %v978
        %v1522 = vunpack.c.h.b16 %v978
        %v1523 = vunpack.c.l.b16 %v979
        %v1524 = vunpack.c.h.b16 %v979
        %v1525 = vunpack.c.l.b16 %v980
        %v1526 = vunpack.c.h.b16 %v980
        %v1527 = vunpack.c.l.b16 %v981
        %v1528 = vunpack.c.h.b16 %v981
        %v1529 = vunpack.c.l.b16 %v982
        %v1530 = vunpack.c.h.b16 %v982
        %v1531 = vunpack.c.l.b16 %v983
        %v1532 = vunpack.c.h.b16 %v983
        %v1533 = vunpack.c.l.b16 %v984
        %v1534 = vunpack.c.h.b16 %v984
        %v1535 = vunpack.c.l.b16 %v985
        %v1536 = vunpack.c.h.b16 %v985
        %v1537 = vunpack.c.l.b16 %v986
        %v1538 = vunpack.c.h.b16 %v986
        %v1539 = vunpack.c.l.b16 %v987
        %v1540 = vunpack.c.l.b16 %v988
        %v1541 = vunpack.c.h.b16 %v988
        %v1542 = vunpack.c.l.b16 %v989
        %v1543 = vunpack.c.h.b16 %v989
        %v1544 = vunpack.c.l.b16 %v990
        %v1545 = vunpack.c.h.b16 %v990
        %v1546 = vunpack.c.l.b16 %v991
        %v1547 = vunpack.c.h.b16 %v991
        %v1548 = vunpack.c.l.b16 %v992
        %v1549 = vunpack.c.h.b16 %v992
        %v1550 = vunpack.c.l.b16 %v993
        %v1551 = vunpack.c.h.b16 %v993
        %v1552 = vunpack.c.l.b16 %v994
        %v1553 = vunpack.c.h.b16 %v994
        %v1554 = vunpack.c.l.b16 %v995
        %v1555 = vunpack.c.h.b16 %v995
        %v1556 = vunpack.c.l.b16 %v996
        %v1557 = vunpack.c.h.b16 %v996
        %v1558 = vunpack.c.l.b16 %v997
        %v1559 = vunpack.c.l.b16 %v998
        %v1560 = vunpack.c.h.b16 %v998
        %v1561 = vunpack.c.l.b16 %v999
        %v1562 = vunpack.c.h.b16 %v999
        %v1563 = vunpack.c.l.b16 %v1000
        %v1564 = vunpack.c.h.b16 %v1000
        %v1565 = vunpack.c.l.b16 %v1001
        %v1566 = vunpack.c.h.b16 %v1001
        %v1567 = vunpack.c.l.b16 %v1002
        %v1568 = vunpack.c.h.b16 %v1002
        %v1569 = vunpack.c.l.b16 %v1003
        %v1570 = vunpack.c.h.b16 %v1003
        %v1571 = vunpack.c.l.b16 %v1004
        %v1572 = vunpack.c.h.b16 %v1004
        %v1573 = vunpack.c.l.b16 %v1005
        %v1574 = vunpack.c.h.b16 %v1005
        %v1575 = vunpack.c.l.b16 %v1006
        %v1576 = vunpack.c.h.b16 %v1006
        %v1577 = vunpack.c.l.b16 %v1007
        %v1578 = vunpack.c.l.b16 %v1008
        %v1579 = vunpack.c.h.b16 %v1008
        %v1580 = vunpack.c.l.b16 %v1009
        %v1581 = vunpack.c.h.b16 %v1009
        %v1582 = vunpack.c.l.b16 %v1010
        %v1583 = vunpack.c.h.b16 %v1010
        %v1584 = vunpack.c.l.b16 %v1011
        %v1585 = vunpack.c.h.b16 %v1011
        %v1586 = vunpack.c.l.b16 %v1012
        %v1587 = vunpack.c.h.b16 %v1012
        %v1588 = vunpack.c.l.b16 %v1013
        %v1589 = vunpack.c.h.b16 %v1013
        %v1590 = vunpack.c.l.b16 %v1014
        %v1591 = vunpack.c.h.b16 %v1014
        %v1592 = vunpack.c.l.b16 %v1015
        %v1593 = vunpack.c.h.b16 %v1015
        %v1594 = vunpack.c.l.b16 %v1016
        %v1595 = vunpack.c.h.b16 %v1016
        %v1596 = vunpack.c.l.b16 %v1017
        %v1597 = vunpack.c.l.b16 %v1018
        %v1598 = vunpack.c.h.b16 %v1018
        %v1599 = vunpack.c.l.b16 %v1019
        %v1600 = vunpack.c.h.b16 %v1019
        %v1601 = vunpack.c.l.b16 %v1020
        %v1602 = vunpack.c.h.b16 %v1020
        %v1603 = vunpack.c.l.b16 %v1021
        %v1604 = vunpack.c.h.b16 %v1021
        %v1605 = vunpack.c.l.b16 %v1022
        %v1606 = vunpack.c.h.b16 %v1022
        %v1607 = vunpack.c.l.b16 %v1023
        %v1608 = vunpack.c.h.b16 %v1023
        %v1609 = vunpack.c.l.b16 %v1024
        %v1610 = vunpack.c.h.b16 %v1024
        %v1611 = vunpack.c.l.b16 %v1025
        %v1612 = vunpack.c.h.b16 %v1025
        %v1613 = vunpack.c.l.b16 %v1026
        %v1614 = vunpack.c.h.b16 %v1026
        %v1615 = vunpack.c.l.b16 %v1027
        %v1616 = vunpack.c.l.b16 %v1028
        %v1617 = vunpack.c.h.b16 %v1028
        %v1618 = vunpack.c.l.b16 %v1029
        %v1619 = vunpack.c.h.b16 %v1029
        %v1620 = vunpack.c.l.b16 %v1030
        %v1621 = vunpack.c.h.b16 %v1030
        %v1622 = vunpack.c.l.b16 %v1031
        %v1623 = vunpack.c.h.b16 %v1031
        %v1624 = vunpack.c.l.b16 %v1032
        %v1625 = vunpack.c.h.b16 %v1032
        %v1626 = vunpack.c.l.b16 %v1033
        %v1627 = vunpack.c.h.b16 %v1033
        %v1628 = vunpack.c.l.b16 %v1034
        %v1629 = vunpack.c.h.b16 %v1034
        %v1630 = vunpack.c.l.b16 %v1035
        %v1631 = vunpack.c.h.b16 %v1035
        %v1632 = vunpack.c.l.b16 %v1036
        %v1633 = vunpack.c.h.b16 %v1036
        %v1634 = vunpack.c.l.b16 %v1037
        %v1635 = vunpack.c.l.b16 %v1038
        %v1636 = vunpack.c.h.b16 %v1038
        %v1637 = vunpack.c.l.b16 %v1039
        %v1638 = vunpack.c.h.b16 %v1039
        %v1639 = vunpack.c.l.b16 %v1040
        %v1640 = vunpack.c.h.b16 %v1040
        %v1641 = vunpack.c.l.b16 %v1041
        %v1642 = vunpack.c.h.b16 %v1041
        %v1643 = vunpack.c.l.b16 %v1042
        %v1644 = vunpack.c.h.b16 %v1042
        %v1645 = vunpack.c.l.b16 %v1043
        %v1646 = vunpack.c.h.b16 %v1043
        %v1647 = vunpack.c.l.b16 %v1044
        %v1648 = vunpack.c.h.b16 %v1044
        %v1649 = vunpack.c.l.b16 %v1045
        %v1650 = vunpack.c.h.b16 %v1045
        %v1651 = vunpack.c.l.b16 %v1046
        %v1652 = vunpack.c.h.b16 %v1046
        %v1653 = vunpack.c.l.b16 %v1047
        %v1654 = vunpack.c.l.b16 %v1048
        %v1655 = vunpack.c.h.b16 %v1048
        %v1656 = vunpack.c.l.b16 %v1049
        %v1657 = vunpack.c.h.b16 %v1049
        %v1658 = vunpack.c.l.b16 %v1050
        %v1659 = vunpack.c.h.b16 %v1050
        %v1660 = vunpack.c.l.b16 %v1051
        %v1661 = vunpack.c.h.b16 %v1051
        %v1662 = vunpack.c.l.b16 %v1052
        %v1663 = vunpack.c.h.b16 %v1052
        %v1664 = vunpack.c.l.b16 %v1053
        %v1665 = vunpack.c.h.b16 %v1053
        %v1666 = vunpack.c.l.b16 %v1054
        %v1667 = vunpack.c.h.b16 %v1054
        %v1668 = vunpack.c.l.b16 %v1055
        %v1669 = vunpack.c.h.b16 %v1055
        %v1670 = vunpack.c.l.b16 %v1056
        %v1671 = vunpack.c.h.b16 %v1056
        %v1672 = vunpack.c.l.b16 %v1057
        %v1673 = vunpack.c.l.b16 %v1058
        %v1674 = vunpack.c.h.b16 %v1058
        %v1675 = vunpack.c.l.b16 %v1059
        %v1676 = vunpack.c.h.b16 %v1059
        %v1677 = vunpack.c.l.b16 %v1060
        %v1678 = vunpack.c.h.b16 %v1060
        %v1679 = vunpack.c.l.b16 %v1061
        %v1680 = vunpack.c.h.b16 %v1061
        %v1681 = vunpack.c.l.b16 %v1062
        %v1682 = vunpack.c.h.b16 %v1062
        %v1683 = vunpack.c.l.b16 %v1063
        %v1684 = vunpack.c.h.b16 %v1063
        %v1685 = vunpack.c.l.b16 %v1064
        %v1686 = vunpack.c.h.b16 %v1064
        %v1687 = vunpack.c.l.b16 %v1065
        %v1688 = vunpack.c.h.b16 %v1065
        %v1689 = vunpack.c.l.b16 %v1066
        %v1690 = vunpack.c.h.b16 %v1066
        %v1691 = vunpack.c.l.b16 %v1067
        %v1692 = vunpack.c.l.b16 %v1068
        %v1693 = vunpack.c.h.b16 %v1068
        %v1694 = vunpack.c.l.b16 %v1069
        %v1695 = vunpack.c.h.b16 %v1069
        %v1696 = vunpack.c.l.b16 %v1070
        %v1697 = vunpack.c.h.b16 %v1070
        %v1698 = vunpack.c.l.b16 %v1071
        %v1699 = vunpack.c.h.b16 %v1071
        %v1700 = vunpack.c.l.b16 %v1072
        %v1701 = vunpack.c.h.b16 %v1072
        %v1702 = vunpack.c.l.b16 %v1073
        %v1703 = vunpack.c.h.b16 %v1073
        %v1704 = vunpack.c.l.b16 %v1074
        %v1705 = vunpack.c.h.b16 %v1074
        %v1706 = vunpack.c.l.b16 %v1075
        %v1707 = vunpack.c.h.b16 %v1075
        %v1708 = vunpack.c.l.b16 %v1076
        %v1709 = vunpack.c.h.b16 %v1076
        %v1710 = vunpack.c.l.b16 %v1077
        %v1711 = vunpack.c.l.b16 %v1078
        %v1712 = vunpack.c.h.b16 %v1078
        %v1713 = vunpack.c.l.b16 %v1079
        %v1714 = vunpack.c.h.b16 %v1079
        %v1715 = vunpack.c.l.b16 %v1080
        %v1716 = vunpack.c.h.b16 %v1080
        %v1717 = vunpack.c.l.b16 %v1081
        %v1718 = vunpack.c.h.b16 %v1081
        %v1719 = vunpack.c.l.b16 %v1082
        %v1720 = vunpack.c.h.b16 %v1082
        %v1721 = vunpack.c.l.b16 %v1083
        %v1722 = vunpack.c.h.b16 %v1083
        %v1723 = vunpack.c.l.b16 %v1084
        %v1724 = vunpack.c.h.b16 %v1084
        %v1725 = vunpack.c.l.b16 %v1085
        %v1726 = vunpack.c.h.b16 %v1085
        %v1727 = vunpack.c.l.b16 %v1086
        %v1728 = vunpack.c.h.b16 %v1086
        %v1729 = vunpack.c.l.b16 %v1087
        %v1730 = vunpack.c.l.b16 %v1088
        %v1731 = vunpack.c.h.b16 %v1088
        %v1732 = vunpack.c.l.b16 %v1089
        %v1733 = vunpack.c.h.b16 %v1089
        %v1734 = vunpack.c.l.b16 %v1090
        %v1735 = vunpack.c.h.b16 %v1090
        %v1736 = vunpack.c.l.b16 %v1091
        %v1737 = vunpack.c.h.b16 %v1091
        %v1738 = vunpack.c.l.b16 %v1092
        %v1739 = vunpack.c.h.b16 %v1092
        %v1740 = vunpack.c.l.b16 %v1093
        %v1741 = vunpack.c.h.b16 %v1093
        %v1742 = vunpack.c.l.b16 %v1094
        %v1743 = vunpack.c.h.b16 %v1094
        %v1744 = vunpack.c.l.b16 %v1095
        %v1745 = vunpack.c.h.b16 %v1095
        %v1746 = vunpack.c.l.b16 %v1096
        %v1747 = vunpack.c.h.b16 %v1096
        %v1748 = vunpack.c.l.b16 %v1097
        %v1749 = vunpack.c.l.b16 %v1098
        %v1750 = vunpack.c.h.b16 %v1098
        %v1751 = vunpack.c.l.b16 %v1099
        %v1752 = vunpack.c.h.b16 %v1099
        %v1753 = vunpack.c.l.b16 %v1100
        %v1754 = vunpack.c.h.b16 %v1100
        %v1755 = vunpack.c.l.b16 %v1101
        %v1756 = vunpack.c.h.b16 %v1101
        %v1757 = vunpack.c.l.b16 %v1102
        %v1758 = vunpack.c.h.b16 %v1102
        %v1759 = vunpack.c.l.b16 %v1103
        %v1760 = vunpack.c.h.b16 %v1103
        %v1761 = vunpack.c.l.b16 %v1104
        %v1762 = vunpack.c.h.b16 %v1104
        %v1763 = vunpack.c.l.b16 %v1105
        %v1764 = vunpack.c.h.b16 %v1105
        %v1765 = vunpack.c.l.b16 %v1106
        %v1766 = vunpack.c.h.b16 %v1106
        %v1767 = vunpack.c.l.b16 %v1107
        %v1768 = vunpack.c.l.b16 %v1108
        %v1769 = vunpack.c.h.b16 %v1108
        %v1770 = vunpack.c.l.b16 %v1109
        %v1771 = vunpack.c.h.b16 %v1109
        %v1772 = vunpack.c.l.b16 %v1110
        %v1773 = vunpack.c.h.b16 %v1110
        %v1774 = vunpack.c.l.b16 %v1111
        %v1775 = vunpack.c.h.b16 %v1111
        %v1776 = vunpack.c.l.b16 %v1112
        %v1777 = vunpack.c.h.b16 %v1112
        %v1778 = vunpack.c.l.b16 %v1113
        %v1779 = vunpack.c.h.b16 %v1113
        %v1780 = vunpack.c.l.b16 %v1114
        %v1781 = vunpack.c.h.b16 %v1114
        %v1782 = vunpack.c.l.b16 %v1115
        %v1783 = vunpack.c.h.b16 %v1115
        %v1784 = vunpack.c.l.b16 %v1116
        %v1785 = vunpack.c.h.b16 %v1116
        %v1786 = vunpack.c.l.b16 %v1117
        %v1787 = vunpack.c.l.b16 %v1118
        %v1788 = vunpack.c.h.b16 %v1118
        %v1789 = vunpack.c.l.b16 %v1119
        %v1790 = vunpack.c.h.b16 %v1119
        %v1791 = vunpack.c.l.b16 %v1120
        %v1792 = vunpack.c.h.b16 %v1120
        %v1793 = vunpack.c.l.b16 %v1121
        %v1794 = vunpack.c.h.b16 %v1121
        %v1795 = vunpack.c.l.b16 %v1122
        %v1796 = vunpack.c.h.b16 %v1122
        %v1797 = vunpack.c.l.b16 %v1123
        %v1798 = vunpack.c.h.b16 %v1123
        %v1799 = vunpack.c.l.b16 %v1124
        %v1800 = vunpack.c.h.b16 %v1124
        %v1801 = vunpack.c.l.b16 %v1125
        %v1802 = vunpack.c.h.b16 %v1125
        %v1803 = vunpack.c.l.b16 %v1126
        %v1804 = vunpack.c.h.b16 %v1126
        %v1805 = vunpack.c.l.b16 %v1127
        %v1806 = vunpack.c.l.b16 %v1128
        %v1807 = vunpack.c.h.b16 %v1128
        %v1808 = vunpack.c.l.b16 %v1129
        %v1809 = vunpack.c.h.b16 %v1129
        %v1810 = vunpack.c.l.b16 %v1130
        %v1811 = vunpack.c.h.b16 %v1130
        %v1812 = vunpack.c.l.b16 %v1131
        %v1813 = vunpack.c.h.b16 %v1131
        %v1814 = vunpack.c.l.b16 %v1132
        %v1815 = vunpack.c.h.b16 %v1132
        %v1816 = vunpack.c.l.b16 %v1133
        %v1817 = vunpack.c.h.b16 %v1133
        %v1818 = vunpack.c.l.b16 %v1134
        %v1819 = vunpack.c.h.b16 %v1134
        %v1820 = vunpack.c.l.b16 %v1135
        %v1821 = vunpack.c.h.b16 %v1135
        %v1822 = vunpack.c.l.b16 %v1136
        %v1823 = vunpack.c.h.b16 %v1136
        %v1824 = vunpack.c.l.b16 %v1137
        %v1825 = vunpack.c.l.b16 %v1138
        %v1826 = vunpack.c.h.b16 %v1138
        %v1827 = vunpack.c.l.b16 %v1139
        %v1828 = vunpack.c.h.b16 %v1139
        %v1829 = vunpack.c.l.b16 %v1140
        %v1830 = vunpack.c.h.b16 %v1140
        %v1831 = vunpack.c.l.b16 %v1141
        %v1832 = vunpack.c.h.b16 %v1141
        %v1833 = vunpack.c.l.b16 %v1142
        %v1834 = vunpack.c.h.b16 %v1142
        %v1835 = vunpack.c.l.b16 %v1143
        %v1836 = vunpack.c.h.b16 %v1143
        %v1837 = vunpack.c.l.b16 %v1144
        %v1838 = vunpack.c.h.b16 %v1144
        %v1839 = vunpack.c.l.b16 %v1145
        %v1840 = vunpack.c.h.b16 %v1145
        %v1841 = vunpack.c.l.b16 %v1146
        %v1842 = vunpack.c.h.b16 %v1146
        %v1843 = vunpack.c.l.b16 %v1147
        %v1844 = vpack.c.b16 %v1407, %v1388
        %v1845 = vpack.c.b16 %v1408, %v1389
        %v1846 = vpack.c.b16 %v1409, %v1390
        %v1847 = vpack.c.b16 %v1410, %v1391
        %v1848 = vpack.c.b16 %v1411, %v1392
        %v1849 = vpack.c.b16 %v1412, %v1393
        %v1850 = vpack.c.b16 %v1413, %v1394
        %v1851 = vpack.c.b16 %v1414, %v1395
        %v1852 = vpack.c.b16 %v1415, %v1396
        %v1853 = vpack.c.b16 %v1416, %v1397
        %v1854 = vpack.c.b16 %v1417, %v1398
        %v1855 = vpack.c.b16 %v1418, %v1399
        %v1856 = vpack.c.b16 %v1419, %v1400
        %v1857 = vpack.c.b16 %v1420, %v1401
        %v1858 = vpack.c.b16 %v1421, %v1402
        %v1859 = vpack.c.b16 %v1422, %v1403
        %v1860 = vpack.c.b16 %v1423, %v1404
        %v1861 = vpack.c.b16 %v1424, %v1405
        %v1862 = vpack.c.b16 %v1425, %v1406
        %v1863 = vpack.c.b16 %v1445, %v1426
        %v1864 = vpack.c.b16 %v1446, %v1427
        %v1865 = vpack.c.b16 %v1447, %v1428
        %v1866 = vpack.c.b16 %v1448, %v1429
        %v1867 = vpack.c.b16 %v1449, %v1430
        %v1868 = vpack.c.b16 %v1450, %v1431
        %v1869 = vpack.c.b16 %v1451, %v1432
        %v1870 = vpack.c.b16 %v1452, %v1433
        %v1871 = vpack.c.b16 %v1453, %v1434
        %v1872 = vpack.c.b16 %v1454, %v1435
        %v1873 = vpack.c.b16 %v1455, %v1436
        %v1874 = vpack.c.b16 %v1456, %v1437
        %v1875 = vpack.c.b16 %v1457, %v1438
        %v1876 = vpack.c.b16 %v1458, %v1439
        %v1877 = vpack.c.b16 %v1459, %v1440
        %v1878 = vpack.c.b16 %v1460, %v1441
        %v1879 = vpack.c.b16 %v1461, %v1442
        %v1880 = vpack.c.b16 %v1462, %v1443
        %v1881 = vpack.c.b16 %v1463, %v1444
        %v1882 = vpack.c.b16 %v1483, %v1464
        %v1883 = vpack.c.b16 %v1484, %v1465
        %v1884 = vpack.c.b16 %v1485, %v1466
        %v1885 = vpack.c.b16 %v1486, %v1467
        %v1886 = vpack.c.b16 %v1487, %v1468
        %v1887 = vpack.c.b16 %v1488, %v1469
        %v1888 = vpack.c.b16 %v1489, %v1470
        %v1889 = vpack.c.b16 %v1490, %v1471
        %v1890 = vpack.c.b16 %v1491, %v1472
        %v1891 = vpack.c.b16 %v1492, %v1473
        %v1892 = vpack.c.b16 %v1493, %v1474
        %v1893 = vpack.c.b16 %v1494, %v1475
        %v1894 = vpack.c.b16 %v1495, %v1476
        %v1895 = vpack.c.b16 %v1496, %v1477
        %v1896 = vpack.c.b16 %v1497, %v1478
        %v1897 = vpack.c.b16 %v1498, %v1479
        %v1898 = vpack.c.b16 %v1499, %v1480
        %v1899 = vpack.c.b16 %v1500, %v1481
        %v1900 = vpack.c.b16 %v1501, %v1482
        %v1901 = vpack.c.b16 %v1521, %v1502
        %v1902 = vpack.c.b16 %v1522, %v1503
        %v1903 = vpack.c.b16 %v1523, %v1504
        %v1904 = vpack.c.b16 %v1524, %v1505
        %v1905 = vpack.c.b16 %v1525, %v1506
        %v1906 = vpack.c.b16 %v1526, %v1507
        %v1907 = vpack.c.b16 %v1527, %v1508
        %v1908 = vpack.c.b16 %v1528, %v1509
        %v1909 = vpack.c.b16 %v1529, %v1510
        %v1910 = vpack.c.b16 %v1530, %v1511
        %v1911 = vpack.c.b16 %v1531, %v1512
        %v1912 = vpack.c.b16 %v1532, %v1513
        %v1913 = vpack.c.b16 %v1533, %v1514
        %v1914 = vpack.c.b16 %v1534, %v1515
        %v1915 = vpack.c.b16 %v1535, %v1516
        %v1916 = vpack.c.b16 %v1536, %v1517
        %v1917 = vpack.c.b16 %v1537, %v1518
        %v1918 = vpack.c.b16 %v1538, %v1519
        %v1919 = vpack.c.b16 %v1539, %v1520
        %v1920 = vpack.c.b16 %v1559, %v1540
        %v1921 = vpack.c.b16 %v1560, %v1541
        %v1922 = vpack.c.b16 %v1561, %v1542
        %v1923 = vpack.c.b16 %v1562, %v1543
        %v1924 = vpack.c.b16 %v1563, %v1544
        %v1925 = vpack.c.b16 %v1564, %v1545
        %v1926 = vpack.c.b16 %v1565, %v1546
        %v1927 = vpack.c.b16 %v1566, %v1547
        %v1928 = vpack.c.b16 %v1567, %v1548
        %v1929 = vpack.c.b16 %v1568, %v1549
        %v1930 = vpack.c.b16 %v1569, %v1550
        %v1931 = vpack.c.b16 %v1570, %v1551
        %v1932 = vpack.c.b16 %v1571, %v1552
        %v1933 = vpack.c.b16 %v1572, %v1553
        %v1934 = vpack.c.b16 %v1573, %v1554
        %v1935 = vpack.c.b16 %v1574, %v1555
        %v1936 = vpack.c.b16 %v1575, %v1556
        %v1937 = vpack.c.b16 %v1576, %v1557
        %v1938 = vpack.c.b16 %v1577, %v1558
        %v1939 = vpack.c.b16 %v1597, %v1578
        %v1940 = vpack.c.b16 %v1598, %v1579
        %v1941 = vpack.c.b16 %v1599, %v1580
        %v1942 = vpack.c.b16 %v1600, %v1581
        %v1943 = vpack.c.b16 %v1601, %v1582
        %v1944 = vpack.c.b16 %v1602, %v1583
        %v1945 = vpack.c.b16 %v1603, %v1584
        %v1946 = vpack.c.b16 %v1604, %v1585
        %v1947 = vpack.c.b16 %v1605, %v1586
        %v1948 = vpack.c.b16 %v1606, %v1587
        %v1949 = vpack.c.b16 %v1607, %v1588
        %v1950 = vpack.c.b16 %v1608, %v1589
        %v1951 = vpack.c.b16 %v1609, %v1590
        %v1952 = vpack.c.b16 %v1610, %v1591
        %v1953 = vpack.c.b16 %v1611, %v1592
        %v1954 = vpack.c.b16 %v1612, %v1593
        %v1955 = vpack.c.b16 %v1613, %v1594
        %v1956 = vpack.c.b16 %v1614, %v1595
        %v1957 = vpack.c.b16 %v1615, %v1596
        %v1958 = vpack.c.b16 %v1635, %v1616
        %v1959 = vpack.c.b16 %v1636, %v1617
        %v1960 = vpack.c.b16 %v1637, %v1618
        %v1961 = vpack.c.b16 %v1638, %v1619
        %v1962 = vpack.c.b16 %v1639, %v1620
        %v1963 = vpack.c.b16 %v1640, %v1621
        %v1964 = vpack.c.b16 %v1641, %v1622
        %v1965 = vpack.c.b16 %v1642, %v1623
        %v1966 = vpack.c.b16 %v1643, %v1624
        %v1967 = vpack.c.b16 %v1644, %v1625
        %v1968 = vpack.c.b16 %v1645, %v1626
        %v1969 = vpack.c.b16 %v1646, %v1627
        %v1970 = vpack.c.b16 %v1647, %v1628
        %v1971 = vpack.c.b16 %v1648, %v1629
        %v1972 = vpack.c.b16 %v1649, %v1630
        %v1973 = vpack.c.b16 %v1650, %v1631
        %v1974 = vpack.c.b16 %v1651, %v1632
        %v1975 = vpack.c.b16 %v1652, %v1633
        %v1976 = vpack.c.b16 %v1653, %v1634
        %v1977 = vpack.c.b16 %v1673, %v1654
        %v1978 = vpack.c.b16 %v1674, %v1655
        %v1979 = vpack.c.b16 %v1675, %v1656
        %v1980 = vpack.c.b16 %v1676, %v1657
        %v1981 = vpack.c.b16 %v1677, %v1658
        %v1982 = vpack.c.b16 %v1678, %v1659
        %v1983 = vpack.c.b16 %v1679, %v1660
        %v1984 = vpack.c.b16 %v1680, %v1661
        %v1985 = vpack.c.b16 %v1681, %v1662
        %v1986 = vpack.c.b16 %v1682, %v1663
        %v1987 = vpack.c.b16 %v1683, %v1664
        %v1988 = vpack.c.b16 %v1684, %v1665
        %v1989 = vpack.c.b16 %v1685, %v1666
        %v1990 = vpack.c.b16 %v1686, %v1667
        %v1991 = vpack.c.b16 %v1687, %v1668
        %v1992 = vpack.c.b16 %v1688, %v1669
        %v1993 = vpack.c.b16 %v1689, %v1670
        %v1994 = vpack.c.b16 %v1690, %v1671
        %v1995 = vpack.c.b16 %v1691, %v1672
        %v1996 = vpack.c.b16 %v1711, %v1692
        %v1997 = vpack.c.b16 %v1712, %v1693
        %v1998 = vpack.c.b16 %v1713, %v1694
        %v1999 = vpack.c.b16 %v1714, %v1695
        %v2000 = vpack.c.b16 %v1715, %v1696
        %v2001 = vpack.c.b16 %v1716, %v1697
        %v2002 = vpack.c.b16 %v1717, %v1698
        %v2003 = vpack.c.b16 %v1718, %v1699
        %v2004 = vpack.c.b16 %v1719, %v1700
        %v2005 = vpack.c.b16 %v1720, %v1701
        %v2006 = vpack.c.b16 %v1721, %v1702
        %v2007 = vpack.c.b16 %v1722, %v1703
        %v2008 = vpack.c.b16 %v1723, %v1704
        %v2009 = vpack.c.b16 %v1724, %v1705
        %v2010 = vpack.c.b16 %v1725, %v1706
        %v2011 = vpack.c.b16 %v1726, %v1707
        %v2012 = vpack.c.b16 %v1727, %v1708
        %v2013 = vpack.c.b16 %v1728, %v1709
        %v2014 = vpack.c.b16 %v1729, %v1710
        %v2015 = vpack.c.b16 %v1749, %v1730
        %v2016 = vpack.c.b16 %v1750, %v1731
        %v2017 = vpack.c.b16 %v1751, %v1732
        %v2018 = vpack.c.b16 %v1752, %v1733
        %v2019 = vpack.c.b16 %v1753, %v1734
        %v2020 = vpack.c.b16 %v1754, %v1735
        %v2021 = vpack.c.b16 %v1755, %v1736
        %v2022 = vpack.c.b16 %v1756, %v1737
        %v2023 = vpack.c.b16 %v1757, %v1738
        %v2024 = vpack.c.b16 %v1758, %v1739
        %v2025 = vpack.c.b16 %v1759, %v1740
        %v2026 = vpack.c.b16 %v1760, %v1741
        %v2027 = vpack.c.b16 %v1761, %v1742
        %v2028 = vpack.c.b16 %v1762, %v1743
        %v2029 = vpack.c.b16 %v1763, %v1744
        %v2030 = vpack.c.b16 %v1764, %v1745
        %v2031 = vpack.c.b16 %v1765, %v1746
        %v2032 = vpack.c.b16 %v1766, %v1747
        %v2033 = vpack.c.b16 %v1767, %v1748
        %v2034 = vpack.c.b16 %v1787, %v1768
        %v2035 = vpack.c.b16 %v1788, %v1769
        %v2036 = vpack.c.b16 %v1789, %v1770
        %v2037 = vpack.c.b16 %v1790, %v1771
        %v2038 = vpack.c.b16 %v1791, %v1772
        %v2039 = vpack.c.b16 %v1792, %v1773
        %v2040 = vpack.c.b16 %v1793, %v1774
        %v2041 = vpack.c.b16 %v1794, %v1775
        %v2042 = vpack.c.b16 %v1795, %v1776
        %v2043 = vpack.c.b16 %v1796, %v1777
        %v2044 = vpack.c.b16 %v1797, %v1778
        %v2045 = vpack.c.b16 %v1798, %v1779
        %v2046 = vpack.c.b16 %v1799, %v1780
        %v2047 = vpack.c.b16 %v1800, %v1781
        %v2048 = vpack.c.b16 %v1801, %v1782
        %v2049 = vpack.c.b16 %v1802, %v1783
        %v2050 = vpack.c.b16 %v1803, %v1784
        %v2051 = vpack.c.b16 %v1804, %v1785
        %v2052 = vpack.c.b16 %v1805, %v1786
        %v2053 = vpack.c.b16 %v1825, %v1806
        %v2054 = vpack.c.b16 %v1826, %v1807
        %v2055 = vpack.c.b16 %v1827, %v1808
        %v2056 = vpack.c.b16 %v1828, %v1809
        %v2057 = vpack.c.b16 %v1829, %v1810
        %v2058 = vpack.c.b16 %v1830, %v1811
        %v2059 = vpack.c.b16 %v1831, %v1812
        %v2060 = vpack.c.b16 %v1832, %v1813
        %v2061 = vpack.c.b16 %v1833, %v1814
        %v2062 = vpack.c.b16 %v1834, %v1815
        %v2063 = vpack.c.b16 %v1835, %v1816
        %v2064 = vpack.c.b16 %v1836, %v1817
        %v2065 = vpack.c.b16 %v1837, %v1818
        %v2066 = vpack.c.b16 %v1838, %v1819
        %v2067 = vpack.c.b16 %v1839, %v1820
        %v2068 = vpack.c.b16 %v1840, %v1821
        %v2069 = vpack.c.b16 %v1841, %v1822
        %v2070 = vpack.c.b16 %v1842, %v1823
        %v2071 = vpack.c.b16 %v1843, %v1824
        %2300 = vmatprep.subr.bf16.mxu0 0
        %2301 = vmatpush1.bf16.msra.mxu0 %v756
        %2302 = vmatprep.subr.bf16.mxu0 0
        %2303 = vmatpush1.bf16.msra.mxu0 %v757
        %2304 = vmatprep.subr.bf16.mxu0 0
        %2305 = vmatpush1.bf16.msra.mxu0 %v758
        %2306 = vmatprep.subr.bf16.mxu0 0
        %2307 = vmatpush1.bf16.msra.mxu0 %v759
        %2308 = vmatprep.subr.bf16.mxu0 0
        %2309 = vmatpush1.bf16.msra.mxu0 %v760
        %2310 = vmatprep.subr.bf16.mxu0 0
        %2311 = vmatpush1.bf16.msra.mxu0 %v761
        %2312 = vmatprep.subr.bf16.mxu0 0
        %2313 = vmatpush1.bf16.msra.mxu0 %v762
        %2314 = vmatprep.subr.bf16.mxu0 0
        %2315 = vmatpush1.bf16.msra.mxu0 %v763
        %2316 = vmatprep.subr.bf16.mxu0 0
        %2317 = vmatpush1.bf16.msra.mxu0 %v764
        %2318 = vmatprep.subr.bf16.mxu0 0
        %2319 = vmatpush1.bf16.msra.mxu0 %v765
        %2320 = vmatprep.subr.bf16.mxu0 0
        %2321 = vmatpush1.bf16.msra.mxu0 %v766
        %2322 = vmatprep.subr.bf16.mxu0 0
        %2323 = vmatpush1.bf16.msra.mxu0 %v767
        %2324 = vmatprep.subr.bf16.mxu0 0
        %2325 = vmatpush1.bf16.msra.mxu0 %v768
        %2326 = vmatprep.subr.bf16.mxu0 0
        %2327 = vmatpush1.bf16.msra.mxu0 %v769
        %2328 = vmatprep.subr.bf16.mxu0 0
        %2329 = vmatpush1.bf16.msra.mxu0 %v770
        %2330 = vmatprep.subr.bf16.mxu0 0
        %2331 = vmatpush1.bf16.msra.mxu0 %v771
        %2332 = vmatprep.mubr.bf16.mxu0 %v1845
        %2333 = vmatmul.mubr.bf16.gmra.mrb[0].mxu0 %v1844
        %v2334 = vpop.f32.mrb[0].mxu0
        %v2335 = vadd.f32 0.0, %v2334
        %v2336 = vpop.f32.mrb[0].mxu0
        %v2337 = vpop.f32.mrb[0].mxu0
        %v2338 = vadd.f32 0.0, %v2337
        %v2339 = vpop.f32.mrb[0].mxu0
        %2340 = vmatprep.mubr.bf16.mxu0 %v1864
        %2341 = vmatmul.mubr.bf16.gmra.mrb[0].mxu0 %v1863
        %v2342 = vpop.f32.mrb[0].mxu0
        %v2343 = vadd.f32 0.0, %v2342
        %v2344 = vpop.f32.mrb[0].mxu0
        %v2345 = vpop.f32.mrb[0].mxu0
        %v2346 = vadd.f32 0.0, %v2345
        %v2347 = vpop.f32.mrb[0].mxu0
        %2348 = vmatprep.mubr.bf16.mxu0 %v1883
        %2349 = vmatmul.mubr.bf16.gmra.mrb[0].mxu0 %v1882
        %v2350 = vpop.f32.mrb[0].mxu0
        %v2351 = vadd.f32 0.0, %v2350
        %v2352 = vpop.f32.mrb[0].mxu0
        %v2353 = vpop.f32.mrb[0].mxu0
        %v2354 = vadd.f32 0.0, %v2353
        %v2355 = vpop.f32.mrb[0].mxu0
        %2356 = vmatprep.mubr.bf16.mxu0 %v1902
        %2357 = vmatmul.mubr.bf16.gmra.mrb[0].mxu0 %v1901
        %v2358 = vpop.f32.mrb[0].mxu0
        %v2359 = vadd.f32 0.0, %v2358
        %v2360 = vpop.f32.mrb[0].mxu0
        %v2361 = vpop.f32.mrb[0].mxu0
        %v2362 = vadd.f32 0.0, %v2361
        %v2363 = vpop.f32.mrb[0].mxu0
        %2364 = vmatprep.mubr.bf16.mxu0 %v1921
        %2365 = vmatmul.mubr.bf16.gmra.mrb[0].mxu0 %v1920
        %v2366 = vpop.f32.mrb[0].mxu0
        %v2367 = vadd.f32 0.0, %v2366
        %v2368 = vpop.f32.mrb[0].mxu0
        %v2369 = vpop.f32.mrb[0].mxu0
        %v2370 = vadd.f32 0.0, %v2369
        %v2371 = vpop.f32.mrb[0].mxu0
        %2372 = vmatprep.mubr.bf16.mxu0 %v1940
        %2373 = vmatmul.mubr.bf16.gmra.mrb[0].mxu0 %v1939
        %v2374 = vpop.f32.mrb[0].mxu0
        %v2375 = vadd.f32 0.0, %v2374
        %v2376 = vpop.f32.mrb[0].mxu0
        %v2377 = vpop.f32.mrb[0].mxu0
        %v2378 = vadd.f32 0.0, %v2377
        %v2379 = vpop.f32.mrb[0].mxu0
        %2380 = vmatprep.mubr.bf16.mxu0 %v1959
        %2381 = vmatmul.mubr.bf16.gmra.mrb[0].mxu0 %v1958
        %v2382 = vpop.f32.mrb[0].mxu0
        %v2383 = vadd.f32 0.0, %v2382
        %v2384 = vpop.f32.mrb[0].mxu0
        %v2385 = vpop.f32.mrb[0].mxu0
        %v2386 = vadd.f32 0.0, %v2385
        %v2387 = vpop.f32.mrb[0].mxu0
        %2388 = vmatprep.mubr.bf16.mxu0 %v1978
        %2389 = vmatmul.mubr.bf16.gmra.mrb[0].mxu0 %v1977
        %v2390 = vpop.f32.mrb[0].mxu0
        %v2391 = vadd.f32 0.0, %v2390
        %v2392 = vpop.f32.mrb[0].mxu0
        %v2393 = vpop.f32.mrb[0].mxu0
        %v2394 = vadd.f32 0.0, %v2393
        %v2395 = vpop.f32.mrb[0].mxu0
        %2396 = vmatprep.mubr.bf16.mxu0 %v1997
        %2397 = vmatmul.mubr.bf16.gmra.mrb[0].mxu0 %v1996
        %v2398 = vpop.f32.mrb[0].mxu0
        %v2399 = vadd.f32 0.0, %v2398
        %v2400 = vpop.f32.mrb[0].mxu0
        %v2401 = vpop.f32.mrb[0].mxu0
        %v2402 = vadd.f32 0.0, %v2401
        %v2403 = vpop.f32.mrb[0].mxu0
        %2404 = vmatprep.mubr.bf16.mxu0 %v2016
        %2405 = vmatmul.mubr.bf16.gmra.mrb[0].mxu0 %v2015
        %v2406 = vpop.f32.mrb[0].mxu0
        %v2407 = vadd.f32 0.0, %v2406
        %v2408 = vpop.f32.mrb[0].mxu0
        %v2409 = vpop.f32.mrb[0].mxu0
        %v2410 = vadd.f32 0.0, %v2409
        %v2411 = vpop.f32.mrb[0].mxu0
        %2412 = vmatprep.mubr.bf16.mxu0 %v2035
        %2413 = vmatmul.mubr.bf16.gmra.mrb[0].mxu0 %v2034
        %v2414 = vpop.f32.mrb[0].mxu0
        %v2415 = vadd.f32 0.0, %v2414
        %v2416 = vpop.f32.mrb[0].mxu0
        %v2417 = vpop.f32.mrb[0].mxu0
        %v2418 = vadd.f32 0.0, %v2417
        %v2419 = vpop.f32.mrb[0].mxu0
        %2420 = vmatprep.mubr.bf16.mxu0 %v2054
        %2421 = vmatmul.mubr.bf16.gmra.mrb[0].mxu0 %v2053
        %v2422 = vpop.f32.mrb[0].mxu0
        %v2423 = vadd.f32 0.0, %v2422
        %v2424 = vpop.f32.mrb[0].mxu0
        %v2425 = vpop.f32.mrb[0].mxu0
        %v2426 = vadd.f32 0.0, %v2425
        %v2427 = vpop.f32.mrb[0].mxu0
        %2428 = vdwg.mxu0
        %2429 = vmatprep.subr.bf16.mxu0 0
        %2430 = vmatpush1.bf16.msra.mxu0 %v772
        %2431 = vmatprep.subr.bf16.mxu0 0
        %2432 = vmatpush1.bf16.msra.mxu0 %v773
        %2433 = vmatprep.subr.bf16.mxu0 0
        %2434 = vmatpush1.bf16.msra.mxu0 %v774
        %2435 = vmatprep.subr.bf16.mxu0 0
        %2436 = vmatpush1.bf16.msra.mxu0 %v775
        %2437 = vmatprep.subr.bf16.mxu0 0
        %2438 = vmatpush1.bf16.msra.mxu0 %v776
        %2439 = vmatprep.subr.bf16.mxu0 0
        %2440 = vmatpush1.bf16.msra.mxu0 %v777
        %2441 = vmatprep.subr.bf16.mxu0 0
        %2442 = vmatpush1.bf16.msra.mxu0 %v778
        %2443 = vmatprep.subr.bf16.mxu0 0
        %2444 = vmatpush1.bf16.msra.mxu0 %v779
        %2445 = vmatprep.subr.bf16.mxu0 0
        %2446 = vmatpush1.bf16.msra.mxu0 %v780
        %2447 = vmatprep.subr.bf16.mxu0 0
        %2448 = vmatpush1.bf16.msra.mxu0 %v781
        %2449 = vmatprep.subr.bf16.mxu0 0
        %2450 = vmatpush1.bf16.msra.mxu0 %v782
        %2451 = vmatprep.subr.bf16.mxu0 0
        %2452 = vmatpush1.bf16.msra.mxu0 %v783
        %2453 = vmatprep.subr.bf16.mxu0 0
        %2454 = vmatpush1.bf16.msra.mxu0 %v784
        %2455 = vmatprep.subr.bf16.mxu0 0
        %2456 = vmatpush1.bf16.msra.mxu0 %v785
        %2457 = vmatprep.subr.bf16.mxu0 0
        %2458 = vmatpush1.bf16.msra.mxu0 %v786
        %2459 = vmatprep.subr.bf16.mxu0 0
        %2460 = vmatpush1.bf16.msra.mxu0 %v787
        %2461 = vmatprep.mubr.bf16.mxu0 %v1847
        %2462 = vmatmul.mubr.bf16.gmra.mrb[0].mxu0 %v1846
        %v2463 = vpop.f32.mrb[0].mxu0
        %v2464 = vadd.f32 %v2335, %v2463
        %v2465 = vpop.f32.mrb[0].mxu0
        %v2466 = vpop.f32.mrb[0].mxu0
        %v2467 = vadd.f32 %v2338, %v2466
        %v2468 = vpop.f32.mrb[0].mxu0
        %2469 = vmatprep.mubr.bf16.mxu0 %v1866
        %2470 = vmatmul.mubr.bf16.gmra.mrb[0].mxu0 %v1865
        %v2471 = vpop.f32.mrb[0].mxu0
        %v2472 = vadd.f32 %v2343, %v2471
        %v2473 = vpop.f32.mrb[0].mxu0
        %v2474 = vpop.f32.mrb[0].mxu0
        %v2475 = vadd.f32 %v2346, %v2474
        %v2476 = vpop.f32.mrb[0].mxu0
        %2477 = vmatprep.mubr.bf16.mxu0 %v1885
        %2478 = vmatmul.mubr.bf16.gmra.mrb[0].mxu0 %v1884
        %v2479 = vpop.f32.mrb[0].mxu0
        %v2480 = vadd.f32 %v2351, %v2479
        %v2481 = vpop.f32.mrb[0].mxu0
        %v2482 = vpop.f32.mrb[0].mxu0
        %v2483 = vadd.f32 %v2354, %v2482
        %v2484 = vpop.f32.mrb[0].mxu0
        %2485 = vmatprep.mubr.bf16.mxu0 %v1904
        %2486 = vmatmul.mubr.bf16.gmra.mrb[0].mxu0 %v1903
        %v2487 = vpop.f32.mrb[0].mxu0
        %v2488 = vadd.f32 %v2359, %v2487
        %v2489 = vpop.f32.mrb[0].mxu0
        %v2490 = vpop.f32.mrb[0].mxu0
        %v2491 = vadd.f32 %v2362, %v2490
        %v2492 = vpop.f32.mrb[0].mxu0
        %2493 = vmatprep.mubr.bf16.mxu0 %v1923
        %2494 = vmatmul.mubr.bf16.gmra.mrb[0].mxu0 %v1922
        %v2495 = vpop.f32.mrb[0].mxu0
        %v2496 = vadd.f32 %v2367, %v2495
        %v2497 = vpop.f32.mrb[0].mxu0
        %v2498 = vpop.f32.mrb[0].mxu0
        %v2499 = vadd.f32 %v2370, %v2498
        %v2500 = vpop.f32.mrb[0].mxu0
        %2501 = vmatprep.mubr.bf16.mxu0 %v1942
        %2502 = vmatmul.mubr.bf16.gmra.mrb[0].mxu0 %v1941
        %v2503 = vpop.f32.mrb[0].mxu0
        %v2504 = vadd.f32 %v2375, %v2503
        %v2505 = vpop.f32.mrb[0].mxu0
        %v2506 = vpop.f32.mrb[0].mxu0
        %v2507 = vadd.f32 %v2378, %v2506
        %v2508 = vpop.f32.mrb[0].mxu0
        %2509 = vmatprep.mubr.bf16.mxu0 %v1961
        %2510 = vmatmul.mubr.bf16.gmra.mrb[0].mxu0 %v1960
        %v2511 = vpop.f32.mrb[0].mxu0
        %v2512 = vadd.f32 %v2383, %v2511
        %v2513 = vpop.f32.mrb[0].mxu0
        %v2514 = vpop.f32.mrb[0].mxu0
        %v2515 = vadd.f32 %v2386, %v2514
        %v2516 = vpop.f32.mrb[0].mxu0
        %2517 = vmatprep.mubr.bf16.mxu0 %v1980
        %2518 = vmatmul.mubr.bf16.gmra.mrb[0].mxu0 %v1979
        %v2519 = vpop.f32.mrb[0].mxu0
        %v2520 = vadd.f32 %v2391, %v2519
        %v2521 = vpop.f32.mrb[0].mxu0
        %v2522 = vpop.f32.mrb[0].mxu0
        %v2523 = vadd.f32 %v2394, %v2522
        %v2524 = vpop.f32.mrb[0].mxu0
        %2525 = vmatprep.mubr.bf16.mxu0 %v1999
        %2526 = vmatmul.mubr.bf16.gmra.mrb[0].mxu0 %v1998
        %v2527 = vpop.f32.mrb[0].mxu0
        %v2528 = vadd.f32 %v2399, %v2527
        %v2529 = vpop.f32.mrb[0].mxu0
        %v2530 = vpop.f32.mrb[0].mxu0
        %v2531 = vadd.f32 %v2402, %v2530
        %v2532 = vpop.f32.mrb[0].mxu0
        %2533 = vmatprep.mubr.bf16.mxu0 %v2018
        %2534 = vmatmul.mubr.bf16.gmra.mrb[0].mxu0 %v2017
        %v2535 = vpop.f32.mrb[0].mxu0
        %v2536 = vadd.f32 %v2407, %v2535
        %v2537 = vpop.f32.mrb[0].mxu0
        %v2538 = vpop.f32.mrb[0].mxu0
        %v2539 = vadd.f32 %v2410, %v2538
        %v2540 = vpop.f32.mrb[0].mxu0
        %2541 = vmatprep.mubr.bf16.mxu0 %v2037
        %2542 = vmatmul.mubr.bf16.gmra.mrb[0].mxu0 %v2036
        %v2543 = vpop.f32.mrb[0].mxu0
        %v2544 = vadd.f32 %v2415, %v2543
        %v2545 = vpop.f32.mrb[0].mxu0
        %v2546 = vpop.f32.mrb[0].mxu0
        %v2547 = vadd.f32 %v2418, %v2546
        %v2548 = vpop.f32.mrb[0].mxu0
        %2549 = vmatprep.mubr.bf16.mxu0 %v2056
        %2550 = vmatmul.mubr.bf16.gmra.mrb[0].mxu0 %v2055
        %v2551 = vpop.f32.mrb[0].mxu0
        %v2552 = vadd.f32 %v2423, %v2551
        %v2553 = vpop.f32.mrb[0].mxu0
        %v2554 = vpop.f32.mrb[0].mxu0
        %v2555 = vadd.f32 %v2426, %v2554
        %v2556 = vpop.f32.mrb[0].mxu0
        %2557 = vdwg.mxu0
        %2558 = vmatprep.subr.bf16.mxu0 0
        %2559 = vmatpush1.bf16.msra.mxu0 %v788
        %2560 = vmatprep.subr.bf16.mxu0 0
        %2561 = vmatpush1.bf16.msra.mxu0 %v789
        %2562 = vmatprep.subr.bf16.mxu0 0
        %2563 = vmatpush1.bf16.msra.mxu0 %v790
        %2564 = vmatprep.subr.bf16.mxu0 0
        %2565 = vmatpush1.bf16.msra.mxu0 %v791
        %2566 = vmatprep.subr.bf16.mxu0 0
        %2567 = vmatpush1.bf16.msra.mxu0 %v792
        %2568 = vmatprep.subr.bf16.mxu0 0
        %2569 = vmatpush1.bf16.msra.mxu0 %v793
        %2570 = vmatprep.subr.bf16.mxu0 0
        %2571 = vmatpush1.bf16.msra.mxu0 %v794
        %2572 = vmatprep.subr.bf16.mxu0 0
        %2573 = vmatpush1.bf16.msra.mxu0 %v795
        %2574 = vmatprep.subr.bf16.mxu0 0
        %2575 = vmatpush1.bf16.msra.mxu0 %v796
        %2576 = vmatprep.subr.bf16.mxu0 0
        %2577 = vmatpush1.bf16.msra.mxu0 %v797
        %2578 = vmatprep.subr.bf16.mxu0 0
        %2579 = vmatpush1.bf16.msra.mxu0 %v798
        %2580 = vmatprep.subr.bf16.mxu0 0
        %2581 = vmatpush1.bf16.msra.mxu0 %v799
        %2582 = vmatprep.subr.bf16.mxu0 0
        %2583 = vmatpush1.bf16.msra.mxu0 %v800
        %2584 = vmatprep.subr.bf16.mxu0 0
        %2585 = vmatpush1.bf16.msra.mxu0 %v801
        %2586 = vmatprep.subr.bf16.mxu0 0
        %2587 = vmatpush1.bf16.msra.mxu0 %v802
        %2588 = vmatprep.subr.bf16.mxu0 0
        %2589 = vmatpush1.bf16.msra.mxu0 %v803
        %2590 = vmatprep.mubr.bf16.mxu0 %v1849
        %2591 = vmatmul.mubr.bf16.gmra.mrb[0].mxu0 %v1848
        %v2592 = vpop.f32.mrb[0].mxu0
        %v2593 = vadd.f32 %v2464, %v2592
        %v2594 = vpop.f32.mrb[0].mxu0
        %v2595 = vpop.f32.mrb[0].mxu0
        %v2596 = vadd.f32 %v2467, %v2595
        %v2597 = vpop.f32.mrb[0].mxu0
        %2598 = vmatprep.mubr.bf16.mxu0 %v1868
        %2599 = vmatmul.mubr.bf16.gmra.mrb[0].mxu0 %v1867
        %v2600 = vpop.f32.mrb[0].mxu0
        %v2601 = vadd.f32 %v2472, %v2600
        %v2602 = vpop.f32.mrb[0].mxu0
        %v2603 = vpop.f32.mrb[0].mxu0
        %v2604 = vadd.f32 %v2475, %v2603
        %v2605 = vpop.f32.mrb[0].mxu0
        %2606 = vmatprep.mubr.bf16.mxu0 %v1887
        %2607 = vmatmul.mubr.bf16.gmra.mrb[0].mxu0 %v1886
        %v2608 = vpop.f32.mrb[0].mxu0
        %v2609 = vadd.f32 %v2480, %v2608
        %v2610 = vpop.f32.mrb[0].mxu0
        %v2611 = vpop.f32.mrb[0].mxu0
        %v2612 = vadd.f32 %v2483, %v2611
        %v2613 = vpop.f32.mrb[0].mxu0
        %2614 = vmatprep.mubr.bf16.mxu0 %v1906
        %2615 = vmatmul.mubr.bf16.gmra.mrb[0].mxu0 %v1905
        %v2616 = vpop.f32.mrb[0].mxu0
        %v2617 = vadd.f32 %v2488, %v2616
        %v2618 = vpop.f32.mrb[0].mxu0
        %v2619 = vpop.f32.mrb[0].mxu0
        %v2620 = vadd.f32 %v2491, %v2619
        %v2621 = vpop.f32.mrb[0].mxu0
        %2622 = vmatprep.mubr.bf16.mxu0 %v1925
        %2623 = vmatmul.mubr.bf16.gmra.mrb[0].mxu0 %v1924
        %v2624 = vpop.f32.mrb[0].mxu0
        %v2625 = vadd.f32 %v2496, %v2624
        %v2626 = vpop.f32.mrb[0].mxu0
        %v2627 = vpop.f32.mrb[0].mxu0
        %v2628 = vadd.f32 %v2499, %v2627
        %v2629 = vpop.f32.mrb[0].mxu0
        %2630 = vmatprep.mubr.bf16.mxu0 %v1944
        %2631 = vmatmul.mubr.bf16.gmra.mrb[0].mxu0 %v1943
        %v2632 = vpop.f32.mrb[0].mxu0
        %v2633 = vadd.f32 %v2504, %v2632
        %v2634 = vpop.f32.mrb[0].mxu0
        %v2635 = vpop.f32.mrb[0].mxu0
        %v2636 = vadd.f32 %v2507, %v2635
        %v2637 = vpop.f32.mrb[0].mxu0
        %2638 = vmatprep.mubr.bf16.mxu0 %v1963
        %2639 = vmatmul.mubr.bf16.gmra.mrb[0].mxu0 %v1962
        %v2640 = vpop.f32.mrb[0].mxu0
        %v2641 = vadd.f32 %v2512, %v2640
        %v2642 = vpop.f32.mrb[0].mxu0
        %v2643 = vpop.f32.mrb[0].mxu0
        %v2644 = vadd.f32 %v2515, %v2643
        %v2645 = vpop.f32.mrb[0].mxu0
        %2646 = vmatprep.mubr.bf16.mxu0 %v1982
        %2647 = vmatmul.mubr.bf16.gmra.mrb[0].mxu0 %v1981
        %v2648 = vpop.f32.mrb[0].mxu0
        %v2649 = vadd.f32 %v2520, %v2648
        %v2650 = vpop.f32.mrb[0].mxu0
        %v2651 = vpop.f32.mrb[0].mxu0
        %v2652 = vadd.f32 %v2523, %v2651
        %v2653 = vpop.f32.mrb[0].mxu0
        %2654 = vmatprep.mubr.bf16.mxu0 %v2001
        %2655 = vmatmul.mubr.bf16.gmra.mrb[0].mxu0 %v2000
        %v2656 = vpop.f32.mrb[0].mxu0
        %v2657 = vadd.f32 %v2528, %v2656
        %v2658 = vpop.f32.mrb[0].mxu0
        %v2659 = vpop.f32.mrb[0].mxu0
        %v2660 = vadd.f32 %v2531, %v2659
        %v2661 = vpop.f32.mrb[0].mxu0
        %2662 = vmatprep.mubr.bf16.mxu0 %v2020
        %2663 = vmatmul.mubr.bf16.gmra.mrb[0].mxu0 %v2019
        %v2664 = vpop.f32.mrb[0].mxu0
        %v2665 = vadd.f32 %v2536, %v2664
        %v2666 = vpop.f32.mrb[0].mxu0
        %v2667 = vpop.f32.mrb[0].mxu0
        %v2668 = vadd.f32 %v2539, %v2667
        %v2669 = vpop.f32.mrb[0].mxu0
        %2670 = vmatprep.mubr.bf16.mxu0 %v2039
        %2671 = vmatmul.mubr.bf16.gmra.mrb[0].mxu0 %v2038
        %v2672 = vpop.f32.mrb[0].mxu0
        %v2673 = vadd.f32 %v2544, %v2672
        %v2674 = vpop.f32.mrb[0].mxu0
        %v2675 = vpop.f32.mrb[0].mxu0
        %v2676 = vadd.f32 %v2547, %v2675
        %v2677 = vpop.f32.mrb[0].mxu0
        %2678 = vmatprep.mubr.bf16.mxu0 %v2058
        %2679 = vmatmul.mubr.bf16.gmra.mrb[0].mxu0 %v2057
        %v2680 = vpop.f32.mrb[0].mxu0
        %v2681 = vadd.f32 %v2552, %v2680
        %v2682 = vpop.f32.mrb[0].mxu0
        %v2683 = vpop.f32.mrb[0].mxu0
        %v2684 = vadd.f32 %v2555, %v2683
        %v2685 = vpop.f32.mrb[0].mxu0
        %2686 = vdwg.mxu0
        %2687 = vmatprep.subr.bf16.mxu0 0
        %2688 = vmatpush1.bf16.msra.mxu0 %v804
        %2689 = vmatprep.subr.bf16.mxu0 0
        %2690 = vmatpush1.bf16.msra.mxu0 %v805
        %2691 = vmatprep.subr.bf16.mxu0 0
        %2692 = vmatpush1.bf16.msra.mxu0 %v806
        %2693 = vmatprep.subr.bf16.mxu0 0
        %2694 = vmatpush1.bf16.msra.mxu0 %v807
        %2695 = vmatprep.subr.bf16.mxu0 0
        %2696 = vmatpush1.bf16.msra.mxu0 %v808
        %2697 = vmatprep.subr.bf16.mxu0 0
        %2698 = vmatpush1.bf16.msra.mxu0 %v809
        %2699 = vmatprep.subr.bf16.mxu0 0
        %2700 = vmatpush1.bf16.msra.mxu0 %v810
        %2701 = vmatprep.subr.bf16.mxu0 0
        %2702 = vmatpush1.bf16.msra.mxu0 %v811
        %2703 = vmatprep.subr.bf16.mxu0 0
        %2704 = vmatpush1.bf16.msra.mxu0 %v812
        %2705 = vmatprep.subr.bf16.mxu0 0
        %2706 = vmatpush1.bf16.msra.mxu0 %v813
        %2707 = vmatprep.subr.bf16.mxu0 0
        %2708 = vmatpush1.bf16.msra.mxu0 %v814
        %2709 = vmatprep.subr.bf16.mxu0 0
        %2710 = vmatpush1.bf16.msra.mxu0 %v815
        %2711 = vmatprep.subr.bf16.mxu0 0
        %2712 = vmatpush1.bf16.msra.mxu0 %v816
        %2713 = vmatprep.subr.bf16.mxu0 0
        %2714 = vmatpush1.bf16.msra.mxu0 %v817
        %2715 = vmatprep.subr.bf16.mxu0 0
        %2716 = vmatpush1.bf16.msra.mxu0 %v818
        %2717 = vmatprep.subr.bf16.mxu0 0
        %2718 = vmatpush1.bf16.msra.mxu0 %v819
        %2719 = vmatprep.mubr.bf16.mxu0 %v1851
        %2720 = vmatmul.mubr.bf16.gmra.mrb[0].mxu0 %v1850
        %v2721 = vpop.f32.mrb[0].mxu0
        %v2722 = vadd.f32 %v2593, %v2721
        %v2723 = vpop.f32.mrb[0].mxu0
        %v2724 = vpop.f32.mrb[0].mxu0
        %v2725 = vadd.f32 %v2596, %v2724
        %v2726 = vpop.f32.mrb[0].mxu0
        %2727 = vmatprep.mubr.bf16.mxu0 %v1870
        %2728 = vmatmul.mubr.bf16.gmra.mrb[0].mxu0 %v1869
        %v2729 = vpop.f32.mrb[0].mxu0
        %v2730 = vadd.f32 %v2601, %v2729
        %v2731 = vpop.f32.mrb[0].mxu0
        %v2732 = vpop.f32.mrb[0].mxu0
        %v2733 = vadd.f32 %v2604, %v2732
        %v2734 = vpop.f32.mrb[0].mxu0
        %2735 = vmatprep.mubr.bf16.mxu0 %v1889
        %2736 = vmatmul.mubr.bf16.gmra.mrb[0].mxu0 %v1888
        %v2737 = vpop.f32.mrb[0].mxu0
        %v2738 = vadd.f32 %v2609, %v2737
        %v2739 = vpop.f32.mrb[0].mxu0
        %v2740 = vpop.f32.mrb[0].mxu0
        %v2741 = vadd.f32 %v2612, %v2740
        %v2742 = vpop.f32.mrb[0].mxu0
        %2743 = vmatprep.mubr.bf16.mxu0 %v1908
        %2744 = vmatmul.mubr.bf16.gmra.mrb[0].mxu0 %v1907
        %v2745 = vpop.f32.mrb[0].mxu0
        %v2746 = vadd.f32 %v2617, %v2745
        %v2747 = vpop.f32.mrb[0].mxu0
        %v2748 = vpop.f32.mrb[0].mxu0
        %v2749 = vadd.f32 %v2620, %v2748
        %v2750 = vpop.f32.mrb[0].mxu0
        %2751 = vmatprep.mubr.bf16.mxu0 %v1927
        %2752 = vmatmul.mubr.bf16.gmra.mrb[0].mxu0 %v1926
        %v2753 = vpop.f32.mrb[0].mxu0
        %v2754 = vadd.f32 %v2625, %v2753
        %v2755 = vpop.f32.mrb[0].mxu0
        %v2756 = vpop.f32.mrb[0].mxu0
        %v2757 = vadd.f32 %v2628, %v2756
        %v2758 = vpop.f32.mrb[0].mxu0
        %2759 = vmatprep.mubr.bf16.mxu0 %v1946
        %2760 = vmatmul.mubr.bf16.gmra.mrb[0].mxu0 %v1945
        %v2761 = vpop.f32.mrb[0].mxu0
        %v2762 = vadd.f32 %v2633, %v2761
        %v2763 = vpop.f32.mrb[0].mxu0
        %v2764 = vpop.f32.mrb[0].mxu0
        %v2765 = vadd.f32 %v2636, %v2764
        %v2766 = vpop.f32.mrb[0].mxu0
        %2767 = vmatprep.mubr.bf16.mxu0 %v1965
        %2768 = vmatmul.mubr.bf16.gmra.mrb[0].mxu0 %v1964
        %v2769 = vpop.f32.mrb[0].mxu0
        %v2770 = vadd.f32 %v2641, %v2769
        %v2771 = vpop.f32.mrb[0].mxu0
        %v2772 = vpop.f32.mrb[0].mxu0
        %v2773 = vadd.f32 %v2644, %v2772
        %v2774 = vpop.f32.mrb[0].mxu0
        %2775 = vmatprep.mubr.bf16.mxu0 %v1984
        %2776 = vmatmul.mubr.bf16.gmra.mrb[0].mxu0 %v1983
        %v2777 = vpop.f32.mrb[0].mxu0
        %v2778 = vadd.f32 %v2649, %v2777
        %v2779 = vpop.f32.mrb[0].mxu0
        %v2780 = vpop.f32.mrb[0].mxu0
        %v2781 = vadd.f32 %v2652, %v2780
        %v2782 = vpop.f32.mrb[0].mxu0
        %2783 = vmatprep.mubr.bf16.mxu0 %v2003
        %2784 = vmatmul.mubr.bf16.gmra.mrb[0].mxu0 %v2002
        %v2785 = vpop.f32.mrb[0].mxu0
        %v2786 = vadd.f32 %v2657, %v2785
        %v2787 = vpop.f32.mrb[0].mxu0
        %v2788 = vpop.f32.mrb[0].mxu0
        %v2789 = vadd.f32 %v2660, %v2788
        %v2790 = vpop.f32.mrb[0].mxu0
        %2791 = vmatprep.mubr.bf16.mxu0 %v2022
        %2792 = vmatmul.mubr.bf16.gmra.mrb[0].mxu0 %v2021
        %v2793 = vpop.f32.mrb[0].mxu0
        %v2794 = vadd.f32 %v2665, %v2793
        %v2795 = vpop.f32.mrb[0].mxu0
        %v2796 = vpop.f32.mrb[0].mxu0
        %v2797 = vadd.f32 %v2668, %v2796
        %v2798 = vpop.f32.mrb[0].mxu0
        %2799 = vmatprep.mubr.bf16.mxu0 %v2041
        %2800 = vmatmul.mubr.bf16.gmra.mrb[0].mxu0 %v2040
        %v2801 = vpop.f32.mrb[0].mxu0
        %v2802 = vadd.f32 %v2673, %v2801
        %v2803 = vpop.f32.mrb[0].mxu0
        %v2804 = vpop.f32.mrb[0].mxu0
        %v2805 = vadd.f32 %v2676, %v2804
        %v2806 = vpop.f32.mrb[0].mxu0
        %2807 = vmatprep.mubr.bf16.mxu0 %v2060
        %2808 = vmatmul.mubr.bf16.gmra.mrb[0].mxu0 %v2059
        %v2809 = vpop.f32.mrb[0].mxu0
        %v2810 = vadd.f32 %v2681, %v2809
        %v2811 = vpop.f32.mrb[0].mxu0
        %v2812 = vpop.f32.mrb[0].mxu0
        %v2813 = vadd.f32 %v2684, %v2812
        %v2814 = vpop.f32.mrb[0].mxu0
        %2815 = vdwg.mxu0
        %2816 = vmatprep.subr.bf16.mxu0 0
        %2817 = vmatpush1.bf16.msra.mxu0 %v820
        %2818 = vmatprep.subr.bf16.mxu0 0
        %2819 = vmatpush1.bf16.msra.mxu0 %v821
        %2820 = vmatprep.subr.bf16.mxu0 0
        %2821 = vmatpush1.bf16.msra.mxu0 %v822
        %2822 = vmatprep.subr.bf16.mxu0 0
        %2823 = vmatpush1.bf16.msra.mxu0 %v823
        %2824 = vmatprep.subr.bf16.mxu0 0
        %2825 = vmatpush1.bf16.msra.mxu0 %v824
        %2826 = vmatprep.subr.bf16.mxu0 0
        %2827 = vmatpush1.bf16.msra.mxu0 %v825
        %2828 = vmatprep.subr.bf16.mxu0 0
        %2829 = vmatpush1.bf16.msra.mxu0 %v826
        %2830 = vmatprep.subr.bf16.mxu0 0
        %2831 = vmatpush1.bf16.msra.mxu0 %v827
        %2832 = vmatprep.subr.bf16.mxu0 0
        %2833 = vmatpush1.bf16.msra.mxu0 %v828
        %2834 = vmatprep.subr.bf16.mxu0 0
        %2835 = vmatpush1.bf16.msra.mxu0 %v829
        %2836 = vmatprep.subr.bf16.mxu0 0
        %2837 = vmatpush1.bf16.msra.mxu0 %v830
        %2838 = vmatprep.subr.bf16.mxu0 0
        %2839 = vmatpush1.bf16.msra.mxu0 %v831
        %2840 = vmatprep.subr.bf16.mxu0 0
        %2841 = vmatpush1.bf16.msra.mxu0 %v832
        %2842 = vmatprep.subr.bf16.mxu0 0
        %2843 = vmatpush1.bf16.msra.mxu0 %v833
        %2844 = vmatprep.subr.bf16.mxu0 0
        %2845 = vmatpush1.bf16.msra.mxu0 %v834
        %2846 = vmatprep.subr.bf16.mxu0 0
        %2847 = vmatpush1.bf16.msra.mxu0 %v835
        %2848 = vmatprep.mubr.bf16.mxu0 %v1853
        %2849 = vmatmul.mubr.bf16.gmra.mrb[0].mxu0 %v1852
        %v2850 = vpop.f32.mrb[0].mxu0
        %v2851 = vadd.f32 %v2722, %v2850
        %v2852 = vpop.f32.mrb[0].mxu0
        %v2853 = vpop.f32.mrb[0].mxu0
        %v2854 = vadd.f32 %v2725, %v2853
        %v2855 = vpop.f32.mrb[0].mxu0
        %2856 = vmatprep.mubr.bf16.mxu0 %v1872
        %2857 = vmatmul.mubr.bf16.gmra.mrb[0].mxu0 %v1871
        %v2858 = vpop.f32.mrb[0].mxu0
        %v2859 = vadd.f32 %v2730, %v2858
        %v2860 = vpop.f32.mrb[0].mxu0
        %v2861 = vpop.f32.mrb[0].mxu0
        %v2862 = vadd.f32 %v2733, %v2861
        %v2863 = vpop.f32.mrb[0].mxu0
        %2864 = vmatprep.mubr.bf16.mxu0 %v1891
        %2865 = vmatmul.mubr.bf16.gmra.mrb[0].mxu0 %v1890
        %v2866 = vpop.f32.mrb[0].mxu0
        %v2867 = vadd.f32 %v2738, %v2866
        %v2868 = vpop.f32.mrb[0].mxu0
        %v2869 = vpop.f32.mrb[0].mxu0
        %v2870 = vadd.f32 %v2741, %v2869
        %v2871 = vpop.f32.mrb[0].mxu0
        %2872 = vmatprep.mubr.bf16.mxu0 %v1910
        %2873 = vmatmul.mubr.bf16.gmra.mrb[0].mxu0 %v1909
        %v2874 = vpop.f32.mrb[0].mxu0
        %v2875 = vadd.f32 %v2746, %v2874
        %v2876 = vpop.f32.mrb[0].mxu0
        %v2877 = vpop.f32.mrb[0].mxu0
        %v2878 = vadd.f32 %v2749, %v2877
        %v2879 = vpop.f32.mrb[0].mxu0
        %2880 = vmatprep.mubr.bf16.mxu0 %v1929
        %2881 = vmatmul.mubr.bf16.gmra.mrb[0].mxu0 %v1928
        %v2882 = vpop.f32.mrb[0].mxu0
        %v2883 = vadd.f32 %v2754, %v2882
        %v2884 = vpop.f32.mrb[0].mxu0
        %v2885 = vpop.f32.mrb[0].mxu0
        %v2886 = vadd.f32 %v2757, %v2885
        %v2887 = vpop.f32.mrb[0].mxu0
        %2888 = vmatprep.mubr.bf16.mxu0 %v1948
        %2889 = vmatmul.mubr.bf16.gmra.mrb[0].mxu0 %v1947
        %v2890 = vpop.f32.mrb[0].mxu0
        %v2891 = vadd.f32 %v2762, %v2890
        %v2892 = vpop.f32.mrb[0].mxu0
        %v2893 = vpop.f32.mrb[0].mxu0
        %v2894 = vadd.f32 %v2765, %v2893
        %v2895 = vpop.f32.mrb[0].mxu0
        %2896 = vmatprep.mubr.bf16.mxu0 %v1967
        %2897 = vmatmul.mubr.bf16.gmra.mrb[0].mxu0 %v1966
        %v2898 = vpop.f32.mrb[0].mxu0
        %v2899 = vadd.f32 %v2770, %v2898
        %v2900 = vpop.f32.mrb[0].mxu0
        %v2901 = vpop.f32.mrb[0].mxu0
        %v2902 = vadd.f32 %v2773, %v2901
        %v2903 = vpop.f32.mrb[0].mxu0
        %2904 = vmatprep.mubr.bf16.mxu0 %v1986
        %2905 = vmatmul.mubr.bf16.gmra.mrb[0].mxu0 %v1985
        %v2906 = vpop.f32.mrb[0].mxu0
        %v2907 = vadd.f32 %v2778, %v2906
        %v2908 = vpop.f32.mrb[0].mxu0
        %v2909 = vpop.f32.mrb[0].mxu0
        %v2910 = vadd.f32 %v2781, %v2909
        %v2911 = vpop.f32.mrb[0].mxu0
        %2912 = vmatprep.mubr.bf16.mxu0 %v2005
        %2913 = vmatmul.mubr.bf16.gmra.mrb[0].mxu0 %v2004
        %v2914 = vpop.f32.mrb[0].mxu0
        %v2915 = vadd.f32 %v2786, %v2914
        %v2916 = vpop.f32.mrb[0].mxu0
        %v2917 = vpop.f32.mrb[0].mxu0
        %v2918 = vadd.f32 %v2789, %v2917
        %v2919 = vpop.f32.mrb[0].mxu0
        %2920 = vmatprep.mubr.bf16.mxu0 %v2024
        %2921 = vmatmul.mubr.bf16.gmra.mrb[0].mxu0 %v2023
        %v2922 = vpop.f32.mrb[0].mxu0
        %v2923 = vadd.f32 %v2794, %v2922
        %v2924 = vpop.f32.mrb[0].mxu0
        %v2925 = vpop.f32.mrb[0].mxu0
        %v2926 = vadd.f32 %v2797, %v2925
        %v2927 = vpop.f32.mrb[0].mxu0
        %2928 = vmatprep.mubr.bf16.mxu0 %v2043
        %2929 = vmatmul.mubr.bf16.gmra.mrb[0].mxu0 %v2042
        %v2930 = vpop.f32.mrb[0].mxu0
        %v2931 = vadd.f32 %v2802, %v2930
        %v2932 = vpop.f32.mrb[0].mxu0
        %v2933 = vpop.f32.mrb[0].mxu0
        %v2934 = vadd.f32 %v2805, %v2933
        %v2935 = vpop.f32.mrb[0].mxu0
        %2936 = vmatprep.mubr.bf16.mxu0 %v2062
        %2937 = vmatmul.mubr.bf16.gmra.mrb[0].mxu0 %v2061
        %v2938 = vpop.f32.mrb[0].mxu0
        %v2939 = vadd.f32 %v2810, %v2938
        %v2940 = vpop.f32.mrb[0].mxu0
        %v2941 = vpop.f32.mrb[0].mxu0
        %v2942 = vadd.f32 %v2813, %v2941
        %v2943 = vpop.f32.mrb[0].mxu0
        %2944 = vdwg.mxu0
        %2945 = vmatprep.subr.bf16.mxu0 0
        %2946 = vmatpush1.bf16.msra.mxu0 %v836
        %2947 = vmatprep.subr.bf16.mxu0 0
        %2948 = vmatpush1.bf16.msra.mxu0 %v837
        %2949 = vmatprep.subr.bf16.mxu0 0
        %2950 = vmatpush1.bf16.msra.mxu0 %v838
        %2951 = vmatprep.subr.bf16.mxu0 0
        %2952 = vmatpush1.bf16.msra.mxu0 %v839
        %2953 = vmatprep.subr.bf16.mxu0 0
        %2954 = vmatpush1.bf16.msra.mxu0 %v840
        %2955 = vmatprep.subr.bf16.mxu0 0
        %2956 = vmatpush1.bf16.msra.mxu0 %v841
        %2957 = vmatprep.subr.bf16.mxu0 0
        %2958 = vmatpush1.bf16.msra.mxu0 %v842
        %2959 = vmatprep.subr.bf16.mxu0 0
        %2960 = vmatpush1.bf16.msra.mxu0 %v843
        %2961 = vmatprep.subr.bf16.mxu0 0
        %2962 = vmatpush1.bf16.msra.mxu0 %v844
        %2963 = vmatprep.subr.bf16.mxu0 0
        %2964 = vmatpush1.bf16.msra.mxu0 %v845
        %2965 = vmatprep.subr.bf16.mxu0 0
        %2966 = vmatpush1.bf16.msra.mxu0 %v846
        %2967 = vmatprep.subr.bf16.mxu0 0
        %2968 = vmatpush1.bf16.msra.mxu0 %v847
        %2969 = vmatprep.subr.bf16.mxu0 0
        %2970 = vmatpush1.bf16.msra.mxu0 %v848
        %2971 = vmatprep.subr.bf16.mxu0 0
        %2972 = vmatpush1.bf16.msra.mxu0 %v849
        %2973 = vmatprep.subr.bf16.mxu0 0
        %2974 = vmatpush1.bf16.msra.mxu0 %v850
        %2975 = vmatprep.subr.bf16.mxu0 0
        %2976 = vmatpush1.bf16.msra.mxu0 %v851
        %2977 = vmatprep.mubr.bf16.mxu0 %v1855
        %2978 = vmatmul.mubr.bf16.gmra.mrb[0].mxu0 %v1854
        %v2979 = vpop.f32.mrb[0].mxu0
        %v2980 = vadd.f32 %v2851, %v2979
        %v2981 = vpop.f32.mrb[0].mxu0
        %v2982 = vpop.f32.mrb[0].mxu0
        %v2983 = vadd.f32 %v2854, %v2982
        %v2984 = vpop.f32.mrb[0].mxu0
        %2985 = vmatprep.mubr.bf16.mxu0 %v1874
        %2986 = vmatmul.mubr.bf16.gmra.mrb[0].mxu0 %v1873
        %v2987 = vpop.f32.mrb[0].mxu0
        %v2988 = vadd.f32 %v2859, %v2987
        %v2989 = vpop.f32.mrb[0].mxu0
        %v2990 = vpop.f32.mrb[0].mxu0
        %v2991 = vadd.f32 %v2862, %v2990
        %v2992 = vpop.f32.mrb[0].mxu0
        %2993 = vmatprep.mubr.bf16.mxu0 %v1893
        %2994 = vmatmul.mubr.bf16.gmra.mrb[0].mxu0 %v1892
        %v2995 = vpop.f32.mrb[0].mxu0
        %v2996 = vadd.f32 %v2867, %v2995
        %v2997 = vpop.f32.mrb[0].mxu0
        %v2998 = vpop.f32.mrb[0].mxu0
        %v2999 = vadd.f32 %v2870, %v2998
        %v3000 = vpop.f32.mrb[0].mxu0
        %3001 = vmatprep.mubr.bf16.mxu0 %v1912
        %3002 = vmatmul.mubr.bf16.gmra.mrb[0].mxu0 %v1911
        %v3003 = vpop.f32.mrb[0].mxu0
        %v3004 = vadd.f32 %v2875, %v3003
        %v3005 = vpop.f32.mrb[0].mxu0
        %v3006 = vpop.f32.mrb[0].mxu0
        %v3007 = vadd.f32 %v2878, %v3006
        %v3008 = vpop.f32.mrb[0].mxu0
        %3009 = vmatprep.mubr.bf16.mxu0 %v1931
        %3010 = vmatmul.mubr.bf16.gmra.mrb[0].mxu0 %v1930
        %v3011 = vpop.f32.mrb[0].mxu0
        %v3012 = vadd.f32 %v2883, %v3011
        %v3013 = vpop.f32.mrb[0].mxu0
        %v3014 = vpop.f32.mrb[0].mxu0
        %v3015 = vadd.f32 %v2886, %v3014
        %v3016 = vpop.f32.mrb[0].mxu0
        %3017 = vmatprep.mubr.bf16.mxu0 %v1950
        %3018 = vmatmul.mubr.bf16.gmra.mrb[0].mxu0 %v1949
        %v3019 = vpop.f32.mrb[0].mxu0
        %v3020 = vadd.f32 %v2891, %v3019
        %v3021 = vpop.f32.mrb[0].mxu0
        %v3022 = vpop.f32.mrb[0].mxu0
        %v3023 = vadd.f32 %v2894, %v3022
        %v3024 = vpop.f32.mrb[0].mxu0
        %3025 = vmatprep.mubr.bf16.mxu0 %v1969
        %3026 = vmatmul.mubr.bf16.gmra.mrb[0].mxu0 %v1968
        %v3027 = vpop.f32.mrb[0].mxu0
        %v3028 = vadd.f32 %v2899, %v3027
        %v3029 = vpop.f32.mrb[0].mxu0
        %v3030 = vpop.f32.mrb[0].mxu0
        %v3031 = vadd.f32 %v2902, %v3030
        %v3032 = vpop.f32.mrb[0].mxu0
        %3033 = vmatprep.mubr.bf16.mxu0 %v1988
        %3034 = vmatmul.mubr.bf16.gmra.mrb[0].mxu0 %v1987
        %v3035 = vpop.f32.mrb[0].mxu0
        %v3036 = vadd.f32 %v2907, %v3035
        %v3037 = vpop.f32.mrb[0].mxu0
        %v3038 = vpop.f32.mrb[0].mxu0
        %v3039 = vadd.f32 %v2910, %v3038
        %v3040 = vpop.f32.mrb[0].mxu0
        %3041 = vmatprep.mubr.bf16.mxu0 %v2007
        %3042 = vmatmul.mubr.bf16.gmra.mrb[0].mxu0 %v2006
        %v3043 = vpop.f32.mrb[0].mxu0
        %v3044 = vadd.f32 %v2915, %v3043
        %v3045 = vpop.f32.mrb[0].mxu0
        %v3046 = vpop.f32.mrb[0].mxu0
        %v3047 = vadd.f32 %v2918, %v3046
        %v3048 = vpop.f32.mrb[0].mxu0
        %3049 = vmatprep.mubr.bf16.mxu0 %v2026
        %3050 = vmatmul.mubr.bf16.gmra.mrb[0].mxu0 %v2025
        %v3051 = vpop.f32.mrb[0].mxu0
        %v3052 = vadd.f32 %v2923, %v3051
        %v3053 = vpop.f32.mrb[0].mxu0
        %v3054 = vpop.f32.mrb[0].mxu0
        %v3055 = vadd.f32 %v2926, %v3054
        %v3056 = vpop.f32.mrb[0].mxu0
        %3057 = vmatprep.mubr.bf16.mxu0 %v2045
        %3058 = vmatmul.mubr.bf16.gmra.mrb[0].mxu0 %v2044
        %v3059 = vpop.f32.mrb[0].mxu0
        %v3060 = vadd.f32 %v2931, %v3059
        %v3061 = vpop.f32.mrb[0].mxu0
        %v3062 = vpop.f32.mrb[0].mxu0
        %v3063 = vadd.f32 %v2934, %v3062
        %v3064 = vpop.f32.mrb[0].mxu0
        %3065 = vmatprep.mubr.bf16.mxu0 %v2064
        %3066 = vmatmul.mubr.bf16.gmra.mrb[0].mxu0 %v2063
        %v3067 = vpop.f32.mrb[0].mxu0
        %v3068 = vadd.f32 %v2939, %v3067
        %v3069 = vpop.f32.mrb[0].mxu0
        %v3070 = vpop.f32.mrb[0].mxu0
        %v3071 = vadd.f32 %v2942, %v3070
        %v3072 = vpop.f32.mrb[0].mxu0
        %3073 = vdwg.mxu0
        %3074 = vmatprep.subr.bf16.mxu0 0
        %3075 = vmatpush1.bf16.msra.mxu0 %v852
        %3076 = vmatprep.subr.bf16.mxu0 0
        %3077 = vmatpush1.bf16.msra.mxu0 %v853
        %3078 = vmatprep.subr.bf16.mxu0 0
        %3079 = vmatpush1.bf16.msra.mxu0 %v854
        %3080 = vmatprep.subr.bf16.mxu0 0
        %3081 = vmatpush1.bf16.msra.mxu0 %v855
        %3082 = vmatprep.subr.bf16.mxu0 0
        %3083 = vmatpush1.bf16.msra.mxu0 %v856
        %3084 = vmatprep.subr.bf16.mxu0 0
        %3085 = vmatpush1.bf16.msra.mxu0 %v857
        %3086 = vmatprep.subr.bf16.mxu0 0
        %3087 = vmatpush1.bf16.msra.mxu0 %v858
        %3088 = vmatprep.subr.bf16.mxu0 0
        %3089 = vmatpush1.bf16.msra.mxu0 %v859
        %3090 = vmatprep.subr.bf16.mxu0 0
        %3091 = vmatpush1.bf16.msra.mxu0 %v860
        %3092 = vmatprep.subr.bf16.mxu0 0
        %3093 = vmatpush1.bf16.msra.mxu0 %v861
        %3094 = vmatprep.subr.bf16.mxu0 0
        %3095 = vmatpush1.bf16.msra.mxu0 %v862
        %3096 = vmatprep.subr.bf16.mxu0 0
        %3097 = vmatpush1.bf16.msra.mxu0 %v863
        %3098 = vmatprep.subr.bf16.mxu0 0
        %3099 = vmatpush1.bf16.msra.mxu0 %v864
        %3100 = vmatprep.subr.bf16.mxu0 0
        %3101 = vmatpush1.bf16.msra.mxu0 %v865
        %3102 = vmatprep.subr.bf16.mxu0 0
        %3103 = vmatpush1.bf16.msra.mxu0 %v866
        %3104 = vmatprep.subr.bf16.mxu0 0
        %3105 = vmatpush1.bf16.msra.mxu0 %v867
        %3106 = vmatprep.mubr.bf16.mxu0 %v1857
        %3107 = vmatmul.mubr.bf16.gmra.mrb[0].mxu0 %v1856
        %v3108 = vpop.f32.mrb[0].mxu0
        %v3109 = vadd.f32 %v2980, %v3108
        %v3110 = vpop.f32.mrb[0].mxu0
        %v3111 = vpop.f32.mrb[0].mxu0
        %v3112 = vadd.f32 %v2983, %v3111
        %v3113 = vpop.f32.mrb[0].mxu0
        %3114 = vmatprep.mubr.bf16.mxu0 %v1876
        %3115 = vmatmul.mubr.bf16.gmra.mrb[0].mxu0 %v1875
        %v3116 = vpop.f32.mrb[0].mxu0
        %v3117 = vadd.f32 %v2988, %v3116
        %v3118 = vpop.f32.mrb[0].mxu0
        %v3119 = vpop.f32.mrb[0].mxu0
        %v3120 = vadd.f32 %v2991, %v3119
        %v3121 = vpop.f32.mrb[0].mxu0
        %3122 = vmatprep.mubr.bf16.mxu0 %v1895
        %3123 = vmatmul.mubr.bf16.gmra.mrb[0].mxu0 %v1894
        %v3124 = vpop.f32.mrb[0].mxu0
        %v3125 = vadd.f32 %v2996, %v3124
        %v3126 = vpop.f32.mrb[0].mxu0
        %v3127 = vpop.f32.mrb[0].mxu0
        %v3128 = vadd.f32 %v2999, %v3127
        %v3129 = vpop.f32.mrb[0].mxu0
        %3130 = vmatprep.mubr.bf16.mxu0 %v1914
        %3131 = vmatmul.mubr.bf16.gmra.mrb[0].mxu0 %v1913
        %v3132 = vpop.f32.mrb[0].mxu0
        %v3133 = vadd.f32 %v3004, %v3132
        %v3134 = vpop.f32.mrb[0].mxu0
        %v3135 = vpop.f32.mrb[0].mxu0
        %v3136 = vadd.f32 %v3007, %v3135
        %v3137 = vpop.f32.mrb[0].mxu0
        %3138 = vmatprep.mubr.bf16.mxu0 %v1933
        %3139 = vmatmul.mubr.bf16.gmra.mrb[0].mxu0 %v1932
        %v3140 = vpop.f32.mrb[0].mxu0
        %v3141 = vadd.f32 %v3012, %v3140
        %v3142 = vpop.f32.mrb[0].mxu0
        %v3143 = vpop.f32.mrb[0].mxu0
        %v3144 = vadd.f32 %v3015, %v3143
        %v3145 = vpop.f32.mrb[0].mxu0
        %3146 = vmatprep.mubr.bf16.mxu0 %v1952
        %3147 = vmatmul.mubr.bf16.gmra.mrb[0].mxu0 %v1951
        %v3148 = vpop.f32.mrb[0].mxu0
        %v3149 = vadd.f32 %v3020, %v3148
        %v3150 = vpop.f32.mrb[0].mxu0
        %v3151 = vpop.f32.mrb[0].mxu0
        %v3152 = vadd.f32 %v3023, %v3151
        %v3153 = vpop.f32.mrb[0].mxu0
        %3154 = vmatprep.mubr.bf16.mxu0 %v1971
        %3155 = vmatmul.mubr.bf16.gmra.mrb[0].mxu0 %v1970
        %v3156 = vpop.f32.mrb[0].mxu0
        %v3157 = vadd.f32 %v3028, %v3156
        %v3158 = vpop.f32.mrb[0].mxu0
        %v3159 = vpop.f32.mrb[0].mxu0
        %v3160 = vadd.f32 %v3031, %v3159
        %v3161 = vpop.f32.mrb[0].mxu0
        %3162 = vmatprep.mubr.bf16.mxu0 %v1990
        %3163 = vmatmul.mubr.bf16.gmra.mrb[0].mxu0 %v1989
        %v3164 = vpop.f32.mrb[0].mxu0
        %v3165 = vadd.f32 %v3036, %v3164
        %v3166 = vpop.f32.mrb[0].mxu0
        %v3167 = vpop.f32.mrb[0].mxu0
        %v3168 = vadd.f32 %v3039, %v3167
        %v3169 = vpop.f32.mrb[0].mxu0
        %3170 = vmatprep.mubr.bf16.mxu0 %v2009
        %3171 = vmatmul.mubr.bf16.gmra.mrb[0].mxu0 %v2008
        %v3172 = vpop.f32.mrb[0].mxu0
        %v3173 = vadd.f32 %v3044, %v3172
        %v3174 = vpop.f32.mrb[0].mxu0
        %v3175 = vpop.f32.mrb[0].mxu0
        %v3176 = vadd.f32 %v3047, %v3175
        %v3177 = vpop.f32.mrb[0].mxu0
        %3178 = vmatprep.mubr.bf16.mxu0 %v2028
        %3179 = vmatmul.mubr.bf16.gmra.mrb[0].mxu0 %v2027
        %v3180 = vpop.f32.mrb[0].mxu0
        %v3181 = vadd.f32 %v3052, %v3180
        %v3182 = vpop.f32.mrb[0].mxu0
        %v3183 = vpop.f32.mrb[0].mxu0
        %v3184 = vadd.f32 %v3055, %v3183
        %v3185 = vpop.f32.mrb[0].mxu0
        %3186 = vmatprep.mubr.bf16.mxu0 %v2047
        %3187 = vmatmul.mubr.bf16.gmra.mrb[0].mxu0 %v2046
        %v3188 = vpop.f32.mrb[0].mxu0
        %v3189 = vadd.f32 %v3060, %v3188
        %v3190 = vpop.f32.mrb[0].mxu0
        %v3191 = vpop.f32.mrb[0].mxu0
        %v3192 = vadd.f32 %v3063, %v3191
        %v3193 = vpop.f32.mrb[0].mxu0
        %3194 = vmatprep.mubr.bf16.mxu0 %v2066
        %3195 = vmatmul.mubr.bf16.gmra.mrb[0].mxu0 %v2065
        %v3196 = vpop.f32.mrb[0].mxu0
        %v3197 = vadd.f32 %v3068, %v3196
        %v3198 = vpop.f32.mrb[0].mxu0
        %v3199 = vpop.f32.mrb[0].mxu0
        %v3200 = vadd.f32 %v3071, %v3199
        %v3201 = vpop.f32.mrb[0].mxu0
        %3202 = vdwg.mxu0
        %3203 = vmatprep.subr.bf16.mxu0 0
        %3204 = vmatpush1.bf16.msra.mxu0 %v868
        %3205 = vmatprep.subr.bf16.mxu0 0
        %3206 = vmatpush1.bf16.msra.mxu0 %v869
        %3207 = vmatprep.subr.bf16.mxu0 0
        %3208 = vmatpush1.bf16.msra.mxu0 %v870
        %3209 = vmatprep.subr.bf16.mxu0 0
        %3210 = vmatpush1.bf16.msra.mxu0 %v871
        %3211 = vmatprep.subr.bf16.mxu0 0
        %3212 = vmatpush1.bf16.msra.mxu0 %v872
        %3213 = vmatprep.subr.bf16.mxu0 0
        %3214 = vmatpush1.bf16.msra.mxu0 %v873
        %3215 = vmatprep.subr.bf16.mxu0 0
        %3216 = vmatpush1.bf16.msra.mxu0 %v874
        %3217 = vmatprep.subr.bf16.mxu0 0
        %3218 = vmatpush1.bf16.msra.mxu0 %v875
        %3219 = vmatprep.subr.bf16.mxu0 0
        %3220 = vmatpush1.bf16.msra.mxu0 %v876
        %3221 = vmatprep.subr.bf16.mxu0 0
        %3222 = vmatpush1.bf16.msra.mxu0 %v877
        %3223 = vmatprep.subr.bf16.mxu0 0
        %3224 = vmatpush1.bf16.msra.mxu0 %v878
        %3225 = vmatprep.subr.bf16.mxu0 0
        %3226 = vmatpush1.bf16.msra.mxu0 %v879
        %3227 = vmatprep.subr.bf16.mxu0 0
        %3228 = vmatpush1.bf16.msra.mxu0 %v880
        %3229 = vmatprep.subr.bf16.mxu0 0
        %3230 = vmatpush1.bf16.msra.mxu0 %v881
        %3231 = vmatprep.subr.bf16.mxu0 0
        %3232 = vmatpush1.bf16.msra.mxu0 %v882
        %3233 = vmatprep.subr.bf16.mxu0 0
        %3234 = vmatpush1.bf16.msra.mxu0 %v883
        %3235 = vmatprep.mubr.bf16.mxu0 %v1859
        %3236 = vmatmul.mubr.bf16.gmra.mrb[0].mxu0 %v1858
        %v3237 = vpop.f32.mrb[0].mxu0
        %v3238 = vadd.f32 %v3109, %v3237
        %v3239 = vpop.f32.mrb[0].mxu0
        %v3240 = vpop.f32.mrb[0].mxu0
        %v3241 = vadd.f32 %v3112, %v3240
        %v3242 = vpop.f32.mrb[0].mxu0
        %3243 = vmatprep.mubr.bf16.mxu0 %v1878
        %3244 = vmatmul.mubr.bf16.gmra.mrb[0].mxu0 %v1877
        %v3245 = vpop.f32.mrb[0].mxu0
        %v3246 = vadd.f32 %v3117, %v3245
        %v3247 = vpop.f32.mrb[0].mxu0
        %v3248 = vpop.f32.mrb[0].mxu0
        %v3249 = vadd.f32 %v3120, %v3248
        %v3250 = vpop.f32.mrb[0].mxu0
        %3251 = vmatprep.mubr.bf16.mxu0 %v1897
        %3252 = vmatmul.mubr.bf16.gmra.mrb[0].mxu0 %v1896
        %v3253 = vpop.f32.mrb[0].mxu0
        %v3254 = vadd.f32 %v3125, %v3253
        %v3255 = vpop.f32.mrb[0].mxu0
        %v3256 = vpop.f32.mrb[0].mxu0
        %v3257 = vadd.f32 %v3128, %v3256
        %v3258 = vpop.f32.mrb[0].mxu0
        %3259 = vmatprep.mubr.bf16.mxu0 %v1916
        %3260 = vmatmul.mubr.bf16.gmra.mrb[0].mxu0 %v1915
        %v3261 = vpop.f32.mrb[0].mxu0
        %v3262 = vadd.f32 %v3133, %v3261
        %v3263 = vpop.f32.mrb[0].mxu0
        %v3264 = vpop.f32.mrb[0].mxu0
        %v3265 = vadd.f32 %v3136, %v3264
        %v3266 = vpop.f32.mrb[0].mxu0
        %3267 = vmatprep.mubr.bf16.mxu0 %v1935
        %3268 = vmatmul.mubr.bf16.gmra.mrb[0].mxu0 %v1934
        %v3269 = vpop.f32.mrb[0].mxu0
        %v3270 = vadd.f32 %v3141, %v3269
        %v3271 = vpop.f32.mrb[0].mxu0
        %v3272 = vpop.f32.mrb[0].mxu0
        %v3273 = vadd.f32 %v3144, %v3272
        %v3274 = vpop.f32.mrb[0].mxu0
        %3275 = vmatprep.mubr.bf16.mxu0 %v1954
        %3276 = vmatmul.mubr.bf16.gmra.mrb[0].mxu0 %v1953
        %v3277 = vpop.f32.mrb[0].mxu0
        %v3278 = vadd.f32 %v3149, %v3277
        %v3279 = vpop.f32.mrb[0].mxu0
        %v3280 = vpop.f32.mrb[0].mxu0
        %v3281 = vadd.f32 %v3152, %v3280
        %v3282 = vpop.f32.mrb[0].mxu0
        %3283 = vmatprep.mubr.bf16.mxu0 %v1973
        %3284 = vmatmul.mubr.bf16.gmra.mrb[0].mxu0 %v1972
        %v3285 = vpop.f32.mrb[0].mxu0
        %v3286 = vadd.f32 %v3157, %v3285
        %v3287 = vpop.f32.mrb[0].mxu0
        %v3288 = vpop.f32.mrb[0].mxu0
        %v3289 = vadd.f32 %v3160, %v3288
        %v3290 = vpop.f32.mrb[0].mxu0
        %3291 = vmatprep.mubr.bf16.mxu0 %v1992
        %3292 = vmatmul.mubr.bf16.gmra.mrb[0].mxu0 %v1991
        %v3293 = vpop.f32.mrb[0].mxu0
        %v3294 = vadd.f32 %v3165, %v3293
        %v3295 = vpop.f32.mrb[0].mxu0
        %v3296 = vpop.f32.mrb[0].mxu0
        %v3297 = vadd.f32 %v3168, %v3296
        %v3298 = vpop.f32.mrb[0].mxu0
        %3299 = vmatprep.mubr.bf16.mxu0 %v2011
        %3300 = vmatmul.mubr.bf16.gmra.mrb[0].mxu0 %v2010
        %v3301 = vpop.f32.mrb[0].mxu0
        %v3302 = vadd.f32 %v3173, %v3301
        %v3303 = vpop.f32.mrb[0].mxu0
        %v3304 = vpop.f32.mrb[0].mxu0
        %v3305 = vadd.f32 %v3176, %v3304
        %v3306 = vpop.f32.mrb[0].mxu0
        %3307 = vmatprep.mubr.bf16.mxu0 %v2030
        %3308 = vmatmul.mubr.bf16.gmra.mrb[0].mxu0 %v2029
        %v3309 = vpop.f32.mrb[0].mxu0
        %v3310 = vadd.f32 %v3181, %v3309
        %v3311 = vpop.f32.mrb[0].mxu0
        %v3312 = vpop.f32.mrb[0].mxu0
        %v3313 = vadd.f32 %v3184, %v3312
        %v3314 = vpop.f32.mrb[0].mxu0
        %3315 = vmatprep.mubr.bf16.mxu0 %v2049
        %3316 = vmatmul.mubr.bf16.gmra.mrb[0].mxu0 %v2048
        %v3317 = vpop.f32.mrb[0].mxu0
        %v3318 = vadd.f32 %v3189, %v3317
        %v3319 = vpop.f32.mrb[0].mxu0
        %v3320 = vpop.f32.mrb[0].mxu0
        %v3321 = vadd.f32 %v3192, %v3320
        %v3322 = vpop.f32.mrb[0].mxu0
        %3323 = vmatprep.mubr.bf16.mxu0 %v2068
        %3324 = vmatmul.mubr.bf16.gmra.mrb[0].mxu0 %v2067
        %v3325 = vpop.f32.mrb[0].mxu0
        %v3326 = vadd.f32 %v3197, %v3325
        %v3327 = vpop.f32.mrb[0].mxu0
        %v3328 = vpop.f32.mrb[0].mxu0
        %v3329 = vadd.f32 %v3200, %v3328
        %v3330 = vpop.f32.mrb[0].mxu0
        %3331 = vdwg.mxu0
        %3332 = vmatprep.subr.bf16.mxu0 0
        %3333 = vmatpush1.bf16.msra.mxu0 %v884
        %3334 = vmatprep.subr.bf16.mxu0 0
        %3335 = vmatpush1.bf16.msra.mxu0 %v885
        %3336 = vmatprep.subr.bf16.mxu0 0
        %3337 = vmatpush1.bf16.msra.mxu0 %v886
        %3338 = vmatprep.subr.bf16.mxu0 0
        %3339 = vmatpush1.bf16.msra.mxu0 %v887
        %3340 = vmatprep.subr.bf16.mxu0 0
        %3341 = vmatpush1.bf16.msra.mxu0 %v888
        %3342 = vmatprep.subr.bf16.mxu0 0
        %3343 = vmatpush1.bf16.msra.mxu0 %v889
        %3344 = vmatprep.subr.bf16.mxu0 0
        %3345 = vmatpush1.bf16.msra.mxu0 %v890
        %3346 = vmatprep.subr.bf16.mxu0 0
        %3347 = vmatpush1.bf16.msra.mxu0 %v891
        %3348 = vmatprep.subr.bf16.mxu0 0
        %3349 = vmatpush1.bf16.msra.mxu0 %v892
        %3350 = vmatprep.subr.bf16.mxu0 0
        %3351 = vmatpush1.bf16.msra.mxu0 %v893
        %3352 = vmatprep.subr.bf16.mxu0 0
        %3353 = vmatpush1.bf16.msra.mxu0 %v894
        %3354 = vmatprep.subr.bf16.mxu0 0
        %3355 = vmatpush1.bf16.msra.mxu0 %v895
        %3356 = vmatprep.subr.bf16.mxu0 0
        %3357 = vmatpush1.bf16.msra.mxu0 %v896
        %3358 = vmatprep.subr.bf16.mxu0 0
        %3359 = vmatpush1.bf16.msra.mxu0 %v897
        %3360 = vmatprep.subr.bf16.mxu0 0
        %3361 = vmatpush1.bf16.msra.mxu0 %v898
        %3362 = vmatprep.subr.bf16.mxu0 0
        %3363 = vmatpush1.bf16.msra.mxu0 %v899
        %3364 = vmatprep.mubr.bf16.mxu0 %v1861
        %3365 = vmatmul.mubr.bf16.gmra.mrb[0].mxu0 %v1860
        %v3366 = vpop.f32.mrb[0].mxu0
        %v3367 = vadd.f32 %v3238, %v3366
        %v3368 = vpop.f32.mrb[0].mxu0
        %v3369 = vpop.f32.mrb[0].mxu0
        %v3370 = vadd.f32 %v3241, %v3369
        %v3371 = vpop.f32.mrb[0].mxu0
        %3372 = vmatprep.mubr.bf16.mxu0 %v1880
        %3373 = vmatmul.mubr.bf16.gmra.mrb[0].mxu0 %v1879
        %v3374 = vpop.f32.mrb[0].mxu0
        %v3375 = vadd.f32 %v3246, %v3374
        %v3376 = vpop.f32.mrb[0].mxu0
        %v3377 = vpop.f32.mrb[0].mxu0
        %v3378 = vadd.f32 %v3249, %v3377
        %v3379 = vpop.f32.mrb[0].mxu0
        %3380 = vmatprep.mubr.bf16.mxu0 %v1899
        %3381 = vmatmul.mubr.bf16.gmra.mrb[0].mxu0 %v1898
        %v3382 = vpop.f32.mrb[0].mxu0
        %v3383 = vadd.f32 %v3254, %v3382
        %v3384 = vpop.f32.mrb[0].mxu0
        %v3385 = vpop.f32.mrb[0].mxu0
        %v3386 = vadd.f32 %v3257, %v3385
        %v3387 = vpop.f32.mrb[0].mxu0
        %3388 = vmatprep.mubr.bf16.mxu0 %v1918
        %3389 = vmatmul.mubr.bf16.gmra.mrb[0].mxu0 %v1917
        %v3390 = vpop.f32.mrb[0].mxu0
        %v3391 = vadd.f32 %v3262, %v3390
        %v3392 = vpop.f32.mrb[0].mxu0
        %v3393 = vpop.f32.mrb[0].mxu0
        %v3394 = vadd.f32 %v3265, %v3393
        %v3395 = vpop.f32.mrb[0].mxu0
        %3396 = vmatprep.mubr.bf16.mxu0 %v1937
        %3397 = vmatmul.mubr.bf16.gmra.mrb[0].mxu0 %v1936
        %v3398 = vpop.f32.mrb[0].mxu0
        %v3399 = vadd.f32 %v3270, %v3398
        %v3400 = vpop.f32.mrb[0].mxu0
        %v3401 = vpop.f32.mrb[0].mxu0
        %v3402 = vadd.f32 %v3273, %v3401
        %v3403 = vpop.f32.mrb[0].mxu0
        %3404 = vmatprep.mubr.bf16.mxu0 %v1956
        %3405 = vmatmul.mubr.bf16.gmra.mrb[0].mxu0 %v1955
        %v3406 = vpop.f32.mrb[0].mxu0
        %v3407 = vadd.f32 %v3278, %v3406
        %v3408 = vpop.f32.mrb[0].mxu0
        %v3409 = vpop.f32.mrb[0].mxu0
        %v3410 = vadd.f32 %v3281, %v3409
        %v3411 = vpop.f32.mrb[0].mxu0
        %3412 = vmatprep.mubr.bf16.mxu0 %v1975
        %3413 = vmatmul.mubr.bf16.gmra.mrb[0].mxu0 %v1974
        %v3414 = vpop.f32.mrb[0].mxu0
        %v3415 = vadd.f32 %v3286, %v3414
        %v3416 = vpop.f32.mrb[0].mxu0
        %v3417 = vpop.f32.mrb[0].mxu0
        %v3418 = vadd.f32 %v3289, %v3417
        %v3419 = vpop.f32.mrb[0].mxu0
        %3420 = vmatprep.mubr.bf16.mxu0 %v1994
        %3421 = vmatmul.mubr.bf16.gmra.mrb[0].mxu0 %v1993
        %v3422 = vpop.f32.mrb[0].mxu0
        %v3423 = vadd.f32 %v3294, %v3422
        %v3424 = vpop.f32.mrb[0].mxu0
        %v3425 = vpop.f32.mrb[0].mxu0
        %v3426 = vadd.f32 %v3297, %v3425
        %v3427 = vpop.f32.mrb[0].mxu0
        %3428 = vmatprep.mubr.bf16.mxu0 %v2013
        %3429 = vmatmul.mubr.bf16.gmra.mrb[0].mxu0 %v2012
        %v3430 = vpop.f32.mrb[0].mxu0
        %v3431 = vadd.f32 %v3302, %v3430
        %v3432 = vpop.f32.mrb[0].mxu0
        %v3433 = vpop.f32.mrb[0].mxu0
        %v3434 = vadd.f32 %v3305, %v3433
        %v3435 = vpop.f32.mrb[0].mxu0
        %3436 = vmatprep.mubr.bf16.mxu0 %v2032
        %3437 = vmatmul.mubr.bf16.gmra.mrb[0].mxu0 %v2031
        %v3438 = vpop.f32.mrb[0].mxu0
        %v3439 = vadd.f32 %v3310, %v3438
        %v3440 = vpop.f32.mrb[0].mxu0
        %v3441 = vpop.f32.mrb[0].mxu0
        %v3442 = vadd.f32 %v3313, %v3441
        %v3443 = vpop.f32.mrb[0].mxu0
        %3444 = vmatprep.mubr.bf16.mxu0 %v2051
        %3445 = vmatmul.mubr.bf16.gmra.mrb[0].mxu0 %v2050
        %v3446 = vpop.f32.mrb[0].mxu0
        %v3447 = vadd.f32 %v3318, %v3446
        %v3448 = vpop.f32.mrb[0].mxu0
        %v3449 = vpop.f32.mrb[0].mxu0
        %v3450 = vadd.f32 %v3321, %v3449
        %v3451 = vpop.f32.mrb[0].mxu0
        %3452 = vmatprep.mubr.bf16.mxu0 %v2070
        %3453 = vmatmul.mubr.bf16.gmra.mrb[0].mxu0 %v2069
        %v3454 = vpop.f32.mrb[0].mxu0
        %v3455 = vadd.f32 %v3326, %v3454
        %v3456 = vpop.f32.mrb[0].mxu0
        %v3457 = vpop.f32.mrb[0].mxu0
        %v3458 = vadd.f32 %v3329, %v3457
        %v3459 = vpop.f32.mrb[0].mxu0
        %3460 = vdwg.mxu0
        %3461 = vmatprep.subr.bf16.mxu0 0
        %3462 = vmatpush1.bf16.msra.mxu0 %v900
        %3463 = vmatprep.subr.bf16.mxu0 0
        %3464 = vmatpush1.bf16.msra.mxu0 %v901
        %3465 = vmatprep.subr.bf16.mxu0 0
        %3466 = vmatpush1.bf16.msra.mxu0 %v902
        %3467 = vmatprep.subr.bf16.mxu0 0
        %3468 = vmatpush1.bf16.msra.mxu0 %v903
        %3469 = vmatprep.subr.bf16.mxu0 0
        %3470 = vmatpush1.bf16.msra.mxu0 %v904
        %3471 = vmatprep.subr.bf16.mxu0 0
        %3472 = vmatpush1.bf16.msra.mxu0 %v905
        %3473 = vmatprep.subr.bf16.mxu0 0
        %3474 = vmatpush1.bf16.msra.mxu0 %v906
        %3475 = vmatprep.subr.bf16.mxu0 0
        %3476 = vmatpush1.bf16.msra.mxu0 %v907
        %3477 = vmatprep.subr.bf16.mxu0 0
        %3478 = vmatpush1.bf16.msra.mxu0 0
        %3479 = vmatprep.subr.bf16.mxu0 0
        %3480 = vmatpush1.bf16.msra.mxu0 0
        %3481 = vmatprep.subr.bf16.mxu0 0
        %3482 = vmatpush1.bf16.msra.mxu0 0
        %3483 = vmatprep.subr.bf16.mxu0 0
        %3484 = vmatpush1.bf16.msra.mxu0 0
        %3485 = vmatprep.subr.bf16.mxu0 0
        %3486 = vmatpush1.bf16.msra.mxu0 0
        %3487 = vmatprep.subr.bf16.mxu0 0
        %3488 = vmatpush1.bf16.msra.mxu0 0
        %3489 = vmatprep.subr.bf16.mxu0 0
        %3490 = vmatpush1.bf16.msra.mxu0 0
        %3491 = vmatprep.subr.bf16.mxu0 0
        %3492 = vmatpush1.bf16.msra.mxu0 0
        %3493 = vmatprep.mubr.bf16.mxu0 0
        %3494 = vmatmul.mubr.bf16.gmra.mrb[0].mxu0 %v1862
        %v3495 = vpop.f32.mrb[0].mxu0
        %v3496 = vadd.f32 %v3367, %v3495
        %v3497 = vpop.f32.mrb[0].mxu0
        %v3498 = vpop.f32.mrb[0].mxu0
        %v3499 = vadd.f32 %v3370, %v3498
        %v3500 = vpop.f32.mrb[0].mxu0
        %3501 = vmatprep.mubr.bf16.mxu0 0
        %3502 = vmatmul.mubr.bf16.gmra.mrb[0].mxu0 %v1881
        %v3503 = vpop.f32.mrb[0].mxu0
        %v3504 = vadd.f32 %v3375, %v3503
        %v3505 = vpop.f32.mrb[0].mxu0
        %v3506 = vpop.f32.mrb[0].mxu0
        %v3507 = vadd.f32 %v3378, %v3506
        %v3508 = vpop.f32.mrb[0].mxu0
        %3509 = vmatprep.mubr.bf16.mxu0 0
        %3510 = vmatmul.mubr.bf16.gmra.mrb[0].mxu0 %v1900
        %v3511 = vpop.f32.mrb[0].mxu0
        %v3512 = vadd.f32 %v3383, %v3511
        %v3513 = vpop.f32.mrb[0].mxu0
        %v3514 = vpop.f32.mrb[0].mxu0
        %v3515 = vadd.f32 %v3386, %v3514
        %v3516 = vpop.f32.mrb[0].mxu0
        %3517 = vmatprep.mubr.bf16.mxu0 0
        %3518 = vmatmul.mubr.bf16.gmra.mrb[0].mxu0 %v1919
        %v3519 = vpop.f32.mrb[0].mxu0
        %v3520 = vadd.f32 %v3391, %v3519
        %v3521 = vpop.f32.mrb[0].mxu0
        %v3522 = vpop.f32.mrb[0].mxu0
        %v3523 = vadd.f32 %v3394, %v3522
        %v3524 = vpop.f32.mrb[0].mxu0
        %3525 = vmatprep.mubr.bf16.mxu0 0
        %3526 = vmatmul.mubr.bf16.gmra.mrb[0].mxu0 %v1938
        %v3527 = vpop.f32.mrb[0].mxu0
        %v3528 = vadd.f32 %v3399, %v3527
        %v3529 = vpop.f32.mrb[0].mxu0
        %v3530 = vpop.f32.mrb[0].mxu0
        %v3531 = vadd.f32 %v3402, %v3530
        %v3532 = vpop.f32.mrb[0].mxu0
        %3533 = vmatprep.mubr.bf16.mxu0 0
        %3534 = vmatmul.mubr.bf16.gmra.mrb[0].mxu0 %v1957
        %v3535 = vpop.f32.mrb[0].mxu0
        %v3536 = vadd.f32 %v3407, %v3535
        %v3537 = vpop.f32.mrb[0].mxu0
        %v3538 = vpop.f32.mrb[0].mxu0
        %v3539 = vadd.f32 %v3410, %v3538
        %v3540 = vpop.f32.mrb[0].mxu0
        %3541 = vmatprep.mubr.bf16.mxu0 0
        %3542 = vmatmul.mubr.bf16.gmra.mrb[0].mxu0 %v1976
        %v3543 = vpop.f32.mrb[0].mxu0
        %v3544 = vadd.f32 %v3415, %v3543
        %v3545 = vpop.f32.mrb[0].mxu0
        %v3546 = vpop.f32.mrb[0].mxu0
        %v3547 = vadd.f32 %v3418, %v3546
        %v3548 = vpop.f32.mrb[0].mxu0
        %3549 = vmatprep.mubr.bf16.mxu0 0
        %3550 = vmatmul.mubr.bf16.gmra.mrb[0].mxu0 %v1995
        %v3551 = vpop.f32.mrb[0].mxu0
        %v3552 = vadd.f32 %v3423, %v3551
        %v3553 = vpop.f32.mrb[0].mxu0
        %v3554 = vpop.f32.mrb[0].mxu0
        %v3555 = vadd.f32 %v3426, %v3554
        %v3556 = vpop.f32.mrb[0].mxu0
        %3557 = vmatprep.mubr.bf16.mxu0 0
        %3558 = vmatmul.mubr.bf16.gmra.mrb[0].mxu0 %v2014
        %v3559 = vpop.f32.mrb[0].mxu0
        %v3560 = vadd.f32 %v3431, %v3559
        %v3561 = vpop.f32.mrb[0].mxu0
        %v3562 = vpop.f32.mrb[0].mxu0
        %v3563 = vadd.f32 %v3434, %v3562
        %v3564 = vpop.f32.mrb[0].mxu0
        %3565 = vmatprep.mubr.bf16.mxu0 0
        %3566 = vmatmul.mubr.bf16.gmra.mrb[0].mxu0 %v2033
        %v3567 = vpop.f32.mrb[0].mxu0
        %v3568 = vadd.f32 %v3439, %v3567
        %v3569 = vpop.f32.mrb[0].mxu0
        %v3570 = vpop.f32.mrb[0].mxu0
        %v3571 = vadd.f32 %v3442, %v3570
        %v3572 = vpop.f32.mrb[0].mxu0
        %3573 = vmatprep.mubr.bf16.mxu0 0
        %3574 = vmatmul.mubr.bf16.gmra.mrb[0].mxu0 %v2052
        %v3575 = vpop.f32.mrb[0].mxu0
        %v3576 = vadd.f32 %v3447, %v3575
        %v3577 = vpop.f32.mrb[0].mxu0
        %v3578 = vpop.f32.mrb[0].mxu0
        %v3579 = vadd.f32 %v3450, %v3578
        %v3580 = vpop.f32.mrb[0].mxu0
        %3581 = vmatprep.mubr.bf16.mxu0 0
        %3582 = vmatmul.mubr.bf16.gmra.mrb[0].mxu0 %v2071
        %v3583 = vpop.f32.mrb[0].mxu0
        %v3584 = vadd.f32 %v3455, %v3583
        %v3585 = vpop.f32.mrb[0].mxu0
        %v3586 = vpop.f32.mrb[0].mxu0
        %v3587 = vadd.f32 %v3458, %v3586
        %v3588 = vpop.f32.mrb[0].mxu0
        %3589 = vdwg.mxu0
        %v3590 = vpack.c.bf16 %v3499, %v3496
        %v3591 = vpack.c.bf16 %v3507, %v3504
        %v3592 = vpack.c.bf16 %v3515, %v3512
        %v3593 = vpack.c.bf16 %v3523, %v3520
        %v3594 = vpack.c.bf16 %v3531, %v3528
        %v3595 = vpack.c.bf16 %v3539, %v3536
        %v3596 = vpack.c.bf16 %v3547, %v3544
        %v3597 = vpack.c.bf16 %v3555, %v3552
        %v3598 = vpack.c.bf16 %v3563, %v3560
        %v3599 = vpack.c.bf16 %v3571, %v3568
        %v3600 = vpack.c.bf16 %v3579, %v3576
        %v3601 = vpack.c.bf16 %v3587, %v3584
        %v3602 = vld [vmem:[#allocation4] sm:$0xf]
        %v3603 = vld [vmem:[#allocation4 + $0x4] sm:$0xf]
        %v3604 = vld [vmem:[#allocation4 + $0x8] sm:$0xf]
        %v3605 = vld [vmem:[#allocation4 + $0xc] sm:$0xf]
        %v3606 = vld [vmem:[#allocation4 + $0x10] sm:$0xf]
        %v3607 = vld [vmem:[#allocation4 + $0x14] sm:$0xf]
        %v3608 = vld [vmem:[#allocation4 + $0x18] sm:$0xf]
        %v3609 = vld [vmem:[#allocation4 + $0x1c] sm:$0xf]
        %v3610 = vld [vmem:[#allocation4 + $0x20] sm:$0xf]
        %v3611 = vld [vmem:[#allocation4 + $0x24] sm:$0xf]
        %v3612 = vld [vmem:[#allocation4 + $0x28] sm:$0xf]
        %v3613 = vld [vmem:[#allocation4 + $0x2c] sm:$0xf]
        %v3614 = vld [vmem:[#allocation4 + $0x30] sm:$0xf]
        %v3615 = vld [vmem:[#allocation4 + $0x34] sm:$0xf]
        %v3616 = vld [vmem:[#allocation4 + $0x38] sm:$0xf]
        %v3617 = vld [vmem:[#allocation4 + $0x3c] sm:$0xf]
        %s3618 = scalar_lea.vmem [#allocation4], 64
        %v3619 = vld [vmem:[%s3618] sm:$0xf]
        %v3620 = vld [vmem:[%s3618 + $0x4] sm:$0xf]
        %v3621 = vld [vmem:[%s3618 + $0x8] sm:$0xf]
        %v3622 = vld [vmem:[%s3618 + $0xc] sm:$0xf]
        %v3623 = vld [vmem:[%s3618 + $0x10] sm:$0xf]
        %v3624 = vld [vmem:[%s3618 + $0x14] sm:$0xf]
        %v3625 = vld [vmem:[%s3618 + $0x18] sm:$0xf]
        %v3626 = vld [vmem:[%s3618 + $0x1c] sm:$0xf]
        %v3627 = vld [vmem:[%s3618 + $0x20] sm:$0xf]
        %v3628 = vld [vmem:[%s3618 + $0x24] sm:$0xf]
        %v3629 = vld [vmem:[%s3618 + $0x28] sm:$0xf]
        %v3630 = vld [vmem:[%s3618 + $0x2c] sm:$0xf]
        %v3631 = vld [vmem:[%s3618 + $0x30] sm:$0xf]
        %v3632 = vld [vmem:[%s3618 + $0x34] sm:$0xf]
        %v3633 = vld [vmem:[%s3618 + $0x38] sm:$0xf]
        %v3634 = vld [vmem:[%s3618 + $0x3c] sm:$0xf]
        %v3651 = vunpack.c.l.b16 %v3619
        %v3652 = vunpack.c.l.b16 %v3620
        %v3653 = vunpack.c.l.b16 %v3621
        %v3654 = vunpack.c.l.b16 %v3622
        %v3655 = vunpack.c.l.b16 %v3623
        %v3656 = vunpack.c.l.b16 %v3624
        %v3657 = vunpack.c.l.b16 %v3625
        %v3658 = vunpack.c.l.b16 %v3626
        %v3659 = vunpack.c.l.b16 %v3627
        %v3660 = vunpack.c.l.b16 %v3628
        %v3661 = vunpack.c.l.b16 %v3629
        %v3662 = vunpack.c.l.b16 %v3630
        %v3663 = vunpack.c.l.b16 %v3631
        %v3664 = vunpack.c.l.b16 %v3632
        %v3665 = vunpack.c.l.b16 %v3633
        %v3666 = vunpack.c.l.b16 %v3634
        %v3667 = vpack.c.b16 %v3652, %v3651
        %v3668 = vpack.c.b16 %v3654, %v3653
        %v3669 = vpack.c.b16 %v3656, %v3655
        %v3670 = vpack.c.b16 %v3658, %v3657
        %v3671 = vpack.c.b16 %v3660, %v3659
        %v3672 = vpack.c.b16 %v3662, %v3661
        %v3673 = vpack.c.b16 %v3664, %v3663
        %v3674 = vpack.c.b16 %v3666, %v3665
        %3683 = vmatprep.subr.bf16.mxu0 0
        %3684 = vmatpush1.bf16.msra.mxu0 %v3667
        %3685 = vmatprep.subr.bf16.mxu0 0
        %3686 = vmatpush1.bf16.msra.mxu0 %v3668
        %3687 = vmatprep.subr.bf16.mxu0 0
        %3688 = vmatpush1.bf16.msra.mxu0 %v3669
        %3689 = vmatprep.subr.bf16.mxu0 0
        %3690 = vmatpush1.bf16.msra.mxu0 %v3670
        %3691 = vmatprep.subr.bf16.mxu0 0
        %3692 = vmatpush1.bf16.msra.mxu0 %v3671
        %3693 = vmatprep.subr.bf16.mxu0 0
        %3694 = vmatpush1.bf16.msra.mxu0 %v3672
        %3695 = vmatprep.subr.bf16.mxu0 0
        %3696 = vmatpush1.bf16.msra.mxu0 %v3673
        %3697 = vmatprep.subr.bf16.mxu0 0
        %3698 = vmatpush1.bf16.msra.mxu0 %v3674
        %3699 = vmatprep.subr.bf16.mxu0 0
        %3700 = vmatpush1.bf16.msra.mxu0 0
        %3701 = vmatprep.subr.bf16.mxu0 0
        %3702 = vmatpush1.bf16.msra.mxu0 0
        %3703 = vmatprep.subr.bf16.mxu0 0
        %3704 = vmatpush1.bf16.msra.mxu0 0
        %3705 = vmatprep.subr.bf16.mxu0 0
        %3706 = vmatpush1.bf16.msra.mxu0 0
        %3707 = vmatprep.subr.bf16.mxu0 0
        %3708 = vmatpush1.bf16.msra.mxu0 0
        %3709 = vmatprep.subr.bf16.mxu0 0
        %3710 = vmatpush1.bf16.msra.mxu0 0
        %3711 = vmatprep.subr.bf16.mxu0 0
        %3712 = vmatpush1.bf16.msra.mxu0 0
        %3713 = vmatprep.subr.bf16.mxu0 0
        %3714 = vmatpush1.bf16.msra.mxu0 0
        %3715 = vmatprep.mubr.bf16.mxu0 0
        %3716 = vmatmul.mubr.bf16.gmra.mrb[0].mxu0 %v3594
        %v3717 = vpop.f32.mrb[0].mxu0
        %v3718 = vadd.f32 0.0, %v3717
        %v3719 = vpop.f32.mrb[0].mxu0
        %v3720 = vpop.f32.mrb[0].mxu0
        %v3721 = vadd.f32 0.0, %v3720
        %v3722 = vpop.f32.mrb[0].mxu0
        %3723 = vmatprep.mubr.bf16.mxu0 0
        %3724 = vmatmul.mubr.bf16.gmra.mrb[0].mxu0 %v3595
        %v3725 = vpop.f32.mrb[0].mxu0
        %v3726 = vadd.f32 0.0, %v3725
        %v3727 = vpop.f32.mrb[0].mxu0
        %v3728 = vpop.f32.mrb[0].mxu0
        %v3729 = vadd.f32 0.0, %v3728
        %v3730 = vpop.f32.mrb[0].mxu0
        %3731 = vmatprep.mubr.bf16.mxu0 0
        %3732 = vmatmul.mubr.bf16.gmra.mrb[0].mxu0 %v3596
        %v3733 = vpop.f32.mrb[0].mxu0
        %v3734 = vadd.f32 0.0, %v3733
        %v3735 = vpop.f32.mrb[0].mxu0
        %v3736 = vpop.f32.mrb[0].mxu0
        %v3737 = vadd.f32 0.0, %v3736
        %v3738 = vpop.f32.mrb[0].mxu0
        %3739 = vmatprep.mubr.bf16.mxu0 0
        %3740 = vmatmul.mubr.bf16.gmra.mrb[0].mxu0 %v3597
        %v3741 = vpop.f32.mrb[0].mxu0
        %v3742 = vadd.f32 0.0, %v3741
        %v3743 = vpop.f32.mrb[0].mxu0
        %v3744 = vpop.f32.mrb[0].mxu0
        %v3745 = vadd.f32 0.0, %v3744
        %v3746 = vpop.f32.mrb[0].mxu0
        %3747 = vdwg.mxu0
        %v3764 = vunpack.c.l.b16 %v3602
        %v3765 = vunpack.c.l.b16 %v3603
        %v3766 = vunpack.c.l.b16 %v3604
        %v3767 = vunpack.c.l.b16 %v3605
        %v3768 = vunpack.c.l.b16 %v3606
        %v3769 = vunpack.c.l.b16 %v3607
        %v3770 = vunpack.c.l.b16 %v3608
        %v3771 = vunpack.c.l.b16 %v3609
        %v3772 = vunpack.c.l.b16 %v3610
        %v3773 = vunpack.c.l.b16 %v3611
        %v3774 = vunpack.c.l.b16 %v3612
        %v3775 = vunpack.c.l.b16 %v3613
        %v3776 = vunpack.c.l.b16 %v3614
        %v3777 = vunpack.c.l.b16 %v3615
        %v3778 = vunpack.c.l.b16 %v3616
        %v3779 = vunpack.c.l.b16 %v3617
        %v3780 = vpack.c.b16 %v3765, %v3764
        %v3781 = vpack.c.b16 %v3767, %v3766
        %v3782 = vpack.c.b16 %v3769, %v3768
        %v3783 = vpack.c.b16 %v3771, %v3770
        %v3784 = vpack.c.b16 %v3773, %v3772
        %v3785 = vpack.c.b16 %v3775, %v3774
        %v3786 = vpack.c.b16 %v3777, %v3776
        %v3787 = vpack.c.b16 %v3779, %v3778
        %3796 = vmatprep.subr.bf16.mxu0 0
        %3797 = vmatpush1.bf16.msra.mxu0 %v3780
        %3798 = vmatprep.subr.bf16.mxu0 0
        %3799 = vmatpush1.bf16.msra.mxu0 %v3781
        %3800 = vmatprep.subr.bf16.mxu0 0
        %3801 = vmatpush1.bf16.msra.mxu0 %v3782
        %3802 = vmatprep.subr.bf16.mxu0 0
        %3803 = vmatpush1.bf16.msra.mxu0 %v3783
        %3804 = vmatprep.subr.bf16.mxu0 0
        %3805 = vmatpush1.bf16.msra.mxu0 %v3784
        %3806 = vmatprep.subr.bf16.mxu0 0
        %3807 = vmatpush1.bf16.msra.mxu0 %v3785
        %3808 = vmatprep.subr.bf16.mxu0 0
        %3809 = vmatpush1.bf16.msra.mxu0 %v3786
        %3810 = vmatprep.subr.bf16.mxu0 0
        %3811 = vmatpush1.bf16.msra.mxu0 %v3787
        %3812 = vmatprep.subr.bf16.mxu0 0
        %3813 = vmatpush1.bf16.msra.mxu0 0
        %3814 = vmatprep.subr.bf16.mxu0 0
        %3815 = vmatpush1.bf16.msra.mxu0 0
        %3816 = vmatprep.subr.bf16.mxu0 0
        %3817 = vmatpush1.bf16.msra.mxu0 0
        %3818 = vmatprep.subr.bf16.mxu0 0
        %3819 = vmatpush1.bf16.msra.mxu0 0
        %3820 = vmatprep.subr.bf16.mxu0 0
        %3821 = vmatpush1.bf16.msra.mxu0 0
        %3822 = vmatprep.subr.bf16.mxu0 0
        %3823 = vmatpush1.bf16.msra.mxu0 0
        %3824 = vmatprep.subr.bf16.mxu0 0
        %3825 = vmatpush1.bf16.msra.mxu0 0
        %3826 = vmatprep.subr.bf16.mxu0 0
        %3827 = vmatpush1.bf16.msra.mxu0 0
        %3828 = vmatprep.mubr.bf16.mxu0 0
        %3829 = vmatmul.mubr.bf16.gmra.mrb[0].mxu0 %v3590
        %v3830 = vpop.f32.mrb[0].mxu0
        %v3831 = vadd.f32 %v3718, %v3830
        %v3832 = vpop.f32.mrb[0].mxu0
        %v3833 = vpop.f32.mrb[0].mxu0
        %v3834 = vadd.f32 %v3721, %v3833
        %v3835 = vpop.f32.mrb[0].mxu0
        %3836 = vmatprep.mubr.bf16.mxu0 0
        %3837 = vmatmul.mubr.bf16.gmra.mrb[0].mxu0 %v3591
        %v3838 = vpop.f32.mrb[0].mxu0
        %v3839 = vadd.f32 %v3726, %v3838
        %v3840 = vpop.f32.mrb[0].mxu0
        %v3841 = vpop.f32.mrb[0].mxu0
        %v3842 = vadd.f32 %v3729, %v3841
        %v3843 = vpop.f32.mrb[0].mxu0
        %3844 = vmatprep.mubr.bf16.mxu0 0
        %3845 = vmatmul.mubr.bf16.gmra.mrb[0].mxu0 %v3592
        %v3846 = vpop.f32.mrb[0].mxu0
        %v3847 = vadd.f32 %v3734, %v3846
        %v3848 = vpop.f32.mrb[0].mxu0
        %v3849 = vpop.f32.mrb[0].mxu0
        %v3850 = vadd.f32 %v3737, %v3849
        %v3851 = vpop.f32.mrb[0].mxu0
        %3852 = vmatprep.mubr.bf16.mxu0 0
        %3853 = vmatmul.mubr.bf16.gmra.mrb[0].mxu0 %v3593
        %v3854 = vpop.f32.mrb[0].mxu0
        %v3855 = vadd.f32 %v3742, %v3854
        %v3856 = vpop.f32.mrb[0].mxu0
        %v3857 = vpop.f32.mrb[0].mxu0
        %v3858 = vadd.f32 %v3745, %v3857
        %v3859 = vpop.f32.mrb[0].mxu0
        %3860 = vdwg.mxu0
        %s3861 = scalar_lea.vmem [#allocation4], 128
        %v3862 = vld [vmem:[%s3861] sm:$0xf]
        %v3863 = vld [vmem:[%s3861 + $0x4] sm:$0xf]
        %v3864 = vld [vmem:[%s3861 + $0x8] sm:$0xf]
        %v3865 = vld [vmem:[%s3861 + $0xc] sm:$0xf]
        %v3866 = vld [vmem:[%s3861 + $0x10] sm:$0xf]
        %v3867 = vld [vmem:[%s3861 + $0x14] sm:$0xf]
        %v3868 = vld [vmem:[%s3861 + $0x18] sm:$0xf]
        %v3869 = vld [vmem:[%s3861 + $0x1c] sm:$0xf]
        %v3870 = vld [vmem:[%s3861 + $0x20] sm:$0xf]
        %v3871 = vld [vmem:[%s3861 + $0x24] sm:$0xf]
        %v3872 = vld [vmem:[%s3861 + $0x28] sm:$0xf]
        %v3873 = vld [vmem:[%s3861 + $0x2c] sm:$0xf]
        %v3874 = vld [vmem:[%s3861 + $0x30] sm:$0xf]
        %v3875 = vld [vmem:[%s3861 + $0x34] sm:$0xf]
        %v3876 = vld [vmem:[%s3861 + $0x38] sm:$0xf]
        %v3877 = vld [vmem:[%s3861 + $0x3c] sm:$0xf]
        %v3894 = vunpack.c.l.b16 %v3862
        %v3895 = vunpack.c.l.b16 %v3863
        %v3896 = vunpack.c.l.b16 %v3864
        %v3897 = vunpack.c.l.b16 %v3865
        %v3898 = vunpack.c.l.b16 %v3866
        %v3899 = vunpack.c.l.b16 %v3867
        %v3900 = vunpack.c.l.b16 %v3868
        %v3901 = vunpack.c.l.b16 %v3869
        %v3902 = vunpack.c.l.b16 %v3870
        %v3903 = vunpack.c.l.b16 %v3871
        %v3904 = vunpack.c.l.b16 %v3872
        %v3905 = vunpack.c.l.b16 %v3873
        %v3906 = vunpack.c.l.b16 %v3874
        %v3907 = vunpack.c.l.b16 %v3875
        %v3908 = vunpack.c.l.b16 %v3876
        %v3909 = vunpack.c.l.b16 %v3877
        %v3910 = vpack.c.b16 %v3895, %v3894
        %v3911 = vpack.c.b16 %v3897, %v3896
        %v3912 = vpack.c.b16 %v3899, %v3898
        %v3913 = vpack.c.b16 %v3901, %v3900
        %v3914 = vpack.c.b16 %v3903, %v3902
        %v3915 = vpack.c.b16 %v3905, %v3904
        %v3916 = vpack.c.b16 %v3907, %v3906
        %v3917 = vpack.c.b16 %v3909, %v3908
        %3926 = vmatprep.subr.bf16.mxu0 0
        %3927 = vmatpush1.bf16.msra.mxu0 %v3910
        %3928 = vmatprep.subr.bf16.mxu0 0
        %3929 = vmatpush1.bf16.msra.mxu0 %v3911
        %3930 = vmatprep.subr.bf16.mxu0 0
        %3931 = vmatpush1.bf16.msra.mxu0 %v3912
        %3932 = vmatprep.subr.bf16.mxu0 0
        %3933 = vmatpush1.bf16.msra.mxu0 %v3913
        %3934 = vmatprep.subr.bf16.mxu0 0
        %3935 = vmatpush1.bf16.msra.mxu0 %v3914
        %3936 = vmatprep.subr.bf16.mxu0 0
        %3937 = vmatpush1.bf16.msra.mxu0 %v3915
        %3938 = vmatprep.subr.bf16.mxu0 0
        %3939 = vmatpush1.bf16.msra.mxu0 %v3916
        %3940 = vmatprep.subr.bf16.mxu0 0
        %3941 = vmatpush1.bf16.msra.mxu0 %v3917
        %3942 = vmatprep.subr.bf16.mxu0 0
        %3943 = vmatpush1.bf16.msra.mxu0 0
        %3944 = vmatprep.subr.bf16.mxu0 0
        %3945 = vmatpush1.bf16.msra.mxu0 0
        %3946 = vmatprep.subr.bf16.mxu0 0
        %3947 = vmatpush1.bf16.msra.mxu0 0
        %3948 = vmatprep.subr.bf16.mxu0 0
        %3949 = vmatpush1.bf16.msra.mxu0 0
        %3950 = vmatprep.subr.bf16.mxu0 0
        %3951 = vmatpush1.bf16.msra.mxu0 0
        %3952 = vmatprep.subr.bf16.mxu0 0
        %3953 = vmatpush1.bf16.msra.mxu0 0
        %3954 = vmatprep.subr.bf16.mxu0 0
        %3955 = vmatpush1.bf16.msra.mxu0 0
        %3956 = vmatprep.subr.bf16.mxu0 0
        %3957 = vmatpush1.bf16.msra.mxu0 0
        %3958 = vmatprep.mubr.bf16.mxu0 0
        %3959 = vmatmul.mubr.bf16.gmra.mrb[0].mxu0 %v3598
        %v3960 = vpop.f32.mrb[0].mxu0
        %v3961 = vadd.f32 0.0, %v3960
        %v3962 = vpop.f32.mrb[0].mxu0
        %v3963 = vpop.f32.mrb[0].mxu0
        %v3964 = vadd.f32 0.0, %v3963
        %v3965 = vpop.f32.mrb[0].mxu0
        %3966 = vmatprep.mubr.bf16.mxu0 0
        %3967 = vmatmul.mubr.bf16.gmra.mrb[0].mxu0 %v3599
        %v3968 = vpop.f32.mrb[0].mxu0
        %v3969 = vadd.f32 0.0, %v3968
        %v3970 = vpop.f32.mrb[0].mxu0
        %v3971 = vpop.f32.mrb[0].mxu0
        %v3972 = vadd.f32 0.0, %v3971
        %v3973 = vpop.f32.mrb[0].mxu0
        %3974 = vmatprep.mubr.bf16.mxu0 0
        %3975 = vmatmul.mubr.bf16.gmra.mrb[0].mxu0 %v3600
        %v3976 = vpop.f32.mrb[0].mxu0
        %v3977 = vadd.f32 0.0, %v3976
        %v3978 = vpop.f32.mrb[0].mxu0
        %v3979 = vpop.f32.mrb[0].mxu0
        %v3980 = vadd.f32 0.0, %v3979
        %v3981 = vpop.f32.mrb[0].mxu0
        %3982 = vmatprep.mubr.bf16.mxu0 0
        %3983 = vmatmul.mubr.bf16.gmra.mrb[0].mxu0 %v3601
        %v3984 = vpop.f32.mrb[0].mxu0
        %v3985 = vadd.f32 0.0, %v3984
        %v3986 = vpop.f32.mrb[0].mxu0
        %v3987 = vpop.f32.mrb[0].mxu0
        %v3988 = vadd.f32 0.0, %v3987
        %v3989 = vpop.f32.mrb[0].mxu0
        %3990 = vdwg.mxu0
        %v3991 = vadd.f32 %v3831, %v3961
        %v3992 = vadd.f32 %v3834, %v3964
        %v3993 = vadd.f32 %v3839, %v3969
        %v3994 = vadd.f32 %v3842, %v3972
        %v3995 = vadd.f32 %v3847, %v3977
        %v3996 = vadd.f32 %v3850, %v3980
        %v3997 = vadd.f32 %v3855, %v3985
        %v3998 = vadd.f32 %v3858, %v3988
        %v3999 = vmax.f32 %v3991, 0.0
        %v4000 = vmax.f32 %v3992, 0.0
        %v4001 = vmax.f32 %v3993, 0.0
        %v4002 = vmax.f32 %v3994, 0.0
        %v4003 = vmax.f32 %v3995, 0.0
        %v4004 = vmax.f32 %v3996, 0.0
        %v4005 = vmax.f32 %v3997, 0.0
        %v4006 = vmax.f32 %v3998, 0.0
        %v4007 = vpack.c.bf16 %v4000, %v3999
        %v4008 = vpack.c.bf16 %v4002, %v4001
        %v4009 = vpack.c.bf16 %v4004, %v4003
        %v4010 = vpack.c.bf16 %v4006, %v4005
        %v4011 = vld [vmem:[#allocation6] sm:$0xf]
        %v4012 = vld [vmem:[#allocation6 + $0x4] sm:$0xf]
        %v4013 = vld [vmem:[#allocation6 + $0x8] sm:$0xf]
        %v4014 = vld [vmem:[#allocation6 + $0xc] sm:$0xf]
        %v4015 = vld [vmem:[#allocation6 + $0x10] sm:$0xf]
        %v4016 = vld [vmem:[#allocation6 + $0x14] sm:$0xf]
        %v4017 = vld [vmem:[#allocation6 + $0x18] sm:$0xf]
        %v4018 = vld [vmem:[#allocation6 + $0x1c] sm:$0xf]
        %v4027 = vunpack.c.l.b16 %v4011
        %v4028 = vunpack.c.l.b16 %v4012
        %v4029 = vunpack.c.l.b16 %v4013
        %v4030 = vunpack.c.l.b16 %v4014
        %v4031 = vunpack.c.l.b16 %v4015
        %v4032 = vunpack.c.l.b16 %v4016
        %v4033 = vunpack.c.l.b16 %v4017
        %v4034 = vunpack.c.l.b16 %v4018
        %v4035 = vpack.c.b16 %v4028, %v4027
        %v4036 = vpack.c.b16 %v4030, %v4029
        %v4037 = vpack.c.b16 %v4032, %v4031
        %v4038 = vpack.c.b16 %v4034, %v4033
        %vm4039 = vcmask 523264
        %v4041 = vsel %vm4039, %v4035, 0
        %v4044 = vsel %vm4039, %v4036, 0
        %v4047 = vsel %vm4039, %v4037, 0
        %v4050 = vsel %vm4039, %v4038, 0
        %4052 = vmatprep.subr.bf16.mxu0 0
        %4053 = vmatpush1.bf16.msra.mxu0 %v4007
        %4054 = vmatprep.subr.bf16.mxu0 0
        %4055 = vmatpush1.bf16.msra.mxu0 %v4008
        %4056 = vmatprep.subr.bf16.mxu0 0
        %4057 = vmatpush1.bf16.msra.mxu0 %v4009
        %4058 = vmatprep.subr.bf16.mxu0 0
        %4059 = vmatpush1.bf16.msra.mxu0 %v4010
        %4060 = vmatprep.subr.bf16.mxu0 0
        %4061 = vmatpush1.bf16.msra.mxu0 0
        %4062 = vmatprep.subr.bf16.mxu0 0
        %4063 = vmatpush1.bf16.msra.mxu0 0
        %4064 = vmatprep.subr.bf16.mxu0 0
        %4065 = vmatpush1.bf16.msra.mxu0 0
        %4066 = vmatprep.subr.bf16.mxu0 0
        %4067 = vmatpush1.bf16.msra.mxu0 0
        %4068 = vmatprep.subr.bf16.mxu0 0
        %4069 = vmatpush1.bf16.msra.mxu0 0
        %4070 = vmatprep.subr.bf16.mxu0 0
        %4071 = vmatpush1.bf16.msra.mxu0 0
        %4072 = vmatprep.subr.bf16.mxu0 0
        %4073 = vmatpush1.bf16.msra.mxu0 0
        %4074 = vmatprep.subr.bf16.mxu0 0
        %4075 = vmatpush1.bf16.msra.mxu0 0
        %4076 = vmatprep.subr.bf16.mxu0 0
        %4077 = vmatpush1.bf16.msra.mxu0 0
        %4078 = vmatprep.subr.bf16.mxu0 0
        %4079 = vmatpush1.bf16.msra.mxu0 0
        %4080 = vmatprep.subr.bf16.mxu0 0
        %4081 = vmatpush1.bf16.msra.mxu0 0
        %4082 = vmatprep.subr.bf16.mxu0 0
        %4083 = vmatpush1.bf16.msra.mxu0 0
        %4084 = vmatprep.mubr.bf16.mxu0 0
        %4085 = vmatmul.mubr.bf16.gmra.mrb[0].mxu0 %v4041
        %v4086 = vpop.f32.mrb[0].mxu0
        %v4087 = vadd.f32 0.0, %v4086
        %v4088 = vpop.f32.mrb[0].mxu0
        %v4089 = vpop.f32.mrb[0].mxu0
        %v4090 = vadd.f32 0.0, %v4089
        %v4091 = vpop.f32.mrb[0].mxu0
        %4092 = vmatprep.mubr.bf16.mxu0 0
        %4093 = vmatmul.mubr.bf16.gmra.mrb[0].mxu0 %v4044
        %v4094 = vpop.f32.mrb[0].mxu0
        %v4095 = vadd.f32 0.0, %v4094
        %v4096 = vpop.f32.mrb[0].mxu0
        %v4097 = vpop.f32.mrb[0].mxu0
        %v4098 = vadd.f32 0.0, %v4097
        %v4099 = vpop.f32.mrb[0].mxu0
        %4100 = vmatprep.mubr.bf16.mxu0 0
        %4101 = vmatmul.mubr.bf16.gmra.mrb[0].mxu0 %v4047
        %v4102 = vpop.f32.mrb[0].mxu0
        %v4103 = vadd.f32 0.0, %v4102
        %v4104 = vpop.f32.mrb[0].mxu0
        %v4105 = vpop.f32.mrb[0].mxu0
        %v4106 = vadd.f32 0.0, %v4105
        %v4107 = vpop.f32.mrb[0].mxu0
        %4108 = vmatprep.mubr.bf16.mxu0 0
        %4109 = vmatmul.mubr.bf16.gmra.mrb[0].mxu0 %v4050
        %v4110 = vpop.f32.mrb[0].mxu0
        %v4111 = vadd.f32 0.0, %v4110
        %v4112 = vpop.f32.mrb[0].mxu0
        %v4113 = vpop.f32.mrb[0].mxu0
        %v4114 = vadd.f32 0.0, %v4113
        %v4115 = vpop.f32.mrb[0].mxu0
        %4116 = vdwg.mxu0
        %v4117 = vpack.c.bf16 %v4090, %v4087
        %v4118 = vpack.c.bf16 %v4098, %v4095
        %v4119 = vpack.c.bf16 %v4106, %v4103
        %v4120 = vpack.c.bf16 %v4114, %v4111
        %v4121 = vld [vmem:[#allocation7] sm:$0xf]
        %v4122 = vld [vmem:[#allocation7 + $0x4] sm:$0xf]
        %v4123 = vld [vmem:[#allocation7 + $0x8] sm:$0xf]
        %v4124 = vld [vmem:[#allocation7 + $0xc] sm:$0xf]
        %v4125 = vld [vmem:[#allocation7 + $0x10] sm:$0xf]
        %v4126 = vld [vmem:[#allocation7 + $0x14] sm:$0xf]
        %v4127 = vld [vmem:[#allocation7 + $0x18] sm:$0xf]
        %v4128 = vld [vmem:[#allocation7 + $0x1c] sm:$0xf]
        %v4137 = vunpack.c.l.b16 %v4121
        %v4138 = vunpack.c.l.b16 %v4122
        %v4139 = vunpack.c.l.b16 %v4123
        %v4140 = vunpack.c.l.b16 %v4124
        %v4141 = vunpack.c.l.b16 %v4125
        %v4142 = vunpack.c.l.b16 %v4126
        %v4143 = vunpack.c.l.b16 %v4127
        %v4144 = vunpack.c.l.b16 %v4128
        %v4145 = vpack.c.b16 %v4138, %v4137
        %v4146 = vpack.c.b16 %v4140, %v4139
        %v4147 = vpack.c.b16 %v4142, %v4141
        %v4148 = vpack.c.b16 %v4144, %v4143
        %v4154 = vsel %vm4039, %v4117, 0
        %v4157 = vsel %vm4039, %v4118, 0
        %v4160 = vsel %vm4039, %v4119, 0
        %v4163 = vsel %vm4039, %v4120, 0
        %4165 = vmatprep.subr.bf16.mxu0 0
        %4166 = vmatpush1.bf16.msra.mxu0 %v4145
        %4167 = vmatprep.subr.bf16.mxu0 0
        %4168 = vmatpush1.bf16.msra.mxu0 %v4146
        %4169 = vmatprep.subr.bf16.mxu0 0
        %4170 = vmatpush1.bf16.msra.mxu0 %v4147
        %4171 = vmatprep.subr.bf16.mxu0 0
        %4172 = vmatpush1.bf16.msra.mxu0 %v4148
        %4173 = vmatprep.subr.bf16.mxu0 0
        %4174 = vmatpush1.bf16.msra.mxu0 0
        %4175 = vmatprep.subr.bf16.mxu0 0
        %4176 = vmatpush1.bf16.msra.mxu0 0
        %4177 = vmatprep.subr.bf16.mxu0 0
        %4178 = vmatpush1.bf16.msra.mxu0 0
        %4179 = vmatprep.subr.bf16.mxu0 0
        %4180 = vmatpush1.bf16.msra.mxu0 0
        %4181 = vmatprep.subr.bf16.mxu0 0
        %4182 = vmatpush1.bf16.msra.mxu0 0
        %4183 = vmatprep.subr.bf16.mxu0 0
        %4184 = vmatpush1.bf16.msra.mxu0 0
        %4185 = vmatprep.subr.bf16.mxu0 0
        %4186 = vmatpush1.bf16.msra.mxu0 0
        %4187 = vmatprep.subr.bf16.mxu0 0
        %4188 = vmatpush1.bf16.msra.mxu0 0
        %4189 = vmatprep.subr.bf16.mxu0 0
        %4190 = vmatpush1.bf16.msra.mxu0 0
        %4191 = vmatprep.subr.bf16.mxu0 0
        %4192 = vmatpush1.bf16.msra.mxu0 0
        %4193 = vmatprep.subr.bf16.mxu0 0
        %4194 = vmatpush1.bf16.msra.mxu0 0
        %4195 = vmatprep.subr.bf16.mxu0 0
        %4196 = vmatpush1.bf16.msra.mxu0 0
        %4197 = vmatprep.mubr.bf16.mxu0 0
        %4198 = vmatmul.mubr.bf16.gmra.mrb[0].mxu0 %v4154
        %v4199 = vpop.f32.mrb[0].mxu0
        %v4200 = vadd.f32 0.0, %v4199
        %v4201 = vpop.f32.mrb[0].mxu0
        %v4202 = vpop.f32.mrb[0].mxu0
        %v4203 = vadd.f32 0.0, %v4202
        %v4204 = vpop.f32.mrb[0].mxu0
        %4205 = vmatprep.mubr.bf16.mxu0 0
        %4206 = vmatmul.mubr.bf16.gmra.mrb[0].mxu0 %v4157
        %v4207 = vpop.f32.mrb[0].mxu0
        %v4208 = vadd.f32 0.0, %v4207
        %v4209 = vpop.f32.mrb[0].mxu0
        %v4210 = vpop.f32.mrb[0].mxu0
        %v4211 = vadd.f32 0.0, %v4210
        %v4212 = vpop.f32.mrb[0].mxu0
        %4213 = vmatprep.mubr.bf16.mxu0 0
        %4214 = vmatmul.mubr.bf16.gmra.mrb[0].mxu0 %v4160
        %v4215 = vpop.f32.mrb[0].mxu0
        %v4216 = vadd.f32 0.0, %v4215
        %v4217 = vpop.f32.mrb[0].mxu0
        %v4218 = vpop.f32.mrb[0].mxu0
        %v4219 = vadd.f32 0.0, %v4218
        %v4220 = vpop.f32.mrb[0].mxu0
        %4221 = vmatprep.mubr.bf16.mxu0 0
        %4222 = vmatmul.mubr.bf16.gmra.mrb[0].mxu0 %v4163
        %v4223 = vpop.f32.mrb[0].mxu0
        %v4224 = vadd.f32 0.0, %v4223
        %v4225 = vpop.f32.mrb[0].mxu0
        %v4226 = vpop.f32.mrb[0].mxu0
        %v4227 = vadd.f32 0.0, %v4226
        %v4228 = vpop.f32.mrb[0].mxu0
        %4229 = vdwg.mxu0
        %4234 = vrot.lane.b32.xlu0 %v4200, 96
        %v4235 = vpop.permute.xlu0 %4234
        %4236 = vrot.lane.b32.xlu0 %v4203, 96
        %v4237 = vpop.permute.xlu0 %4236
        %4238 = vrot.lane.b32.xlu0 %v4208, 96
        %v4239 = vpop.permute.xlu0 %4238
        %4240 = vrot.lane.b32.xlu0 %v4211, 96
        %v4241 = vpop.permute.xlu0 %4240
        %v4246 = vmax.f32 %v4200, %v4235
        %v4247 = vmax.f32 %v4203, %v4237
        %v4248 = vmax.f32 %v4208, %v4239
        %v4249 = vmax.f32 %v4211, %v4241
        %4254 = vrot.lane.b32.xlu0 %v4216, 96
        %v4255 = vpop.permute.xlu0 %4254
        %4256 = vrot.lane.b32.xlu0 %v4219, 96
        %v4257 = vpop.permute.xlu0 %4256
        %4258 = vrot.lane.b32.xlu0 %v4224, 96
        %v4259 = vpop.permute.xlu0 %4258
        %4260 = vrot.lane.b32.xlu0 %v4227, 96
        %v4261 = vpop.permute.xlu0 %4260
        %v4266 = vmax.f32 %v4216, %v4255
        %v4267 = vmax.f32 %v4219, %v4257
        %v4268 = vmax.f32 %v4224, %v4259
        %v4269 = vmax.f32 %v4227, %v4261
        %v4270 = vmax.f32 %v4246, %v4266
        %v4271 = vmax.f32 %v4247, %v4267
        %v4272 = vmax.f32 %v4248, %v4268
        %v4273 = vmax.f32 %v4249, %v4269
        %v4274 = vpack.c.bf16 %v4271, %v4270
        %v4275 = vpack.c.bf16 %v4273, %v4272
        %v4276 = vld [vmem:[#allocation9] sm:$0xf]
        %v4277 = vld [vmem:[#allocation9 + $0x4] sm:$0xf]
        %v4278 = vld [vmem:[#allocation9 + $0x8] sm:$0xf]
        %v4279 = vld [vmem:[#allocation9 + $0xc] sm:$0xf]
        %v4280 = vld [vmem:[#allocation9 + $0x10] sm:$0xf]
        %v4281 = vld [vmem:[#allocation9 + $0x14] sm:$0xf]
        %v4288 = vunpack.c.l.b16 %v4276
        %v4289 = vunpack.c.l.b16 %v4277
        %v4290 = vunpack.c.l.b16 %v4278
        %v4291 = vunpack.c.l.b16 %v4279
        %v4292 = vunpack.c.l.b16 %v4280
        %v4293 = vunpack.c.l.b16 %v4281
        %v4294 = vpack.c.b16 %v4289, %v4288
        %v4295 = vpack.c.b16 %v4291, %v4290
        %v4296 = vpack.c.b16 %v4293, %v4292
        %vm4297 = vcmask 261120
        %v4299 = vsel %vm4297, %v4294, 0
        %v4302 = vsel %vm4297, %v4295, 0
        %v4305 = vsel %vm4297, %v4296, 0
        %4307 = vmatprep.subr.bf16.mxu0 0
        %4308 = vmatpush1.bf16.msra.mxu0 %v4274
        %4309 = vmatprep.subr.bf16.mxu0 0
        %4310 = vmatpush1.bf16.msra.mxu0 %v4275
        %4311 = vmatprep.subr.bf16.mxu0 0
        %4312 = vmatpush1.bf16.msra.mxu0 0
        %4313 = vmatprep.subr.bf16.mxu0 0
        %4314 = vmatpush1.bf16.msra.mxu0 0
        %4315 = vmatprep.subr.bf16.mxu0 0
        %4316 = vmatpush1.bf16.msra.mxu0 0
        %4317 = vmatprep.subr.bf16.mxu0 0
        %4318 = vmatpush1.bf16.msra.mxu0 0
        %4319 = vmatprep.subr.bf16.mxu0 0
        %4320 = vmatpush1.bf16.msra.mxu0 0
        %4321 = vmatprep.subr.bf16.mxu0 0
        %4322 = vmatpush1.bf16.msra.mxu0 0
        %4323 = vmatprep.subr.bf16.mxu0 0
        %4324 = vmatpush1.bf16.msra.mxu0 0
        %4325 = vmatprep.subr.bf16.mxu0 0
        %4326 = vmatpush1.bf16.msra.mxu0 0
        %4327 = vmatprep.subr.bf16.mxu0 0
        %4328 = vmatpush1.bf16.msra.mxu0 0
        %4329 = vmatprep.subr.bf16.mxu0 0
        %4330 = vmatpush1.bf16.msra.mxu0 0
        %4331 = vmatprep.subr.bf16.mxu0 0
        %4332 = vmatpush1.bf16.msra.mxu0 0
        %4333 = vmatprep.subr.bf16.mxu0 0
        %4334 = vmatpush1.bf16.msra.mxu0 0
        %4335 = vmatprep.subr.bf16.mxu0 0
        %4336 = vmatpush1.bf16.msra.mxu0 0
        %4337 = vmatprep.subr.bf16.mxu0 0
        %4338 = vmatpush1.bf16.msra.mxu0 0
        %4339 = vmatprep.mubr.bf16.mxu0 0
        %4340 = vmatmul.mubr.bf16.gmra.mrb[0].mxu0 %v4299
        %v4341 = vpop.f32.mrb[0].mxu0
        %v4342 = vadd.f32 0.0, %v4341
        %v4343 = vpop.f32.mrb[0].mxu0
        %v4344 = vpop.f32.mrb[0].mxu0
        %v4345 = vadd.f32 0.0, %v4344
        %v4346 = vpop.f32.mrb[0].mxu0
        %4347 = vmatprep.mubr.bf16.mxu0 0
        %4348 = vmatmul.mubr.bf16.gmra.mrb[0].mxu0 %v4302
        %v4349 = vpop.f32.mrb[0].mxu0
        %v4350 = vadd.f32 0.0, %v4349
        %v4351 = vpop.f32.mrb[0].mxu0
        %v4352 = vpop.f32.mrb[0].mxu0
        %v4353 = vadd.f32 0.0, %v4352
        %v4354 = vpop.f32.mrb[0].mxu0
        %4355 = vmatprep.mubr.bf16.mxu0 0
        %4356 = vmatmul.mubr.bf16.gmra.mrb[0].mxu0 %v4305
        %v4357 = vpop.f32.mrb[0].mxu0
        %v4358 = vadd.f32 0.0, %v4357
        %v4359 = vpop.f32.mrb[0].mxu0
        %v4360 = vpop.f32.mrb[0].mxu0
        %v4361 = vadd.f32 0.0, %v4360
        %v4362 = vpop.f32.mrb[0].mxu0
        %4363 = vdwg.mxu0
        %v4364 = vpack.c.bf16 %v4345, %v4342
        %v4365 = vpack.c.bf16 %v4353, %v4350
        %v4366 = vpack.c.bf16 %v4361, %v4358
        %v4367 = vld [vmem:[#allocation10] sm:$0xf]
        %v4368 = vld [vmem:[#allocation10 + $0x4] sm:$0xf]
        %v4369 = vld [vmem:[#allocation10 + $0x8] sm:$0xf]
        %v4370 = vld [vmem:[#allocation10 + $0xc] sm:$0xf]
        %s4371 = scalar_lea.vmem [#allocation10], 16
        %v4372 = vld [vmem:[%s4371] sm:$0xf]
        %v4373 = vld [vmem:[%s4371 + $0x4] sm:$0xf]
        %v4374 = vld [vmem:[%s4371 + $0x8] sm:$0xf]
        %v4375 = vld [vmem:[%s4371 + $0xc] sm:$0xf]
        %v4380 = vunpack.c.l.b16 %v4372
        %v4381 = vunpack.c.l.b16 %v4373
        %v4382 = vunpack.c.l.b16 %v4374
        %v4383 = vunpack.c.l.b16 %v4375
        %v4384 = vpack.c.b16 %v4381, %v4380
        %v4385 = vpack.c.b16 %v4383, %v4382
        %v4389 = vsel %vm4297, %v4365, 0
        %4391 = vmatprep.subr.bf16.mxu0 0
        %4392 = vmatpush1.bf16.msra.mxu0 %v4384
        %4393 = vmatprep.subr.bf16.mxu0 0
        %4394 = vmatpush1.bf16.msra.mxu0 %v4385
        %4395 = vmatprep.subr.bf16.mxu0 0
        %4396 = vmatpush1.bf16.msra.mxu0 0
        %4397 = vmatprep.subr.bf16.mxu0 0
        %4398 = vmatpush1.bf16.msra.mxu0 0
        %4399 = vmatprep.subr.bf16.mxu0 0
        %4400 = vmatpush1.bf16.msra.mxu0 0
        %4401 = vmatprep.subr.bf16.mxu0 0
        %4402 = vmatpush1.bf16.msra.mxu0 0
        %4403 = vmatprep.subr.bf16.mxu0 0
        %4404 = vmatpush1.bf16.msra.mxu0 0
        %4405 = vmatprep.subr.bf16.mxu0 0
        %4406 = vmatpush1.bf16.msra.mxu0 0
        %4407 = vmatprep.subr.bf16.mxu0 0
        %4408 = vmatpush1.bf16.msra.mxu0 0
        %4409 = vmatprep.subr.bf16.mxu0 0
        %4410 = vmatpush1.bf16.msra.mxu0 0
        %4411 = vmatprep.subr.bf16.mxu0 0
        %4412 = vmatpush1.bf16.msra.mxu0 0
        %4413 = vmatprep.subr.bf16.mxu0 0
        %4414 = vmatpush1.bf16.msra.mxu0 0
        %4415 = vmatprep.subr.bf16.mxu0 0
        %4416 = vmatpush1.bf16.msra.mxu0 0
        %4417 = vmatprep.subr.bf16.mxu0 0
        %4418 = vmatpush1.bf16.msra.mxu0 0
        %4419 = vmatprep.subr.bf16.mxu0 0
        %4420 = vmatpush1.bf16.msra.mxu0 0
        %4421 = vmatprep.subr.bf16.mxu0 0
        %4422 = vmatpush1.bf16.msra.mxu0 0
        %4423 = vmatprep.mubr.bf16.mxu0 0
        %4424 = vmatmul.mubr.bf16.gmra.mrb[0].mxu0 %v4389
        %v4425 = vpop.f32.mrb[0].mxu0
        %v4426 = vadd.f32 0.0, %v4425
        %v4427 = vpop.f32.mrb[0].mxu0
        %v4428 = vpop.f32.mrb[0].mxu0
        %v4429 = vadd.f32 0.0, %v4428
        %v4430 = vpop.f32.mrb[0].mxu0
        %4431 = vdwg.mxu0
        %v4436 = vunpack.c.l.b16 %v4367
        %v4437 = vunpack.c.l.b16 %v4368
        %v4438 = vunpack.c.l.b16 %v4369
        %v4439 = vunpack.c.l.b16 %v4370
        %v4440 = vpack.c.b16 %v4437, %v4436
        %v4441 = vpack.c.b16 %v4439, %v4438
        %v4445 = vsel %vm4297, %v4364, 0
        %4447 = vmatprep.subr.bf16.mxu0 0
        %4448 = vmatpush1.bf16.msra.mxu0 %v4440
        %4449 = vmatprep.subr.bf16.mxu0 0
        %4450 = vmatpush1.bf16.msra.mxu0 %v4441
        %4451 = vmatprep.subr.bf16.mxu0 0
        %4452 = vmatpush1.bf16.msra.mxu0 0
        %4453 = vmatprep.subr.bf16.mxu0 0
        %4454 = vmatpush1.bf16.msra.mxu0 0
        %4455 = vmatprep.subr.bf16.mxu0 0
        %4456 = vmatpush1.bf16.msra.mxu0 0
        %4457 = vmatprep.subr.bf16.mxu0 0
        %4458 = vmatpush1.bf16.msra.mxu0 0
        %4459 = vmatprep.subr.bf16.mxu0 0
        %4460 = vmatpush1.bf16.msra.mxu0 0
        %4461 = vmatprep.subr.bf16.mxu0 0
        %4462 = vmatpush1.bf16.msra.mxu0 0
        %4463 = vmatprep.subr.bf16.mxu0 0
        %4464 = vmatpush1.bf16.msra.mxu0 0
        %4465 = vmatprep.subr.bf16.mxu0 0
        %4466 = vmatpush1.bf16.msra.mxu0 0
        %4467 = vmatprep.subr.bf16.mxu0 0
        %4468 = vmatpush1.bf16.msra.mxu0 0
        %4469 = vmatprep.subr.bf16.mxu0 0
        %4470 = vmatpush1.bf16.msra.mxu0 0
        %4471 = vmatprep.subr.bf16.mxu0 0
        %4472 = vmatpush1.bf16.msra.mxu0 0
        %4473 = vmatprep.subr.bf16.mxu0 0
        %4474 = vmatpush1.bf16.msra.mxu0 0
        %4475 = vmatprep.subr.bf16.mxu0 0
        %4476 = vmatpush1.bf16.msra.mxu0 0
        %4477 = vmatprep.subr.bf16.mxu0 0
        %4478 = vmatpush1.bf16.msra.mxu0 0
        %4479 = vmatprep.mubr.bf16.mxu0 0
        %4480 = vmatmul.mubr.bf16.gmra.mrb[0].mxu0 %v4445
        %v4481 = vpop.f32.mrb[0].mxu0
        %v4482 = vadd.f32 %v4426, %v4481
        %v4483 = vpop.f32.mrb[0].mxu0
        %v4484 = vpop.f32.mrb[0].mxu0
        %v4485 = vadd.f32 %v4429, %v4484
        %v4486 = vpop.f32.mrb[0].mxu0
        %4487 = vdwg.mxu0
        %s4488 = scalar_lea.vmem [#allocation10], 32
        %v4489 = vld [vmem:[%s4488] sm:$0xf]
        %v4490 = vld [vmem:[%s4488 + $0x4] sm:$0xf]
        %v4491 = vld [vmem:[%s4488 + $0x8] sm:$0xf]
        %v4492 = vld [vmem:[%s4488 + $0xc] sm:$0xf]
        %v4497 = vunpack.c.l.b16 %v4489
        %v4498 = vunpack.c.l.b16 %v4490
        %v4499 = vunpack.c.l.b16 %v4491
        %v4500 = vunpack.c.l.b16 %v4492
        %v4501 = vpack.c.b16 %v4498, %v4497
        %v4502 = vpack.c.b16 %v4500, %v4499
        %v4506 = vsel %vm4297, %v4366, 0
        %4508 = vmatprep.subr.bf16.mxu0 0
        %4509 = vmatpush1.bf16.msra.mxu0 %v4501
        %4510 = vmatprep.subr.bf16.mxu0 0
        %4511 = vmatpush1.bf16.msra.mxu0 %v4502
        %4512 = vmatprep.subr.bf16.mxu0 0
        %4513 = vmatpush1.bf16.msra.mxu0 0
        %4514 = vmatprep.subr.bf16.mxu0 0
        %4515 = vmatpush1.bf16.msra.mxu0 0
        %4516 = vmatprep.subr.bf16.mxu0 0
        %4517 = vmatpush1.bf16.msra.mxu0 0
        %4518 = vmatprep.subr.bf16.mxu0 0
        %4519 = vmatpush1.bf16.msra.mxu0 0
        %4520 = vmatprep.subr.bf16.mxu0 0
        %4521 = vmatpush1.bf16.msra.mxu0 0
        %4522 = vmatprep.subr.bf16.mxu0 0
        %4523 = vmatpush1.bf16.msra.mxu0 0
        %4524 = vmatprep.subr.bf16.mxu0 0
        %4525 = vmatpush1.bf16.msra.mxu0 0
        %4526 = vmatprep.subr.bf16.mxu0 0
        %4527 = vmatpush1.bf16.msra.mxu0 0
        %4528 = vmatprep.subr.bf16.mxu0 0
        %4529 = vmatpush1.bf16.msra.mxu0 0
        %4530 = vmatprep.subr.bf16.mxu0 0
        %4531 = vmatpush1.bf16.msra.mxu0 0
        %4532 = vmatprep.subr.bf16.mxu0 0
        %4533 = vmatpush1.bf16.msra.mxu0 0
        %4534 = vmatprep.subr.bf16.mxu0 0
        %4535 = vmatpush1.bf16.msra.mxu0 0
        %4536 = vmatprep.subr.bf16.mxu0 0
        %4537 = vmatpush1.bf16.msra.mxu0 0
        %4538 = vmatprep.subr.bf16.mxu0 0
        %4539 = vmatpush1.bf16.msra.mxu0 0
        %4540 = vmatprep.mubr.bf16.mxu0 0
        %4541 = vmatmul.mubr.bf16.gmra.mrb[0].mxu0 %v4506
        %v4542 = vpop.f32.mrb[0].mxu0
        %v4543 = vadd.f32 0.0, %v4542
        %v4544 = vpop.f32.mrb[0].mxu0
        %v4545 = vpop.f32.mrb[0].mxu0
        %v4546 = vadd.f32 0.0, %v4545
        %v4547 = vpop.f32.mrb[0].mxu0
        %4548 = vdwg.mxu0
        %v4549 = vadd.f32 %v4482, %v4543
        %v4550 = vadd.f32 %v4485, %v4546
        %v4551 = vmax.f32 %v4549, 0.0
        %v4552 = vmax.f32 %v4550, 0.0
        %v4553 = vld [vmem:[#allocation12] sm:$0xf]
        %vm4554 = vcmask 130048
        %v4556 = vsel %vm4554, %v4553, 0
        %4558 = vmatprep.subr.mxu0 0.0
        %4559 = vmatpush1.msra.mxu0 %v4551
        %4560 = vmatprep.subr.mxu0 0.0
        %4561 = vmatpush1.msra.mxu0 %v4552
        %4562 = vmatprep.subr.mxu0 0.0
        %4563 = vmatpush1.msra.mxu0 0.0
        %4564 = vmatprep.subr.mxu0 0.0
        %4565 = vmatpush1.msra.mxu0 0.0
        %4566 = vmatprep.subr.mxu0 0.0
        %4567 = vmatpush1.msra.mxu0 0.0
        %4568 = vmatprep.subr.mxu0 0.0
        %4569 = vmatpush1.msra.mxu0 0.0
        %4570 = vmatprep.subr.mxu0 0.0
        %4571 = vmatpush1.msra.mxu0 0.0
        %4572 = vmatprep.subr.mxu0 0.0
        %4573 = vmatpush1.msra.mxu0 0.0
        %4574 = vmatprep.subr.mxu0 0.0
        %4575 = vmatpush1.msra.mxu0 0.0
        %4576 = vmatprep.subr.mxu0 0.0
        %4577 = vmatpush1.msra.mxu0 0.0
        %4578 = vmatprep.subr.mxu0 0.0
        %4579 = vmatpush1.msra.mxu0 0.0
        %4580 = vmatprep.subr.mxu0 0.0
        %4581 = vmatpush1.msra.mxu0 0.0
        %4582 = vmatprep.subr.mxu0 0.0
        %4583 = vmatpush1.msra.mxu0 0.0
        %4584 = vmatprep.subr.mxu0 0.0
        %4585 = vmatpush1.msra.mxu0 0.0
        %4586 = vmatprep.subr.mxu0 0.0
        %4587 = vmatpush1.msra.mxu0 0.0
        %4588 = vmatprep.subr.mxu0 0.0
        %4589 = vmatpush1.msra.mxu0 0.0
        %4590 = vmatprep.subr.mxu0 0.0
        %4591 = vmatpush1.msra.mxu0 0.0
        %4592 = vmatprep.subr.mxu0 0.0
        %4593 = vmatpush1.msra.mxu0 0.0
        %4594 = vmatprep.subr.mxu0 0.0
        %4595 = vmatpush1.msra.mxu0 0.0
        %4596 = vmatprep.subr.mxu0 0.0
        %4597 = vmatpush1.msra.mxu0 0.0
        %4598 = vmatprep.subr.mxu0 0.0
        %4599 = vmatpush1.msra.mxu0 0.0
        %4600 = vmatprep.subr.mxu0 0.0
        %4601 = vmatpush1.msra.mxu0 0.0
        %4602 = vmatprep.subr.mxu0 0.0
        %4603 = vmatpush1.msra.mxu0 0.0
        %4604 = vmatprep.subr.mxu0 0.0
        %4605 = vmatpush1.msra.mxu0 0.0
        %4606 = vmatprep.subr.mxu0 0.0
        %4607 = vmatpush1.msra.mxu0 0.0
        %4608 = vmatprep.subr.mxu0 0.0
        %4609 = vmatpush1.msra.mxu0 0.0
        %4610 = vmatprep.subr.mxu0 0.0
        %4611 = vmatpush1.msra.mxu0 0.0
        %4612 = vmatprep.subr.mxu0 0.0
        %4613 = vmatpush1.msra.mxu0 0.0
        %4614 = vmatprep.subr.mxu0 0.0
        %4615 = vmatpush1.msra.mxu0 0.0
        %4616 = vmatprep.subr.mxu0 0.0
        %4617 = vmatpush1.msra.mxu0 0.0
        %4618 = vmatprep.subr.mxu0 0.0
        %4619 = vmatpush1.msra.mxu0 0.0
        %4620 = vmatprep.subr.mxu0 0.0
        %4621 = vmatpush1.msra.mxu0 0.0
        %4622 = vmatprep.mubr.f32.mxu0 0.0
        %4623 = vmatmul.mubr.f32.gmra.mrb[0].mxu0 %v4556
        %v4624 = vpop.f32.mrb[0].mxu0
        %v4625 = vadd.f32 0.0, %v4624
        %v4626 = vpop.f32.mrb[0].mxu0
        %4627 = vdwg.mxu0
        %v4628 = vld [vmem:[#allocation13] sm:$0xff]
        %v4629 = vld [vmem:[#allocation13 + $0x8] sm:$0xff]
        %v4631 = vsel %vm4554, %v4625, 0
        %4633 = vmatprep.subr.mxu0 0.0
        %4634 = vmatpush1.msra.mxu0 %v4628
        %4635 = vmatprep.subr.mxu0 0.0
        %4636 = vmatpush1.msra.mxu0 %v4629
        %4637 = vmatprep.subr.mxu0 0.0
        %4638 = vmatpush1.msra.mxu0 0.0
        %4639 = vmatprep.subr.mxu0 0.0
        %4640 = vmatpush1.msra.mxu0 0.0
        %4641 = vmatprep.subr.mxu0 0.0
        %4642 = vmatpush1.msra.mxu0 0.0
        %4643 = vmatprep.subr.mxu0 0.0
        %4644 = vmatpush1.msra.mxu0 0.0
        %4645 = vmatprep.subr.mxu0 0.0
        %4646 = vmatpush1.msra.mxu0 0.0
        %4647 = vmatprep.subr.mxu0 0.0
        %4648 = vmatpush1.msra.mxu0 0.0
        %4649 = vmatprep.subr.mxu0 0.0
        %4650 = vmatpush1.msra.mxu0 0.0
        %4651 = vmatprep.subr.mxu0 0.0
        %4652 = vmatpush1.msra.mxu0 0.0
        %4653 = vmatprep.subr.mxu0 0.0
        %4654 = vmatpush1.msra.mxu0 0.0
        %4655 = vmatprep.subr.mxu0 0.0
        %4656 = vmatpush1.msra.mxu0 0.0
        %4657 = vmatprep.subr.mxu0 0.0
        %4658 = vmatpush1.msra.mxu0 0.0
        %4659 = vmatprep.subr.mxu0 0.0
        %4660 = vmatpush1.msra.mxu0 0.0
        %4661 = vmatprep.subr.mxu0 0.0
        %4662 = vmatpush1.msra.mxu0 0.0
        %4663 = vmatprep.subr.mxu0 0.0
        %4664 = vmatpush1.msra.mxu0 0.0
        %4665 = vmatprep.subr.mxu0 0.0
        %4666 = vmatpush1.msra.mxu0 0.0
        %4667 = vmatprep.subr.mxu0 0.0
        %4668 = vmatpush1.msra.mxu0 0.0
        %4669 = vmatprep.subr.mxu0 0.0
        %4670 = vmatpush1.msra.mxu0 0.0
        %4671 = vmatprep.subr.mxu0 0.0
        %4672 = vmatpush1.msra.mxu0 0.0
        %4673 = vmatprep.subr.mxu0 0.0
        %4674 = vmatpush1.msra.mxu0 0.0
        %4675 = vmatprep.subr.mxu0 0.0
        %4676 = vmatpush1.msra.mxu0 0.0
        %4677 = vmatprep.subr.mxu0 0.0
        %4678 = vmatpush1.msra.mxu0 0.0
        %4679 = vmatprep.subr.mxu0 0.0
        %4680 = vmatpush1.msra.mxu0 0.0
        %4681 = vmatprep.subr.mxu0 0.0
        %4682 = vmatpush1.msra.mxu0 0.0
        %4683 = vmatprep.subr.mxu0 0.0
        %4684 = vmatpush1.msra.mxu0 0.0
        %4685 = vmatprep.subr.mxu0 0.0
        %4686 = vmatpush1.msra.mxu0 0.0
        %4687 = vmatprep.subr.mxu0 0.0
        %4688 = vmatpush1.msra.mxu0 0.0
        %4689 = vmatprep.subr.mxu0 0.0
        %4690 = vmatpush1.msra.mxu0 0.0
        %4691 = vmatprep.subr.mxu0 0.0
        %4692 = vmatpush1.msra.mxu0 0.0
        %4693 = vmatprep.subr.mxu0 0.0
        %4694 = vmatpush1.msra.mxu0 0.0
        %4695 = vmatprep.subr.mxu0 0.0
        %4696 = vmatpush1.msra.mxu0 0.0
        %4697 = vmatprep.mubr.f32.mxu0 0.0
        %4698 = vmatmul.mubr.f32.gmra.mrb[0].mxu0 %v4631
        %v4699 = vpop.f32.mrb[0].mxu0
        %v4700 = vadd.f32 0.0, %v4699
        %v4701 = vpop.f32.mrb[0].mxu0
        %4702 = vdwg.mxu0
        %v4703 = vmul.f32 %v4700, 0.020408163
        %vm4704 = vcmask 27648
        %4705 = vst.msk [vmem:[%s450] sm:$0xf] %vm4704, %v4703
        %p4706 = scmp.lt.s32.totalorder %s27, 1
        %s4707 = scalar_select %p4706, %s27, 1
        %s4708 = smul.addr %s4707, 4
        %s4709 = scalar_lea.vmem %s9, %s4708
        // Predicated region
        $region89: #{calib_per_sample_t_forward.2} parent=55 // pred_check
          %p4710 = pneg %p239
        $region90: #{calib_per_sample_t_forward.2} parent=55 // pred_check_branch
          %4712 = sbr.rel (%p4710) target = $region92
        $region91: #{calib_per_sample_t_forward.2} parent=55 // pred_region
          _
        $region92: #{calib_per_sample_t_forward.2} parent=55 // pred_fallthru
          _
      $region56: #{calib_per_sample_t_forward.2} parent=5 // pred_fallthru
        _
      %p4713 = scmp.le.s32.totalorder 2, %s22
      // Predicated region
      $region93: #{calib_per_sample_t_forward.2} parent=5 // pred_check
        %p4714 = pneg %p4713
      $region94: #{calib_per_sample_t_forward.2} parent=5 // pred_check_branch
        %4716 = sbr.rel (%p4714) target = $region96
      $region95: #{calib_per_sample_t_forward.2} parent=5 // pred_region
        %s4717 = ssub.s32 %s22, 2
        // Predicated region
        $region97: #{calib_per_sample_t_forward.2} parent=95 // pred_check
          %p4718 = pneg %p245
        $region98: #{calib_per_sample_t_forward.2} parent=95 // pred_check_branch
          %4720 = sbr.rel (%p4718) target = $region100
        $region99: #{calib_per_sample_t_forward.2} parent=95 // pred_region
          %p4721 = scmp.lt.s32.totalorder %s28, 1
          %s4722 = scalar_select %p4721, %s28, 1
          %s4723 = smul.addr %s4722, 4
          %s4724 = scalar_lea.vmem %s9, %s4723
        $region100: #{calib_per_sample_t_forward.2} parent=95 // pred_fallthru
          _
      $region96: #{calib_per_sample_t_forward.2} parent=5 // pred_fallthru
        _
    $region6: #{calib_per_sample_t_forward.2} parent=1 // loop_footer
      %s26 = sadd.s32 1, %s22
    $region7: #{calib_per_sample_t_forward.2} parent=1 // loop_footer_branch
      %21 = sbr.rel target = $region3
    $region8: #{calib_per_sample_t_forward.2} parent=1 // loop_exit
      _
    %4725 = vsyncpa [#allocation3], 1
    %s4726 = scalar_lea.sflag [#allocation3], 1
    %4727 = vsyncpa %s4726, 1
    %4728 = vsyncpa [#allocation5], 1
    %4729 = vsyncpa [#allocation8], 1
    %4730 = vsyncpa [#allocation11], 1
    %4731 = vsyncpa [#allocation14], 1

</llo_original>
